<compile_context>
chip_gen: v5e
topology: v5e:2x2
jax: 0.10.0
libtpu: 0.0.40
codegen_flags: <defaults>
</compile_context>

<pallas_src>
import math

import jax
import jax.numpy as jnp
from jax import lax
from jax.experimental import pallas as pl
from jax.experimental.pallas import tpu as pltpu

# ----------------------------- configuration -------------------------------
VOCAB = 64
D_MODEL = 32
NHEAD = 4
D_HEAD = D_MODEL // NHEAD
NUM_ENC_LAYERS = 2
NUM_DEC_LAYERS = 2
DIM_FF = 64
MAX_SEQ_LEN = 16
BATCH = 2
SEQ = 8

LN_EPS = 1e-5
NEG = -1e30  # finite stand-in for -inf: keeps softmax NaN-free

# Padded slab tile sizes (every weight matrix fits in one (64, 128) block).
W_ROWS, W_COLS = 64, 128
V_COLS = 128


# ------------------------ static parameter registry -------------------------
def _param_layout():
    """Name -> slab-slot registries (pure-Python, static at trace time)."""
    widx, wshape, vidx, vshape = {}, {}, {}, {}

    def w(name, r, c):
        widx[name] = len(widx)
        wshape[name] = (r, c)

    def v(name, c):
        vidx[name] = len(vidx)
        vshape[name] = c

    w("emb", VOCAB, D_MODEL)          # embedding table (pre-scaled by sqrt(d))
    w("emb_t", D_MODEL, W_COLS)       # emb.T zero-padded to 128 lanes (logits)

    for l in range(NUM_ENC_LAYERS):
        p = f"enc{l}"
        w(f"{p}_wqkv", D_MODEL, 3 * D_MODEL); v(f"{p}_bqkv", 3 * D_MODEL)
        w(f"{p}_wo", D_MODEL, D_MODEL);       v(f"{p}_bo", D_MODEL)
        v(f"{p}_ln1_g", D_MODEL); v(f"{p}_ln1_b", D_MODEL)
        w(f"{p}_w1", D_MODEL, DIM_FF);        v(f"{p}_b1", DIM_FF)
        w(f"{p}_w2", DIM_FF, D_MODEL);        v(f"{p}_b2", D_MODEL)
        v(f"{p}_ln2_g", D_MODEL); v(f"{p}_ln2_b", D_MODEL)

    for l in range(NUM_DEC_LAYERS):
        p = f"dec{l}"
        w(f"{p}_wqkv1", D_MODEL, 3 * D_MODEL); v(f"{p}_bqkv1", 3 * D_MODEL)
        w(f"{p}_wo1", D_MODEL, D_MODEL);       v(f"{p}_bo1", D_MODEL)
        v(f"{p}_ln1_g", D_MODEL); v(f"{p}_ln1_b", D_MODEL)
        w(f"{p}_wqkv2", D_MODEL, 3 * D_MODEL); v(f"{p}_bqkv2", 3 * D_MODEL)
        w(f"{p}_wo2", D_MODEL, D_MODEL);       v(f"{p}_bo2", D_MODEL)
        v(f"{p}_ln2_g", D_MODEL); v(f"{p}_ln2_b", D_MODEL)
        w(f"{p}_w1", D_MODEL, DIM_FF);         v(f"{p}_b1", DIM_FF)
        w(f"{p}_w2", DIM_FF, D_MODEL);         v(f"{p}_b2", D_MODEL)
        v(f"{p}_ln3_g", D_MODEL); v(f"{p}_ln3_b", D_MODEL)

    return widx, wshape, vidx, vshape


_WIDX, _WSHAPE, _VIDX, _VSHAPE = _param_layout()
_NW = len(_WIDX)   # 22 weight matrices
_NV = len(_VIDX)   # 40 bias / layer-norm vectors


# ------------------------------ fused kernel --------------------------------
def _transformer_kernel(ids_ref, mask_ref, pe_ref, w_ref, vec_ref, o_ref):
    B, S, H, dk, D = BATCH, SEQ, NHEAD, D_HEAD, D_MODEL
    M = B * S

    # ---- parameter getters (all indices static) ----------------------------
    def W(name):
        r, c = _WSHAPE[name]
        return w_ref[_WIDX[name]][:r, :c]

    vall = vec_ref[...]                                  # (NV, 128), ~20 KB

    def P(name):
        i = _VIDX[name]
        return vall[i:i + 1, :_VSHAPE[name]]             # (1, c)

    def layer_norm(z, gname, bname):
        mu = jnp.mean(z, axis=-1, keepdims=True)
        var = jnp.mean(jnp.square(z - mu), axis=-1, keepdims=True)  # biased
        return (z - mu) * lax.rsqrt(var + LN_EPS) * P(gname) + P(bname)

    def ffn(x, lp):
        h = jnp.dot(x, W(f"{lp}_w1"), preferred_element_type=jnp.float32)
        h = jnp.maximum(h + P(f"{lp}_b1"), 0.0)
        return jnp.dot(h, W(f"{lp}_w2"),
                       preferred_element_type=jnp.float32) + P(f"{lp}_b2")

    # ---- masks -> biases, built once per forward ---------------------------
    masks = mask_ref[...]                                # (2B, S), 1=keep 0=pad
    src_m, tgt_m = masks[:B], masks[B:]                  # (B, S) each
    src_kb = NEG * (1.0 - src_m)                         # additive key bias
    tgt_kb = NEG * (1.0 - tgt_m)

    # causal additive bias, hoisted out of all layer/head loops
    row = lax.broadcasted_iota(jnp.int32, (S, S), 0)
    col = lax.broadcasted_iota(jnp.int32, (S, S), 1)
    causal_bias = jnp.where(col > row, NEG, 0.0)         # (S, S)

    # ---- multi-head attention (batched over B, static head loop) -----------
    def mha(xq, xkv, q_m, k_bias, wname, bname, oname, boname,
            self_attn, causal):
        wqkv = W(wname)                                  # (D, 3D); Q pre-scaled
        bqkv = P(bname)                                  # (1, 3D)
        if self_attn:
            qkv = jnp.dot(xq, wqkv, preferred_element_type=jnp.float32) + bqkv
            q, k, v = qkv[:, :D], qkv[:, D:2 * D], qkv[:, 2 * D:]
        else:                                            # cross-attn: K,V from memory
            q = jnp.dot(xq, wqkv[:, :D],
                        preferred_element_type=jnp.float32) + bqkv[:, :D]
            kv = jnp.dot(xkv, wqkv[:, D:],
                         preferred_element_type=jnp.float32) + bqkv[:, D:]
            k, v = kv[:, :D], kv[:, D:]

        q3 = q.reshape(B, S, D)
        k3 = k.reshape(B, S, D)
        v3 = v.reshape(B, S, D)

        bias = k_bias[:, None, :]                        # (B, 1, S)
        if causal:
            bias = bias + causal_bias[None, :, :]        # (B, S, S)

        heads = []
        for h in range(H):
            sl = slice(h * dk, (h + 1) * dk)
            s = jnp.einsum("bqd,bkd->bqk", q3[:, :, sl], k3[:, :, sl],
                           preferred_element_type=jnp.float32)   # (B, S, S)
            s = s + bias
            mmax = jnp.max(s, axis=-1, keepdims=True)
            e = jnp.exp(s - mmax)
            a = e / jnp.sum(e, axis=-1, keepdims=True)           # exact softmax
            heads.append(jnp.einsum("bqk,bkd->bqd", a, v3[:, :, sl],
                                    preferred_element_type=jnp.float32))
        ctx = jnp.concatenate(heads, axis=-1)            # (B, S, D)
        ctx = (ctx * q_m[:, :, None]).reshape(M, D)      # zero padded queries
        return jnp.dot(ctx, W(oname),
                       preferred_element_type=jnp.float32) + P(boname)

    # ---- stacked src+tgt embedding lookup (one one-hot matmul) -------------
    ids = ids_ref[...]                                   # (2M, 1) int32
    vocab_iota = lax.broadcasted_iota(jnp.int32, (2 * M, VOCAB), 1)
    onehot = (ids == vocab_iota).astype(jnp.float32)     # (2M, V)
    emb = jnp.dot(onehot, W("emb"),
                  preferred_element_type=jnp.float32) + pe_ref[...]
    src, tgt = emb[:M], emb[M:]
    # dropout == identity (eval-mode semantics)

    # ------------------------------ encoder ---------------------------------
    x = src
    for l in range(NUM_ENC_LAYERS):
        p = f"enc{l}"
        attn = mha(x, x, src_m, src_kb, f"{p}_wqkv", f"{p}_bqkv",
                   f"{p}_wo", f"{p}_bo", self_attn=True, causal=False)
        x = layer_norm(x + attn, f"{p}_ln1_g", f"{p}_ln1_b")
        x = layer_norm(x + ffn(x, p), f"{p}_ln2_g", f"{p}_ln2_b")
    memory = x

    # ------------------------------ decoder ---------------------------------
    y = tgt
    for l in range(NUM_DEC_LAYERS):
        p = f"dec{l}"
        a1 = mha(y, y, tgt_m, tgt_kb, f"{p}_wqkv1", f"{p}_bqkv1",
                 f"{p}_wo1", f"{p}_bo1", self_attn=True, causal=True)
        y = layer_norm(y + a1, f"{p}_ln1_g", f"{p}_ln1_b")
        a2 = mha(y, memory, tgt_m, src_kb, f"{p}_wqkv2", f"{p}_bqkv2",
                 f"{p}_wo2", f"{p}_bo2", self_attn=False, causal=False)
        y = layer_norm(y + a2, f"{p}_ln2_g", f"{p}_ln2_b")
        y = layer_norm(y + ffn(y, p), f"{p}_ln3_g", f"{p}_ln3_b")

    # ---- InverseEmbedding: lane-dense (M, 128) store, cols >= VOCAB are 0 --
    o_ref[...] = jnp.dot(y, W("emb_t"),
                         preferred_element_type=jnp.float32).astype(o_ref.dtype)


# ------------------------------ forward wrapper ------------------------------
def transformer_forward(arrays, src_ids, src_mask, tgt_ids, tgt_mask):
    B, S = src_ids.shape
    assert (B, S) == (BATCH, SEQ)
    M = B * S
    f32 = jnp.float32

    ids = jnp.concatenate(
        [src_ids.reshape(-1), tgt_ids.reshape(-1)]).astype(jnp.int32)
    ids = ids.reshape(2 * M, 1)
    masks = jnp.concatenate([src_mask, tgt_mask], axis=0).astype(f32)  # (2B, S)
    pe = jnp.tile(arrays["pos_enc"][:S], (2 * B, 1))                   # (2M, D)

    vmem = pltpu.MemorySpace.VMEM
    logits_pad = pl.pallas_call(
        _transformer_kernel,
        out_shape=jax.ShapeDtypeStruct((M, 128), f32),
        in_specs=[pl.BlockSpec(memory_space=vmem)] * 5,
        out_specs=pl.BlockSpec(memory_space=vmem),
        cost_estimate=pl.CostEstimate(
            flops=2_000_000, transcendentals=3_200, bytes_accessed=760_000),
    )(ids, masks, pe, arrays["wslab"], arrays["vslab"])

    return logits_pad[:, :VOCAB].reshape(B, S, VOCAB)


# ----------------------------- parameter init -------------------------------
def make_pos_encoding(d_model, max_seq_len):
    pos = jnp.arange(max_seq_len, dtype=jnp.float32)[:, None]
    idx = jnp.arange(0, d_model, 2, dtype=jnp.float32)[None, :]
    wavlen = 10000.0 ** (idx / d_model)
    pe = jnp.zeros((max_seq_len, d_model), jnp.float32)
    pe = pe.at[:, 0::2].set(jnp.sin(pos / wavlen))
    pe = pe.at[:, 1::2].set(jnp.cos(pos / wavlen))
    return pe


def init_params(key):
    sqrt_d = math.sqrt(D_MODEL)
    keys = jax.random.split(key, 1 + NUM_ENC_LAYERS + NUM_DEC_LAYERS)
    emb = jax.random.normal(keys[0], (VOCAB, D_MODEL), jnp.float32)

    wslab = jnp.zeros((_NW, W_ROWS, W_COLS), jnp.float32)
    vslab = jnp.zeros((_NV, V_COLS), jnp.float32)

    def setw(name, mat):
        nonlocal wslab
        r, c = mat.shape
        wslab = wslab.at[_WIDX[name], :r, :c].set(mat)

    def setv(name, vec):
        nonlocal vslab
        vec = jnp.asarray(vec).reshape(-1)
        vslab = vslab.at[_VIDX[name], :vec.shape[0]].set(vec)

    def init_linear(k, din, dout):
        k1, k2 = jax.random.split(k)
        w = jax.random.normal(k1, (din, dout), jnp.float32) / math.sqrt(din)
        b = 0.01 * jax.random.normal(k2, (1, dout), jnp.float32)
        return w, b

    def init_mha(k, prefix, suffix):
        ks = jax.random.split(k, 4)
        wq, bq = init_linear(ks[0], D_MODEL, D_MODEL)
        wk, bk = init_linear(ks[1], D_MODEL, D_MODEL)
        wv, bv = init_linear(ks[2], D_MODEL, D_MODEL)
        wo, bo = init_linear(ks[3], D_MODEL, D_MODEL)
        scale = 1.0 / math.sqrt(D_HEAD)   # fold 1/sqrt(d_k) into Q projection
        setw(f"{prefix}_wqkv{suffix}",
             jnp.concatenate([wq * scale, wk, wv], axis=1))
        setv(f"{prefix}_bqkv{suffix}",
             jnp.concatenate([bq * scale, bk, bv], axis=1))
        setw(f"{prefix}_wo{suffix}", wo)
        setv(f"{prefix}_bo{suffix}", bo)

    # embeddings: lookup table pre-scaled by sqrt(d_model); unscaled transpose
    # (zero-padded to 128 lanes inside the slab) for the inverse embedding.
    setw("emb", emb * sqrt_d)
    setw("emb_t", emb.T)

    for l in range(NUM_ENC_LAYERS):
        p = f"enc{l}"
        k_mha, k_f1, k_f2 = jax.random.split(keys[1 + l], 3)
        init_mha(k_mha, p, "")
        w1, b1 = init_linear(k_f1, D_MODEL, DIM_FF)
        w2, b2 = init_linear(k_f2, DIM_FF, D_MODEL)
        setw(f"{p}_w1", w1); setv(f"{p}_b1", b1)
        setw(f"{p}_w2", w2); setv(f"{p}_b2", b2)
        for nm in ("ln1", "ln2"):
            setv(f"{p}_{nm}_g", jnp.ones((D_MODEL,), jnp.float32))
            setv(f"{p}_{nm}_b", jnp.zeros((D_MODEL,), jnp.float32))

    for l in range(NUM_DEC_LAYERS):
        p = f"dec{l}"
        k_m1, k_m2, k_f1, k_f2 = jax.random.split(
            keys[1 + NUM_ENC_LAYERS + l], 4)
        init_mha(k_m1, p, "1")
        init_mha(k_m2, p, "2")
        w1, b1 = init_linear(k_f1, D_MODEL, DIM_FF)
        w2, b2 = init_linear(k_f2, DIM_FF, D_MODEL)
        setw(f"{p}_w1", w1); setv(f"{p}_b1", b1)
        setw(f"{p}_w2", w2); setv(f"{p}_b2", b2)
        for nm in ("ln1", "ln2", "ln3"):
            setv(f"{p}_{nm}_g", jnp.ones((D_MODEL,), jnp.float32))
            setv(f"{p}_{nm}_b", jnp.zeros((D_MODEL,), jnp.float32))

    return {
        "wslab": wslab,                                   # (22, 64, 128)
        "vslab": vslab,                                   # (40, 128)
        "pos_enc": make_pos_encoding(D_MODEL, MAX_SEQ_LEN),
    }


# --------------------------------- main --------------------------------------
if __name__ == "__main__":
    key = jax.random.PRNGKey(0)
    k_param, k_src, k_tgt = jax.random.split(key, 3)
    arrays = init_params(k_param)

    src_ids = jax.random.randint(k_src, (BATCH, SEQ), 0, VOCAB, jnp.int32)
    tgt_ids = jax.random.randint(k_tgt, (BATCH, SEQ), 0, VOCAB, jnp.int32)
    # Padding masks: 1 = keep, 0 = mask.
    src_mask = jnp.array([[1, 1, 1, 1, 1, 1, 1, 1],
                          [1, 1, 1, 1, 1, 1, 0, 0]], jnp.int32)
    tgt_mask = jnp.array([[1, 1, 1, 1, 1, 1, 1, 0],
                          [1, 1, 1, 1, 1, 0, 0, 0]], jnp.int32)

    fwd = jax.jit(transformer_forward)
    logits = jax.block_until_ready(
        fwd(arrays, src_ids, src_mask, tgt_ids, tgt_mask))

    assert logits.shape == (BATCH, SEQ, VOCAB), logits.shape
    assert bool(jnp.all(jnp.isfinite(logits)))
    print("KERNEL_OK")
</pallas_src>

<mosaic_0001>
module attributes {stable_mosaic.version = 11 : i64} {
  func.func @_transformer_kernel(%arg0: memref<32x1xi32, #tpu.memory_space<vmem>>, %arg1: memref<4x8xf32, #tpu.memory_space<vmem>>, %arg2: memref<32x32xf32, #tpu.memory_space<vmem>>, %arg3: memref<22x64x128xf32, #tpu.memory_space<vmem>>, %arg4: memref<40x128xf32, #tpu.memory_space<vmem>>, %arg5: memref<16x128xf32, #tpu.memory_space<vmem>>) attributes {dimension_semantics = [], scalar_prefetch = 0 : i64, scratch_operands = 0 : i64, tpu.core_type = #tpu.core_type<tc>} {
    %c0 = arith.constant 0 : index
    %c0_0 = arith.constant 0 : index
    %0 = vector.load %arg4[%c0, %c0_0] : memref<40x128xf32, #tpu.memory_space<vmem>>, vector<40x128xf32>
    %c0_1 = arith.constant 0 : index
    %c0_2 = arith.constant 0 : index
    %1 = vector.load %arg1[%c0_1, %c0_2] : memref<4x8xf32, #tpu.memory_space<vmem>>, vector<4x8xf32>
    %2 = vector.extract_strided_slice %1 {offsets = [0, 0], sizes = [2, 8], strides = [1, 1]} : vector<4x8xf32> to vector<2x8xf32>
    %3 = vector.extract_strided_slice %1 {offsets = [2, 0], sizes = [2, 8], strides = [1, 1]} : vector<4x8xf32> to vector<2x8xf32>
    %cst = arith.constant 1.000000e+00 : f32
    %4 = vector.broadcast %cst : f32 to vector<2x8xf32>
    %5 = arith.subf %4, %2 : vector<2x8xf32>
    %cst_3 = arith.constant -1.000000e+30 : f32
    %6 = vector.broadcast %cst_3 : f32 to vector<2x8xf32>
    %7 = arith.mulf %6, %5 : vector<2x8xf32>
    %cst_4 = arith.constant 1.000000e+00 : f32
    %8 = vector.broadcast %cst_4 : f32 to vector<2x8xf32>
    %9 = arith.subf %8, %3 : vector<2x8xf32>
    %cst_5 = arith.constant -1.000000e+30 : f32
    %10 = vector.broadcast %cst_5 : f32 to vector<2x8xf32>
    %11 = arith.mulf %10, %9 : vector<2x8xf32>
    %12 = tpu.iota {dimensions = array<i32: 0>} : vector<8x8xi32>
    %13 = tpu.iota {dimensions = array<i32: 1>} : vector<8x8xi32>
    %14 = arith.cmpi sgt, %13, %12 : vector<8x8xi32>
    %cst_6 = arith.constant -1.000000e+30 : f32
    %cst_7 = arith.constant 0.000000e+00 : f32
    %15 = vector.broadcast %cst_6 : f32 to vector<8x8xf32>
    %16 = vector.broadcast %cst_7 : f32 to vector<8x8xf32>
    %17 = arith.select %14, %15, %16 : vector<8x8xi1>, vector<8x8xf32>
    %c0_8 = arith.constant 0 : index
    %c0_9 = arith.constant 0 : index
    %18 = vector.load %arg0[%c0_8, %c0_9] : memref<32x1xi32, #tpu.memory_space<vmem>>, vector<32x1xi32>
    %19 = tpu.iota {dimensions = array<i32: 1>} : vector<32x64xi32>
    %20 = vector.broadcast %18 : vector<32x1xi32> to vector<32x64xi32>
    %21 = arith.cmpi eq, %20, %19 : vector<32x64xi32>
    %22 = arith.extui %21 : vector<32x64xi1> to vector<32x64xi32>
    %23 = arith.sitofp %22 : vector<32x64xi32> to vector<32x64xf32>
    %c0_10 = arith.constant 0 : index
    %c0_11 = arith.constant 0 : index
    %c0_12 = arith.constant 0 : index
    %24 = vector.load %arg3[%c0_10, %c0_11, %c0_12] : memref<22x64x128xf32, #tpu.memory_space<vmem>>, vector<1x64x128xf32>
    %25 = vector.shape_cast %24 : vector<1x64x128xf32> to vector<64x128xf32>
    %26 = vector.extract_strided_slice %25 {offsets = [0, 0], sizes = [64, 32], strides = [1, 1]} : vector<64x128xf32> to vector<64x32xf32>
    %cst_13 = arith.constant dense<0.000000e+00> : vector<32x32xf32>
    %27 = tpu.matmul %23, %26, %cst_13 {dimension_numbers = #tpu.dot_dimension_numbers<[1], [0], [0], [1], [0, 0, 1, 1], [], []>} : vector<32x64xf32>, vector<64x32xf32>, vector<32x32xf32> -> vector<32x32xf32>
    %c0_14 = arith.constant 0 : index
    %c0_15 = arith.constant 0 : index
    %28 = vector.load %arg2[%c0_14, %c0_15] : memref<32x32xf32, #tpu.memory_space<vmem>>, vector<32x32xf32>
    %29 = arith.addf %27, %28 : vector<32x32xf32>
    %30 = vector.extract_strided_slice %29 {offsets = [0, 0], sizes = [16, 32], strides = [1, 1]} : vector<32x32xf32> to vector<16x32xf32>
    %31 = vector.extract_strided_slice %29 {offsets = [16, 0], sizes = [16, 32], strides = [1, 1]} : vector<32x32xf32> to vector<16x32xf32>
    %c2 = arith.constant 2 : index
    %c0_16 = arith.constant 0 : index
    %c0_17 = arith.constant 0 : index
    %32 = vector.load %arg3[%c2, %c0_16, %c0_17] : memref<22x64x128xf32, #tpu.memory_space<vmem>>, vector<1x64x128xf32>
    %33 = vector.shape_cast %32 : vector<1x64x128xf32> to vector<64x128xf32>
    %34 = vector.extract_strided_slice %33 {offsets = [0, 0], sizes = [32, 96], strides = [1, 1]} : vector<64x128xf32> to vector<32x96xf32>
    %35 = vector.extract_strided_slice %0 {offsets = [0, 0], sizes = [1, 96], strides = [1, 1]} : vector<40x128xf32> to vector<1x96xf32>
    %cst_18 = arith.constant dense<0.000000e+00> : vector<16x96xf32>
    %36 = tpu.matmul %30, %34, %cst_18 {dimension_numbers = #tpu.dot_dimension_numbers<[1], [0], [0], [1], [0, 0, 1, 1], [], []>} : vector<16x32xf32>, vector<32x96xf32>, vector<16x96xf32> -> vector<16x96xf32>
    %37 = vector.broadcast %35 : vector<1x96xf32> to vector<16x96xf32>
    %38 = arith.addf %36, %37 : vector<16x96xf32>
    %39 = vector.extract_strided_slice %38 {offsets = [0, 0], sizes = [16, 32], strides = [1, 1]} : vector<16x96xf32> to vector<16x32xf32>
    %40 = vector.extract_strided_slice %38 {offsets = [0, 32], sizes = [16, 32], strides = [1, 1]} : vector<16x96xf32> to vector<16x32xf32>
    %41 = vector.extract_strided_slice %38 {offsets = [0, 64], sizes = [16, 32], strides = [1, 1]} : vector<16x96xf32> to vector<16x32xf32>
    %42 = vector.shape_cast %39 : vector<16x32xf32> to vector<2x8x32xf32>
    %43 = vector.shape_cast %40 : vector<16x32xf32> to vector<2x8x32xf32>
    %44 = vector.shape_cast %41 : vector<16x32xf32> to vector<2x8x32xf32>
    %45 = vector.shape_cast %7 : vector<2x8xf32> to vector<2x1x8xf32>
    %46 = vector.extract_strided_slice %42 {offsets = [0, 0, 0], sizes = [2, 8, 8], strides = [1, 1, 1]} : vector<2x8x32xf32> to vector<2x8x8xf32>
    %47 = vector.extract_strided_slice %43 {offsets = [0, 0, 0], sizes = [2, 8, 8], strides = [1, 1, 1]} : vector<2x8x32xf32> to vector<2x8x8xf32>
    "tpu.trace_start"() <{level = 10 : i32, message = "bqd,bkd->bqk"}> : () -> ()
    %cst_19 = arith.constant dense<0.000000e+00> : vector<2x8x8xf32>
    %48 = tpu.matmul %46, %47, %cst_19 {dimension_numbers = #tpu.dot_dimension_numbers<[2], [2], [1], [1], [0, 0, 0, 1, 1, 1], [0], [0]>} : vector<2x8x8xf32>, vector<2x8x8xf32>, vector<2x8x8xf32> -> vector<2x8x8xf32>
    "tpu.trace_stop"() : () -> ()
    %49 = vector.broadcast %45 : vector<2x1x8xf32> to vector<2x8x8xf32>
    %50 = arith.addf %48, %49 : vector<2x8x8xf32>
    %cst_20 = arith.constant dense<0xFF800000> : vector<2x8xf32>
    %51 = vector.multi_reduction <maximumf>, %50, %cst_20 [2] : vector<2x8x8xf32> to vector<2x8xf32>
    %52 = vector.shape_cast %51 : vector<2x8xf32> to vector<2x8x1xf32>
    %53 = vector.broadcast %52 : vector<2x8x1xf32> to vector<2x8x8xf32>
    %54 = arith.subf %50, %53 : vector<2x8x8xf32>
    %55 = math.exp %54 : vector<2x8x8xf32>
    %cst_21 = arith.constant dense<0.000000e+00> : vector<2x8xf32>
    %56 = vector.multi_reduction <add>, %55, %cst_21 [2] : vector<2x8x8xf32> to vector<2x8xf32>
    %57 = vector.shape_cast %56 : vector<2x8xf32> to vector<2x8x1xf32>
    %58 = vector.broadcast %57 : vector<2x8x1xf32> to vector<2x8x8xf32>
    %59 = arith.divf %55, %58 : vector<2x8x8xf32>
    %60 = vector.extract_strided_slice %44 {offsets = [0, 0, 0], sizes = [2, 8, 8], strides = [1, 1, 1]} : vector<2x8x32xf32> to vector<2x8x8xf32>
    "tpu.trace_start"() <{level = 10 : i32, message = "bqk,bkd->bqd"}> : () -> ()
    %cst_22 = arith.constant dense<0.000000e+00> : vector<2x8x8xf32>
    %61 = tpu.matmul %59, %60, %cst_22 {dimension_numbers = #tpu.dot_dimension_numbers<[2], [1], [1], [2], [0, 0, 0, 1, 1, 2], [0], [0]>} : vector<2x8x8xf32>, vector<2x8x8xf32>, vector<2x8x8xf32> -> vector<2x8x8xf32>
    "tpu.trace_stop"() : () -> ()
    %62 = vector.extract_strided_slice %42 {offsets = [0, 0, 8], sizes = [2, 8, 8], strides = [1, 1, 1]} : vector<2x8x32xf32> to vector<2x8x8xf32>
    %63 = vector.extract_strided_slice %43 {offsets = [0, 0, 8], sizes = [2, 8, 8], strides = [1, 1, 1]} : vector<2x8x32xf32> to vector<2x8x8xf32>
    "tpu.trace_start"() <{level = 10 : i32, message = "bqd,bkd->bqk"}> : () -> ()
    %cst_23 = arith.constant dense<0.000000e+00> : vector<2x8x8xf32>
    %64 = tpu.matmul %62, %63, %cst_23 {dimension_numbers = #tpu.dot_dimension_numbers<[2], [2], [1], [1], [0, 0, 0, 1, 1, 1], [0], [0]>} : vector<2x8x8xf32>, vector<2x8x8xf32>, vector<2x8x8xf32> -> vector<2x8x8xf32>
    "tpu.trace_stop"() : () -> ()
    %65 = vector.broadcast %45 : vector<2x1x8xf32> to vector<2x8x8xf32>
    %66 = arith.addf %64, %65 : vector<2x8x8xf32>
    %cst_24 = arith.constant dense<0xFF800000> : vector<2x8xf32>
    %67 = vector.multi_reduction <maximumf>, %66, %cst_24 [2] : vector<2x8x8xf32> to vector<2x8xf32>
    %68 = vector.shape_cast %67 : vector<2x8xf32> to vector<2x8x1xf32>
    %69 = vector.broadcast %68 : vector<2x8x1xf32> to vector<2x8x8xf32>
    %70 = arith.subf %66, %69 : vector<2x8x8xf32>
    %71 = math.exp %70 : vector<2x8x8xf32>
    %cst_25 = arith.constant dense<0.000000e+00> : vector<2x8xf32>
    %72 = vector.multi_reduction <add>, %71, %cst_25 [2] : vector<2x8x8xf32> to vector<2x8xf32>
    %73 = vector.shape_cast %72 : vector<2x8xf32> to vector<2x8x1xf32>
    %74 = vector.broadcast %73 : vector<2x8x1xf32> to vector<2x8x8xf32>
    %75 = arith.divf %71, %74 : vector<2x8x8xf32>
    %76 = vector.extract_strided_slice %44 {offsets = [0, 0, 8], sizes = [2, 8, 8], strides = [1, 1, 1]} : vector<2x8x32xf32> to vector<2x8x8xf32>
    "tpu.trace_start"() <{level = 10 : i32, message = "bqk,bkd->bqd"}> : () -> ()
    %cst_26 = arith.constant dense<0.000000e+00> : vector<2x8x8xf32>
    %77 = tpu.matmul %75, %76, %cst_26 {dimension_numbers = #tpu.dot_dimension_numbers<[2], [1], [1], [2], [0, 0, 0, 1, 1, 2], [0], [0]>} : vector<2x8x8xf32>, vector<2x8x8xf32>, vector<2x8x8xf32> -> vector<2x8x8xf32>
    "tpu.trace_stop"() : () -> ()
    %78 = vector.extract_strided_slice %42 {offsets = [0, 0, 16], sizes = [2, 8, 8], strides = [1, 1, 1]} : vector<2x8x32xf32> to vector<2x8x8xf32>
    %79 = vector.extract_strided_slice %43 {offsets = [0, 0, 16], sizes = [2, 8, 8], strides = [1, 1, 1]} : vector<2x8x32xf32> to vector<2x8x8xf32>
    "tpu.trace_start"() <{level = 10 : i32, message = "bqd,bkd->bqk"}> : () -> ()
    %cst_27 = arith.constant dense<0.000000e+00> : vector<2x8x8xf32>
    %80 = tpu.matmul %78, %79, %cst_27 {dimension_numbers = #tpu.dot_dimension_numbers<[2], [2], [1], [1], [0, 0, 0, 1, 1, 1], [0], [0]>} : vector<2x8x8xf32>, vector<2x8x8xf32>, vector<2x8x8xf32> -> vector<2x8x8xf32>
    "tpu.trace_stop"() : () -> ()
    %81 = vector.broadcast %45 : vector<2x1x8xf32> to vector<2x8x8xf32>
    %82 = arith.addf %80, %81 : vector<2x8x8xf32>
    %cst_28 = arith.constant dense<0xFF800000> : vector<2x8xf32>
    %83 = vector.multi_reduction <maximumf>, %82, %cst_28 [2] : vector<2x8x8xf32> to vector<2x8xf32>
    %84 = vector.shape_cast %83 : vector<2x8xf32> to vector<2x8x1xf32>
    %85 = vector.broadcast %84 : vector<2x8x1xf32> to vector<2x8x8xf32>
    %86 = arith.subf %82, %85 : vector<2x8x8xf32>
    %87 = math.exp %86 : vector<2x8x8xf32>
    %cst_29 = arith.constant dense<0.000000e+00> : vector<2x8xf32>
    %88 = vector.multi_reduction <add>, %87, %cst_29 [2] : vector<2x8x8xf32> to vector<2x8xf32>
    %89 = vector.shape_cast %88 : vector<2x8xf32> to vector<2x8x1xf32>
    %90 = vector.broadcast %89 : vector<2x8x1xf32> to vector<2x8x8xf32>
    %91 = arith.divf %87, %90 : vector<2x8x8xf32>
    %92 = vector.extract_strided_slice %44 {offsets = [0, 0, 16], sizes = [2, 8, 8], strides = [1, 1, 1]} : vector<2x8x32xf32> to vector<2x8x8xf32>
    "tpu.trace_start"() <{level = 10 : i32, message = "bqk,bkd->bqd"}> : () -> ()
    %cst_30 = arith.constant dense<0.000000e+00> : vector<2x8x8xf32>
    %93 = tpu.matmul %91, %92, %cst_30 {dimension_numbers = #tpu.dot_dimension_numbers<[2], [1], [1], [2], [0, 0, 0, 1, 1, 2], [0], [0]>} : vector<2x8x8xf32>, vector<2x8x8xf32>, vector<2x8x8xf32> -> vector<2x8x8xf32>
    "tpu.trace_stop"() : () -> ()
    %94 = vector.extract_strided_slice %42 {offsets = [0, 0, 24], sizes = [2, 8, 8], strides = [1, 1, 1]} : vector<2x8x32xf32> to vector<2x8x8xf32>
    %95 = vector.extract_strided_slice %43 {offsets = [0, 0, 24], sizes = [2, 8, 8], strides = [1, 1, 1]} : vector<2x8x32xf32> to vector<2x8x8xf32>
    "tpu.trace_start"() <{level = 10 : i32, message = "bqd,bkd->bqk"}> : () -> ()
    %cst_31 = arith.constant dense<0.000000e+00> : vector<2x8x8xf32>
    %96 = tpu.matmul %94, %95, %cst_31 {dimension_numbers = #tpu.dot_dimension_numbers<[2], [2], [1], [1], [0, 0, 0, 1, 1, 1], [0], [0]>} : vector<2x8x8xf32>, vector<2x8x8xf32>, vector<2x8x8xf32> -> vector<2x8x8xf32>
    "tpu.trace_stop"() : () -> ()
    %97 = vector.broadcast %45 : vector<2x1x8xf32> to vector<2x8x8xf32>
    %98 = arith.addf %96, %97 : vector<2x8x8xf32>
    %cst_32 = arith.constant dense<0xFF800000> : vector<2x8xf32>
    %99 = vector.multi_reduction <maximumf>, %98, %cst_32 [2] : vector<2x8x8xf32> to vector<2x8xf32>
    %100 = vector.shape_cast %99 : vector<2x8xf32> to vector<2x8x1xf32>
    %101 = vector.broadcast %100 : vector<2x8x1xf32> to vector<2x8x8xf32>
    %102 = arith.subf %98, %101 : vector<2x8x8xf32>
    %103 = math.exp %102 : vector<2x8x8xf32>
    %cst_33 = arith.constant dense<0.000000e+00> : vector<2x8xf32>
    %104 = vector.multi_reduction <add>, %103, %cst_33 [2] : vector<2x8x8xf32> to vector<2x8xf32>
    %105 = vector.shape_cast %104 : vector<2x8xf32> to vector<2x8x1xf32>
    %106 = vector.broadcast %105 : vector<2x8x1xf32> to vector<2x8x8xf32>
    %107 = arith.divf %103, %106 : vector<2x8x8xf32>
    %108 = vector.extract_strided_slice %44 {offsets = [0, 0, 24], sizes = [2, 8, 8], strides = [1, 1, 1]} : vector<2x8x32xf32> to vector<2x8x8xf32>
    "tpu.trace_start"() <{level = 10 : i32, message = "bqk,bkd->bqd"}> : () -> ()
    %cst_34 = arith.constant dense<0.000000e+00> : vector<2x8x8xf32>
    %109 = tpu.matmul %107, %108, %cst_34 {dimension_numbers = #tpu.dot_dimension_numbers<[2], [1], [1], [2], [0, 0, 0, 1, 1, 2], [0], [0]>} : vector<2x8x8xf32>, vector<2x8x8xf32>, vector<2x8x8xf32> -> vector<2x8x8xf32>
    "tpu.trace_stop"() : () -> ()
    %110 = tpu.concatenate %61, %77, %93, %109 in 2 : vector<2x8x8xf32>, vector<2x8x8xf32>, vector<2x8x8xf32>, vector<2x8x8xf32> -> vector<2x8x32xf32>
    %111 = vector.shape_cast %2 : vector<2x8xf32> to vector<2x8x1xf32>
    %112 = vector.broadcast %111 : vector<2x8x1xf32> to vector<2x8x32xf32>
    %113 = arith.mulf %110, %112 : vector<2x8x32xf32>
    %114 = vector.shape_cast %113 : vector<2x8x32xf32> to vector<16x32xf32>
    %c3 = arith.constant 3 : index
    %c0_35 = arith.constant 0 : index
    %c0_36 = arith.constant 0 : index
    %115 = vector.load %arg3[%c3, %c0_35, %c0_36] : memref<22x64x128xf32, #tpu.memory_space<vmem>>, vector<1x64x128xf32>
    %116 = vector.shape_cast %115 : vector<1x64x128xf32> to vector<64x128xf32>
    %117 = vector.extract_strided_slice %116 {offsets = [0, 0], sizes = [32, 32], strides = [1, 1]} : vector<64x128xf32> to vector<32x32xf32>
    %cst_37 = arith.constant dense<0.000000e+00> : vector<16x32xf32>
    %118 = tpu.matmul %114, %117, %cst_37 {dimension_numbers = #tpu.dot_dimension_numbers<[1], [0], [0], [1], [0, 0, 1, 1], [], []>} : vector<16x32xf32>, vector<32x32xf32>, vector<16x32xf32> -> vector<16x32xf32>
    %119 = vector.extract_strided_slice %0 {offsets = [1, 0], sizes = [1, 32], strides = [1, 1]} : vector<40x128xf32> to vector<1x32xf32>
    %120 = vector.broadcast %119 : vector<1x32xf32> to vector<16x32xf32>
    %121 = arith.addf %118, %120 : vector<16x32xf32>
    %122 = arith.addf %30, %121 : vector<16x32xf32>
    %cst_38 = arith.constant dense<0.000000e+00> : vector<16xf32>
    %123 = vector.multi_reduction <add>, %122, %cst_38 [1] : vector<16x32xf32> to vector<16xf32>
    %124 = vector.shape_cast %123 : vector<16xf32> to vector<16x1xf32>
    %cst_39 = arith.constant 3.200000e+01 : f32
    %125 = vector.broadcast %cst_39 : f32 to vector<16x1xf32>
    %126 = arith.divf %124, %125 : vector<16x1xf32>
    %127 = vector.broadcast %126 : vector<16x1xf32> to vector<16x32xf32>
    %128 = arith.subf %122, %127 : vector<16x32xf32>
    %129 = arith.mulf %128, %128 : vector<16x32xf32>
    %cst_40 = arith.constant dense<0.000000e+00> : vector<16xf32>
    %130 = vector.multi_reduction <add>, %129, %cst_40 [1] : vector<16x32xf32> to vector<16xf32>
    %131 = vector.shape_cast %130 : vector<16xf32> to vector<16x1xf32>
    %cst_41 = arith.constant 3.200000e+01 : f32
    %132 = vector.broadcast %cst_41 : f32 to vector<16x1xf32>
    %133 = arith.divf %131, %132 : vector<16x1xf32>
    %134 = vector.broadcast %126 : vector<16x1xf32> to vector<16x32xf32>
    %135 = arith.subf %122, %134 : vector<16x32xf32>
    %cst_42 = arith.constant 9.99999974E-6 : f32
    %136 = vector.broadcast %cst_42 : f32 to vector<16x1xf32>
    %137 = arith.addf %133, %136 : vector<16x1xf32>
    %138 = math.rsqrt %137 : vector<16x1xf32>
    %139 = vector.broadcast %138 : vector<16x1xf32> to vector<16x32xf32>
    %140 = arith.mulf %135, %139 : vector<16x32xf32>
    %141 = vector.extract_strided_slice %0 {offsets = [2, 0], sizes = [1, 32], strides = [1, 1]} : vector<40x128xf32> to vector<1x32xf32>
    %142 = vector.broadcast %141 : vector<1x32xf32> to vector<16x32xf32>
    %143 = arith.mulf %140, %142 : vector<16x32xf32>
    %144 = vector.extract_strided_slice %0 {offsets = [3, 0], sizes = [1, 32], strides = [1, 1]} : vector<40x128xf32> to vector<1x32xf32>
    %145 = vector.broadcast %144 : vector<1x32xf32> to vector<16x32xf32>
    %146 = arith.addf %143, %145 : vector<16x32xf32>
    %c4 = arith.constant 4 : index
    %c0_43 = arith.constant 0 : index
    %c0_44 = arith.constant 0 : index
    %147 = vector.load %arg3[%c4, %c0_43, %c0_44] : memref<22x64x128xf32, #tpu.memory_space<vmem>>, vector<1x64x128xf32>
    %148 = vector.shape_cast %147 : vector<1x64x128xf32> to vector<64x128xf32>
    %149 = vector.extract_strided_slice %148 {offsets = [0, 0], sizes = [32, 64], strides = [1, 1]} : vector<64x128xf32> to vector<32x64xf32>
    %cst_45 = arith.constant dense<0.000000e+00> : vector<16x64xf32>
    %150 = tpu.matmul %146, %149, %cst_45 {dimension_numbers = #tpu.dot_dimension_numbers<[1], [0], [0], [1], [0, 0, 1, 1], [], []>} : vector<16x32xf32>, vector<32x64xf32>, vector<16x64xf32> -> vector<16x64xf32>
    %151 = vector.extract_strided_slice %0 {offsets = [4, 0], sizes = [1, 64], strides = [1, 1]} : vector<40x128xf32> to vector<1x64xf32>
    %152 = vector.broadcast %151 : vector<1x64xf32> to vector<16x64xf32>
    %153 = arith.addf %150, %152 : vector<16x64xf32>
    %cst_46 = arith.constant 0.000000e+00 : f32
    %154 = vector.broadcast %cst_46 : f32 to vector<16x64xf32>
    %155 = arith.maximumf %153, %154 : vector<16x64xf32>
    %c5 = arith.constant 5 : index
    %c0_47 = arith.constant 0 : index
    %c0_48 = arith.constant 0 : index
    %156 = vector.load %arg3[%c5, %c0_47, %c0_48] : memref<22x64x128xf32, #tpu.memory_space<vmem>>, vector<1x64x128xf32>
    %157 = vector.shape_cast %156 : vector<1x64x128xf32> to vector<64x128xf32>
    %158 = vector.extract_strided_slice %157 {offsets = [0, 0], sizes = [64, 32], strides = [1, 1]} : vector<64x128xf32> to vector<64x32xf32>
    %cst_49 = arith.constant dense<0.000000e+00> : vector<16x32xf32>
    %159 = tpu.matmul %155, %158, %cst_49 {dimension_numbers = #tpu.dot_dimension_numbers<[1], [0], [0], [1], [0, 0, 1, 1], [], []>} : vector<16x64xf32>, vector<64x32xf32>, vector<16x32xf32> -> vector<16x32xf32>
    %160 = vector.extract_strided_slice %0 {offsets = [5, 0], sizes = [1, 32], strides = [1, 1]} : vector<40x128xf32> to vector<1x32xf32>
    %161 = vector.broadcast %160 : vector<1x32xf32> to vector<16x32xf32>
    %162 = arith.addf %159, %161 : vector<16x32xf32>
    %163 = arith.addf %146, %162 : vector<16x32xf32>
    %cst_50 = arith.constant dense<0.000000e+00> : vector<16xf32>
    %164 = vector.multi_reduction <add>, %163, %cst_50 [1] : vector<16x32xf32> to vector<16xf32>
    %165 = vector.shape_cast %164 : vector<16xf32> to vector<16x1xf32>
    %cst_51 = arith.constant 3.200000e+01 : f32
    %166 = vector.broadcast %cst_51 : f32 to vector<16x1xf32>
    %167 = arith.divf %165, %166 : vector<16x1xf32>
    %168 = vector.broadcast %167 : vector<16x1xf32> to vector<16x32xf32>
    %169 = arith.subf %163, %168 : vector<16x32xf32>
    %170 = arith.mulf %169, %169 : vector<16x32xf32>
    %cst_52 = arith.constant dense<0.000000e+00> : vector<16xf32>
    %171 = vector.multi_reduction <add>, %170, %cst_52 [1] : vector<16x32xf32> to vector<16xf32>
    %172 = vector.shape_cast %171 : vector<16xf32> to vector<16x1xf32>
    %cst_53 = arith.constant 3.200000e+01 : f32
    %173 = vector.broadcast %cst_53 : f32 to vector<16x1xf32>
    %174 = arith.divf %172, %173 : vector<16x1xf32>
    %175 = vector.broadcast %167 : vector<16x1xf32> to vector<16x32xf32>
    %176 = arith.subf %163, %175 : vector<16x32xf32>
    %cst_54 = arith.constant 9.99999974E-6 : f32
    %177 = vector.broadcast %cst_54 : f32 to vector<16x1xf32>
    %178 = arith.addf %174, %177 : vector<16x1xf32>
    %179 = math.rsqrt %178 : vector<16x1xf32>
    %180 = vector.broadcast %179 : vector<16x1xf32> to vector<16x32xf32>
    %181 = arith.mulf %176, %180 : vector<16x32xf32>
    %182 = vector.extract_strided_slice %0 {offsets = [6, 0], sizes = [1, 32], strides = [1, 1]} : vector<40x128xf32> to vector<1x32xf32>
    %183 = vector.broadcast %182 : vector<1x32xf32> to vector<16x32xf32>
    %184 = arith.mulf %181, %183 : vector<16x32xf32>
    %185 = vector.extract_strided_slice %0 {offsets = [7, 0], sizes = [1, 32], strides = [1, 1]} : vector<40x128xf32> to vector<1x32xf32>
    %186 = vector.broadcast %185 : vector<1x32xf32> to vector<16x32xf32>
    %187 = arith.addf %184, %186 : vector<16x32xf32>
    %c6 = arith.constant 6 : index
    %c0_55 = arith.constant 0 : index
    %c0_56 = arith.constant 0 : index
    %188 = vector.load %arg3[%c6, %c0_55, %c0_56] : memref<22x64x128xf32, #tpu.memory_space<vmem>>, vector<1x64x128xf32>
    %189 = vector.shape_cast %188 : vector<1x64x128xf32> to vector<64x128xf32>
    %190 = vector.extract_strided_slice %189 {offsets = [0, 0], sizes = [32, 96], strides = [1, 1]} : vector<64x128xf32> to vector<32x96xf32>
    %191 = vector.extract_strided_slice %0 {offsets = [8, 0], sizes = [1, 96], strides = [1, 1]} : vector<40x128xf32> to vector<1x96xf32>
    %cst_57 = arith.constant dense<0.000000e+00> : vector<16x96xf32>
    %192 = tpu.matmul %187, %190, %cst_57 {dimension_numbers = #tpu.dot_dimension_numbers<[1], [0], [0], [1], [0, 0, 1, 1], [], []>} : vector<16x32xf32>, vector<32x96xf32>, vector<16x96xf32> -> vector<16x96xf32>
    %193 = vector.broadcast %191 : vector<1x96xf32> to vector<16x96xf32>
    %194 = arith.addf %192, %193 : vector<16x96xf32>
    %195 = vector.extract_strided_slice %194 {offsets = [0, 0], sizes = [16, 32], strides = [1, 1]} : vector<16x96xf32> to vector<16x32xf32>
    %196 = vector.extract_strided_slice %194 {offsets = [0, 32], sizes = [16, 32], strides = [1, 1]} : vector<16x96xf32> to vector<16x32xf32>
    %197 = vector.extract_strided_slice %194 {offsets = [0, 64], sizes = [16, 32], strides = [1, 1]} : vector<16x96xf32> to vector<16x32xf32>
    %198 = vector.shape_cast %195 : vector<16x32xf32> to vector<2x8x32xf32>
    %199 = vector.shape_cast %196 : vector<16x32xf32> to vector<2x8x32xf32>
    %200 = vector.shape_cast %197 : vector<16x32xf32> to vector<2x8x32xf32>
    %201 = vector.shape_cast %7 : vector<2x8xf32> to vector<2x1x8xf32>
    %202 = vector.extract_strided_slice %198 {offsets = [0, 0, 0], sizes = [2, 8, 8], strides = [1, 1, 1]} : vector<2x8x32xf32> to vector<2x8x8xf32>
    %203 = vector.extract_strided_slice %199 {offsets = [0, 0, 0], sizes = [2, 8, 8], strides = [1, 1, 1]} : vector<2x8x32xf32> to vector<2x8x8xf32>
    "tpu.trace_start"() <{level = 10 : i32, message = "bqd,bkd->bqk"}> : () -> ()
    %cst_58 = arith.constant dense<0.000000e+00> : vector<2x8x8xf32>
    %204 = tpu.matmul %202, %203, %cst_58 {dimension_numbers = #tpu.dot_dimension_numbers<[2], [2], [1], [1], [0, 0, 0, 1, 1, 1], [0], [0]>} : vector<2x8x8xf32>, vector<2x8x8xf32>, vector<2x8x8xf32> -> vector<2x8x8xf32>
    "tpu.trace_stop"() : () -> ()
    %205 = vector.broadcast %201 : vector<2x1x8xf32> to vector<2x8x8xf32>
    %206 = arith.addf %204, %205 : vector<2x8x8xf32>
    %cst_59 = arith.constant dense<0xFF800000> : vector<2x8xf32>
    %207 = vector.multi_reduction <maximumf>, %206, %cst_59 [2] : vector<2x8x8xf32> to vector<2x8xf32>
    %208 = vector.shape_cast %207 : vector<2x8xf32> to vector<2x8x1xf32>
    %209 = vector.broadcast %208 : vector<2x8x1xf32> to vector<2x8x8xf32>
    %210 = arith.subf %206, %209 : vector<2x8x8xf32>
    %211 = math.exp %210 : vector<2x8x8xf32>
    %cst_60 = arith.constant dense<0.000000e+00> : vector<2x8xf32>
    %212 = vector.multi_reduction <add>, %211, %cst_60 [2] : vector<2x8x8xf32> to vector<2x8xf32>
    %213 = vector.shape_cast %212 : vector<2x8xf32> to vector<2x8x1xf32>
    %214 = vector.broadcast %213 : vector<2x8x1xf32> to vector<2x8x8xf32>
    %215 = arith.divf %211, %214 : vector<2x8x8xf32>
    %216 = vector.extract_strided_slice %200 {offsets = [0, 0, 0], sizes = [2, 8, 8], strides = [1, 1, 1]} : vector<2x8x32xf32> to vector<2x8x8xf32>
    "tpu.trace_start"() <{level = 10 : i32, message = "bqk,bkd->bqd"}> : () -> ()
    %cst_61 = arith.constant dense<0.000000e+00> : vector<2x8x8xf32>
    %217 = tpu.matmul %215, %216, %cst_61 {dimension_numbers = #tpu.dot_dimension_numbers<[2], [1], [1], [2], [0, 0, 0, 1, 1, 2], [0], [0]>} : vector<2x8x8xf32>, vector<2x8x8xf32>, vector<2x8x8xf32> -> vector<2x8x8xf32>
    "tpu.trace_stop"() : () -> ()
    %218 = vector.extract_strided_slice %198 {offsets = [0, 0, 8], sizes = [2, 8, 8], strides = [1, 1, 1]} : vector<2x8x32xf32> to vector<2x8x8xf32>
    %219 = vector.extract_strided_slice %199 {offsets = [0, 0, 8], sizes = [2, 8, 8], strides = [1, 1, 1]} : vector<2x8x32xf32> to vector<2x8x8xf32>
    "tpu.trace_start"() <{level = 10 : i32, message = "bqd,bkd->bqk"}> : () -> ()
    %cst_62 = arith.constant dense<0.000000e+00> : vector<2x8x8xf32>
    %220 = tpu.matmul %218, %219, %cst_62 {dimension_numbers = #tpu.dot_dimension_numbers<[2], [2], [1], [1], [0, 0, 0, 1, 1, 1], [0], [0]>} : vector<2x8x8xf32>, vector<2x8x8xf32>, vector<2x8x8xf32> -> vector<2x8x8xf32>
    "tpu.trace_stop"() : () -> ()
    %221 = vector.broadcast %201 : vector<2x1x8xf32> to vector<2x8x8xf32>
    %222 = arith.addf %220, %221 : vector<2x8x8xf32>
    %cst_63 = arith.constant dense<0xFF800000> : vector<2x8xf32>
    %223 = vector.multi_reduction <maximumf>, %222, %cst_63 [2] : vector<2x8x8xf32> to vector<2x8xf32>
    %224 = vector.shape_cast %223 : vector<2x8xf32> to vector<2x8x1xf32>
    %225 = vector.broadcast %224 : vector<2x8x1xf32> to vector<2x8x8xf32>
    %226 = arith.subf %222, %225 : vector<2x8x8xf32>
    %227 = math.exp %226 : vector<2x8x8xf32>
    %cst_64 = arith.constant dense<0.000000e+00> : vector<2x8xf32>
    %228 = vector.multi_reduction <add>, %227, %cst_64 [2] : vector<2x8x8xf32> to vector<2x8xf32>
    %229 = vector.shape_cast %228 : vector<2x8xf32> to vector<2x8x1xf32>
    %230 = vector.broadcast %229 : vector<2x8x1xf32> to vector<2x8x8xf32>
    %231 = arith.divf %227, %230 : vector<2x8x8xf32>
    %232 = vector.extract_strided_slice %200 {offsets = [0, 0, 8], sizes = [2, 8, 8], strides = [1, 1, 1]} : vector<2x8x32xf32> to vector<2x8x8xf32>
    "tpu.trace_start"() <{level = 10 : i32, message = "bqk,bkd->bqd"}> : () -> ()
    %cst_65 = arith.constant dense<0.000000e+00> : vector<2x8x8xf32>
    %233 = tpu.matmul %231, %232, %cst_65 {dimension_numbers = #tpu.dot_dimension_numbers<[2], [1], [1], [2], [0, 0, 0, 1, 1, 2], [0], [0]>} : vector<2x8x8xf32>, vector<2x8x8xf32>, vector<2x8x8xf32> -> vector<2x8x8xf32>
    "tpu.trace_stop"() : () -> ()
    %234 = vector.extract_strided_slice %198 {offsets = [0, 0, 16], sizes = [2, 8, 8], strides = [1, 1, 1]} : vector<2x8x32xf32> to vector<2x8x8xf32>
    %235 = vector.extract_strided_slice %199 {offsets = [0, 0, 16], sizes = [2, 8, 8], strides = [1, 1, 1]} : vector<2x8x32xf32> to vector<2x8x8xf32>
    "tpu.trace_start"() <{level = 10 : i32, message = "bqd,bkd->bqk"}> : () -> ()
    %cst_66 = arith.constant dense<0.000000e+00> : vector<2x8x8xf32>
    %236 = tpu.matmul %234, %235, %cst_66 {dimension_numbers = #tpu.dot_dimension_numbers<[2], [2], [1], [1], [0, 0, 0, 1, 1, 1], [0], [0]>} : vector<2x8x8xf32>, vector<2x8x8xf32>, vector<2x8x8xf32> -> vector<2x8x8xf32>
    "tpu.trace_stop"() : () -> ()
    %237 = vector.broadcast %201 : vector<2x1x8xf32> to vector<2x8x8xf32>
    %238 = arith.addf %236, %237 : vector<2x8x8xf32>
    %cst_67 = arith.constant dense<0xFF800000> : vector<2x8xf32>
    %239 = vector.multi_reduction <maximumf>, %238, %cst_67 [2] : vector<2x8x8xf32> to vector<2x8xf32>
    %240 = vector.shape_cast %239 : vector<2x8xf32> to vector<2x8x1xf32>
    %241 = vector.broadcast %240 : vector<2x8x1xf32> to vector<2x8x8xf32>
    %242 = arith.subf %238, %241 : vector<2x8x8xf32>
    %243 = math.exp %242 : vector<2x8x8xf32>
    %cst_68 = arith.constant dense<0.000000e+00> : vector<2x8xf32>
    %244 = vector.multi_reduction <add>, %243, %cst_68 [2] : vector<2x8x8xf32> to vector<2x8xf32>
    %245 = vector.shape_cast %244 : vector<2x8xf32> to vector<2x8x1xf32>
    %246 = vector.broadcast %245 : vector<2x8x1xf32> to vector<2x8x8xf32>
    %247 = arith.divf %243, %246 : vector<2x8x8xf32>
    %248 = vector.extract_strided_slice %200 {offsets = [0, 0, 16], sizes = [2, 8, 8], strides = [1, 1, 1]} : vector<2x8x32xf32> to vector<2x8x8xf32>
    "tpu.trace_start"() <{level = 10 : i32, message = "bqk,bkd->bqd"}> : () -> ()
    %cst_69 = arith.constant dense<0.000000e+00> : vector<2x8x8xf32>
    %249 = tpu.matmul %247, %248, %cst_69 {dimension_numbers = #tpu.dot_dimension_numbers<[2], [1], [1], [2], [0, 0, 0, 1, 1, 2], [0], [0]>} : vector<2x8x8xf32>, vector<2x8x8xf32>, vector<2x8x8xf32> -> vector<2x8x8xf32>
    "tpu.trace_stop"() : () -> ()
    %250 = vector.extract_strided_slice %198 {offsets = [0, 0, 24], sizes = [2, 8, 8], strides = [1, 1, 1]} : vector<2x8x32xf32> to vector<2x8x8xf32>
    %251 = vector.extract_strided_slice %199 {offsets = [0, 0, 24], sizes = [2, 8, 8], strides = [1, 1, 1]} : vector<2x8x32xf32> to vector<2x8x8xf32>
    "tpu.trace_start"() <{level = 10 : i32, message = "bqd,bkd->bqk"}> : () -> ()
    %cst_70 = arith.constant dense<0.000000e+00> : vector<2x8x8xf32>
    %252 = tpu.matmul %250, %251, %cst_70 {dimension_numbers = #tpu.dot_dimension_numbers<[2], [2], [1], [1], [0, 0, 0, 1, 1, 1], [0], [0]>} : vector<2x8x8xf32>, vector<2x8x8xf32>, vector<2x8x8xf32> -> vector<2x8x8xf32>
    "tpu.trace_stop"() : () -> ()
    %253 = vector.broadcast %201 : vector<2x1x8xf32> to vector<2x8x8xf32>
    %254 = arith.addf %252, %253 : vector<2x8x8xf32>
    %cst_71 = arith.constant dense<0xFF800000> : vector<2x8xf32>
    %255 = vector.multi_reduction <maximumf>, %254, %cst_71 [2] : vector<2x8x8xf32> to vector<2x8xf32>
    %256 = vector.shape_cast %255 : vector<2x8xf32> to vector<2x8x1xf32>
    %257 = vector.broadcast %256 : vector<2x8x1xf32> to vector<2x8x8xf32>
    %258 = arith.subf %254, %257 : vector<2x8x8xf32>
    %259 = math.exp %258 : vector<2x8x8xf32>
    %cst_72 = arith.constant dense<0.000000e+00> : vector<2x8xf32>
    %260 = vector.multi_reduction <add>, %259, %cst_72 [2] : vector<2x8x8xf32> to vector<2x8xf32>
    %261 = vector.shape_cast %260 : vector<2x8xf32> to vector<2x8x1xf32>
    %262 = vector.broadcast %261 : vector<2x8x1xf32> to vector<2x8x8xf32>
    %263 = arith.divf %259, %262 : vector<2x8x8xf32>
    %264 = vector.extract_strided_slice %200 {offsets = [0, 0, 24], sizes = [2, 8, 8], strides = [1, 1, 1]} : vector<2x8x32xf32> to vector<2x8x8xf32>
    "tpu.trace_start"() <{level = 10 : i32, message = "bqk,bkd->bqd"}> : () -> ()
    %cst_73 = arith.constant dense<0.000000e+00> : vector<2x8x8xf32>
    %265 = tpu.matmul %263, %264, %cst_73 {dimension_numbers = #tpu.dot_dimension_numbers<[2], [1], [1], [2], [0, 0, 0, 1, 1, 2], [0], [0]>} : vector<2x8x8xf32>, vector<2x8x8xf32>, vector<2x8x8xf32> -> vector<2x8x8xf32>
    "tpu.trace_stop"() : () -> ()
    %266 = tpu.concatenate %217, %233, %249, %265 in 2 : vector<2x8x8xf32>, vector<2x8x8xf32>, vector<2x8x8xf32>, vector<2x8x8xf32> -> vector<2x8x32xf32>
    %267 = vector.shape_cast %2 : vector<2x8xf32> to vector<2x8x1xf32>
    %268 = vector.broadcast %267 : vector<2x8x1xf32> to vector<2x8x32xf32>
    %269 = arith.mulf %266, %268 : vector<2x8x32xf32>
    %270 = vector.shape_cast %269 : vector<2x8x32xf32> to vector<16x32xf32>
    %c7 = arith.constant 7 : index
    %c0_74 = arith.constant 0 : index
    %c0_75 = arith.constant 0 : index
    %271 = vector.load %arg3[%c7, %c0_74, %c0_75] : memref<22x64x128xf32, #tpu.memory_space<vmem>>, vector<1x64x128xf32>
    %272 = vector.shape_cast %271 : vector<1x64x128xf32> to vector<64x128xf32>
    %273 = vector.extract_strided_slice %272 {offsets = [0, 0], sizes = [32, 32], strides = [1, 1]} : vector<64x128xf32> to vector<32x32xf32>
    %cst_76 = arith.constant dense<0.000000e+00> : vector<16x32xf32>
    %274 = tpu.matmul %270, %273, %cst_76 {dimension_numbers = #tpu.dot_dimension_numbers<[1], [0], [0], [1], [0, 0, 1, 1], [], []>} : vector<16x32xf32>, vector<32x32xf32>, vector<16x32xf32> -> vector<16x32xf32>
    %275 = vector.extract_strided_slice %0 {offsets = [9, 0], sizes = [1, 32], strides = [1, 1]} : vector<40x128xf32> to vector<1x32xf32>
    %276 = vector.broadcast %275 : vector<1x32xf32> to vector<16x32xf32>
    %277 = arith.addf %274, %276 : vector<16x32xf32>
    %278 = arith.addf %187, %277 : vector<16x32xf32>
    %cst_77 = arith.constant dense<0.000000e+00> : vector<16xf32>
    %279 = vector.multi_reduction <add>, %278, %cst_77 [1] : vector<16x32xf32> to vector<16xf32>
    %280 = vector.shape_cast %279 : vector<16xf32> to vector<16x1xf32>
    %cst_78 = arith.constant 3.200000e+01 : f32
    %281 = vector.broadcast %cst_78 : f32 to vector<16x1xf32>
    %282 = arith.divf %280, %281 : vector<16x1xf32>
    %283 = vector.broadcast %282 : vector<16x1xf32> to vector<16x32xf32>
    %284 = arith.subf %278, %283 : vector<16x32xf32>
    %285 = arith.mulf %284, %284 : vector<16x32xf32>
    %cst_79 = arith.constant dense<0.000000e+00> : vector<16xf32>
    %286 = vector.multi_reduction <add>, %285, %cst_79 [1] : vector<16x32xf32> to vector<16xf32>
    %287 = vector.shape_cast %286 : vector<16xf32> to vector<16x1xf32>
    %cst_80 = arith.constant 3.200000e+01 : f32
    %288 = vector.broadcast %cst_80 : f32 to vector<16x1xf32>
    %289 = arith.divf %287, %288 : vector<16x1xf32>
    %290 = vector.broadcast %282 : vector<16x1xf32> to vector<16x32xf32>
    %291 = arith.subf %278, %290 : vector<16x32xf32>
    %cst_81 = arith.constant 9.99999974E-6 : f32
    %292 = vector.broadcast %cst_81 : f32 to vector<16x1xf32>
    %293 = arith.addf %289, %292 : vector<16x1xf32>
    %294 = math.rsqrt %293 : vector<16x1xf32>
    %295 = vector.broadcast %294 : vector<16x1xf32> to vector<16x32xf32>
    %296 = arith.mulf %291, %295 : vector<16x32xf32>
    %297 = vector.extract_strided_slice %0 {offsets = [10, 0], sizes = [1, 32], strides = [1, 1]} : vector<40x128xf32> to vector<1x32xf32>
    %298 = vector.broadcast %297 : vector<1x32xf32> to vector<16x32xf32>
    %299 = arith.mulf %296, %298 : vector<16x32xf32>
    %300 = vector.extract_strided_slice %0 {offsets = [11, 0], sizes = [1, 32], strides = [1, 1]} : vector<40x128xf32> to vector<1x32xf32>
    %301 = vector.broadcast %300 : vector<1x32xf32> to vector<16x32xf32>
    %302 = arith.addf %299, %301 : vector<16x32xf32>
    %c8 = arith.constant 8 : index
    %c0_82 = arith.constant 0 : index
    %c0_83 = arith.constant 0 : index
    %303 = vector.load %arg3[%c8, %c0_82, %c0_83] : memref<22x64x128xf32, #tpu.memory_space<vmem>>, vector<1x64x128xf32>
    %304 = vector.shape_cast %303 : vector<1x64x128xf32> to vector<64x128xf32>
    %305 = vector.extract_strided_slice %304 {offsets = [0, 0], sizes = [32, 64], strides = [1, 1]} : vector<64x128xf32> to vector<32x64xf32>
    %cst_84 = arith.constant dense<0.000000e+00> : vector<16x64xf32>
    %306 = tpu.matmul %302, %305, %cst_84 {dimension_numbers = #tpu.dot_dimension_numbers<[1], [0], [0], [1], [0, 0, 1, 1], [], []>} : vector<16x32xf32>, vector<32x64xf32>, vector<16x64xf32> -> vector<16x64xf32>
    %307 = vector.extract_strided_slice %0 {offsets = [12, 0], sizes = [1, 64], strides = [1, 1]} : vector<40x128xf32> to vector<1x64xf32>
    %308 = vector.broadcast %307 : vector<1x64xf32> to vector<16x64xf32>
    %309 = arith.addf %306, %308 : vector<16x64xf32>
    %cst_85 = arith.constant 0.000000e+00 : f32
    %310 = vector.broadcast %cst_85 : f32 to vector<16x64xf32>
    %311 = arith.maximumf %309, %310 : vector<16x64xf32>
    %c9 = arith.constant 9 : index
    %c0_86 = arith.constant 0 : index
    %c0_87 = arith.constant 0 : index
    %312 = vector.load %arg3[%c9, %c0_86, %c0_87] : memref<22x64x128xf32, #tpu.memory_space<vmem>>, vector<1x64x128xf32>
    %313 = vector.shape_cast %312 : vector<1x64x128xf32> to vector<64x128xf32>
    %314 = vector.extract_strided_slice %313 {offsets = [0, 0], sizes = [64, 32], strides = [1, 1]} : vector<64x128xf32> to vector<64x32xf32>
    %cst_88 = arith.constant dense<0.000000e+00> : vector<16x32xf32>
    %315 = tpu.matmul %311, %314, %cst_88 {dimension_numbers = #tpu.dot_dimension_numbers<[1], [0], [0], [1], [0, 0, 1, 1], [], []>} : vector<16x64xf32>, vector<64x32xf32>, vector<16x32xf32> -> vector<16x32xf32>
    %316 = vector.extract_strided_slice %0 {offsets = [13, 0], sizes = [1, 32], strides = [1, 1]} : vector<40x128xf32> to vector<1x32xf32>
    %317 = vector.broadcast %316 : vector<1x32xf32> to vector<16x32xf32>
    %318 = arith.addf %315, %317 : vector<16x32xf32>
    %319 = arith.addf %302, %318 : vector<16x32xf32>
    %cst_89 = arith.constant dense<0.000000e+00> : vector<16xf32>
    %320 = vector.multi_reduction <add>, %319, %cst_89 [1] : vector<16x32xf32> to vector<16xf32>
    %321 = vector.shape_cast %320 : vector<16xf32> to vector<16x1xf32>
    %cst_90 = arith.constant 3.200000e+01 : f32
    %322 = vector.broadcast %cst_90 : f32 to vector<16x1xf32>
    %323 = arith.divf %321, %322 : vector<16x1xf32>
    %324 = vector.broadcast %323 : vector<16x1xf32> to vector<16x32xf32>
    %325 = arith.subf %319, %324 : vector<16x32xf32>
    %326 = arith.mulf %325, %325 : vector<16x32xf32>
    %cst_91 = arith.constant dense<0.000000e+00> : vector<16xf32>
    %327 = vector.multi_reduction <add>, %326, %cst_91 [1] : vector<16x32xf32> to vector<16xf32>
    %328 = vector.shape_cast %327 : vector<16xf32> to vector<16x1xf32>
    %cst_92 = arith.constant 3.200000e+01 : f32
    %329 = vector.broadcast %cst_92 : f32 to vector<16x1xf32>
    %330 = arith.divf %328, %329 : vector<16x1xf32>
    %331 = vector.broadcast %323 : vector<16x1xf32> to vector<16x32xf32>
    %332 = arith.subf %319, %331 : vector<16x32xf32>
    %cst_93 = arith.constant 9.99999974E-6 : f32
    %333 = vector.broadcast %cst_93 : f32 to vector<16x1xf32>
    %334 = arith.addf %330, %333 : vector<16x1xf32>
    %335 = math.rsqrt %334 : vector<16x1xf32>
    %336 = vector.broadcast %335 : vector<16x1xf32> to vector<16x32xf32>
    %337 = arith.mulf %332, %336 : vector<16x32xf32>
    %338 = vector.extract_strided_slice %0 {offsets = [14, 0], sizes = [1, 32], strides = [1, 1]} : vector<40x128xf32> to vector<1x32xf32>
    %339 = vector.broadcast %338 : vector<1x32xf32> to vector<16x32xf32>
    %340 = arith.mulf %337, %339 : vector<16x32xf32>
    %341 = vector.extract_strided_slice %0 {offsets = [15, 0], sizes = [1, 32], strides = [1, 1]} : vector<40x128xf32> to vector<1x32xf32>
    %342 = vector.broadcast %341 : vector<1x32xf32> to vector<16x32xf32>
    %343 = arith.addf %340, %342 : vector<16x32xf32>
    %c10 = arith.constant 10 : index
    %c0_94 = arith.constant 0 : index
    %c0_95 = arith.constant 0 : index
    %344 = vector.load %arg3[%c10, %c0_94, %c0_95] : memref<22x64x128xf32, #tpu.memory_space<vmem>>, vector<1x64x128xf32>
    %345 = vector.shape_cast %344 : vector<1x64x128xf32> to vector<64x128xf32>
    %346 = vector.extract_strided_slice %345 {offsets = [0, 0], sizes = [32, 96], strides = [1, 1]} : vector<64x128xf32> to vector<32x96xf32>
    %347 = vector.extract_strided_slice %0 {offsets = [16, 0], sizes = [1, 96], strides = [1, 1]} : vector<40x128xf32> to vector<1x96xf32>
    %cst_96 = arith.constant dense<0.000000e+00> : vector<16x96xf32>
    %348 = tpu.matmul %31, %346, %cst_96 {dimension_numbers = #tpu.dot_dimension_numbers<[1], [0], [0], [1], [0, 0, 1, 1], [], []>} : vector<16x32xf32>, vector<32x96xf32>, vector<16x96xf32> -> vector<16x96xf32>
    %349 = vector.broadcast %347 : vector<1x96xf32> to vector<16x96xf32>
    %350 = arith.addf %348, %349 : vector<16x96xf32>
    %351 = vector.extract_strided_slice %350 {offsets = [0, 0], sizes = [16, 32], strides = [1, 1]} : vector<16x96xf32> to vector<16x32xf32>
    %352 = vector.extract_strided_slice %350 {offsets = [0, 32], sizes = [16, 32], strides = [1, 1]} : vector<16x96xf32> to vector<16x32xf32>
    %353 = vector.extract_strided_slice %350 {offsets = [0, 64], sizes = [16, 32], strides = [1, 1]} : vector<16x96xf32> to vector<16x32xf32>
    %354 = vector.shape_cast %351 : vector<16x32xf32> to vector<2x8x32xf32>
    %355 = vector.shape_cast %352 : vector<16x32xf32> to vector<2x8x32xf32>
    %356 = vector.shape_cast %353 : vector<16x32xf32> to vector<2x8x32xf32>
    %357 = vector.shape_cast %11 : vector<2x8xf32> to vector<2x1x8xf32>
    %358 = vector.shape_cast %17 : vector<8x8xf32> to vector<1x8x8xf32>
    %359 = vector.broadcast %357 : vector<2x1x8xf32> to vector<2x8x8xf32>
    %360 = vector.broadcast %358 : vector<1x8x8xf32> to vector<2x8x8xf32>
    %361 = arith.addf %359, %360 : vector<2x8x8xf32>
    %362 = vector.extract_strided_slice %354 {offsets = [0, 0, 0], sizes = [2, 8, 8], strides = [1, 1, 1]} : vector<2x8x32xf32> to vector<2x8x8xf32>
    %363 = vector.extract_strided_slice %355 {offsets = [0, 0, 0], sizes = [2, 8, 8], strides = [1, 1, 1]} : vector<2x8x32xf32> to vector<2x8x8xf32>
    "tpu.trace_start"() <{level = 10 : i32, message = "bqd,bkd->bqk"}> : () -> ()
    %cst_97 = arith.constant dense<0.000000e+00> : vector<2x8x8xf32>
    %364 = tpu.matmul %362, %363, %cst_97 {dimension_numbers = #tpu.dot_dimension_numbers<[2], [2], [1], [1], [0, 0, 0, 1, 1, 1], [0], [0]>} : vector<2x8x8xf32>, vector<2x8x8xf32>, vector<2x8x8xf32> -> vector<2x8x8xf32>
    "tpu.trace_stop"() : () -> ()
    %365 = arith.addf %364, %361 : vector<2x8x8xf32>
    %cst_98 = arith.constant dense<0xFF800000> : vector<2x8xf32>
    %366 = vector.multi_reduction <maximumf>, %365, %cst_98 [2] : vector<2x8x8xf32> to vector<2x8xf32>
    %367 = vector.shape_cast %366 : vector<2x8xf32> to vector<2x8x1xf32>
    %368 = vector.broadcast %367 : vector<2x8x1xf32> to vector<2x8x8xf32>
    %369 = arith.subf %365, %368 : vector<2x8x8xf32>
    %370 = math.exp %369 : vector<2x8x8xf32>
    %cst_99 = arith.constant dense<0.000000e+00> : vector<2x8xf32>
    %371 = vector.multi_reduction <add>, %370, %cst_99 [2] : vector<2x8x8xf32> to vector<2x8xf32>
    %372 = vector.shape_cast %371 : vector<2x8xf32> to vector<2x8x1xf32>
    %373 = vector.broadcast %372 : vector<2x8x1xf32> to vector<2x8x8xf32>
    %374 = arith.divf %370, %373 : vector<2x8x8xf32>
    %375 = vector.extract_strided_slice %356 {offsets = [0, 0, 0], sizes = [2, 8, 8], strides = [1, 1, 1]} : vector<2x8x32xf32> to vector<2x8x8xf32>
    "tpu.trace_start"() <{level = 10 : i32, message = "bqk,bkd->bqd"}> : () -> ()
    %cst_100 = arith.constant dense<0.000000e+00> : vector<2x8x8xf32>
    %376 = tpu.matmul %374, %375, %cst_100 {dimension_numbers = #tpu.dot_dimension_numbers<[2], [1], [1], [2], [0, 0, 0, 1, 1, 2], [0], [0]>} : vector<2x8x8xf32>, vector<2x8x8xf32>, vector<2x8x8xf32> -> vector<2x8x8xf32>
    "tpu.trace_stop"() : () -> ()
    %377 = vector.extract_strided_slice %354 {offsets = [0, 0, 8], sizes = [2, 8, 8], strides = [1, 1, 1]} : vector<2x8x32xf32> to vector<2x8x8xf32>
    %378 = vector.extract_strided_slice %355 {offsets = [0, 0, 8], sizes = [2, 8, 8], strides = [1, 1, 1]} : vector<2x8x32xf32> to vector<2x8x8xf32>
    "tpu.trace_start"() <{level = 10 : i32, message = "bqd,bkd->bqk"}> : () -> ()
    %cst_101 = arith.constant dense<0.000000e+00> : vector<2x8x8xf32>
    %379 = tpu.matmul %377, %378, %cst_101 {dimension_numbers = #tpu.dot_dimension_numbers<[2], [2], [1], [1], [0, 0, 0, 1, 1, 1], [0], [0]>} : vector<2x8x8xf32>, vector<2x8x8xf32>, vector<2x8x8xf32> -> vector<2x8x8xf32>
    "tpu.trace_stop"() : () -> ()
    %380 = arith.addf %379, %361 : vector<2x8x8xf32>
    %cst_102 = arith.constant dense<0xFF800000> : vector<2x8xf32>
    %381 = vector.multi_reduction <maximumf>, %380, %cst_102 [2] : vector<2x8x8xf32> to vector<2x8xf32>
    %382 = vector.shape_cast %381 : vector<2x8xf32> to vector<2x8x1xf32>
    %383 = vector.broadcast %382 : vector<2x8x1xf32> to vector<2x8x8xf32>
    %384 = arith.subf %380, %383 : vector<2x8x8xf32>
    %385 = math.exp %384 : vector<2x8x8xf32>
    %cst_103 = arith.constant dense<0.000000e+00> : vector<2x8xf32>
    %386 = vector.multi_reduction <add>, %385, %cst_103 [2] : vector<2x8x8xf32> to vector<2x8xf32>
    %387 = vector.shape_cast %386 : vector<2x8xf32> to vector<2x8x1xf32>
    %388 = vector.broadcast %387 : vector<2x8x1xf32> to vector<2x8x8xf32>
    %389 = arith.divf %385, %388 : vector<2x8x8xf32>
    %390 = vector.extract_strided_slice %356 {offsets = [0, 0, 8], sizes = [2, 8, 8], strides = [1, 1, 1]} : vector<2x8x32xf32> to vector<2x8x8xf32>
    "tpu.trace_start"() <{level = 10 : i32, message = "bqk,bkd->bqd"}> : () -> ()
    %cst_104 = arith.constant dense<0.000000e+00> : vector<2x8x8xf32>
    %391 = tpu.matmul %389, %390, %cst_104 {dimension_numbers = #tpu.dot_dimension_numbers<[2], [1], [1], [2], [0, 0, 0, 1, 1, 2], [0], [0]>} : vector<2x8x8xf32>, vector<2x8x8xf32>, vector<2x8x8xf32> -> vector<2x8x8xf32>
    "tpu.trace_stop"() : () -> ()
    %392 = vector.extract_strided_slice %354 {offsets = [0, 0, 16], sizes = [2, 8, 8], strides = [1, 1, 1]} : vector<2x8x32xf32> to vector<2x8x8xf32>
    %393 = vector.extract_strided_slice %355 {offsets = [0, 0, 16], sizes = [2, 8, 8], strides = [1, 1, 1]} : vector<2x8x32xf32> to vector<2x8x8xf32>
    "tpu.trace_start"() <{level = 10 : i32, message = "bqd,bkd->bqk"}> : () -> ()
    %cst_105 = arith.constant dense<0.000000e+00> : vector<2x8x8xf32>
    %394 = tpu.matmul %392, %393, %cst_105 {dimension_numbers = #tpu.dot_dimension_numbers<[2], [2], [1], [1], [0, 0, 0, 1, 1, 1], [0], [0]>} : vector<2x8x8xf32>, vector<2x8x8xf32>, vector<2x8x8xf32> -> vector<2x8x8xf32>
    "tpu.trace_stop"() : () -> ()
    %395 = arith.addf %394, %361 : vector<2x8x8xf32>
    %cst_106 = arith.constant dense<0xFF800000> : vector<2x8xf32>
    %396 = vector.multi_reduction <maximumf>, %395, %cst_106 [2] : vector<2x8x8xf32> to vector<2x8xf32>
    %397 = vector.shape_cast %396 : vector<2x8xf32> to vector<2x8x1xf32>
    %398 = vector.broadcast %397 : vector<2x8x1xf32> to vector<2x8x8xf32>
    %399 = arith.subf %395, %398 : vector<2x8x8xf32>
    %400 = math.exp %399 : vector<2x8x8xf32>
    %cst_107 = arith.constant dense<0.000000e+00> : vector<2x8xf32>
    %401 = vector.multi_reduction <add>, %400, %cst_107 [2] : vector<2x8x8xf32> to vector<2x8xf32>
    %402 = vector.shape_cast %401 : vector<2x8xf32> to vector<2x8x1xf32>
    %403 = vector.broadcast %402 : vector<2x8x1xf32> to vector<2x8x8xf32>
    %404 = arith.divf %400, %403 : vector<2x8x8xf32>
    %405 = vector.extract_strided_slice %356 {offsets = [0, 0, 16], sizes = [2, 8, 8], strides = [1, 1, 1]} : vector<2x8x32xf32> to vector<2x8x8xf32>
    "tpu.trace_start"() <{level = 10 : i32, message = "bqk,bkd->bqd"}> : () -> ()
    %cst_108 = arith.constant dense<0.000000e+00> : vector<2x8x8xf32>
    %406 = tpu.matmul %404, %405, %cst_108 {dimension_numbers = #tpu.dot_dimension_numbers<[2], [1], [1], [2], [0, 0, 0, 1, 1, 2], [0], [0]>} : vector<2x8x8xf32>, vector<2x8x8xf32>, vector<2x8x8xf32> -> vector<2x8x8xf32>
    "tpu.trace_stop"() : () -> ()
    %407 = vector.extract_strided_slice %354 {offsets = [0, 0, 24], sizes = [2, 8, 8], strides = [1, 1, 1]} : vector<2x8x32xf32> to vector<2x8x8xf32>
    %408 = vector.extract_strided_slice %355 {offsets = [0, 0, 24], sizes = [2, 8, 8], strides = [1, 1, 1]} : vector<2x8x32xf32> to vector<2x8x8xf32>
    "tpu.trace_start"() <{level = 10 : i32, message = "bqd,bkd->bqk"}> : () -> ()
    %cst_109 = arith.constant dense<0.000000e+00> : vector<2x8x8xf32>
    %409 = tpu.matmul %407, %408, %cst_109 {dimension_numbers = #tpu.dot_dimension_numbers<[2], [2], [1], [1], [0, 0, 0, 1, 1, 1], [0], [0]>} : vector<2x8x8xf32>, vector<2x8x8xf32>, vector<2x8x8xf32> -> vector<2x8x8xf32>
    "tpu.trace_stop"() : () -> ()
    %410 = arith.addf %409, %361 : vector<2x8x8xf32>
    %cst_110 = arith.constant dense<0xFF800000> : vector<2x8xf32>
    %411 = vector.multi_reduction <maximumf>, %410, %cst_110 [2] : vector<2x8x8xf32> to vector<2x8xf32>
    %412 = vector.shape_cast %411 : vector<2x8xf32> to vector<2x8x1xf32>
    %413 = vector.broadcast %412 : vector<2x8x1xf32> to vector<2x8x8xf32>
    %414 = arith.subf %410, %413 : vector<2x8x8xf32>
    %415 = math.exp %414 : vector<2x8x8xf32>
    %cst_111 = arith.constant dense<0.000000e+00> : vector<2x8xf32>
    %416 = vector.multi_reduction <add>, %415, %cst_111 [2] : vector<2x8x8xf32> to vector<2x8xf32>
    %417 = vector.shape_cast %416 : vector<2x8xf32> to vector<2x8x1xf32>
    %418 = vector.broadcast %417 : vector<2x8x1xf32> to vector<2x8x8xf32>
    %419 = arith.divf %415, %418 : vector<2x8x8xf32>
    %420 = vector.extract_strided_slice %356 {offsets = [0, 0, 24], sizes = [2, 8, 8], strides = [1, 1, 1]} : vector<2x8x32xf32> to vector<2x8x8xf32>
    "tpu.trace_start"() <{level = 10 : i32, message = "bqk,bkd->bqd"}> : () -> ()
    %cst_112 = arith.constant dense<0.000000e+00> : vector<2x8x8xf32>
    %421 = tpu.matmul %419, %420, %cst_112 {dimension_numbers = #tpu.dot_dimension_numbers<[2], [1], [1], [2], [0, 0, 0, 1, 1, 2], [0], [0]>} : vector<2x8x8xf32>, vector<2x8x8xf32>, vector<2x8x8xf32> -> vector<2x8x8xf32>
    "tpu.trace_stop"() : () -> ()
    %422 = tpu.concatenate %376, %391, %406, %421 in 2 : vector<2x8x8xf32>, vector<2x8x8xf32>, vector<2x8x8xf32>, vector<2x8x8xf32> -> vector<2x8x32xf32>
    %423 = vector.shape_cast %3 : vector<2x8xf32> to vector<2x8x1xf32>
    %424 = vector.broadcast %423 : vector<2x8x1xf32> to vector<2x8x32xf32>
    %425 = arith.mulf %422, %424 : vector<2x8x32xf32>
    %426 = vector.shape_cast %425 : vector<2x8x32xf32> to vector<16x32xf32>
    %c11 = arith.constant 11 : index
    %c0_113 = arith.constant 0 : index
    %c0_114 = arith.constant 0 : index
    %427 = vector.load %arg3[%c11, %c0_113, %c0_114] : memref<22x64x128xf32, #tpu.memory_space<vmem>>, vector<1x64x128xf32>
    %428 = vector.shape_cast %427 : vector<1x64x128xf32> to vector<64x128xf32>
    %429 = vector.extract_strided_slice %428 {offsets = [0, 0], sizes = [32, 32], strides = [1, 1]} : vector<64x128xf32> to vector<32x32xf32>
    %cst_115 = arith.constant dense<0.000000e+00> : vector<16x32xf32>
    %430 = tpu.matmul %426, %429, %cst_115 {dimension_numbers = #tpu.dot_dimension_numbers<[1], [0], [0], [1], [0, 0, 1, 1], [], []>} : vector<16x32xf32>, vector<32x32xf32>, vector<16x32xf32> -> vector<16x32xf32>
    %431 = vector.extract_strided_slice %0 {offsets = [17, 0], sizes = [1, 32], strides = [1, 1]} : vector<40x128xf32> to vector<1x32xf32>
    %432 = vector.broadcast %431 : vector<1x32xf32> to vector<16x32xf32>
    %433 = arith.addf %430, %432 : vector<16x32xf32>
    %434 = arith.addf %31, %433 : vector<16x32xf32>
    %cst_116 = arith.constant dense<0.000000e+00> : vector<16xf32>
    %435 = vector.multi_reduction <add>, %434, %cst_116 [1] : vector<16x32xf32> to vector<16xf32>
    %436 = vector.shape_cast %435 : vector<16xf32> to vector<16x1xf32>
    %cst_117 = arith.constant 3.200000e+01 : f32
    %437 = vector.broadcast %cst_117 : f32 to vector<16x1xf32>
    %438 = arith.divf %436, %437 : vector<16x1xf32>
    %439 = vector.broadcast %438 : vector<16x1xf32> to vector<16x32xf32>
    %440 = arith.subf %434, %439 : vector<16x32xf32>
    %441 = arith.mulf %440, %440 : vector<16x32xf32>
    %cst_118 = arith.constant dense<0.000000e+00> : vector<16xf32>
    %442 = vector.multi_reduction <add>, %441, %cst_118 [1] : vector<16x32xf32> to vector<16xf32>
    %443 = vector.shape_cast %442 : vector<16xf32> to vector<16x1xf32>
    %cst_119 = arith.constant 3.200000e+01 : f32
    %444 = vector.broadcast %cst_119 : f32 to vector<16x1xf32>
    %445 = arith.divf %443, %444 : vector<16x1xf32>
    %446 = vector.broadcast %438 : vector<16x1xf32> to vector<16x32xf32>
    %447 = arith.subf %434, %446 : vector<16x32xf32>
    %cst_120 = arith.constant 9.99999974E-6 : f32
    %448 = vector.broadcast %cst_120 : f32 to vector<16x1xf32>
    %449 = arith.addf %445, %448 : vector<16x1xf32>
    %450 = math.rsqrt %449 : vector<16x1xf32>
    %451 = vector.broadcast %450 : vector<16x1xf32> to vector<16x32xf32>
    %452 = arith.mulf %447, %451 : vector<16x32xf32>
    %453 = vector.extract_strided_slice %0 {offsets = [18, 0], sizes = [1, 32], strides = [1, 1]} : vector<40x128xf32> to vector<1x32xf32>
    %454 = vector.broadcast %453 : vector<1x32xf32> to vector<16x32xf32>
    %455 = arith.mulf %452, %454 : vector<16x32xf32>
    %456 = vector.extract_strided_slice %0 {offsets = [19, 0], sizes = [1, 32], strides = [1, 1]} : vector<40x128xf32> to vector<1x32xf32>
    %457 = vector.broadcast %456 : vector<1x32xf32> to vector<16x32xf32>
    %458 = arith.addf %455, %457 : vector<16x32xf32>
    %c12 = arith.constant 12 : index
    %c0_121 = arith.constant 0 : index
    %c0_122 = arith.constant 0 : index
    %459 = vector.load %arg3[%c12, %c0_121, %c0_122] : memref<22x64x128xf32, #tpu.memory_space<vmem>>, vector<1x64x128xf32>
    %460 = vector.shape_cast %459 : vector<1x64x128xf32> to vector<64x128xf32>
    %461 = vector.extract_strided_slice %460 {offsets = [0, 0], sizes = [32, 96], strides = [1, 1]} : vector<64x128xf32> to vector<32x96xf32>
    %462 = vector.extract_strided_slice %0 {offsets = [20, 0], sizes = [1, 96], strides = [1, 1]} : vector<40x128xf32> to vector<1x96xf32>
    %463 = vector.extract_strided_slice %461 {offsets = [0, 0], sizes = [32, 32], strides = [1, 1]} : vector<32x96xf32> to vector<32x32xf32>
    %cst_123 = arith.constant dense<0.000000e+00> : vector<16x32xf32>
    %464 = tpu.matmul %458, %463, %cst_123 {dimension_numbers = #tpu.dot_dimension_numbers<[1], [0], [0], [1], [0, 0, 1, 1], [], []>} : vector<16x32xf32>, vector<32x32xf32>, vector<16x32xf32> -> vector<16x32xf32>
    %465 = vector.extract_strided_slice %462 {offsets = [0, 0], sizes = [1, 32], strides = [1, 1]} : vector<1x96xf32> to vector<1x32xf32>
    %466 = vector.broadcast %465 : vector<1x32xf32> to vector<16x32xf32>
    %467 = arith.addf %464, %466 : vector<16x32xf32>
    %468 = vector.extract_strided_slice %461 {offsets = [0, 32], sizes = [32, 64], strides = [1, 1]} : vector<32x96xf32> to vector<32x64xf32>
    %cst_124 = arith.constant dense<0.000000e+00> : vector<16x64xf32>
    %469 = tpu.matmul %343, %468, %cst_124 {dimension_numbers = #tpu.dot_dimension_numbers<[1], [0], [0], [1], [0, 0, 1, 1], [], []>} : vector<16x32xf32>, vector<32x64xf32>, vector<16x64xf32> -> vector<16x64xf32>
    %470 = vector.extract_strided_slice %462 {offsets = [0, 32], sizes = [1, 64], strides = [1, 1]} : vector<1x96xf32> to vector<1x64xf32>
    %471 = vector.broadcast %470 : vector<1x64xf32> to vector<16x64xf32>
    %472 = arith.addf %469, %471 : vector<16x64xf32>
    %473 = vector.extract_strided_slice %472 {offsets = [0, 0], sizes = [16, 32], strides = [1, 1]} : vector<16x64xf32> to vector<16x32xf32>
    %474 = vector.extract_strided_slice %472 {offsets = [0, 32], sizes = [16, 32], strides = [1, 1]} : vector<16x64xf32> to vector<16x32xf32>
    %475 = vector.shape_cast %467 : vector<16x32xf32> to vector<2x8x32xf32>
    %476 = vector.shape_cast %473 : vector<16x32xf32> to vector<2x8x32xf32>
    %477 = vector.shape_cast %474 : vector<16x32xf32> to vector<2x8x32xf32>
    %478 = vector.shape_cast %7 : vector<2x8xf32> to vector<2x1x8xf32>
    %479 = vector.extract_strided_slice %475 {offsets = [0, 0, 0], sizes = [2, 8, 8], strides = [1, 1, 1]} : vector<2x8x32xf32> to vector<2x8x8xf32>
    %480 = vector.extract_strided_slice %476 {offsets = [0, 0, 0], sizes = [2, 8, 8], strides = [1, 1, 1]} : vector<2x8x32xf32> to vector<2x8x8xf32>
    "tpu.trace_start"() <{level = 10 : i32, message = "bqd,bkd->bqk"}> : () -> ()
    %cst_125 = arith.constant dense<0.000000e+00> : vector<2x8x8xf32>
    %481 = tpu.matmul %479, %480, %cst_125 {dimension_numbers = #tpu.dot_dimension_numbers<[2], [2], [1], [1], [0, 0, 0, 1, 1, 1], [0], [0]>} : vector<2x8x8xf32>, vector<2x8x8xf32>, vector<2x8x8xf32> -> vector<2x8x8xf32>
    "tpu.trace_stop"() : () -> ()
    %482 = vector.broadcast %478 : vector<2x1x8xf32> to vector<2x8x8xf32>
    %483 = arith.addf %481, %482 : vector<2x8x8xf32>
    %cst_126 = arith.constant dense<0xFF800000> : vector<2x8xf32>
    %484 = vector.multi_reduction <maximumf>, %483, %cst_126 [2] : vector<2x8x8xf32> to vector<2x8xf32>
    %485 = vector.shape_cast %484 : vector<2x8xf32> to vector<2x8x1xf32>
    %486 = vector.broadcast %485 : vector<2x8x1xf32> to vector<2x8x8xf32>
    %487 = arith.subf %483, %486 : vector<2x8x8xf32>
    %488 = math.exp %487 : vector<2x8x8xf32>
    %cst_127 = arith.constant dense<0.000000e+00> : vector<2x8xf32>
    %489 = vector.multi_reduction <add>, %488, %cst_127 [2] : vector<2x8x8xf32> to vector<2x8xf32>
    %490 = vector.shape_cast %489 : vector<2x8xf32> to vector<2x8x1xf32>
    %491 = vector.broadcast %490 : vector<2x8x1xf32> to vector<2x8x8xf32>
    %492 = arith.divf %488, %491 : vector<2x8x8xf32>
    %493 = vector.extract_strided_slice %477 {offsets = [0, 0, 0], sizes = [2, 8, 8], strides = [1, 1, 1]} : vector<2x8x32xf32> to vector<2x8x8xf32>
    "tpu.trace_start"() <{level = 10 : i32, message = "bqk,bkd->bqd"}> : () -> ()
    %cst_128 = arith.constant dense<0.000000e+00> : vector<2x8x8xf32>
    %494 = tpu.matmul %492, %493, %cst_128 {dimension_numbers = #tpu.dot_dimension_numbers<[2], [1], [1], [2], [0, 0, 0, 1, 1, 2], [0], [0]>} : vector<2x8x8xf32>, vector<2x8x8xf32>, vector<2x8x8xf32> -> vector<2x8x8xf32>
    "tpu.trace_stop"() : () -> ()
    %495 = vector.extract_strided_slice %475 {offsets = [0, 0, 8], sizes = [2, 8, 8], strides = [1, 1, 1]} : vector<2x8x32xf32> to vector<2x8x8xf32>
    %496 = vector.extract_strided_slice %476 {offsets = [0, 0, 8], sizes = [2, 8, 8], strides = [1, 1, 1]} : vector<2x8x32xf32> to vector<2x8x8xf32>
    "tpu.trace_start"() <{level = 10 : i32, message = "bqd,bkd->bqk"}> : () -> ()
    %cst_129 = arith.constant dense<0.000000e+00> : vector<2x8x8xf32>
    %497 = tpu.matmul %495, %496, %cst_129 {dimension_numbers = #tpu.dot_dimension_numbers<[2], [2], [1], [1], [0, 0, 0, 1, 1, 1], [0], [0]>} : vector<2x8x8xf32>, vector<2x8x8xf32>, vector<2x8x8xf32> -> vector<2x8x8xf32>
    "tpu.trace_stop"() : () -> ()
    %498 = vector.broadcast %478 : vector<2x1x8xf32> to vector<2x8x8xf32>
    %499 = arith.addf %497, %498 : vector<2x8x8xf32>
    %cst_130 = arith.constant dense<0xFF800000> : vector<2x8xf32>
    %500 = vector.multi_reduction <maximumf>, %499, %cst_130 [2] : vector<2x8x8xf32> to vector<2x8xf32>
    %501 = vector.shape_cast %500 : vector<2x8xf32> to vector<2x8x1xf32>
    %502 = vector.broadcast %501 : vector<2x8x1xf32> to vector<2x8x8xf32>
    %503 = arith.subf %499, %502 : vector<2x8x8xf32>
    %504 = math.exp %503 : vector<2x8x8xf32>
    %cst_131 = arith.constant dense<0.000000e+00> : vector<2x8xf32>
    %505 = vector.multi_reduction <add>, %504, %cst_131 [2] : vector<2x8x8xf32> to vector<2x8xf32>
    %506 = vector.shape_cast %505 : vector<2x8xf32> to vector<2x8x1xf32>
    %507 = vector.broadcast %506 : vector<2x8x1xf32> to vector<2x8x8xf32>
    %508 = arith.divf %504, %507 : vector<2x8x8xf32>
    %509 = vector.extract_strided_slice %477 {offsets = [0, 0, 8], sizes = [2, 8, 8], strides = [1, 1, 1]} : vector<2x8x32xf32> to vector<2x8x8xf32>
    "tpu.trace_start"() <{level = 10 : i32, message = "bqk,bkd->bqd"}> : () -> ()
    %cst_132 = arith.constant dense<0.000000e+00> : vector<2x8x8xf32>
    %510 = tpu.matmul %508, %509, %cst_132 {dimension_numbers = #tpu.dot_dimension_numbers<[2], [1], [1], [2], [0, 0, 0, 1, 1, 2], [0], [0]>} : vector<2x8x8xf32>, vector<2x8x8xf32>, vector<2x8x8xf32> -> vector<2x8x8xf32>
    "tpu.trace_stop"() : () -> ()
    %511 = vector.extract_strided_slice %475 {offsets = [0, 0, 16], sizes = [2, 8, 8], strides = [1, 1, 1]} : vector<2x8x32xf32> to vector<2x8x8xf32>
    %512 = vector.extract_strided_slice %476 {offsets = [0, 0, 16], sizes = [2, 8, 8], strides = [1, 1, 1]} : vector<2x8x32xf32> to vector<2x8x8xf32>
    "tpu.trace_start"() <{level = 10 : i32, message = "bqd,bkd->bqk"}> : () -> ()
    %cst_133 = arith.constant dense<0.000000e+00> : vector<2x8x8xf32>
    %513 = tpu.matmul %511, %512, %cst_133 {dimension_numbers = #tpu.dot_dimension_numbers<[2], [2], [1], [1], [0, 0, 0, 1, 1, 1], [0], [0]>} : vector<2x8x8xf32>, vector<2x8x8xf32>, vector<2x8x8xf32> -> vector<2x8x8xf32>
    "tpu.trace_stop"() : () -> ()
    %514 = vector.broadcast %478 : vector<2x1x8xf32> to vector<2x8x8xf32>
    %515 = arith.addf %513, %514 : vector<2x8x8xf32>
    %cst_134 = arith.constant dense<0xFF800000> : vector<2x8xf32>
    %516 = vector.multi_reduction <maximumf>, %515, %cst_134 [2] : vector<2x8x8xf32> to vector<2x8xf32>
    %517 = vector.shape_cast %516 : vector<2x8xf32> to vector<2x8x1xf32>
    %518 = vector.broadcast %517 : vector<2x8x1xf32> to vector<2x8x8xf32>
    %519 = arith.subf %515, %518 : vector<2x8x8xf32>
    %520 = math.exp %519 : vector<2x8x8xf32>
    %cst_135 = arith.constant dense<0.000000e+00> : vector<2x8xf32>
    %521 = vector.multi_reduction <add>, %520, %cst_135 [2] : vector<2x8x8xf32> to vector<2x8xf32>
    %522 = vector.shape_cast %521 : vector<2x8xf32> to vector<2x8x1xf32>
    %523 = vector.broadcast %522 : vector<2x8x1xf32> to vector<2x8x8xf32>
    %524 = arith.divf %520, %523 : vector<2x8x8xf32>
    %525 = vector.extract_strided_slice %477 {offsets = [0, 0, 16], sizes = [2, 8, 8], strides = [1, 1, 1]} : vector<2x8x32xf32> to vector<2x8x8xf32>
    "tpu.trace_start"() <{level = 10 : i32, message = "bqk,bkd->bqd"}> : () -> ()
    %cst_136 = arith.constant dense<0.000000e+00> : vector<2x8x8xf32>
    %526 = tpu.matmul %524, %525, %cst_136 {dimension_numbers = #tpu.dot_dimension_numbers<[2], [1], [1], [2], [0, 0, 0, 1, 1, 2], [0], [0]>} : vector<2x8x8xf32>, vector<2x8x8xf32>, vector<2x8x8xf32> -> vector<2x8x8xf32>
    "tpu.trace_stop"() : () -> ()
    %527 = vector.extract_strided_slice %475 {offsets = [0, 0, 24], sizes = [2, 8, 8], strides = [1, 1, 1]} : vector<2x8x32xf32> to vector<2x8x8xf32>
    %528 = vector.extract_strided_slice %476 {offsets = [0, 0, 24], sizes = [2, 8, 8], strides = [1, 1, 1]} : vector<2x8x32xf32> to vector<2x8x8xf32>
    "tpu.trace_start"() <{level = 10 : i32, message = "bqd,bkd->bqk"}> : () -> ()
    %cst_137 = arith.constant dense<0.000000e+00> : vector<2x8x8xf32>
    %529 = tpu.matmul %527, %528, %cst_137 {dimension_numbers = #tpu.dot_dimension_numbers<[2], [2], [1], [1], [0, 0, 0, 1, 1, 1], [0], [0]>} : vector<2x8x8xf32>, vector<2x8x8xf32>, vector<2x8x8xf32> -> vector<2x8x8xf32>
    "tpu.trace_stop"() : () -> ()
    %530 = vector.broadcast %478 : vector<2x1x8xf32> to vector<2x8x8xf32>
    %531 = arith.addf %529, %530 : vector<2x8x8xf32>
    %cst_138 = arith.constant dense<0xFF800000> : vector<2x8xf32>
    %532 = vector.multi_reduction <maximumf>, %531, %cst_138 [2] : vector<2x8x8xf32> to vector<2x8xf32>
    %533 = vector.shape_cast %532 : vector<2x8xf32> to vector<2x8x1xf32>
    %534 = vector.broadcast %533 : vector<2x8x1xf32> to vector<2x8x8xf32>
    %535 = arith.subf %531, %534 : vector<2x8x8xf32>
    %536 = math.exp %535 : vector<2x8x8xf32>
    %cst_139 = arith.constant dense<0.000000e+00> : vector<2x8xf32>
    %537 = vector.multi_reduction <add>, %536, %cst_139 [2] : vector<2x8x8xf32> to vector<2x8xf32>
    %538 = vector.shape_cast %537 : vector<2x8xf32> to vector<2x8x1xf32>
    %539 = vector.broadcast %538 : vector<2x8x1xf32> to vector<2x8x8xf32>
    %540 = arith.divf %536, %539 : vector<2x8x8xf32>
    %541 = vector.extract_strided_slice %477 {offsets = [0, 0, 24], sizes = [2, 8, 8], strides = [1, 1, 1]} : vector<2x8x32xf32> to vector<2x8x8xf32>
    "tpu.trace_start"() <{level = 10 : i32, message = "bqk,bkd->bqd"}> : () -> ()
    %cst_140 = arith.constant dense<0.000000e+00> : vector<2x8x8xf32>
    %542 = tpu.matmul %540, %541, %cst_140 {dimension_numbers = #tpu.dot_dimension_numbers<[2], [1], [1], [2], [0, 0, 0, 1, 1, 2], [0], [0]>} : vector<2x8x8xf32>, vector<2x8x8xf32>, vector<2x8x8xf32> -> vector<2x8x8xf32>
    "tpu.trace_stop"() : () -> ()
    %543 = tpu.concatenate %494, %510, %526, %542 in 2 : vector<2x8x8xf32>, vector<2x8x8xf32>, vector<2x8x8xf32>, vector<2x8x8xf32> -> vector<2x8x32xf32>
    %544 = vector.shape_cast %3 : vector<2x8xf32> to vector<2x8x1xf32>
    %545 = vector.broadcast %544 : vector<2x8x1xf32> to vector<2x8x32xf32>
    %546 = arith.mulf %543, %545 : vector<2x8x32xf32>
    %547 = vector.shape_cast %546 : vector<2x8x32xf32> to vector<16x32xf32>
    %c13 = arith.constant 13 : index
    %c0_141 = arith.constant 0 : index
    %c0_142 = arith.constant 0 : index
    %548 = vector.load %arg3[%c13, %c0_141, %c0_142] : memref<22x64x128xf32, #tpu.memory_space<vmem>>, vector<1x64x128xf32>
    %549 = vector.shape_cast %548 : vector<1x64x128xf32> to vector<64x128xf32>
    %550 = vector.extract_strided_slice %549 {offsets = [0, 0], sizes = [32, 32], strides = [1, 1]} : vector<64x128xf32> to vector<32x32xf32>
    %cst_143 = arith.constant dense<0.000000e+00> : vector<16x32xf32>
    %551 = tpu.matmul %547, %550, %cst_143 {dimension_numbers = #tpu.dot_dimension_numbers<[1], [0], [0], [1], [0, 0, 1, 1], [], []>} : vector<16x32xf32>, vector<32x32xf32>, vector<16x32xf32> -> vector<16x32xf32>
    %552 = vector.extract_strided_slice %0 {offsets = [21, 0], sizes = [1, 32], strides = [1, 1]} : vector<40x128xf32> to vector<1x32xf32>
    %553 = vector.broadcast %552 : vector<1x32xf32> to vector<16x32xf32>
    %554 = arith.addf %551, %553 : vector<16x32xf32>
    %555 = arith.addf %458, %554 : vector<16x32xf32>
    %cst_144 = arith.constant dense<0.000000e+00> : vector<16xf32>
    %556 = vector.multi_reduction <add>, %555, %cst_144 [1] : vector<16x32xf32> to vector<16xf32>
    %557 = vector.shape_cast %556 : vector<16xf32> to vector<16x1xf32>
    %cst_145 = arith.constant 3.200000e+01 : f32
    %558 = vector.broadcast %cst_145 : f32 to vector<16x1xf32>
    %559 = arith.divf %557, %558 : vector<16x1xf32>
    %560 = vector.broadcast %559 : vector<16x1xf32> to vector<16x32xf32>
    %561 = arith.subf %555, %560 : vector<16x32xf32>
    %562 = arith.mulf %561, %561 : vector<16x32xf32>
    %cst_146 = arith.constant dense<0.000000e+00> : vector<16xf32>
    %563 = vector.multi_reduction <add>, %562, %cst_146 [1] : vector<16x32xf32> to vector<16xf32>
    %564 = vector.shape_cast %563 : vector<16xf32> to vector<16x1xf32>
    %cst_147 = arith.constant 3.200000e+01 : f32
    %565 = vector.broadcast %cst_147 : f32 to vector<16x1xf32>
    %566 = arith.divf %564, %565 : vector<16x1xf32>
    %567 = vector.broadcast %559 : vector<16x1xf32> to vector<16x32xf32>
    %568 = arith.subf %555, %567 : vector<16x32xf32>
    %cst_148 = arith.constant 9.99999974E-6 : f32
    %569 = vector.broadcast %cst_148 : f32 to vector<16x1xf32>
    %570 = arith.addf %566, %569 : vector<16x1xf32>
    %571 = math.rsqrt %570 : vector<16x1xf32>
    %572 = vector.broadcast %571 : vector<16x1xf32> to vector<16x32xf32>
    %573 = arith.mulf %568, %572 : vector<16x32xf32>
    %574 = vector.extract_strided_slice %0 {offsets = [22, 0], sizes = [1, 32], strides = [1, 1]} : vector<40x128xf32> to vector<1x32xf32>
    %575 = vector.broadcast %574 : vector<1x32xf32> to vector<16x32xf32>
    %576 = arith.mulf %573, %575 : vector<16x32xf32>
    %577 = vector.extract_strided_slice %0 {offsets = [23, 0], sizes = [1, 32], strides = [1, 1]} : vector<40x128xf32> to vector<1x32xf32>
    %578 = vector.broadcast %577 : vector<1x32xf32> to vector<16x32xf32>
    %579 = arith.addf %576, %578 : vector<16x32xf32>
    %c14 = arith.constant 14 : index
    %c0_149 = arith.constant 0 : index
    %c0_150 = arith.constant 0 : index
    %580 = vector.load %arg3[%c14, %c0_149, %c0_150] : memref<22x64x128xf32, #tpu.memory_space<vmem>>, vector<1x64x128xf32>
    %581 = vector.shape_cast %580 : vector<1x64x128xf32> to vector<64x128xf32>
    %582 = vector.extract_strided_slice %581 {offsets = [0, 0], sizes = [32, 64], strides = [1, 1]} : vector<64x128xf32> to vector<32x64xf32>
    %cst_151 = arith.constant dense<0.000000e+00> : vector<16x64xf32>
    %583 = tpu.matmul %579, %582, %cst_151 {dimension_numbers = #tpu.dot_dimension_numbers<[1], [0], [0], [1], [0, 0, 1, 1], [], []>} : vector<16x32xf32>, vector<32x64xf32>, vector<16x64xf32> -> vector<16x64xf32>
    %584 = vector.extract_strided_slice %0 {offsets = [24, 0], sizes = [1, 64], strides = [1, 1]} : vector<40x128xf32> to vector<1x64xf32>
    %585 = vector.broadcast %584 : vector<1x64xf32> to vector<16x64xf32>
    %586 = arith.addf %583, %585 : vector<16x64xf32>
    %cst_152 = arith.constant 0.000000e+00 : f32
    %587 = vector.broadcast %cst_152 : f32 to vector<16x64xf32>
    %588 = arith.maximumf %586, %587 : vector<16x64xf32>
    %c15 = arith.constant 15 : index
    %c0_153 = arith.constant 0 : index
    %c0_154 = arith.constant 0 : index
    %589 = vector.load %arg3[%c15, %c0_153, %c0_154] : memref<22x64x128xf32, #tpu.memory_space<vmem>>, vector<1x64x128xf32>
    %590 = vector.shape_cast %589 : vector<1x64x128xf32> to vector<64x128xf32>
    %591 = vector.extract_strided_slice %590 {offsets = [0, 0], sizes = [64, 32], strides = [1, 1]} : vector<64x128xf32> to vector<64x32xf32>
    %cst_155 = arith.constant dense<0.000000e+00> : vector<16x32xf32>
    %592 = tpu.matmul %588, %591, %cst_155 {dimension_numbers = #tpu.dot_dimension_numbers<[1], [0], [0], [1], [0, 0, 1, 1], [], []>} : vector<16x64xf32>, vector<64x32xf32>, vector<16x32xf32> -> vector<16x32xf32>
    %593 = vector.extract_strided_slice %0 {offsets = [25, 0], sizes = [1, 32], strides = [1, 1]} : vector<40x128xf32> to vector<1x32xf32>
    %594 = vector.broadcast %593 : vector<1x32xf32> to vector<16x32xf32>
    %595 = arith.addf %592, %594 : vector<16x32xf32>
    %596 = arith.addf %579, %595 : vector<16x32xf32>
    %cst_156 = arith.constant dense<0.000000e+00> : vector<16xf32>
    %597 = vector.multi_reduction <add>, %596, %cst_156 [1] : vector<16x32xf32> to vector<16xf32>
    %598 = vector.shape_cast %597 : vector<16xf32> to vector<16x1xf32>
    %cst_157 = arith.constant 3.200000e+01 : f32
    %599 = vector.broadcast %cst_157 : f32 to vector<16x1xf32>
    %600 = arith.divf %598, %599 : vector<16x1xf32>
    %601 = vector.broadcast %600 : vector<16x1xf32> to vector<16x32xf32>
    %602 = arith.subf %596, %601 : vector<16x32xf32>
    %603 = arith.mulf %602, %602 : vector<16x32xf32>
    %cst_158 = arith.constant dense<0.000000e+00> : vector<16xf32>
    %604 = vector.multi_reduction <add>, %603, %cst_158 [1] : vector<16x32xf32> to vector<16xf32>
    %605 = vector.shape_cast %604 : vector<16xf32> to vector<16x1xf32>
    %cst_159 = arith.constant 3.200000e+01 : f32
    %606 = vector.broadcast %cst_159 : f32 to vector<16x1xf32>
    %607 = arith.divf %605, %606 : vector<16x1xf32>
    %608 = vector.broadcast %600 : vector<16x1xf32> to vector<16x32xf32>
    %609 = arith.subf %596, %608 : vector<16x32xf32>
    %cst_160 = arith.constant 9.99999974E-6 : f32
    %610 = vector.broadcast %cst_160 : f32 to vector<16x1xf32>
    %611 = arith.addf %607, %610 : vector<16x1xf32>
    %612 = math.rsqrt %611 : vector<16x1xf32>
    %613 = vector.broadcast %612 : vector<16x1xf32> to vector<16x32xf32>
    %614 = arith.mulf %609, %613 : vector<16x32xf32>
    %615 = vector.extract_strided_slice %0 {offsets = [26, 0], sizes = [1, 32], strides = [1, 1]} : vector<40x128xf32> to vector<1x32xf32>
    %616 = vector.broadcast %615 : vector<1x32xf32> to vector<16x32xf32>
    %617 = arith.mulf %614, %616 : vector<16x32xf32>
    %618 = vector.extract_strided_slice %0 {offsets = [27, 0], sizes = [1, 32], strides = [1, 1]} : vector<40x128xf32> to vector<1x32xf32>
    %619 = vector.broadcast %618 : vector<1x32xf32> to vector<16x32xf32>
    %620 = arith.addf %617, %619 : vector<16x32xf32>
    %c16 = arith.constant 16 : index
    %c0_161 = arith.constant 0 : index
    %c0_162 = arith.constant 0 : index
    %621 = vector.load %arg3[%c16, %c0_161, %c0_162] : memref<22x64x128xf32, #tpu.memory_space<vmem>>, vector<1x64x128xf32>
    %622 = vector.shape_cast %621 : vector<1x64x128xf32> to vector<64x128xf32>
    %623 = vector.extract_strided_slice %622 {offsets = [0, 0], sizes = [32, 96], strides = [1, 1]} : vector<64x128xf32> to vector<32x96xf32>
    %624 = vector.extract_strided_slice %0 {offsets = [28, 0], sizes = [1, 96], strides = [1, 1]} : vector<40x128xf32> to vector<1x96xf32>
    %cst_163 = arith.constant dense<0.000000e+00> : vector<16x96xf32>
    %625 = tpu.matmul %620, %623, %cst_163 {dimension_numbers = #tpu.dot_dimension_numbers<[1], [0], [0], [1], [0, 0, 1, 1], [], []>} : vector<16x32xf32>, vector<32x96xf32>, vector<16x96xf32> -> vector<16x96xf32>
    %626 = vector.broadcast %624 : vector<1x96xf32> to vector<16x96xf32>
    %627 = arith.addf %625, %626 : vector<16x96xf32>
    %628 = vector.extract_strided_slice %627 {offsets = [0, 0], sizes = [16, 32], strides = [1, 1]} : vector<16x96xf32> to vector<16x32xf32>
    %629 = vector.extract_strided_slice %627 {offsets = [0, 32], sizes = [16, 32], strides = [1, 1]} : vector<16x96xf32> to vector<16x32xf32>
    %630 = vector.extract_strided_slice %627 {offsets = [0, 64], sizes = [16, 32], strides = [1, 1]} : vector<16x96xf32> to vector<16x32xf32>
    %631 = vector.shape_cast %628 : vector<16x32xf32> to vector<2x8x32xf32>
    %632 = vector.shape_cast %629 : vector<16x32xf32> to vector<2x8x32xf32>
    %633 = vector.shape_cast %630 : vector<16x32xf32> to vector<2x8x32xf32>
    %634 = vector.shape_cast %11 : vector<2x8xf32> to vector<2x1x8xf32>
    %635 = vector.shape_cast %17 : vector<8x8xf32> to vector<1x8x8xf32>
    %636 = vector.broadcast %634 : vector<2x1x8xf32> to vector<2x8x8xf32>
    %637 = vector.broadcast %635 : vector<1x8x8xf32> to vector<2x8x8xf32>
    %638 = arith.addf %636, %637 : vector<2x8x8xf32>
    %639 = vector.extract_strided_slice %631 {offsets = [0, 0, 0], sizes = [2, 8, 8], strides = [1, 1, 1]} : vector<2x8x32xf32> to vector<2x8x8xf32>
    %640 = vector.extract_strided_slice %632 {offsets = [0, 0, 0], sizes = [2, 8, 8], strides = [1, 1, 1]} : vector<2x8x32xf32> to vector<2x8x8xf32>
    "tpu.trace_start"() <{level = 10 : i32, message = "bqd,bkd->bqk"}> : () -> ()
    %cst_164 = arith.constant dense<0.000000e+00> : vector<2x8x8xf32>
    %641 = tpu.matmul %639, %640, %cst_164 {dimension_numbers = #tpu.dot_dimension_numbers<[2], [2], [1], [1], [0, 0, 0, 1, 1, 1], [0], [0]>} : vector<2x8x8xf32>, vector<2x8x8xf32>, vector<2x8x8xf32> -> vector<2x8x8xf32>
    "tpu.trace_stop"() : () -> ()
    %642 = arith.addf %641, %638 : vector<2x8x8xf32>
    %cst_165 = arith.constant dense<0xFF800000> : vector<2x8xf32>
    %643 = vector.multi_reduction <maximumf>, %642, %cst_165 [2] : vector<2x8x8xf32> to vector<2x8xf32>
    %644 = vector.shape_cast %643 : vector<2x8xf32> to vector<2x8x1xf32>
    %645 = vector.broadcast %644 : vector<2x8x1xf32> to vector<2x8x8xf32>
    %646 = arith.subf %642, %645 : vector<2x8x8xf32>
    %647 = math.exp %646 : vector<2x8x8xf32>
    %cst_166 = arith.constant dense<0.000000e+00> : vector<2x8xf32>
    %648 = vector.multi_reduction <add>, %647, %cst_166 [2] : vector<2x8x8xf32> to vector<2x8xf32>
    %649 = vector.shape_cast %648 : vector<2x8xf32> to vector<2x8x1xf32>
    %650 = vector.broadcast %649 : vector<2x8x1xf32> to vector<2x8x8xf32>
    %651 = arith.divf %647, %650 : vector<2x8x8xf32>
    %652 = vector.extract_strided_slice %633 {offsets = [0, 0, 0], sizes = [2, 8, 8], strides = [1, 1, 1]} : vector<2x8x32xf32> to vector<2x8x8xf32>
    "tpu.trace_start"() <{level = 10 : i32, message = "bqk,bkd->bqd"}> : () -> ()
    %cst_167 = arith.constant dense<0.000000e+00> : vector<2x8x8xf32>
    %653 = tpu.matmul %651, %652, %cst_167 {dimension_numbers = #tpu.dot_dimension_numbers<[2], [1], [1], [2], [0, 0, 0, 1, 1, 2], [0], [0]>} : vector<2x8x8xf32>, vector<2x8x8xf32>, vector<2x8x8xf32> -> vector<2x8x8xf32>
    "tpu.trace_stop"() : () -> ()
    %654 = vector.extract_strided_slice %631 {offsets = [0, 0, 8], sizes = [2, 8, 8], strides = [1, 1, 1]} : vector<2x8x32xf32> to vector<2x8x8xf32>
    %655 = vector.extract_strided_slice %632 {offsets = [0, 0, 8], sizes = [2, 8, 8], strides = [1, 1, 1]} : vector<2x8x32xf32> to vector<2x8x8xf32>
    "tpu.trace_start"() <{level = 10 : i32, message = "bqd,bkd->bqk"}> : () -> ()
    %cst_168 = arith.constant dense<0.000000e+00> : vector<2x8x8xf32>
    %656 = tpu.matmul %654, %655, %cst_168 {dimension_numbers = #tpu.dot_dimension_numbers<[2], [2], [1], [1], [0, 0, 0, 1, 1, 1], [0], [0]>} : vector<2x8x8xf32>, vector<2x8x8xf32>, vector<2x8x8xf32> -> vector<2x8x8xf32>
    "tpu.trace_stop"() : () -> ()
    %657 = arith.addf %656, %638 : vector<2x8x8xf32>
    %cst_169 = arith.constant dense<0xFF800000> : vector<2x8xf32>
    %658 = vector.multi_reduction <maximumf>, %657, %cst_169 [2] : vector<2x8x8xf32> to vector<2x8xf32>
    %659 = vector.shape_cast %658 : vector<2x8xf32> to vector<2x8x1xf32>
    %660 = vector.broadcast %659 : vector<2x8x1xf32> to vector<2x8x8xf32>
    %661 = arith.subf %657, %660 : vector<2x8x8xf32>
    %662 = math.exp %661 : vector<2x8x8xf32>
    %cst_170 = arith.constant dense<0.000000e+00> : vector<2x8xf32>
    %663 = vector.multi_reduction <add>, %662, %cst_170 [2] : vector<2x8x8xf32> to vector<2x8xf32>
    %664 = vector.shape_cast %663 : vector<2x8xf32> to vector<2x8x1xf32>
    %665 = vector.broadcast %664 : vector<2x8x1xf32> to vector<2x8x8xf32>
    %666 = arith.divf %662, %665 : vector<2x8x8xf32>
    %667 = vector.extract_strided_slice %633 {offsets = [0, 0, 8], sizes = [2, 8, 8], strides = [1, 1, 1]} : vector<2x8x32xf32> to vector<2x8x8xf32>
    "tpu.trace_start"() <{level = 10 : i32, message = "bqk,bkd->bqd"}> : () -> ()
    %cst_171 = arith.constant dense<0.000000e+00> : vector<2x8x8xf32>
    %668 = tpu.matmul %666, %667, %cst_171 {dimension_numbers = #tpu.dot_dimension_numbers<[2], [1], [1], [2], [0, 0, 0, 1, 1, 2], [0], [0]>} : vector<2x8x8xf32>, vector<2x8x8xf32>, vector<2x8x8xf32> -> vector<2x8x8xf32>
    "tpu.trace_stop"() : () -> ()
    %669 = vector.extract_strided_slice %631 {offsets = [0, 0, 16], sizes = [2, 8, 8], strides = [1, 1, 1]} : vector<2x8x32xf32> to vector<2x8x8xf32>
    %670 = vector.extract_strided_slice %632 {offsets = [0, 0, 16], sizes = [2, 8, 8], strides = [1, 1, 1]} : vector<2x8x32xf32> to vector<2x8x8xf32>
    "tpu.trace_start"() <{level = 10 : i32, message = "bqd,bkd->bqk"}> : () -> ()
    %cst_172 = arith.constant dense<0.000000e+00> : vector<2x8x8xf32>
    %671 = tpu.matmul %669, %670, %cst_172 {dimension_numbers = #tpu.dot_dimension_numbers<[2], [2], [1], [1], [0, 0, 0, 1, 1, 1], [0], [0]>} : vector<2x8x8xf32>, vector<2x8x8xf32>, vector<2x8x8xf32> -> vector<2x8x8xf32>
    "tpu.trace_stop"() : () -> ()
    %672 = arith.addf %671, %638 : vector<2x8x8xf32>
    %cst_173 = arith.constant dense<0xFF800000> : vector<2x8xf32>
    %673 = vector.multi_reduction <maximumf>, %672, %cst_173 [2] : vector<2x8x8xf32> to vector<2x8xf32>
    %674 = vector.shape_cast %673 : vector<2x8xf32> to vector<2x8x1xf32>
    %675 = vector.broadcast %674 : vector<2x8x1xf32> to vector<2x8x8xf32>
    %676 = arith.subf %672, %675 : vector<2x8x8xf32>
    %677 = math.exp %676 : vector<2x8x8xf32>
    %cst_174 = arith.constant dense<0.000000e+00> : vector<2x8xf32>
    %678 = vector.multi_reduction <add>, %677, %cst_174 [2] : vector<2x8x8xf32> to vector<2x8xf32>
    %679 = vector.shape_cast %678 : vector<2x8xf32> to vector<2x8x1xf32>
    %680 = vector.broadcast %679 : vector<2x8x1xf32> to vector<2x8x8xf32>
    %681 = arith.divf %677, %680 : vector<2x8x8xf32>
    %682 = vector.extract_strided_slice %633 {offsets = [0, 0, 16], sizes = [2, 8, 8], strides = [1, 1, 1]} : vector<2x8x32xf32> to vector<2x8x8xf32>
    "tpu.trace_start"() <{level = 10 : i32, message = "bqk,bkd->bqd"}> : () -> ()
    %cst_175 = arith.constant dense<0.000000e+00> : vector<2x8x8xf32>
    %683 = tpu.matmul %681, %682, %cst_175 {dimension_numbers = #tpu.dot_dimension_numbers<[2], [1], [1], [2], [0, 0, 0, 1, 1, 2], [0], [0]>} : vector<2x8x8xf32>, vector<2x8x8xf32>, vector<2x8x8xf32> -> vector<2x8x8xf32>
    "tpu.trace_stop"() : () -> ()
    %684 = vector.extract_strided_slice %631 {offsets = [0, 0, 24], sizes = [2, 8, 8], strides = [1, 1, 1]} : vector<2x8x32xf32> to vector<2x8x8xf32>
    %685 = vector.extract_strided_slice %632 {offsets = [0, 0, 24], sizes = [2, 8, 8], strides = [1, 1, 1]} : vector<2x8x32xf32> to vector<2x8x8xf32>
    "tpu.trace_start"() <{level = 10 : i32, message = "bqd,bkd->bqk"}> : () -> ()
    %cst_176 = arith.constant dense<0.000000e+00> : vector<2x8x8xf32>
    %686 = tpu.matmul %684, %685, %cst_176 {dimension_numbers = #tpu.dot_dimension_numbers<[2], [2], [1], [1], [0, 0, 0, 1, 1, 1], [0], [0]>} : vector<2x8x8xf32>, vector<2x8x8xf32>, vector<2x8x8xf32> -> vector<2x8x8xf32>
    "tpu.trace_stop"() : () -> ()
    %687 = arith.addf %686, %638 : vector<2x8x8xf32>
    %cst_177 = arith.constant dense<0xFF800000> : vector<2x8xf32>
    %688 = vector.multi_reduction <maximumf>, %687, %cst_177 [2] : vector<2x8x8xf32> to vector<2x8xf32>
    %689 = vector.shape_cast %688 : vector<2x8xf32> to vector<2x8x1xf32>
    %690 = vector.broadcast %689 : vector<2x8x1xf32> to vector<2x8x8xf32>
    %691 = arith.subf %687, %690 : vector<2x8x8xf32>
    %692 = math.exp %691 : vector<2x8x8xf32>
    %cst_178 = arith.constant dense<0.000000e+00> : vector<2x8xf32>
    %693 = vector.multi_reduction <add>, %692, %cst_178 [2] : vector<2x8x8xf32> to vector<2x8xf32>
    %694 = vector.shape_cast %693 : vector<2x8xf32> to vector<2x8x1xf32>
    %695 = vector.broadcast %694 : vector<2x8x1xf32> to vector<2x8x8xf32>
    %696 = arith.divf %692, %695 : vector<2x8x8xf32>
    %697 = vector.extract_strided_slice %633 {offsets = [0, 0, 24], sizes = [2, 8, 8], strides = [1, 1, 1]} : vector<2x8x32xf32> to vector<2x8x8xf32>
    "tpu.trace_start"() <{level = 10 : i32, message = "bqk,bkd->bqd"}> : () -> ()
    %cst_179 = arith.constant dense<0.000000e+00> : vector<2x8x8xf32>
    %698 = tpu.matmul %696, %697, %cst_179 {dimension_numbers = #tpu.dot_dimension_numbers<[2], [1], [1], [2], [0, 0, 0, 1, 1, 2], [0], [0]>} : vector<2x8x8xf32>, vector<2x8x8xf32>, vector<2x8x8xf32> -> vector<2x8x8xf32>
    "tpu.trace_stop"() : () -> ()
    %699 = tpu.concatenate %653, %668, %683, %698 in 2 : vector<2x8x8xf32>, vector<2x8x8xf32>, vector<2x8x8xf32>, vector<2x8x8xf32> -> vector<2x8x32xf32>
    %700 = vector.shape_cast %3 : vector<2x8xf32> to vector<2x8x1xf32>
    %701 = vector.broadcast %700 : vector<2x8x1xf32> to vector<2x8x32xf32>
    %702 = arith.mulf %699, %701 : vector<2x8x32xf32>
    %703 = vector.shape_cast %702 : vector<2x8x32xf32> to vector<16x32xf32>
    %c17 = arith.constant 17 : index
    %c0_180 = arith.constant 0 : index
    %c0_181 = arith.constant 0 : index
    %704 = vector.load %arg3[%c17, %c0_180, %c0_181] : memref<22x64x128xf32, #tpu.memory_space<vmem>>, vector<1x64x128xf32>
    %705 = vector.shape_cast %704 : vector<1x64x128xf32> to vector<64x128xf32>
    %706 = vector.extract_strided_slice %705 {offsets = [0, 0], sizes = [32, 32], strides = [1, 1]} : vector<64x128xf32> to vector<32x32xf32>
    %cst_182 = arith.constant dense<0.000000e+00> : vector<16x32xf32>
    %707 = tpu.matmul %703, %706, %cst_182 {dimension_numbers = #tpu.dot_dimension_numbers<[1], [0], [0], [1], [0, 0, 1, 1], [], []>} : vector<16x32xf32>, vector<32x32xf32>, vector<16x32xf32> -> vector<16x32xf32>
    %708 = vector.extract_strided_slice %0 {offsets = [29, 0], sizes = [1, 32], strides = [1, 1]} : vector<40x128xf32> to vector<1x32xf32>
    %709 = vector.broadcast %708 : vector<1x32xf32> to vector<16x32xf32>
    %710 = arith.addf %707, %709 : vector<16x32xf32>
    %711 = arith.addf %620, %710 : vector<16x32xf32>
    %cst_183 = arith.constant dense<0.000000e+00> : vector<16xf32>
    %712 = vector.multi_reduction <add>, %711, %cst_183 [1] : vector<16x32xf32> to vector<16xf32>
    %713 = vector.shape_cast %712 : vector<16xf32> to vector<16x1xf32>
    %cst_184 = arith.constant 3.200000e+01 : f32
    %714 = vector.broadcast %cst_184 : f32 to vector<16x1xf32>
    %715 = arith.divf %713, %714 : vector<16x1xf32>
    %716 = vector.broadcast %715 : vector<16x1xf32> to vector<16x32xf32>
    %717 = arith.subf %711, %716 : vector<16x32xf32>
    %718 = arith.mulf %717, %717 : vector<16x32xf32>
    %cst_185 = arith.constant dense<0.000000e+00> : vector<16xf32>
    %719 = vector.multi_reduction <add>, %718, %cst_185 [1] : vector<16x32xf32> to vector<16xf32>
    %720 = vector.shape_cast %719 : vector<16xf32> to vector<16x1xf32>
    %cst_186 = arith.constant 3.200000e+01 : f32
    %721 = vector.broadcast %cst_186 : f32 to vector<16x1xf32>
    %722 = arith.divf %720, %721 : vector<16x1xf32>
    %723 = vector.broadcast %715 : vector<16x1xf32> to vector<16x32xf32>
    %724 = arith.subf %711, %723 : vector<16x32xf32>
    %cst_187 = arith.constant 9.99999974E-6 : f32
    %725 = vector.broadcast %cst_187 : f32 to vector<16x1xf32>
    %726 = arith.addf %722, %725 : vector<16x1xf32>
    %727 = math.rsqrt %726 : vector<16x1xf32>
    %728 = vector.broadcast %727 : vector<16x1xf32> to vector<16x32xf32>
    %729 = arith.mulf %724, %728 : vector<16x32xf32>
    %730 = vector.extract_strided_slice %0 {offsets = [30, 0], sizes = [1, 32], strides = [1, 1]} : vector<40x128xf32> to vector<1x32xf32>
    %731 = vector.broadcast %730 : vector<1x32xf32> to vector<16x32xf32>
    %732 = arith.mulf %729, %731 : vector<16x32xf32>
    %733 = vector.extract_strided_slice %0 {offsets = [31, 0], sizes = [1, 32], strides = [1, 1]} : vector<40x128xf32> to vector<1x32xf32>
    %734 = vector.broadcast %733 : vector<1x32xf32> to vector<16x32xf32>
    %735 = arith.addf %732, %734 : vector<16x32xf32>
    %c18 = arith.constant 18 : index
    %c0_188 = arith.constant 0 : index
    %c0_189 = arith.constant 0 : index
    %736 = vector.load %arg3[%c18, %c0_188, %c0_189] : memref<22x64x128xf32, #tpu.memory_space<vmem>>, vector<1x64x128xf32>
    %737 = vector.shape_cast %736 : vector<1x64x128xf32> to vector<64x128xf32>
    %738 = vector.extract_strided_slice %737 {offsets = [0, 0], sizes = [32, 96], strides = [1, 1]} : vector<64x128xf32> to vector<32x96xf32>
    %739 = vector.extract_strided_slice %0 {offsets = [32, 0], sizes = [1, 96], strides = [1, 1]} : vector<40x128xf32> to vector<1x96xf32>
    %740 = vector.extract_strided_slice %738 {offsets = [0, 0], sizes = [32, 32], strides = [1, 1]} : vector<32x96xf32> to vector<32x32xf32>
    %cst_190 = arith.constant dense<0.000000e+00> : vector<16x32xf32>
    %741 = tpu.matmul %735, %740, %cst_190 {dimension_numbers = #tpu.dot_dimension_numbers<[1], [0], [0], [1], [0, 0, 1, 1], [], []>} : vector<16x32xf32>, vector<32x32xf32>, vector<16x32xf32> -> vector<16x32xf32>
    %742 = vector.extract_strided_slice %739 {offsets = [0, 0], sizes = [1, 32], strides = [1, 1]} : vector<1x96xf32> to vector<1x32xf32>
    %743 = vector.broadcast %742 : vector<1x32xf32> to vector<16x32xf32>
    %744 = arith.addf %741, %743 : vector<16x32xf32>
    %745 = vector.extract_strided_slice %738 {offsets = [0, 32], sizes = [32, 64], strides = [1, 1]} : vector<32x96xf32> to vector<32x64xf32>
    %cst_191 = arith.constant dense<0.000000e+00> : vector<16x64xf32>
    %746 = tpu.matmul %343, %745, %cst_191 {dimension_numbers = #tpu.dot_dimension_numbers<[1], [0], [0], [1], [0, 0, 1, 1], [], []>} : vector<16x32xf32>, vector<32x64xf32>, vector<16x64xf32> -> vector<16x64xf32>
    %747 = vector.extract_strided_slice %739 {offsets = [0, 32], sizes = [1, 64], strides = [1, 1]} : vector<1x96xf32> to vector<1x64xf32>
    %748 = vector.broadcast %747 : vector<1x64xf32> to vector<16x64xf32>
    %749 = arith.addf %746, %748 : vector<16x64xf32>
    %750 = vector.extract_strided_slice %749 {offsets = [0, 0], sizes = [16, 32], strides = [1, 1]} : vector<16x64xf32> to vector<16x32xf32>
    %751 = vector.extract_strided_slice %749 {offsets = [0, 32], sizes = [16, 32], strides = [1, 1]} : vector<16x64xf32> to vector<16x32xf32>
    %752 = vector.shape_cast %744 : vector<16x32xf32> to vector<2x8x32xf32>
    %753 = vector.shape_cast %750 : vector<16x32xf32> to vector<2x8x32xf32>
    %754 = vector.shape_cast %751 : vector<16x32xf32> to vector<2x8x32xf32>
    %755 = vector.shape_cast %7 : vector<2x8xf32> to vector<2x1x8xf32>
    %756 = vector.extract_strided_slice %752 {offsets = [0, 0, 0], sizes = [2, 8, 8], strides = [1, 1, 1]} : vector<2x8x32xf32> to vector<2x8x8xf32>
    %757 = vector.extract_strided_slice %753 {offsets = [0, 0, 0], sizes = [2, 8, 8], strides = [1, 1, 1]} : vector<2x8x32xf32> to vector<2x8x8xf32>
    "tpu.trace_start"() <{level = 10 : i32, message = "bqd,bkd->bqk"}> : () -> ()
    %cst_192 = arith.constant dense<0.000000e+00> : vector<2x8x8xf32>
    %758 = tpu.matmul %756, %757, %cst_192 {dimension_numbers = #tpu.dot_dimension_numbers<[2], [2], [1], [1], [0, 0, 0, 1, 1, 1], [0], [0]>} : vector<2x8x8xf32>, vector<2x8x8xf32>, vector<2x8x8xf32> -> vector<2x8x8xf32>
    "tpu.trace_stop"() : () -> ()
    %759 = vector.broadcast %755 : vector<2x1x8xf32> to vector<2x8x8xf32>
    %760 = arith.addf %758, %759 : vector<2x8x8xf32>
    %cst_193 = arith.constant dense<0xFF800000> : vector<2x8xf32>
    %761 = vector.multi_reduction <maximumf>, %760, %cst_193 [2] : vector<2x8x8xf32> to vector<2x8xf32>
    %762 = vector.shape_cast %761 : vector<2x8xf32> to vector<2x8x1xf32>
    %763 = vector.broadcast %762 : vector<2x8x1xf32> to vector<2x8x8xf32>
    %764 = arith.subf %760, %763 : vector<2x8x8xf32>
    %765 = math.exp %764 : vector<2x8x8xf32>
    %cst_194 = arith.constant dense<0.000000e+00> : vector<2x8xf32>
    %766 = vector.multi_reduction <add>, %765, %cst_194 [2] : vector<2x8x8xf32> to vector<2x8xf32>
    %767 = vector.shape_cast %766 : vector<2x8xf32> to vector<2x8x1xf32>
    %768 = vector.broadcast %767 : vector<2x8x1xf32> to vector<2x8x8xf32>
    %769 = arith.divf %765, %768 : vector<2x8x8xf32>
    %770 = vector.extract_strided_slice %754 {offsets = [0, 0, 0], sizes = [2, 8, 8], strides = [1, 1, 1]} : vector<2x8x32xf32> to vector<2x8x8xf32>
    "tpu.trace_start"() <{level = 10 : i32, message = "bqk,bkd->bqd"}> : () -> ()
    %cst_195 = arith.constant dense<0.000000e+00> : vector<2x8x8xf32>
    %771 = tpu.matmul %769, %770, %cst_195 {dimension_numbers = #tpu.dot_dimension_numbers<[2], [1], [1], [2], [0, 0, 0, 1, 1, 2], [0], [0]>} : vector<2x8x8xf32>, vector<2x8x8xf32>, vector<2x8x8xf32> -> vector<2x8x8xf32>
    "tpu.trace_stop"() : () -> ()
    %772 = vector.extract_strided_slice %752 {offsets = [0, 0, 8], sizes = [2, 8, 8], strides = [1, 1, 1]} : vector<2x8x32xf32> to vector<2x8x8xf32>
    %773 = vector.extract_strided_slice %753 {offsets = [0, 0, 8], sizes = [2, 8, 8], strides = [1, 1, 1]} : vector<2x8x32xf32> to vector<2x8x8xf32>
    "tpu.trace_start"() <{level = 10 : i32, message = "bqd,bkd->bqk"}> : () -> ()
    %cst_196 = arith.constant dense<0.000000e+00> : vector<2x8x8xf32>
    %774 = tpu.matmul %772, %773, %cst_196 {dimension_numbers = #tpu.dot_dimension_numbers<[2], [2], [1], [1], [0, 0, 0, 1, 1, 1], [0], [0]>} : vector<2x8x8xf32>, vector<2x8x8xf32>, vector<2x8x8xf32> -> vector<2x8x8xf32>
    "tpu.trace_stop"() : () -> ()
    %775 = vector.broadcast %755 : vector<2x1x8xf32> to vector<2x8x8xf32>
    %776 = arith.addf %774, %775 : vector<2x8x8xf32>
    %cst_197 = arith.constant dense<0xFF800000> : vector<2x8xf32>
    %777 = vector.multi_reduction <maximumf>, %776, %cst_197 [2] : vector<2x8x8xf32> to vector<2x8xf32>
    %778 = vector.shape_cast %777 : vector<2x8xf32> to vector<2x8x1xf32>
    %779 = vector.broadcast %778 : vector<2x8x1xf32> to vector<2x8x8xf32>
    %780 = arith.subf %776, %779 : vector<2x8x8xf32>
    %781 = math.exp %780 : vector<2x8x8xf32>
    %cst_198 = arith.constant dense<0.000000e+00> : vector<2x8xf32>
    %782 = vector.multi_reduction <add>, %781, %cst_198 [2] : vector<2x8x8xf32> to vector<2x8xf32>
    %783 = vector.shape_cast %782 : vector<2x8xf32> to vector<2x8x1xf32>
    %784 = vector.broadcast %783 : vector<2x8x1xf32> to vector<2x8x8xf32>
    %785 = arith.divf %781, %784 : vector<2x8x8xf32>
    %786 = vector.extract_strided_slice %754 {offsets = [0, 0, 8], sizes = [2, 8, 8], strides = [1, 1, 1]} : vector<2x8x32xf32> to vector<2x8x8xf32>
    "tpu.trace_start"() <{level = 10 : i32, message = "bqk,bkd->bqd"}> : () -> ()
    %cst_199 = arith.constant dense<0.000000e+00> : vector<2x8x8xf32>
    %787 = tpu.matmul %785, %786, %cst_199 {dimension_numbers = #tpu.dot_dimension_numbers<[2], [1], [1], [2], [0, 0, 0, 1, 1, 2], [0], [0]>} : vector<2x8x8xf32>, vector<2x8x8xf32>, vector<2x8x8xf32> -> vector<2x8x8xf32>
    "tpu.trace_stop"() : () -> ()
    %788 = vector.extract_strided_slice %752 {offsets = [0, 0, 16], sizes = [2, 8, 8], strides = [1, 1, 1]} : vector<2x8x32xf32> to vector<2x8x8xf32>
    %789 = vector.extract_strided_slice %753 {offsets = [0, 0, 16], sizes = [2, 8, 8], strides = [1, 1, 1]} : vector<2x8x32xf32> to vector<2x8x8xf32>
    "tpu.trace_start"() <{level = 10 : i32, message = "bqd,bkd->bqk"}> : () -> ()
    %cst_200 = arith.constant dense<0.000000e+00> : vector<2x8x8xf32>
    %790 = tpu.matmul %788, %789, %cst_200 {dimension_numbers = #tpu.dot_dimension_numbers<[2], [2], [1], [1], [0, 0, 0, 1, 1, 1], [0], [0]>} : vector<2x8x8xf32>, vector<2x8x8xf32>, vector<2x8x8xf32> -> vector<2x8x8xf32>
    "tpu.trace_stop"() : () -> ()
    %791 = vector.broadcast %755 : vector<2x1x8xf32> to vector<2x8x8xf32>
    %792 = arith.addf %790, %791 : vector<2x8x8xf32>
    %cst_201 = arith.constant dense<0xFF800000> : vector<2x8xf32>
    %793 = vector.multi_reduction <maximumf>, %792, %cst_201 [2] : vector<2x8x8xf32> to vector<2x8xf32>
    %794 = vector.shape_cast %793 : vector<2x8xf32> to vector<2x8x1xf32>
    %795 = vector.broadcast %794 : vector<2x8x1xf32> to vector<2x8x8xf32>
    %796 = arith.subf %792, %795 : vector<2x8x8xf32>
    %797 = math.exp %796 : vector<2x8x8xf32>
    %cst_202 = arith.constant dense<0.000000e+00> : vector<2x8xf32>
    %798 = vector.multi_reduction <add>, %797, %cst_202 [2] : vector<2x8x8xf32> to vector<2x8xf32>
    %799 = vector.shape_cast %798 : vector<2x8xf32> to vector<2x8x1xf32>
    %800 = vector.broadcast %799 : vector<2x8x1xf32> to vector<2x8x8xf32>
    %801 = arith.divf %797, %800 : vector<2x8x8xf32>
    %802 = vector.extract_strided_slice %754 {offsets = [0, 0, 16], sizes = [2, 8, 8], strides = [1, 1, 1]} : vector<2x8x32xf32> to vector<2x8x8xf32>
    "tpu.trace_start"() <{level = 10 : i32, message = "bqk,bkd->bqd"}> : () -> ()
    %cst_203 = arith.constant dense<0.000000e+00> : vector<2x8x8xf32>
    %803 = tpu.matmul %801, %802, %cst_203 {dimension_numbers = #tpu.dot_dimension_numbers<[2], [1], [1], [2], [0, 0, 0, 1, 1, 2], [0], [0]>} : vector<2x8x8xf32>, vector<2x8x8xf32>, vector<2x8x8xf32> -> vector<2x8x8xf32>
    "tpu.trace_stop"() : () -> ()
    %804 = vector.extract_strided_slice %752 {offsets = [0, 0, 24], sizes = [2, 8, 8], strides = [1, 1, 1]} : vector<2x8x32xf32> to vector<2x8x8xf32>
    %805 = vector.extract_strided_slice %753 {offsets = [0, 0, 24], sizes = [2, 8, 8], strides = [1, 1, 1]} : vector<2x8x32xf32> to vector<2x8x8xf32>
    "tpu.trace_start"() <{level = 10 : i32, message = "bqd,bkd->bqk"}> : () -> ()
    %cst_204 = arith.constant dense<0.000000e+00> : vector<2x8x8xf32>
    %806 = tpu.matmul %804, %805, %cst_204 {dimension_numbers = #tpu.dot_dimension_numbers<[2], [2], [1], [1], [0, 0, 0, 1, 1, 1], [0], [0]>} : vector<2x8x8xf32>, vector<2x8x8xf32>, vector<2x8x8xf32> -> vector<2x8x8xf32>
    "tpu.trace_stop"() : () -> ()
    %807 = vector.broadcast %755 : vector<2x1x8xf32> to vector<2x8x8xf32>
    %808 = arith.addf %806, %807 : vector<2x8x8xf32>
    %cst_205 = arith.constant dense<0xFF800000> : vector<2x8xf32>
    %809 = vector.multi_reduction <maximumf>, %808, %cst_205 [2] : vector<2x8x8xf32> to vector<2x8xf32>
    %810 = vector.shape_cast %809 : vector<2x8xf32> to vector<2x8x1xf32>
    %811 = vector.broadcast %810 : vector<2x8x1xf32> to vector<2x8x8xf32>
    %812 = arith.subf %808, %811 : vector<2x8x8xf32>
    %813 = math.exp %812 : vector<2x8x8xf32>
    %cst_206 = arith.constant dense<0.000000e+00> : vector<2x8xf32>
    %814 = vector.multi_reduction <add>, %813, %cst_206 [2] : vector<2x8x8xf32> to vector<2x8xf32>
    %815 = vector.shape_cast %814 : vector<2x8xf32> to vector<2x8x1xf32>
    %816 = vector.broadcast %815 : vector<2x8x1xf32> to vector<2x8x8xf32>
    %817 = arith.divf %813, %816 : vector<2x8x8xf32>
    %818 = vector.extract_strided_slice %754 {offsets = [0, 0, 24], sizes = [2, 8, 8], strides = [1, 1, 1]} : vector<2x8x32xf32> to vector<2x8x8xf32>
    "tpu.trace_start"() <{level = 10 : i32, message = "bqk,bkd->bqd"}> : () -> ()
    %cst_207 = arith.constant dense<0.000000e+00> : vector<2x8x8xf32>
    %819 = tpu.matmul %817, %818, %cst_207 {dimension_numbers = #tpu.dot_dimension_numbers<[2], [1], [1], [2], [0, 0, 0, 1, 1, 2], [0], [0]>} : vector<2x8x8xf32>, vector<2x8x8xf32>, vector<2x8x8xf32> -> vector<2x8x8xf32>
    "tpu.trace_stop"() : () -> ()
    %820 = tpu.concatenate %771, %787, %803, %819 in 2 : vector<2x8x8xf32>, vector<2x8x8xf32>, vector<2x8x8xf32>, vector<2x8x8xf32> -> vector<2x8x32xf32>
    %821 = vector.shape_cast %3 : vector<2x8xf32> to vector<2x8x1xf32>
    %822 = vector.broadcast %821 : vector<2x8x1xf32> to vector<2x8x32xf32>
    %823 = arith.mulf %820, %822 : vector<2x8x32xf32>
    %824 = vector.shape_cast %823 : vector<2x8x32xf32> to vector<16x32xf32>
    %c19 = arith.constant 19 : index
    %c0_208 = arith.constant 0 : index
    %c0_209 = arith.constant 0 : index
    %825 = vector.load %arg3[%c19, %c0_208, %c0_209] : memref<22x64x128xf32, #tpu.memory_space<vmem>>, vector<1x64x128xf32>
    %826 = vector.shape_cast %825 : vector<1x64x128xf32> to vector<64x128xf32>
    %827 = vector.extract_strided_slice %826 {offsets = [0, 0], sizes = [32, 32], strides = [1, 1]} : vector<64x128xf32> to vector<32x32xf32>
    %cst_210 = arith.constant dense<0.000000e+00> : vector<16x32xf32>
    %828 = tpu.matmul %824, %827, %cst_210 {dimension_numbers = #tpu.dot_dimension_numbers<[1], [0], [0], [1], [0, 0, 1, 1], [], []>} : vector<16x32xf32>, vector<32x32xf32>, vector<16x32xf32> -> vector<16x32xf32>
    %829 = vector.extract_strided_slice %0 {offsets = [33, 0], sizes = [1, 32], strides = [1, 1]} : vector<40x128xf32> to vector<1x32xf32>
    %830 = vector.broadcast %829 : vector<1x32xf32> to vector<16x32xf32>
    %831 = arith.addf %828, %830 : vector<16x32xf32>
    %832 = arith.addf %735, %831 : vector<16x32xf32>
    %cst_211 = arith.constant dense<0.000000e+00> : vector<16xf32>
    %833 = vector.multi_reduction <add>, %832, %cst_211 [1] : vector<16x32xf32> to vector<16xf32>
    %834 = vector.shape_cast %833 : vector<16xf32> to vector<16x1xf32>
    %cst_212 = arith.constant 3.200000e+01 : f32
    %835 = vector.broadcast %cst_212 : f32 to vector<16x1xf32>
    %836 = arith.divf %834, %835 : vector<16x1xf32>
    %837 = vector.broadcast %836 : vector<16x1xf32> to vector<16x32xf32>
    %838 = arith.subf %832, %837 : vector<16x32xf32>
    %839 = arith.mulf %838, %838 : vector<16x32xf32>
    %cst_213 = arith.constant dense<0.000000e+00> : vector<16xf32>
    %840 = vector.multi_reduction <add>, %839, %cst_213 [1] : vector<16x32xf32> to vector<16xf32>
    %841 = vector.shape_cast %840 : vector<16xf32> to vector<16x1xf32>
    %cst_214 = arith.constant 3.200000e+01 : f32
    %842 = vector.broadcast %cst_214 : f32 to vector<16x1xf32>
    %843 = arith.divf %841, %842 : vector<16x1xf32>
    %844 = vector.broadcast %836 : vector<16x1xf32> to vector<16x32xf32>
    %845 = arith.subf %832, %844 : vector<16x32xf32>
    %cst_215 = arith.constant 9.99999974E-6 : f32
    %846 = vector.broadcast %cst_215 : f32 to vector<16x1xf32>
    %847 = arith.addf %843, %846 : vector<16x1xf32>
    %848 = math.rsqrt %847 : vector<16x1xf32>
    %849 = vector.broadcast %848 : vector<16x1xf32> to vector<16x32xf32>
    %850 = arith.mulf %845, %849 : vector<16x32xf32>
    %851 = vector.extract_strided_slice %0 {offsets = [34, 0], sizes = [1, 32], strides = [1, 1]} : vector<40x128xf32> to vector<1x32xf32>
    %852 = vector.broadcast %851 : vector<1x32xf32> to vector<16x32xf32>
    %853 = arith.mulf %850, %852 : vector<16x32xf32>
    %854 = vector.extract_strided_slice %0 {offsets = [35, 0], sizes = [1, 32], strides = [1, 1]} : vector<40x128xf32> to vector<1x32xf32>
    %855 = vector.broadcast %854 : vector<1x32xf32> to vector<16x32xf32>
    %856 = arith.addf %853, %855 : vector<16x32xf32>
    %c20 = arith.constant 20 : index
    %c0_216 = arith.constant 0 : index
    %c0_217 = arith.constant 0 : index
    %857 = vector.load %arg3[%c20, %c0_216, %c0_217] : memref<22x64x128xf32, #tpu.memory_space<vmem>>, vector<1x64x128xf32>
    %858 = vector.shape_cast %857 : vector<1x64x128xf32> to vector<64x128xf32>
    %859 = vector.extract_strided_slice %858 {offsets = [0, 0], sizes = [32, 64], strides = [1, 1]} : vector<64x128xf32> to vector<32x64xf32>
    %cst_218 = arith.constant dense<0.000000e+00> : vector<16x64xf32>
    %860 = tpu.matmul %856, %859, %cst_218 {dimension_numbers = #tpu.dot_dimension_numbers<[1], [0], [0], [1], [0, 0, 1, 1], [], []>} : vector<16x32xf32>, vector<32x64xf32>, vector<16x64xf32> -> vector<16x64xf32>
    %861 = vector.extract_strided_slice %0 {offsets = [36, 0], sizes = [1, 64], strides = [1, 1]} : vector<40x128xf32> to vector<1x64xf32>
    %862 = vector.broadcast %861 : vector<1x64xf32> to vector<16x64xf32>
    %863 = arith.addf %860, %862 : vector<16x64xf32>
    %cst_219 = arith.constant 0.000000e+00 : f32
    %864 = vector.broadcast %cst_219 : f32 to vector<16x64xf32>
    %865 = arith.maximumf %863, %864 : vector<16x64xf32>
    %c21 = arith.constant 21 : index
    %c0_220 = arith.constant 0 : index
    %c0_221 = arith.constant 0 : index
    %866 = vector.load %arg3[%c21, %c0_220, %c0_221] : memref<22x64x128xf32, #tpu.memory_space<vmem>>, vector<1x64x128xf32>
    %867 = vector.shape_cast %866 : vector<1x64x128xf32> to vector<64x128xf32>
    %868 = vector.extract_strided_slice %867 {offsets = [0, 0], sizes = [64, 32], strides = [1, 1]} : vector<64x128xf32> to vector<64x32xf32>
    %cst_222 = arith.constant dense<0.000000e+00> : vector<16x32xf32>
    %869 = tpu.matmul %865, %868, %cst_222 {dimension_numbers = #tpu.dot_dimension_numbers<[1], [0], [0], [1], [0, 0, 1, 1], [], []>} : vector<16x64xf32>, vector<64x32xf32>, vector<16x32xf32> -> vector<16x32xf32>
    %870 = vector.extract_strided_slice %0 {offsets = [37, 0], sizes = [1, 32], strides = [1, 1]} : vector<40x128xf32> to vector<1x32xf32>
    %871 = vector.broadcast %870 : vector<1x32xf32> to vector<16x32xf32>
    %872 = arith.addf %869, %871 : vector<16x32xf32>
    %873 = arith.addf %856, %872 : vector<16x32xf32>
    %cst_223 = arith.constant dense<0.000000e+00> : vector<16xf32>
    %874 = vector.multi_reduction <add>, %873, %cst_223 [1] : vector<16x32xf32> to vector<16xf32>
    %875 = vector.shape_cast %874 : vector<16xf32> to vector<16x1xf32>
    %cst_224 = arith.constant 3.200000e+01 : f32
    %876 = vector.broadcast %cst_224 : f32 to vector<16x1xf32>
    %877 = arith.divf %875, %876 : vector<16x1xf32>
    %878 = vector.broadcast %877 : vector<16x1xf32> to vector<16x32xf32>
    %879 = arith.subf %873, %878 : vector<16x32xf32>
    %880 = arith.mulf %879, %879 : vector<16x32xf32>
    %cst_225 = arith.constant dense<0.000000e+00> : vector<16xf32>
    %881 = vector.multi_reduction <add>, %880, %cst_225 [1] : vector<16x32xf32> to vector<16xf32>
    %882 = vector.shape_cast %881 : vector<16xf32> to vector<16x1xf32>
    %cst_226 = arith.constant 3.200000e+01 : f32
    %883 = vector.broadcast %cst_226 : f32 to vector<16x1xf32>
    %884 = arith.divf %882, %883 : vector<16x1xf32>
    %885 = vector.broadcast %877 : vector<16x1xf32> to vector<16x32xf32>
    %886 = arith.subf %873, %885 : vector<16x32xf32>
    %cst_227 = arith.constant 9.99999974E-6 : f32
    %887 = vector.broadcast %cst_227 : f32 to vector<16x1xf32>
    %888 = arith.addf %884, %887 : vector<16x1xf32>
    %889 = math.rsqrt %888 : vector<16x1xf32>
    %890 = vector.broadcast %889 : vector<16x1xf32> to vector<16x32xf32>
    %891 = arith.mulf %886, %890 : vector<16x32xf32>
    %892 = vector.extract_strided_slice %0 {offsets = [38, 0], sizes = [1, 32], strides = [1, 1]} : vector<40x128xf32> to vector<1x32xf32>
    %893 = vector.broadcast %892 : vector<1x32xf32> to vector<16x32xf32>
    %894 = arith.mulf %891, %893 : vector<16x32xf32>
    %895 = vector.extract_strided_slice %0 {offsets = [39, 0], sizes = [1, 32], strides = [1, 1]} : vector<40x128xf32> to vector<1x32xf32>
    %896 = vector.broadcast %895 : vector<1x32xf32> to vector<16x32xf32>
    %897 = arith.addf %894, %896 : vector<16x32xf32>
    %c1 = arith.constant 1 : index
    %c0_228 = arith.constant 0 : index
    %c0_229 = arith.constant 0 : index
    %898 = vector.load %arg3[%c1, %c0_228, %c0_229] : memref<22x64x128xf32, #tpu.memory_space<vmem>>, vector<1x64x128xf32>
    %899 = vector.shape_cast %898 : vector<1x64x128xf32> to vector<64x128xf32>
    %900 = vector.extract_strided_slice %899 {offsets = [0, 0], sizes = [32, 128], strides = [1, 1]} : vector<64x128xf32> to vector<32x128xf32>
    %cst_230 = arith.constant dense<0.000000e+00> : vector<16x128xf32>
    %901 = tpu.matmul %897, %900, %cst_230 {dimension_numbers = #tpu.dot_dimension_numbers<[1], [0], [0], [1], [0, 0, 1, 1], [], []>} : vector<16x32xf32>, vector<32x128xf32>, vector<16x128xf32> -> vector<16x128xf32>
    %c0_231 = arith.constant 0 : index
    %c0_232 = arith.constant 0 : index
    %902 = vector.load %arg5[%c0_231, %c0_232] : memref<16x128xf32, #tpu.memory_space<vmem>>, vector<16x128xf32>
    tpu.vector_store %arg5[%c0_231, %c0_232], %901 {strides = array<i32>} : memref<16x128xf32, #tpu.memory_space<vmem>>, vector<16x128xf32>,
    return
  }
}

</mosaic_0001>

<llo_original>
// kernel: transformer_forward.1
$region0: #{transformer_forward.1}
  #allocation0 [shape = 'u32[]', space=smem, size = 0x4, offset = 0x4, fixed_abs, tag = 'smem constant byte address 0x4 - core index']
  #allocation1 [shape = 'u32[72,128]{1,0:T(1,128)}', space=vmem, size = 0x9000, scoped, tag = 'internal scratch']
  %s0 = inlined_call_operand.vmem [shape: s32[32,1], index: 0, kind: input, shape index: {}]
  %s1 = inlined_call_operand.vmem [shape: f32[4,8], index: 1, kind: input, shape index: {}]
  %s2 = inlined_call_operand.vmem [shape: f32[32,32], index: 2, kind: input, shape index: {}]
  %s3 = inlined_call_operand.hbm [shape: f32[22,64,128], index: 3, kind: input, shape index: {}]
  %s4 = inlined_call_operand.vmem [shape: f32[40,128], index: 4, kind: input, shape index: {}]
  %s5 = inlined_call_operand.vmem [shape: f32[16,128], index: 5, kind: output, shape index: {}]
  %s6 = sld [smem:[#allocation0]]
  $region34: #{transformer_forward.1} parent=0
    _
  %s8 = ssub.s32 1, %s6
  %s9 = scalar_select 0, %s8, %s6
  $region1: #{transformer_forward.1} parent=0
    #allocation2 [shape = 'u8[720896]{0}', space=vmem, size = 0xb0000, scoped, tag = 'input window, operand 3, single buffered']
    #allocation3 [shape = 's32[1]{0}', space=sflag, size = 0x4, scoped, tag = 'scoped memory for transformer_forward.1']
    %10 = vsyncpa [#allocation3], 0
    // Predicated region
    $region2: #{transformer_forward.1} parent=1 // pred_check
      _
    $region3: #{transformer_forward.1} parent=1 // pred_check_branch
      %12 = sbr.rel (0) target = $region5
    $region4: #{transformer_forward.1} parent=1 // pred_region
      _
    $region5: #{transformer_forward.1} parent=1 // pred_fallthru
      _
    // Predicated region
    $region6: #{transformer_forward.1} parent=1 // pred_check
      _
    $region7: #{transformer_forward.1} parent=1 // pred_check_branch
      %14 = sbr.rel (0) target = $region9
    $region8: #{transformer_forward.1} parent=1 // pred_region
      _
    $region9: #{transformer_forward.1} parent=1 // pred_fallthru
      _
    // Predicated region
    $region10: #{transformer_forward.1} parent=1 // pred_check
      _
    $region11: #{transformer_forward.1} parent=1 // pred_check_branch
      %16 = sbr.rel (0) target = $region13
    $region12: #{transformer_forward.1} parent=1 // pred_region
      _
    $region13: #{transformer_forward.1} parent=1 // pred_fallthru
      _
    // Predicated region
    $region14: #{transformer_forward.1} parent=1 // pred_check
      _
    $region15: #{transformer_forward.1} parent=1 // pred_check_branch
      %18 = sbr.rel (0) target = $region17
    $region16: #{transformer_forward.1} parent=1 // pred_region
      %20 = vsyncadd [#allocation3], 0
      %s21 = sshll.u32 %s3, 4
      %s22 = int_to_ptr.hbm [resolvable:$true] %s21
      %s23 = sshll.u32 [#allocation2], 4
      %s24 = int_to_ptr.vmem [resolvable:$true] %s23
      %29 = dma.hbm_to_vmem [thread:$0]  %s22, 22528, %s24, [#allocation3], 128, 128, 8
    $region17: #{transformer_forward.1} parent=1 // pred_fallthru
      _
    // Predicated region
    $region18: #{transformer_forward.1} parent=1 // pred_check
      _
    $region19: #{transformer_forward.1} parent=1 // pred_check_branch
      %31 = sbr.rel (0) target = $region21
    $region20: #{transformer_forward.1} parent=1 // pred_region
      _
    $region21: #{transformer_forward.1} parent=1 // pred_fallthru
      _
    // Predicated region
    $region22: #{transformer_forward.1} parent=1 // pred_check
      _
    $region23: #{transformer_forward.1} parent=1 // pred_check_branch
      %33 = sbr.rel (0) target = $region25
    $region24: #{transformer_forward.1} parent=1 // pred_region
      %35 = dma.done [#allocation3], 22528
    $region25: #{transformer_forward.1} parent=1 // pred_fallthru
      _
    %v36 = vld [vmem:[%s4] sm:$0xff]
    %v37 = vld [vmem:[%s4 + $0x8] sm:$0xff]
    %v38 = vld [vmem:[%s4 + $0x10] sm:$0xff]
    %v39 = vld [vmem:[%s4 + $0x18] sm:$0xff]
    %v40 = vld [vmem:[%s4 + $0x20] sm:$0xff]
    %v41 = vld [vmem:[%s1] sm:$0xf]
    %v42 = vsub.f32 1.0, %v41
    %v43 = vmul.f32 %v42, -1e+30
    %v44 = vlaneseq
    %v45 = vshrl.u32 %v44, 7
    %v46 = vlaneseq
    %v47 = vand.u32 %v46, 127
    %vm48 = vcmp.gt.s32.totalorder %v47, %v45
    %v49 = vsel %vm48, -1e+30, 0.0
    %v50 = vld [vmem:[%s0] sm:$0xff]
    %v51 = vld [vmem:[%s0 + $0x8] sm:$0xff]
    %v52 = vld [vmem:[%s0 + $0x10] sm:$0xff]
    %v53 = vld [vmem:[%s0 + $0x18] sm:$0xff]
    %54 = vset.pattern.permute.xlu0 0
    %55 = vperm.xlu0 %54, %v50
    %v56 = vpop.permute.xlu0 %55
    %57 = vset.pattern.permute.xlu0 0
    %58 = vperm.xlu0 %57, %v51
    %v59 = vpop.permute.xlu0 %58
    %60 = vset.pattern.permute.xlu0 0
    %61 = vperm.xlu0 %60, %v52
    %v62 = vpop.permute.xlu0 %61
    %63 = vset.pattern.permute.xlu0 0
    %64 = vperm.xlu0 %63, %v53
    %v65 = vpop.permute.xlu0 %64
    %vm66 = vcmp.eq.s32.totalorder %v56, %v47
    %vm67 = vcmp.eq.s32.totalorder %v59, %v47
    %vm68 = vcmp.eq.s32.totalorder %v62, %v47
    %vm69 = vcmp.eq.s32.totalorder %v65, %v47
    %v70 = vsel %vm66, 1, 0
    %v71 = vsel %vm67, 1, 0
    %v72 = vsel %vm68, 1, 0
    %v73 = vsel %vm69, 1, 0
    %v74 = vcvt.s32.f32 %v70
    %v75 = vcvt.s32.f32 %v71
    %v76 = vcvt.s32.f32 %v72
    %v77 = vcvt.s32.f32 %v73
    %v78 = vld [vmem:[#allocation2] sm:$0xff]
    %v79 = vld [vmem:[#allocation2 + $0x8] sm:$0xff]
    %v80 = vld [vmem:[#allocation2 + $0x10] sm:$0xff]
    %v81 = vld [vmem:[#allocation2 + $0x18] sm:$0xff]
    %v82 = vld [vmem:[#allocation2 + $0x20] sm:$0xff]
    %v83 = vld [vmem:[#allocation2 + $0x28] sm:$0xff]
    %v84 = vld [vmem:[#allocation2 + $0x30] sm:$0xff]
    %v85 = vld [vmem:[#allocation2 + $0x38] sm:$0xff]
    %v86 = vld [vmem:[%s2] sm:$0xff]
    %v87 = vld [vmem:[%s2 + $0x8] sm:$0xff]
    %v88 = vld [vmem:[%s2 + $0x10] sm:$0xff]
    %v89 = vld [vmem:[%s2 + $0x18] sm:$0xff]
    %vm90 = vcmask 523264
    %v92 = vsel %vm90, %v74, 0
    %v95 = vsel %vm90, %v75, 0
    %v98 = vsel %vm90, %v76, 0
    %v101 = vsel %vm90, %v77, 0
    %103 = vmatpush.msra.mxu0 0.0
    %104 = vmatpush.msra.mxu0 0.0
    %105 = vmatpush.msra.mxu0 0.0
    %106 = vmatpush.msra.mxu0 0.0
    %107 = vmatpush.msra.mxu0 0.0
    %108 = vmatpush.msra.mxu0 0.0
    %109 = vmatpush.msra.mxu0 0.0
    %110 = vmatpush.msra.mxu0 0.0
    %111 = vmatpush.msra.mxu0 %v85
    %112 = vmatpush.msra.mxu0 %v84
    %113 = vmatpush.msra.mxu0 %v83
    %114 = vmatpush.msra.mxu0 %v82
    %115 = vmatpush.msra.mxu0 %v81
    %116 = vmatpush.msra.mxu0 %v80
    %117 = vmatpush.msra.mxu0 %v79
    %118 = vmatpush.msra.mxu0 %v78
    %119 = vmatmul.f32.gmra.mxu0 %v92
    %v120 = vpop.f32.mrf.mxu0
    %v121 = vadd.f32 %v86, %v120
    %122 = vmatmul.f32.gmra.mxu0 %v95
    %v123 = vpop.f32.mrf.mxu0
    %v124 = vadd.f32 %v87, %v123
    %125 = vmatmul.f32.gmra.mxu0 %v98
    %v126 = vpop.f32.mrf.mxu0
    %v127 = vadd.f32 %v88, %v126
    %128 = vmatmul.f32.gmra.mxu0 %v101
    %v129 = vpop.f32.mrf.mxu0
    %v130 = vadd.f32 %v89, %v129
    %131 = vdwg.mxu0
    %s132 = scalar_lea.vmem [#allocation2], 128
    %v133 = vld [vmem:[%s132] sm:$0xff]
    %v134 = vld [vmem:[%s132 + $0x8] sm:$0xff]
    %v135 = vld [vmem:[%s132 + $0x10] sm:$0xff]
    %v136 = vld [vmem:[%s132 + $0x18] sm:$0xff]
    %v137 = vperm.slane %v36, 0
    %vm138 = vcmask 261120
    %v140 = vsel %vm138, %v121, 0
    %v143 = vsel %vm138, %v124, 0
    %145 = vmatpush.msra.mxu0 0.0
    %146 = vmatpush.msra.mxu0 0.0
    %147 = vmatpush.msra.mxu0 0.0
    %148 = vmatpush.msra.mxu0 0.0
    %149 = vmatpush.msra.mxu0 0.0
    %150 = vmatpush.msra.mxu0 0.0
    %151 = vmatpush.msra.mxu0 0.0
    %152 = vmatpush.msra.mxu0 0.0
    %153 = vmatpush.msra.mxu0 0.0
    %154 = vmatpush.msra.mxu0 0.0
    %155 = vmatpush.msra.mxu0 0.0
    %156 = vmatpush.msra.mxu0 0.0
    %157 = vmatpush.msra.mxu0 %v136
    %158 = vmatpush.msra.mxu0 %v135
    %159 = vmatpush.msra.mxu0 %v134
    %160 = vmatpush.msra.mxu0 %v133
    %161 = vmatmul.f32.gmra.mxu0 %v140
    %v162 = vpop.f32.mrf.mxu0
    %v163 = vadd.f32 %v137, %v162
    %164 = vmatmul.f32.gmra.mxu0 %v143
    %v165 = vpop.f32.mrf.mxu0
    %v166 = vadd.f32 %v137, %v165
    %167 = vdwg.mxu0
    %v169 = vrot.slane %v43, 1
    %v170 = vperm.slane %v43, 0
    %v171 = vperm.slane %v169, 0
    %175 = vrot.lane.b32.xlu0 %v163, 96
    %v176 = vpop.permute.xlu0 %175
    %vm177 = vcmask 64512
    %v178 = vsel %vm177, %v163, 0
    %v180 = vsel %vm177, %v176, 0
    %182 = vmatpush.xpose.msra.mxu0 0.0
    %183 = vmatpush.xpose.msra.mxu0 0.0
    %184 = vmatpush.xpose.msra.mxu0 0.0
    %185 = vmatpush.xpose.msra.mxu0 0.0
    %186 = vmatpush.xpose.msra.mxu0 0.0
    %187 = vmatpush.xpose.msra.mxu0 0.0
    %188 = vmatpush.xpose.msra.mxu0 0.0
    %189 = vmatpush.xpose.msra.mxu0 0.0
    %190 = vmatpush.xpose.msra.mxu0 0.0
    %191 = vmatpush.xpose.msra.mxu0 0.0
    %192 = vmatpush.xpose.msra.mxu0 0.0
    %193 = vmatpush.xpose.msra.mxu0 0.0
    %194 = vmatpush.xpose.msra.mxu0 0.0
    %195 = vmatpush.xpose.msra.mxu0 0.0
    %196 = vmatpush.xpose.msra.mxu0 0.0
    %197 = vmatpush.xpose.msra.mxu0 %v180
    %198 = vmatmul.f32.gmra.mxu0 %v178
    %v199 = vpop.f32.mrf.mxu0
    %v200 = vadd.f32 %v170, %v199
    %201 = vdwg.mxu0
    %203 = vrot.lane.b32.xlu0 %v166, 96
    %v204 = vpop.permute.xlu0 %203
    %v205 = vsel %vm177, %v166, 0
    %v207 = vsel %vm177, %v204, 0
    %209 = vmatpush.xpose.msra.mxu0 0.0
    %210 = vmatpush.xpose.msra.mxu0 0.0
    %211 = vmatpush.xpose.msra.mxu0 0.0
    %212 = vmatpush.xpose.msra.mxu0 0.0
    %213 = vmatpush.xpose.msra.mxu0 0.0
    %214 = vmatpush.xpose.msra.mxu0 0.0
    %215 = vmatpush.xpose.msra.mxu0 0.0
    %216 = vmatpush.xpose.msra.mxu0 0.0
    %217 = vmatpush.xpose.msra.mxu0 0.0
    %218 = vmatpush.xpose.msra.mxu0 0.0
    %219 = vmatpush.xpose.msra.mxu0 0.0
    %220 = vmatpush.xpose.msra.mxu0 0.0
    %221 = vmatpush.xpose.msra.mxu0 0.0
    %222 = vmatpush.xpose.msra.mxu0 0.0
    %223 = vmatpush.xpose.msra.mxu0 0.0
    %224 = vmatpush.xpose.msra.mxu0 %v207
    %225 = vmatmul.f32.gmra.mxu0 %v205
    %v226 = vpop.f32.mrf.mxu0
    %v227 = vadd.f32 %v171, %v226
    %228 = vdwg.mxu0
    %v229 = vsel %vm177, %v200, -inf
    %230 = vmax.xlane.f32.xlu0 %v229
    %v231 = vpop.xlane.xlu0 %230
    %v232 = vsel %vm177, %v227, -inf
    %233 = vmax.xlane.f32.xlu0 %v232
    %v234 = vpop.xlane.xlu0 %233
    %v235 = vsub.f32 %v200, %v231
    %v236 = vsub.f32 %v227, %v234
    %v237 = vmul.f32 %v235, 1.442695
    %v238 = vpow.pop %v237
    %v239 = vmul.f32 %v236, 1.442695
    %v240 = vpow.pop %v239
    %v241 = vsel %vm177, %v238, 0.0
    %242 = vadd.xlane.f32.xlu0 %v241
    %v243 = vpop.xlane.xlu0 %242
    %v244 = vsel %vm177, %v240, 0.0
    %245 = vadd.xlane.f32.xlu0 %v244
    %v246 = vpop.xlane.xlu0 %245
    %v247 = vrcp.pop %v243
    %v248 = vmul.f32 %v243, %v247
    %v249 = vsub.f32 1.0, %v248
    %v250 = vmul.f32 %v247, %v249
    %v251 = vadd.f32 %v247, %v250
    %vm252 = vweird.f32 %v243
    %vm253 = vweird.f32 %v247
    %vm254 = vmor %vm252, %vm253
    %v255 = vsel %vm254, %v247, %v251
    %v256 = vand.u32 2147483647, %v243
    %vm257 = vcmp.eq.f32.partialorder %v256, 8.507059e+37
    %v258 = vand.u32 %v243, 2147483648
    %v259 = vor.u32 1.1754944e-38, %v258
    %v260 = vsel %vm257, %v259, %v255
    %v261 = vmul.f32 %v238, %v260
    %v262 = vrcp.pop %v246
    %v263 = vmul.f32 %v246, %v262
    %v264 = vsub.f32 1.0, %v263
    %v265 = vmul.f32 %v262, %v264
    %v266 = vadd.f32 %v262, %v265
    %vm267 = vweird.f32 %v246
    %vm268 = vweird.f32 %v262
    %vm269 = vmor %vm267, %vm268
    %v270 = vsel %vm269, %v262, %v266
    %v271 = vand.u32 2147483647, %v246
    %vm272 = vcmp.eq.f32.partialorder %v271, 8.507059e+37
    %v273 = vand.u32 %v246, 2147483648
    %v274 = vor.u32 1.1754944e-38, %v273
    %v275 = vsel %vm272, %v274, %v270
    %v276 = vmul.f32 %v240, %v275
    %277 = vrot.lane.b32.xlu0 %v163, 64
    %v278 = vpop.permute.xlu0 %277
    %v281 = vsel %vm177, %v261, 0
    %283 = vmatpush.msra.mxu0 0.0
    %284 = vmatpush.msra.mxu0 0.0
    %285 = vmatpush.msra.mxu0 0.0
    %286 = vmatpush.msra.mxu0 0.0
    %287 = vmatpush.msra.mxu0 0.0
    %288 = vmatpush.msra.mxu0 0.0
    %289 = vmatpush.msra.mxu0 0.0
    %290 = vmatpush.msra.mxu0 0.0
    %291 = vmatpush.msra.mxu0 0.0
    %292 = vmatpush.msra.mxu0 0.0
    %293 = vmatpush.msra.mxu0 0.0
    %294 = vmatpush.msra.mxu0 0.0
    %295 = vmatpush.msra.mxu0 0.0
    %296 = vmatpush.msra.mxu0 0.0
    %297 = vmatpush.msra.mxu0 0.0
    %298 = vmatpush.msra.mxu0 %v278
    %299 = vmatmul.f32.gmra.mxu0 %v281
    %v300 = vpop.f32.mrf.mxu0
    %v301 = vadd.f32 0.0, %v300
    %302 = vdwg.mxu0
    %303 = vrot.lane.b32.xlu0 %v166, 64
    %v304 = vpop.permute.xlu0 %303
    %v307 = vsel %vm177, %v276, 0
    %309 = vmatpush.msra.mxu0 0.0
    %310 = vmatpush.msra.mxu0 0.0
    %311 = vmatpush.msra.mxu0 0.0
    %312 = vmatpush.msra.mxu0 0.0
    %313 = vmatpush.msra.mxu0 0.0
    %314 = vmatpush.msra.mxu0 0.0
    %315 = vmatpush.msra.mxu0 0.0
    %316 = vmatpush.msra.mxu0 0.0
    %317 = vmatpush.msra.mxu0 0.0
    %318 = vmatpush.msra.mxu0 0.0
    %319 = vmatpush.msra.mxu0 0.0
    %320 = vmatpush.msra.mxu0 0.0
    %321 = vmatpush.msra.mxu0 0.0
    %322 = vmatpush.msra.mxu0 0.0
    %323 = vmatpush.msra.mxu0 0.0
    %324 = vmatpush.msra.mxu0 %v304
    %325 = vmatmul.f32.gmra.mxu0 %v307
    %v326 = vpop.f32.mrf.mxu0
    %v327 = vadd.f32 0.0, %v326
    %328 = vdwg.mxu0
    %329 = vrot.lane.b32.xlu0 %v163, 120
    %v330 = vpop.permute.xlu0 %329
    %331 = vrot.lane.b32.xlu0 %v163, 88
    %v332 = vpop.permute.xlu0 %331
    %v333 = vsel %vm177, %v330, 0
    %v335 = vsel %vm177, %v332, 0
    %337 = vmatpush.xpose.msra.mxu0 0.0
    %338 = vmatpush.xpose.msra.mxu0 0.0
    %339 = vmatpush.xpose.msra.mxu0 0.0
    %340 = vmatpush.xpose.msra.mxu0 0.0
    %341 = vmatpush.xpose.msra.mxu0 0.0
    %342 = vmatpush.xpose.msra.mxu0 0.0
    %343 = vmatpush.xpose.msra.mxu0 0.0
    %344 = vmatpush.xpose.msra.mxu0 0.0
    %345 = vmatpush.xpose.msra.mxu0 0.0
    %346 = vmatpush.xpose.msra.mxu0 0.0
    %347 = vmatpush.xpose.msra.mxu0 0.0
    %348 = vmatpush.xpose.msra.mxu0 0.0
    %349 = vmatpush.xpose.msra.mxu0 0.0
    %350 = vmatpush.xpose.msra.mxu0 0.0
    %351 = vmatpush.xpose.msra.mxu0 0.0
    %352 = vmatpush.xpose.msra.mxu0 %v335
    %353 = vmatmul.f32.gmra.mxu0 %v333
    %v354 = vpop.f32.mrf.mxu0
    %v355 = vadd.f32 %v170, %v354
    %356 = vdwg.mxu0
    %357 = vrot.lane.b32.xlu0 %v166, 120
    %v358 = vpop.permute.xlu0 %357
    %359 = vrot.lane.b32.xlu0 %v166, 88
    %v360 = vpop.permute.xlu0 %359
    %v361 = vsel %vm177, %v358, 0
    %v363 = vsel %vm177, %v360, 0
    %365 = vmatpush.xpose.msra.mxu0 0.0
    %366 = vmatpush.xpose.msra.mxu0 0.0
    %367 = vmatpush.xpose.msra.mxu0 0.0
    %368 = vmatpush.xpose.msra.mxu0 0.0
    %369 = vmatpush.xpose.msra.mxu0 0.0
    %370 = vmatpush.xpose.msra.mxu0 0.0
    %371 = vmatpush.xpose.msra.mxu0 0.0
    %372 = vmatpush.xpose.msra.mxu0 0.0
    %373 = vmatpush.xpose.msra.mxu0 0.0
    %374 = vmatpush.xpose.msra.mxu0 0.0
    %375 = vmatpush.xpose.msra.mxu0 0.0
    %376 = vmatpush.xpose.msra.mxu0 0.0
    %377 = vmatpush.xpose.msra.mxu0 0.0
    %378 = vmatpush.xpose.msra.mxu0 0.0
    %379 = vmatpush.xpose.msra.mxu0 0.0
    %380 = vmatpush.xpose.msra.mxu0 %v363
    %381 = vmatmul.f32.gmra.mxu0 %v361
    %v382 = vpop.f32.mrf.mxu0
    %v383 = vadd.f32 %v171, %v382
    %384 = vdwg.mxu0
    %v385 = vsel %vm177, %v355, -inf
    %386 = vmax.xlane.f32.xlu0 %v385
    %v387 = vpop.xlane.xlu0 %386
    %v388 = vsel %vm177, %v383, -inf
    %389 = vmax.xlane.f32.xlu0 %v388
    %v390 = vpop.xlane.xlu0 %389
    %v391 = vsub.f32 %v355, %v387
    %v392 = vsub.f32 %v383, %v390
    %v393 = vmul.f32 %v391, 1.442695
    %v394 = vpow.pop %v393
    %v395 = vmul.f32 %v392, 1.442695
    %v396 = vpow.pop %v395
    %v397 = vsel %vm177, %v394, 0.0
    %398 = vadd.xlane.f32.xlu0 %v397
    %v399 = vpop.xlane.xlu0 %398
    %v400 = vsel %vm177, %v396, 0.0
    %401 = vadd.xlane.f32.xlu0 %v400
    %v402 = vpop.xlane.xlu0 %401
    %v403 = vrcp.pop %v399
    %v404 = vmul.f32 %v399, %v403
    %v405 = vsub.f32 1.0, %v404
    %v406 = vmul.f32 %v403, %v405
    %v407 = vadd.f32 %v403, %v406
    %vm408 = vweird.f32 %v399
    %vm409 = vweird.f32 %v403
    %vm410 = vmor %vm408, %vm409
    %v411 = vsel %vm410, %v403, %v407
    %v412 = vand.u32 2147483647, %v399
    %vm413 = vcmp.eq.f32.partialorder %v412, 8.507059e+37
    %v414 = vand.u32 %v399, 2147483648
    %v415 = vor.u32 1.1754944e-38, %v414
    %v416 = vsel %vm413, %v415, %v411
    %v417 = vmul.f32 %v394, %v416
    %v418 = vrcp.pop %v402
    %v419 = vmul.f32 %v402, %v418
    %v420 = vsub.f32 1.0, %v419
    %v421 = vmul.f32 %v418, %v420
    %v422 = vadd.f32 %v418, %v421
    %vm423 = vweird.f32 %v402
    %vm424 = vweird.f32 %v418
    %vm425 = vmor %vm423, %vm424
    %v426 = vsel %vm425, %v418, %v422
    %v427 = vand.u32 2147483647, %v402
    %vm428 = vcmp.eq.f32.partialorder %v427, 8.507059e+37
    %v429 = vand.u32 %v402, 2147483648
    %v430 = vor.u32 1.1754944e-38, %v429
    %v431 = vsel %vm428, %v430, %v426
    %v432 = vmul.f32 %v396, %v431
    %433 = vrot.lane.b32.xlu0 %v163, 56
    %v434 = vpop.permute.xlu0 %433
    %v437 = vsel %vm177, %v417, 0
    %439 = vmatpush.msra.mxu0 0.0
    %440 = vmatpush.msra.mxu0 0.0
    %441 = vmatpush.msra.mxu0 0.0
    %442 = vmatpush.msra.mxu0 0.0
    %443 = vmatpush.msra.mxu0 0.0
    %444 = vmatpush.msra.mxu0 0.0
    %445 = vmatpush.msra.mxu0 0.0
    %446 = vmatpush.msra.mxu0 0.0
    %447 = vmatpush.msra.mxu0 0.0
    %448 = vmatpush.msra.mxu0 0.0
    %449 = vmatpush.msra.mxu0 0.0
    %450 = vmatpush.msra.mxu0 0.0
    %451 = vmatpush.msra.mxu0 0.0
    %452 = vmatpush.msra.mxu0 0.0
    %453 = vmatpush.msra.mxu0 0.0
    %454 = vmatpush.msra.mxu0 %v434
    %455 = vmatmul.f32.gmra.mxu0 %v437
    %v456 = vpop.f32.mrf.mxu0
    %v457 = vadd.f32 0.0, %v456
    %458 = vdwg.mxu0
    %459 = vrot.lane.b32.xlu0 %v166, 56
    %v460 = vpop.permute.xlu0 %459
    %v463 = vsel %vm177, %v432, 0
    %465 = vmatpush.msra.mxu0 0.0
    %466 = vmatpush.msra.mxu0 0.0
    %467 = vmatpush.msra.mxu0 0.0
    %468 = vmatpush.msra.mxu0 0.0
    %469 = vmatpush.msra.mxu0 0.0
    %470 = vmatpush.msra.mxu0 0.0
    %471 = vmatpush.msra.mxu0 0.0
    %472 = vmatpush.msra.mxu0 0.0
    %473 = vmatpush.msra.mxu0 0.0
    %474 = vmatpush.msra.mxu0 0.0
    %475 = vmatpush.msra.mxu0 0.0
    %476 = vmatpush.msra.mxu0 0.0
    %477 = vmatpush.msra.mxu0 0.0
    %478 = vmatpush.msra.mxu0 0.0
    %479 = vmatpush.msra.mxu0 0.0
    %480 = vmatpush.msra.mxu0 %v460
    %481 = vmatmul.f32.gmra.mxu0 %v463
    %v482 = vpop.f32.mrf.mxu0
    %v483 = vadd.f32 0.0, %v482
    %484 = vdwg.mxu0
    %485 = vrot.lane.b32.xlu0 %v163, 112
    %v486 = vpop.permute.xlu0 %485
    %487 = vrot.lane.b32.xlu0 %v163, 80
    %v488 = vpop.permute.xlu0 %487
    %v489 = vsel %vm177, %v486, 0
    %v491 = vsel %vm177, %v488, 0
    %493 = vmatpush.xpose.msra.mxu0 0.0
    %494 = vmatpush.xpose.msra.mxu0 0.0
    %495 = vmatpush.xpose.msra.mxu0 0.0
    %496 = vmatpush.xpose.msra.mxu0 0.0
    %497 = vmatpush.xpose.msra.mxu0 0.0
    %498 = vmatpush.xpose.msra.mxu0 0.0
    %499 = vmatpush.xpose.msra.mxu0 0.0
    %500 = vmatpush.xpose.msra.mxu0 0.0
    %501 = vmatpush.xpose.msra.mxu0 0.0
    %502 = vmatpush.xpose.msra.mxu0 0.0
    %503 = vmatpush.xpose.msra.mxu0 0.0
    %504 = vmatpush.xpose.msra.mxu0 0.0
    %505 = vmatpush.xpose.msra.mxu0 0.0
    %506 = vmatpush.xpose.msra.mxu0 0.0
    %507 = vmatpush.xpose.msra.mxu0 0.0
    %508 = vmatpush.xpose.msra.mxu0 %v491
    %509 = vmatmul.f32.gmra.mxu0 %v489
    %v510 = vpop.f32.mrf.mxu0
    %v511 = vadd.f32 %v170, %v510
    %512 = vdwg.mxu0
    %513 = vrot.lane.b32.xlu0 %v166, 112
    %v514 = vpop.permute.xlu0 %513
    %515 = vrot.lane.b32.xlu0 %v166, 80
    %v516 = vpop.permute.xlu0 %515
    %v517 = vsel %vm177, %v514, 0
    %v519 = vsel %vm177, %v516, 0
    %521 = vmatpush.xpose.msra.mxu0 0.0
    %522 = vmatpush.xpose.msra.mxu0 0.0
    %523 = vmatpush.xpose.msra.mxu0 0.0
    %524 = vmatpush.xpose.msra.mxu0 0.0
    %525 = vmatpush.xpose.msra.mxu0 0.0
    %526 = vmatpush.xpose.msra.mxu0 0.0
    %527 = vmatpush.xpose.msra.mxu0 0.0
    %528 = vmatpush.xpose.msra.mxu0 0.0
    %529 = vmatpush.xpose.msra.mxu0 0.0
    %530 = vmatpush.xpose.msra.mxu0 0.0
    %531 = vmatpush.xpose.msra.mxu0 0.0
    %532 = vmatpush.xpose.msra.mxu0 0.0
    %533 = vmatpush.xpose.msra.mxu0 0.0
    %534 = vmatpush.xpose.msra.mxu0 0.0
    %535 = vmatpush.xpose.msra.mxu0 0.0
    %536 = vmatpush.xpose.msra.mxu0 %v519
    %537 = vmatmul.f32.gmra.mxu0 %v517
    %v538 = vpop.f32.mrf.mxu0
    %v539 = vadd.f32 %v171, %v538
    %540 = vdwg.mxu0
    %v541 = vsel %vm177, %v511, -inf
    %542 = vmax.xlane.f32.xlu0 %v541
    %v543 = vpop.xlane.xlu0 %542
    %v544 = vsel %vm177, %v539, -inf
    %545 = vmax.xlane.f32.xlu0 %v544
    %v546 = vpop.xlane.xlu0 %545
    %v547 = vsub.f32 %v511, %v543
    %v548 = vsub.f32 %v539, %v546
    %v549 = vmul.f32 %v547, 1.442695
    %v550 = vpow.pop %v549
    %v551 = vmul.f32 %v548, 1.442695
    %v552 = vpow.pop %v551
    %v553 = vsel %vm177, %v550, 0.0
    %554 = vadd.xlane.f32.xlu0 %v553
    %v555 = vpop.xlane.xlu0 %554
    %v556 = vsel %vm177, %v552, 0.0
    %557 = vadd.xlane.f32.xlu0 %v556
    %v558 = vpop.xlane.xlu0 %557
    %v559 = vrcp.pop %v555
    %v560 = vmul.f32 %v555, %v559
    %v561 = vsub.f32 1.0, %v560
    %v562 = vmul.f32 %v559, %v561
    %v563 = vadd.f32 %v559, %v562
    %vm564 = vweird.f32 %v555
    %vm565 = vweird.f32 %v559
    %vm566 = vmor %vm564, %vm565
    %v567 = vsel %vm566, %v559, %v563
    %v568 = vand.u32 2147483647, %v555
    %vm569 = vcmp.eq.f32.partialorder %v568, 8.507059e+37
    %v570 = vand.u32 %v555, 2147483648
    %v571 = vor.u32 1.1754944e-38, %v570
    %v572 = vsel %vm569, %v571, %v567
    %v573 = vmul.f32 %v550, %v572
    %v574 = vrcp.pop %v558
    %v575 = vmul.f32 %v558, %v574
    %v576 = vsub.f32 1.0, %v575
    %v577 = vmul.f32 %v574, %v576
    %v578 = vadd.f32 %v574, %v577
    %vm579 = vweird.f32 %v558
    %vm580 = vweird.f32 %v574
    %vm581 = vmor %vm579, %vm580
    %v582 = vsel %vm581, %v574, %v578
    %v583 = vand.u32 2147483647, %v558
    %vm584 = vcmp.eq.f32.partialorder %v583, 8.507059e+37
    %v585 = vand.u32 %v558, 2147483648
    %v586 = vor.u32 1.1754944e-38, %v585
    %v587 = vsel %vm584, %v586, %v582
    %v588 = vmul.f32 %v552, %v587
    %589 = vrot.lane.b32.xlu0 %v163, 48
    %v590 = vpop.permute.xlu0 %589
    %v593 = vsel %vm177, %v573, 0
    %595 = vmatpush.msra.mxu0 0.0
    %596 = vmatpush.msra.mxu0 0.0
    %597 = vmatpush.msra.mxu0 0.0
    %598 = vmatpush.msra.mxu0 0.0
    %599 = vmatpush.msra.mxu0 0.0
    %600 = vmatpush.msra.mxu0 0.0
    %601 = vmatpush.msra.mxu0 0.0
    %602 = vmatpush.msra.mxu0 0.0
    %603 = vmatpush.msra.mxu0 0.0
    %604 = vmatpush.msra.mxu0 0.0
    %605 = vmatpush.msra.mxu0 0.0
    %606 = vmatpush.msra.mxu0 0.0
    %607 = vmatpush.msra.mxu0 0.0
    %608 = vmatpush.msra.mxu0 0.0
    %609 = vmatpush.msra.mxu0 0.0
    %610 = vmatpush.msra.mxu0 %v590
    %611 = vmatmul.f32.gmra.mxu0 %v593
    %v612 = vpop.f32.mrf.mxu0
    %v613 = vadd.f32 0.0, %v612
    %614 = vdwg.mxu0
    %615 = vrot.lane.b32.xlu0 %v166, 48
    %v616 = vpop.permute.xlu0 %615
    %v619 = vsel %vm177, %v588, 0
    %621 = vmatpush.msra.mxu0 0.0
    %622 = vmatpush.msra.mxu0 0.0
    %623 = vmatpush.msra.mxu0 0.0
    %624 = vmatpush.msra.mxu0 0.0
    %625 = vmatpush.msra.mxu0 0.0
    %626 = vmatpush.msra.mxu0 0.0
    %627 = vmatpush.msra.mxu0 0.0
    %628 = vmatpush.msra.mxu0 0.0
    %629 = vmatpush.msra.mxu0 0.0
    %630 = vmatpush.msra.mxu0 0.0
    %631 = vmatpush.msra.mxu0 0.0
    %632 = vmatpush.msra.mxu0 0.0
    %633 = vmatpush.msra.mxu0 0.0
    %634 = vmatpush.msra.mxu0 0.0
    %635 = vmatpush.msra.mxu0 0.0
    %636 = vmatpush.msra.mxu0 %v616
    %637 = vmatmul.f32.gmra.mxu0 %v619
    %v638 = vpop.f32.mrf.mxu0
    %v639 = vadd.f32 0.0, %v638
    %640 = vdwg.mxu0
    %641 = vrot.lane.b32.xlu0 %v163, 104
    %v642 = vpop.permute.xlu0 %641
    %643 = vrot.lane.b32.xlu0 %v163, 72
    %v644 = vpop.permute.xlu0 %643
    %v645 = vsel %vm177, %v642, 0
    %v647 = vsel %vm177, %v644, 0
    %649 = vmatpush.xpose.msra.mxu0 0.0
    %650 = vmatpush.xpose.msra.mxu0 0.0
    %651 = vmatpush.xpose.msra.mxu0 0.0
    %652 = vmatpush.xpose.msra.mxu0 0.0
    %653 = vmatpush.xpose.msra.mxu0 0.0
    %654 = vmatpush.xpose.msra.mxu0 0.0
    %655 = vmatpush.xpose.msra.mxu0 0.0
    %656 = vmatpush.xpose.msra.mxu0 0.0
    %657 = vmatpush.xpose.msra.mxu0 0.0
    %658 = vmatpush.xpose.msra.mxu0 0.0
    %659 = vmatpush.xpose.msra.mxu0 0.0
    %660 = vmatpush.xpose.msra.mxu0 0.0
    %661 = vmatpush.xpose.msra.mxu0 0.0
    %662 = vmatpush.xpose.msra.mxu0 0.0
    %663 = vmatpush.xpose.msra.mxu0 0.0
    %664 = vmatpush.xpose.msra.mxu0 %v647
    %665 = vmatmul.f32.gmra.mxu0 %v645
    %v666 = vpop.f32.mrf.mxu0
    %v667 = vadd.f32 %v170, %v666
    %668 = vdwg.mxu0
    %669 = vrot.lane.b32.xlu0 %v166, 104
    %v670 = vpop.permute.xlu0 %669
    %671 = vrot.lane.b32.xlu0 %v166, 72
    %v672 = vpop.permute.xlu0 %671
    %v673 = vsel %vm177, %v670, 0
    %v675 = vsel %vm177, %v672, 0
    %677 = vmatpush.xpose.msra.mxu0 0.0
    %678 = vmatpush.xpose.msra.mxu0 0.0
    %679 = vmatpush.xpose.msra.mxu0 0.0
    %680 = vmatpush.xpose.msra.mxu0 0.0
    %681 = vmatpush.xpose.msra.mxu0 0.0
    %682 = vmatpush.xpose.msra.mxu0 0.0
    %683 = vmatpush.xpose.msra.mxu0 0.0
    %684 = vmatpush.xpose.msra.mxu0 0.0
    %685 = vmatpush.xpose.msra.mxu0 0.0
    %686 = vmatpush.xpose.msra.mxu0 0.0
    %687 = vmatpush.xpose.msra.mxu0 0.0
    %688 = vmatpush.xpose.msra.mxu0 0.0
    %689 = vmatpush.xpose.msra.mxu0 0.0
    %690 = vmatpush.xpose.msra.mxu0 0.0
    %691 = vmatpush.xpose.msra.mxu0 0.0
    %692 = vmatpush.xpose.msra.mxu0 %v675
    %693 = vmatmul.f32.gmra.mxu0 %v673
    %v694 = vpop.f32.mrf.mxu0
    %v695 = vadd.f32 %v171, %v694
    %696 = vdwg.mxu0
    %v697 = vsel %vm177, %v667, -inf
    %698 = vmax.xlane.f32.xlu0 %v697
    %v699 = vpop.xlane.xlu0 %698
    %v700 = vsel %vm177, %v695, -inf
    %701 = vmax.xlane.f32.xlu0 %v700
    %v702 = vpop.xlane.xlu0 %701
    %v703 = vsub.f32 %v667, %v699
    %v704 = vsub.f32 %v695, %v702
    %v705 = vmul.f32 %v703, 1.442695
    %v706 = vpow.pop %v705
    %v707 = vmul.f32 %v704, 1.442695
    %v708 = vpow.pop %v707
    %v709 = vsel %vm177, %v706, 0.0
    %710 = vadd.xlane.f32.xlu0 %v709
    %v711 = vpop.xlane.xlu0 %710
    %v712 = vsel %vm177, %v708, 0.0
    %713 = vadd.xlane.f32.xlu0 %v712
    %v714 = vpop.xlane.xlu0 %713
    %v715 = vrcp.pop %v711
    %v716 = vmul.f32 %v711, %v715
    %v717 = vsub.f32 1.0, %v716
    %v718 = vmul.f32 %v715, %v717
    %v719 = vadd.f32 %v715, %v718
    %vm720 = vweird.f32 %v711
    %vm721 = vweird.f32 %v715
    %vm722 = vmor %vm720, %vm721
    %v723 = vsel %vm722, %v715, %v719
    %v724 = vand.u32 2147483647, %v711
    %vm725 = vcmp.eq.f32.partialorder %v724, 8.507059e+37
    %v726 = vand.u32 %v711, 2147483648
    %v727 = vor.u32 1.1754944e-38, %v726
    %v728 = vsel %vm725, %v727, %v723
    %v729 = vmul.f32 %v706, %v728
    %v730 = vrcp.pop %v714
    %v731 = vmul.f32 %v714, %v730
    %v732 = vsub.f32 1.0, %v731
    %v733 = vmul.f32 %v730, %v732
    %v734 = vadd.f32 %v730, %v733
    %vm735 = vweird.f32 %v714
    %vm736 = vweird.f32 %v730
    %vm737 = vmor %vm735, %vm736
    %v738 = vsel %vm737, %v730, %v734
    %v739 = vand.u32 2147483647, %v714
    %vm740 = vcmp.eq.f32.partialorder %v739, 8.507059e+37
    %v741 = vand.u32 %v714, 2147483648
    %v742 = vor.u32 1.1754944e-38, %v741
    %v743 = vsel %vm740, %v742, %v738
    %v744 = vmul.f32 %v708, %v743
    %745 = vrot.lane.b32.xlu0 %v163, 40
    %v746 = vpop.permute.xlu0 %745
    %v749 = vsel %vm177, %v729, 0
    %751 = vmatpush.msra.mxu0 0.0
    %752 = vmatpush.msra.mxu0 0.0
    %753 = vmatpush.msra.mxu0 0.0
    %754 = vmatpush.msra.mxu0 0.0
    %755 = vmatpush.msra.mxu0 0.0
    %756 = vmatpush.msra.mxu0 0.0
    %757 = vmatpush.msra.mxu0 0.0
    %758 = vmatpush.msra.mxu0 0.0
    %759 = vmatpush.msra.mxu0 0.0
    %760 = vmatpush.msra.mxu0 0.0
    %761 = vmatpush.msra.mxu0 0.0
    %762 = vmatpush.msra.mxu0 0.0
    %763 = vmatpush.msra.mxu0 0.0
    %764 = vmatpush.msra.mxu0 0.0
    %765 = vmatpush.msra.mxu0 0.0
    %766 = vmatpush.msra.mxu0 %v746
    %767 = vmatmul.f32.gmra.mxu0 %v749
    %v768 = vpop.f32.mrf.mxu0
    %v769 = vadd.f32 0.0, %v768
    %770 = vdwg.mxu0
    %771 = vrot.lane.b32.xlu0 %v166, 40
    %v772 = vpop.permute.xlu0 %771
    %v775 = vsel %vm177, %v744, 0
    %777 = vmatpush.msra.mxu0 0.0
    %778 = vmatpush.msra.mxu0 0.0
    %779 = vmatpush.msra.mxu0 0.0
    %780 = vmatpush.msra.mxu0 0.0
    %781 = vmatpush.msra.mxu0 0.0
    %782 = vmatpush.msra.mxu0 0.0
    %783 = vmatpush.msra.mxu0 0.0
    %784 = vmatpush.msra.mxu0 0.0
    %785 = vmatpush.msra.mxu0 0.0
    %786 = vmatpush.msra.mxu0 0.0
    %787 = vmatpush.msra.mxu0 0.0
    %788 = vmatpush.msra.mxu0 0.0
    %789 = vmatpush.msra.mxu0 0.0
    %790 = vmatpush.msra.mxu0 0.0
    %791 = vmatpush.msra.mxu0 0.0
    %792 = vmatpush.msra.mxu0 %v772
    %793 = vmatmul.f32.gmra.mxu0 %v775
    %v794 = vpop.f32.mrf.mxu0
    %v795 = vadd.f32 0.0, %v794
    %796 = vdwg.mxu0
    %799 = vrot.lane.b32.xlu0 %v457, 8
    %v800 = vpop.permute.xlu0 %799
    %801 = vrot.lane.b32.xlu0 %v483, 8
    %v802 = vpop.permute.xlu0 %801
    %807 = vrot.lane.b32.xlu0 %v613, 16
    %v808 = vpop.permute.xlu0 %807
    %809 = vrot.lane.b32.xlu0 %v639, 16
    %v810 = vpop.permute.xlu0 %809
    %815 = vrot.lane.b32.xlu0 %v769, 24
    %v816 = vpop.permute.xlu0 %815
    %817 = vrot.lane.b32.xlu0 %v795, 24
    %v818 = vpop.permute.xlu0 %817
    %v821 = vsel %vm177, %v301, %v800
    %v822 = vsel %vm177, %v327, %v802
    %vm823 = vcmask 130048
    %v824 = vsel %vm823, %v821, %v808
    %v825 = vsel %vm823, %v822, %v810
    %vm826 = vcmask 195584
    %v827 = vsel %vm826, %v824, %v816
    %v828 = vsel %vm826, %v825, %v818
    %v829 = vperm.slane %v41, 0
    %v830 = vlaneseq
    %v831 = vshrl.u32 %v830, 7
    %833 = vset.pattern.permute.xlu0 %v831
    %834 = vperm.xlu0 %833, %v829
    %v835 = vpop.permute.xlu0 %834
    %v836 = vperm.slane %v41, 1
    %v837 = vlaneseq
    %v838 = vshrl.u32 %v837, 7
    %840 = vset.pattern.permute.xlu0 %v838
    %841 = vperm.xlu0 %840, %v836
    %v842 = vpop.permute.xlu0 %841
    %v843 = vmul.f32 %v827, %v835
    %v844 = vmul.f32 %v828, %v842
    %s845 = scalar_lea.vmem [#allocation2], 192
    %v846 = vld [vmem:[%s845] sm:$0xff]
    %v847 = vld [vmem:[%s845 + $0x8] sm:$0xff]
    %v848 = vld [vmem:[%s845 + $0x10] sm:$0xff]
    %v849 = vld [vmem:[%s845 + $0x18] sm:$0xff]
    %v850 = vperm.slane %v36, 1
    %v852 = vsel %vm138, %v843, 0
    %v855 = vsel %vm138, %v844, 0
    %857 = vmatpush.msra.mxu0 0.0
    %858 = vmatpush.msra.mxu0 0.0
    %859 = vmatpush.msra.mxu0 0.0
    %860 = vmatpush.msra.mxu0 0.0
    %861 = vmatpush.msra.mxu0 0.0
    %862 = vmatpush.msra.mxu0 0.0
    %863 = vmatpush.msra.mxu0 0.0
    %864 = vmatpush.msra.mxu0 0.0
    %865 = vmatpush.msra.mxu0 0.0
    %866 = vmatpush.msra.mxu0 0.0
    %867 = vmatpush.msra.mxu0 0.0
    %868 = vmatpush.msra.mxu0 0.0
    %869 = vmatpush.msra.mxu0 %v849
    %870 = vmatpush.msra.mxu0 %v848
    %871 = vmatpush.msra.mxu0 %v847
    %872 = vmatpush.msra.mxu0 %v846
    %873 = vmatmul.f32.gmra.mxu0 %v852
    %v874 = vpop.f32.mrf.mxu0
    %v875 = vadd.f32 %v850, %v874
    %876 = vmatmul.f32.gmra.mxu0 %v855
    %v877 = vpop.f32.mrf.mxu0
    %v878 = vadd.f32 %v850, %v877
    %879 = vdwg.mxu0
    %v880 = vadd.f32 %v121, %v875
    %v881 = vadd.f32 %v124, %v878
    %v882 = vsel %vm138, %v880, 0.0
    %883 = vadd.xlane.f32.xlu0 %v882
    %v884 = vpop.xlane.xlu0 %883
    %v885 = vsel %vm138, %v881, 0.0
    %886 = vadd.xlane.f32.xlu0 %v885
    %v887 = vpop.xlane.xlu0 %886
    %v888 = vrcp.pop 32.0
    %v889 = vmul.f32 32.0, %v888
    %v890 = vsub.f32 1.0, %v889
    %v891 = vmul.f32 %v888, %v890
    %v892 = vadd.f32 %v888, %v891
    %vm893 = vweird.f32 %v888
    %v894 = vsel %vm893, %v888, %v892
    %v895 = vmul.f32 %v884, %v894
    %v896 = vmul.f32 %v887, %v894
    %v897 = vsub.f32 %v880, %v895
    %v898 = vsub.f32 %v881, %v896
    %v899 = vmul.f32 %v897, %v897
    %v900 = vmul.f32 %v898, %v898
    %v901 = vsel %vm138, %v899, 0.0
    %902 = vadd.xlane.f32.xlu0 %v901
    %v903 = vpop.xlane.xlu0 %902
    %v904 = vsel %vm138, %v900, 0.0
    %905 = vadd.xlane.f32.xlu0 %v904
    %v906 = vpop.xlane.xlu0 %905
    %v907 = vmul.f32 %v903, %v894
    %v908 = vmul.f32 %v906, %v894
    %v909 = vadd.f32 %v907, 1e-05
    %v910 = vadd.f32 %v908, 1e-05
    %v911 = vrsqrt.pop %v909
    %v912 = vmul.f32 %v911, %v909
    %v913 = vmul.f32 %v912, %v911
    %v914 = vmul.f32 0.5, %v913
    %v915 = vsub.f32 1.5, %v914
    %v916 = vmul.f32 %v911, %v915
    %vm917 = vweird.f32 %v909
    %vm918 = vweird.f32 %v911
    %vm919 = vmor %vm917, %vm918
    %v920 = vsel %vm919, %v911, %v916
    %v921 = vrsqrt.pop %v910
    %v922 = vmul.f32 %v921, %v910
    %v923 = vmul.f32 %v922, %v921
    %v924 = vmul.f32 0.5, %v923
    %v925 = vsub.f32 1.5, %v924
    %v926 = vmul.f32 %v921, %v925
    %vm927 = vweird.f32 %v910
    %vm928 = vweird.f32 %v921
    %vm929 = vmor %vm927, %vm928
    %v930 = vsel %vm929, %v921, %v926
    %v931 = vmul.f32 %v897, %v920
    %v932 = vmul.f32 %v898, %v930
    %v933 = vperm.slane %v36, 2
    %v934 = vmul.f32 %v931, %v933
    %v935 = vmul.f32 %v932, %v933
    %v936 = vperm.slane %v36, 3
    %v937 = vadd.f32 %v934, %v936
    %v938 = vadd.f32 %v935, %v936
    %s939 = scalar_lea.vmem [#allocation2], 256
    %v940 = vld [vmem:[%s939] sm:$0xff]
    %v941 = vld [vmem:[%s939 + $0x8] sm:$0xff]
    %v942 = vld [vmem:[%s939 + $0x10] sm:$0xff]
    %v943 = vld [vmem:[%s939 + $0x18] sm:$0xff]
    %v944 = vperm.slane %v36, 4
    %v946 = vsel %vm138, %v937, 0
    %v949 = vsel %vm138, %v938, 0
    %951 = vmatpush.msra.mxu0 0.0
    %952 = vmatpush.msra.mxu0 0.0
    %953 = vmatpush.msra.mxu0 0.0
    %954 = vmatpush.msra.mxu0 0.0
    %955 = vmatpush.msra.mxu0 0.0
    %956 = vmatpush.msra.mxu0 0.0
    %957 = vmatpush.msra.mxu0 0.0
    %958 = vmatpush.msra.mxu0 0.0
    %959 = vmatpush.msra.mxu0 0.0
    %960 = vmatpush.msra.mxu0 0.0
    %961 = vmatpush.msra.mxu0 0.0
    %962 = vmatpush.msra.mxu0 0.0
    %963 = vmatpush.msra.mxu0 %v943
    %964 = vmatpush.msra.mxu0 %v942
    %965 = vmatpush.msra.mxu0 %v941
    %966 = vmatpush.msra.mxu0 %v940
    %967 = vmatmul.f32.gmra.mxu0 %v946
    %v968 = vpop.f32.mrf.mxu0
    %v969 = vadd.f32 %v944, %v968
    %970 = vmatmul.f32.gmra.mxu0 %v949
    %v971 = vpop.f32.mrf.mxu0
    %v972 = vadd.f32 %v944, %v971
    %973 = vdwg.mxu0
    %v974 = vmax.f32 %v969, 0.0
    %v975 = vmax.f32 %v972, 0.0
    %s976 = scalar_lea.vmem [#allocation2], 320
    %v977 = vld [vmem:[%s976] sm:$0xff]
    %v978 = vld [vmem:[%s976 + $0x8] sm:$0xff]
    %v979 = vld [vmem:[%s976 + $0x10] sm:$0xff]
    %v980 = vld [vmem:[%s976 + $0x18] sm:$0xff]
    %v981 = vld [vmem:[%s976 + $0x20] sm:$0xff]
    %v982 = vld [vmem:[%s976 + $0x28] sm:$0xff]
    %v983 = vld [vmem:[%s976 + $0x30] sm:$0xff]
    %v984 = vld [vmem:[%s976 + $0x38] sm:$0xff]
    %v985 = vperm.slane %v36, 5
    %v987 = vsel %vm90, %v974, 0
    %v990 = vsel %vm90, %v975, 0
    %992 = vmatpush.msra.mxu0 0.0
    %993 = vmatpush.msra.mxu0 0.0
    %994 = vmatpush.msra.mxu0 0.0
    %995 = vmatpush.msra.mxu0 0.0
    %996 = vmatpush.msra.mxu0 0.0
    %997 = vmatpush.msra.mxu0 0.0
    %998 = vmatpush.msra.mxu0 0.0
    %999 = vmatpush.msra.mxu0 0.0
    %1000 = vmatpush.msra.mxu0 %v984
    %1001 = vmatpush.msra.mxu0 %v983
    %1002 = vmatpush.msra.mxu0 %v982
    %1003 = vmatpush.msra.mxu0 %v981
    %1004 = vmatpush.msra.mxu0 %v980
    %1005 = vmatpush.msra.mxu0 %v979
    %1006 = vmatpush.msra.mxu0 %v978
    %1007 = vmatpush.msra.mxu0 %v977
    %1008 = vmatmul.f32.gmra.mxu0 %v987
    %v1009 = vpop.f32.mrf.mxu0
    %v1010 = vadd.f32 %v985, %v1009
    %1011 = vmatmul.f32.gmra.mxu0 %v990
    %v1012 = vpop.f32.mrf.mxu0
    %v1013 = vadd.f32 %v985, %v1012
    %1014 = vdwg.mxu0
    %v1015 = vadd.f32 %v937, %v1010
    %v1016 = vadd.f32 %v938, %v1013
    %v1017 = vsel %vm138, %v1015, 0.0
    %1018 = vadd.xlane.f32.xlu0 %v1017
    %v1019 = vpop.xlane.xlu0 %1018
    %v1020 = vsel %vm138, %v1016, 0.0
    %1021 = vadd.xlane.f32.xlu0 %v1020
    %v1022 = vpop.xlane.xlu0 %1021
    %v1023 = vmul.f32 %v1019, %v894
    %v1024 = vmul.f32 %v1022, %v894
    %v1025 = vsub.f32 %v1015, %v1023
    %v1026 = vsub.f32 %v1016, %v1024
    %v1027 = vmul.f32 %v1025, %v1025
    %v1028 = vmul.f32 %v1026, %v1026
    %v1029 = vsel %vm138, %v1027, 0.0
    %1030 = vadd.xlane.f32.xlu0 %v1029
    %v1031 = vpop.xlane.xlu0 %1030
    %v1032 = vsel %vm138, %v1028, 0.0
    %1033 = vadd.xlane.f32.xlu0 %v1032
    %v1034 = vpop.xlane.xlu0 %1033
    %v1035 = vmul.f32 %v1031, %v894
    %v1036 = vmul.f32 %v1034, %v894
    %v1037 = vadd.f32 %v1035, 1e-05
    %v1038 = vadd.f32 %v1036, 1e-05
    %v1039 = vrsqrt.pop %v1037
    %v1040 = vmul.f32 %v1039, %v1037
    %v1041 = vmul.f32 %v1040, %v1039
    %v1042 = vmul.f32 0.5, %v1041
    %v1043 = vsub.f32 1.5, %v1042
    %v1044 = vmul.f32 %v1039, %v1043
    %vm1045 = vweird.f32 %v1037
    %vm1046 = vweird.f32 %v1039
    %vm1047 = vmor %vm1045, %vm1046
    %v1048 = vsel %vm1047, %v1039, %v1044
    %v1049 = vrsqrt.pop %v1038
    %v1050 = vmul.f32 %v1049, %v1038
    %v1051 = vmul.f32 %v1050, %v1049
    %v1052 = vmul.f32 0.5, %v1051
    %v1053 = vsub.f32 1.5, %v1052
    %v1054 = vmul.f32 %v1049, %v1053
    %vm1055 = vweird.f32 %v1038
    %vm1056 = vweird.f32 %v1049
    %vm1057 = vmor %vm1055, %vm1056
    %v1058 = vsel %vm1057, %v1049, %v1054
    %v1059 = vmul.f32 %v1025, %v1048
    %v1060 = vmul.f32 %v1026, %v1058
    %v1061 = vperm.slane %v36, 6
    %v1062 = vmul.f32 %v1059, %v1061
    %v1063 = vmul.f32 %v1060, %v1061
    %v1064 = vperm.slane %v36, 7
    %v1065 = vadd.f32 %v1062, %v1064
    %v1066 = vadd.f32 %v1063, %v1064
    %s1067 = scalar_lea.vmem [#allocation2], 384
    %v1068 = vld [vmem:[%s1067] sm:$0xff]
    %v1069 = vld [vmem:[%s1067 + $0x8] sm:$0xff]
    %v1070 = vld [vmem:[%s1067 + $0x10] sm:$0xff]
    %v1071 = vld [vmem:[%s1067 + $0x18] sm:$0xff]
    %v1072 = vperm.slane %v37, 0
    %v1074 = vsel %vm138, %v1065, 0
    %v1077 = vsel %vm138, %v1066, 0
    %1079 = vmatpush.msra.mxu0 0.0
    %1080 = vmatpush.msra.mxu0 0.0
    %1081 = vmatpush.msra.mxu0 0.0
    %1082 = vmatpush.msra.mxu0 0.0
    %1083 = vmatpush.msra.mxu0 0.0
    %1084 = vmatpush.msra.mxu0 0.0
    %1085 = vmatpush.msra.mxu0 0.0
    %1086 = vmatpush.msra.mxu0 0.0
    %1087 = vmatpush.msra.mxu0 0.0
    %1088 = vmatpush.msra.mxu0 0.0
    %1089 = vmatpush.msra.mxu0 0.0
    %1090 = vmatpush.msra.mxu0 0.0
    %1091 = vmatpush.msra.mxu0 %v1071
    %1092 = vmatpush.msra.mxu0 %v1070
    %1093 = vmatpush.msra.mxu0 %v1069
    %1094 = vmatpush.msra.mxu0 %v1068
    %1095 = vmatmul.f32.gmra.mxu0 %v1074
    %v1096 = vpop.f32.mrf.mxu0
    %v1097 = vadd.f32 %v1072, %v1096
    %1098 = vmatmul.f32.gmra.mxu0 %v1077
    %v1099 = vpop.f32.mrf.mxu0
    %v1100 = vadd.f32 %v1072, %v1099
    %1101 = vdwg.mxu0
    %1103 = vrot.lane.b32.xlu0 %v1097, 96
    %v1104 = vpop.permute.xlu0 %1103
    %v1105 = vsel %vm177, %v1097, 0
    %v1107 = vsel %vm177, %v1104, 0
    %1109 = vmatpush.xpose.msra.mxu0 0.0
    %1110 = vmatpush.xpose.msra.mxu0 0.0
    %1111 = vmatpush.xpose.msra.mxu0 0.0
    %1112 = vmatpush.xpose.msra.mxu0 0.0
    %1113 = vmatpush.xpose.msra.mxu0 0.0
    %1114 = vmatpush.xpose.msra.mxu0 0.0
    %1115 = vmatpush.xpose.msra.mxu0 0.0
    %1116 = vmatpush.xpose.msra.mxu0 0.0
    %1117 = vmatpush.xpose.msra.mxu0 0.0
    %1118 = vmatpush.xpose.msra.mxu0 0.0
    %1119 = vmatpush.xpose.msra.mxu0 0.0
    %1120 = vmatpush.xpose.msra.mxu0 0.0
    %1121 = vmatpush.xpose.msra.mxu0 0.0
    %1122 = vmatpush.xpose.msra.mxu0 0.0
    %1123 = vmatpush.xpose.msra.mxu0 0.0
    %1124 = vmatpush.xpose.msra.mxu0 %v1107
    %1125 = vmatmul.f32.gmra.mxu0 %v1105
    %v1126 = vpop.f32.mrf.mxu0
    %v1127 = vadd.f32 %v170, %v1126
    %1128 = vdwg.mxu0
    %1130 = vrot.lane.b32.xlu0 %v1100, 96
    %v1131 = vpop.permute.xlu0 %1130
    %v1132 = vsel %vm177, %v1100, 0
    %v1134 = vsel %vm177, %v1131, 0
    %1136 = vmatpush.xpose.msra.mxu0 0.0
    %1137 = vmatpush.xpose.msra.mxu0 0.0
    %1138 = vmatpush.xpose.msra.mxu0 0.0
    %1139 = vmatpush.xpose.msra.mxu0 0.0
    %1140 = vmatpush.xpose.msra.mxu0 0.0
    %1141 = vmatpush.xpose.msra.mxu0 0.0
    %1142 = vmatpush.xpose.msra.mxu0 0.0
    %1143 = vmatpush.xpose.msra.mxu0 0.0
    %1144 = vmatpush.xpose.msra.mxu0 0.0
    %1145 = vmatpush.xpose.msra.mxu0 0.0
    %1146 = vmatpush.xpose.msra.mxu0 0.0
    %1147 = vmatpush.xpose.msra.mxu0 0.0
    %1148 = vmatpush.xpose.msra.mxu0 0.0
    %1149 = vmatpush.xpose.msra.mxu0 0.0
    %1150 = vmatpush.xpose.msra.mxu0 0.0
    %1151 = vmatpush.xpose.msra.mxu0 %v1134
    %1152 = vmatmul.f32.gmra.mxu0 %v1132
    %v1153 = vpop.f32.mrf.mxu0
    %v1154 = vadd.f32 %v171, %v1153
    %1155 = vdwg.mxu0
    %v1156 = vsel %vm177, %v1127, -inf
    %1157 = vmax.xlane.f32.xlu0 %v1156
    %v1158 = vpop.xlane.xlu0 %1157
    %v1159 = vsel %vm177, %v1154, -inf
    %1160 = vmax.xlane.f32.xlu0 %v1159
    %v1161 = vpop.xlane.xlu0 %1160
    %v1162 = vsub.f32 %v1127, %v1158
    %v1163 = vsub.f32 %v1154, %v1161
    %v1164 = vmul.f32 %v1162, 1.442695
    %v1165 = vpow.pop %v1164
    %v1166 = vmul.f32 %v1163, 1.442695
    %v1167 = vpow.pop %v1166
    %v1168 = vsel %vm177, %v1165, 0.0
    %1169 = vadd.xlane.f32.xlu0 %v1168
    %v1170 = vpop.xlane.xlu0 %1169
    %v1171 = vsel %vm177, %v1167, 0.0
    %1172 = vadd.xlane.f32.xlu0 %v1171
    %v1173 = vpop.xlane.xlu0 %1172
    %v1174 = vrcp.pop %v1170
    %v1175 = vmul.f32 %v1170, %v1174
    %v1176 = vsub.f32 1.0, %v1175
    %v1177 = vmul.f32 %v1174, %v1176
    %v1178 = vadd.f32 %v1174, %v1177
    %vm1179 = vweird.f32 %v1170
    %vm1180 = vweird.f32 %v1174
    %vm1181 = vmor %vm1179, %vm1180
    %v1182 = vsel %vm1181, %v1174, %v1178
    %v1183 = vand.u32 2147483647, %v1170
    %vm1184 = vcmp.eq.f32.partialorder %v1183, 8.507059e+37
    %v1185 = vand.u32 %v1170, 2147483648
    %v1186 = vor.u32 1.1754944e-38, %v1185
    %v1187 = vsel %vm1184, %v1186, %v1182
    %v1188 = vmul.f32 %v1165, %v1187
    %v1189 = vrcp.pop %v1173
    %v1190 = vmul.f32 %v1173, %v1189
    %v1191 = vsub.f32 1.0, %v1190
    %v1192 = vmul.f32 %v1189, %v1191
    %v1193 = vadd.f32 %v1189, %v1192
    %vm1194 = vweird.f32 %v1173
    %vm1195 = vweird.f32 %v1189
    %vm1196 = vmor %vm1194, %vm1195
    %v1197 = vsel %vm1196, %v1189, %v1193
    %v1198 = vand.u32 2147483647, %v1173
    %vm1199 = vcmp.eq.f32.partialorder %v1198, 8.507059e+37
    %v1200 = vand.u32 %v1173, 2147483648
    %v1201 = vor.u32 1.1754944e-38, %v1200
    %v1202 = vsel %vm1199, %v1201, %v1197
    %v1203 = vmul.f32 %v1167, %v1202
    %1204 = vrot.lane.b32.xlu0 %v1097, 64
    %v1205 = vpop.permute.xlu0 %1204
    %v1208 = vsel %vm177, %v1188, 0
    %1210 = vmatpush.msra.mxu0 0.0
    %1211 = vmatpush.msra.mxu0 0.0
    %1212 = vmatpush.msra.mxu0 0.0
    %1213 = vmatpush.msra.mxu0 0.0
    %1214 = vmatpush.msra.mxu0 0.0
    %1215 = vmatpush.msra.mxu0 0.0
    %1216 = vmatpush.msra.mxu0 0.0
    %1217 = vmatpush.msra.mxu0 0.0
    %1218 = vmatpush.msra.mxu0 0.0
    %1219 = vmatpush.msra.mxu0 0.0
    %1220 = vmatpush.msra.mxu0 0.0
    %1221 = vmatpush.msra.mxu0 0.0
    %1222 = vmatpush.msra.mxu0 0.0
    %1223 = vmatpush.msra.mxu0 0.0
    %1224 = vmatpush.msra.mxu0 0.0
    %1225 = vmatpush.msra.mxu0 %v1205
    %1226 = vmatmul.f32.gmra.mxu0 %v1208
    %v1227 = vpop.f32.mrf.mxu0
    %v1228 = vadd.f32 0.0, %v1227
    %1229 = vdwg.mxu0
    %1230 = vrot.lane.b32.xlu0 %v1100, 64
    %v1231 = vpop.permute.xlu0 %1230
    %v1234 = vsel %vm177, %v1203, 0
    %1236 = vmatpush.msra.mxu0 0.0
    %1237 = vmatpush.msra.mxu0 0.0
    %1238 = vmatpush.msra.mxu0 0.0
    %1239 = vmatpush.msra.mxu0 0.0
    %1240 = vmatpush.msra.mxu0 0.0
    %1241 = vmatpush.msra.mxu0 0.0
    %1242 = vmatpush.msra.mxu0 0.0
    %1243 = vmatpush.msra.mxu0 0.0
    %1244 = vmatpush.msra.mxu0 0.0
    %1245 = vmatpush.msra.mxu0 0.0
    %1246 = vmatpush.msra.mxu0 0.0
    %1247 = vmatpush.msra.mxu0 0.0
    %1248 = vmatpush.msra.mxu0 0.0
    %1249 = vmatpush.msra.mxu0 0.0
    %1250 = vmatpush.msra.mxu0 0.0
    %1251 = vmatpush.msra.mxu0 %v1231
    %1252 = vmatmul.f32.gmra.mxu0 %v1234
    %v1253 = vpop.f32.mrf.mxu0
    %v1254 = vadd.f32 0.0, %v1253
    %1255 = vdwg.mxu0
    %1256 = vrot.lane.b32.xlu0 %v1097, 120
    %v1257 = vpop.permute.xlu0 %1256
    %1258 = vrot.lane.b32.xlu0 %v1097, 88
    %v1259 = vpop.permute.xlu0 %1258
    %v1260 = vsel %vm177, %v1257, 0
    %v1262 = vsel %vm177, %v1259, 0
    %1264 = vmatpush.xpose.msra.mxu0 0.0
    %1265 = vmatpush.xpose.msra.mxu0 0.0
    %1266 = vmatpush.xpose.msra.mxu0 0.0
    %1267 = vmatpush.xpose.msra.mxu0 0.0
    %1268 = vmatpush.xpose.msra.mxu0 0.0
    %1269 = vmatpush.xpose.msra.mxu0 0.0
    %1270 = vmatpush.xpose.msra.mxu0 0.0
    %1271 = vmatpush.xpose.msra.mxu0 0.0
    %1272 = vmatpush.xpose.msra.mxu0 0.0
    %1273 = vmatpush.xpose.msra.mxu0 0.0
    %1274 = vmatpush.xpose.msra.mxu0 0.0
    %1275 = vmatpush.xpose.msra.mxu0 0.0
    %1276 = vmatpush.xpose.msra.mxu0 0.0
    %1277 = vmatpush.xpose.msra.mxu0 0.0
    %1278 = vmatpush.xpose.msra.mxu0 0.0
    %1279 = vmatpush.xpose.msra.mxu0 %v1262
    %1280 = vmatmul.f32.gmra.mxu0 %v1260
    %v1281 = vpop.f32.mrf.mxu0
    %v1282 = vadd.f32 %v170, %v1281
    %1283 = vdwg.mxu0
    %1284 = vrot.lane.b32.xlu0 %v1100, 120
    %v1285 = vpop.permute.xlu0 %1284
    %1286 = vrot.lane.b32.xlu0 %v1100, 88
    %v1287 = vpop.permute.xlu0 %1286
    %v1288 = vsel %vm177, %v1285, 0
    %v1290 = vsel %vm177, %v1287, 0
    %1292 = vmatpush.xpose.msra.mxu0 0.0
    %1293 = vmatpush.xpose.msra.mxu0 0.0
    %1294 = vmatpush.xpose.msra.mxu0 0.0
    %1295 = vmatpush.xpose.msra.mxu0 0.0
    %1296 = vmatpush.xpose.msra.mxu0 0.0
    %1297 = vmatpush.xpose.msra.mxu0 0.0
    %1298 = vmatpush.xpose.msra.mxu0 0.0
    %1299 = vmatpush.xpose.msra.mxu0 0.0
    %1300 = vmatpush.xpose.msra.mxu0 0.0
    %1301 = vmatpush.xpose.msra.mxu0 0.0
    %1302 = vmatpush.xpose.msra.mxu0 0.0
    %1303 = vmatpush.xpose.msra.mxu0 0.0
    %1304 = vmatpush.xpose.msra.mxu0 0.0
    %1305 = vmatpush.xpose.msra.mxu0 0.0
    %1306 = vmatpush.xpose.msra.mxu0 0.0
    %1307 = vmatpush.xpose.msra.mxu0 %v1290
    %1308 = vmatmul.f32.gmra.mxu0 %v1288
    %v1309 = vpop.f32.mrf.mxu0
    %v1310 = vadd.f32 %v171, %v1309
    %1311 = vdwg.mxu0
    %v1312 = vsel %vm177, %v1282, -inf
    %1313 = vmax.xlane.f32.xlu0 %v1312
    %v1314 = vpop.xlane.xlu0 %1313
    %v1315 = vsel %vm177, %v1310, -inf
    %1316 = vmax.xlane.f32.xlu0 %v1315
    %v1317 = vpop.xlane.xlu0 %1316
    %v1318 = vsub.f32 %v1282, %v1314
    %v1319 = vsub.f32 %v1310, %v1317
    %v1320 = vmul.f32 %v1318, 1.442695
    %v1321 = vpow.pop %v1320
    %v1322 = vmul.f32 %v1319, 1.442695
    %v1323 = vpow.pop %v1322
    %v1324 = vsel %vm177, %v1321, 0.0
    %1325 = vadd.xlane.f32.xlu0 %v1324
    %v1326 = vpop.xlane.xlu0 %1325
    %v1327 = vsel %vm177, %v1323, 0.0
    %1328 = vadd.xlane.f32.xlu0 %v1327
    %v1329 = vpop.xlane.xlu0 %1328
    %v1330 = vrcp.pop %v1326
    %v1331 = vmul.f32 %v1326, %v1330
    %v1332 = vsub.f32 1.0, %v1331
    %v1333 = vmul.f32 %v1330, %v1332
    %v1334 = vadd.f32 %v1330, %v1333
    %vm1335 = vweird.f32 %v1326
    %vm1336 = vweird.f32 %v1330
    %vm1337 = vmor %vm1335, %vm1336
    %v1338 = vsel %vm1337, %v1330, %v1334
    %v1339 = vand.u32 2147483647, %v1326
    %vm1340 = vcmp.eq.f32.partialorder %v1339, 8.507059e+37
    %v1341 = vand.u32 %v1326, 2147483648
    %v1342 = vor.u32 1.1754944e-38, %v1341
    %v1343 = vsel %vm1340, %v1342, %v1338
    %v1344 = vmul.f32 %v1321, %v1343
    %v1345 = vrcp.pop %v1329
    %v1346 = vmul.f32 %v1329, %v1345
    %v1347 = vsub.f32 1.0, %v1346
    %v1348 = vmul.f32 %v1345, %v1347
    %v1349 = vadd.f32 %v1345, %v1348
    %vm1350 = vweird.f32 %v1329
    %vm1351 = vweird.f32 %v1345
    %vm1352 = vmor %vm1350, %vm1351
    %v1353 = vsel %vm1352, %v1345, %v1349
    %v1354 = vand.u32 2147483647, %v1329
    %vm1355 = vcmp.eq.f32.partialorder %v1354, 8.507059e+37
    %v1356 = vand.u32 %v1329, 2147483648
    %v1357 = vor.u32 1.1754944e-38, %v1356
    %v1358 = vsel %vm1355, %v1357, %v1353
    %v1359 = vmul.f32 %v1323, %v1358
    %1360 = vrot.lane.b32.xlu0 %v1097, 56
    %v1361 = vpop.permute.xlu0 %1360
    %v1364 = vsel %vm177, %v1344, 0
    %1366 = vmatpush.msra.mxu0 0.0
    %1367 = vmatpush.msra.mxu0 0.0
    %1368 = vmatpush.msra.mxu0 0.0
    %1369 = vmatpush.msra.mxu0 0.0
    %1370 = vmatpush.msra.mxu0 0.0
    %1371 = vmatpush.msra.mxu0 0.0
    %1372 = vmatpush.msra.mxu0 0.0
    %1373 = vmatpush.msra.mxu0 0.0
    %1374 = vmatpush.msra.mxu0 0.0
    %1375 = vmatpush.msra.mxu0 0.0
    %1376 = vmatpush.msra.mxu0 0.0
    %1377 = vmatpush.msra.mxu0 0.0
    %1378 = vmatpush.msra.mxu0 0.0
    %1379 = vmatpush.msra.mxu0 0.0
    %1380 = vmatpush.msra.mxu0 0.0
    %1381 = vmatpush.msra.mxu0 %v1361
    %1382 = vmatmul.f32.gmra.mxu0 %v1364
    %v1383 = vpop.f32.mrf.mxu0
    %v1384 = vadd.f32 0.0, %v1383
    %1385 = vdwg.mxu0
    %1386 = vrot.lane.b32.xlu0 %v1100, 56
    %v1387 = vpop.permute.xlu0 %1386
    %v1390 = vsel %vm177, %v1359, 0
    %1392 = vmatpush.msra.mxu0 0.0
    %1393 = vmatpush.msra.mxu0 0.0
    %1394 = vmatpush.msra.mxu0 0.0
    %1395 = vmatpush.msra.mxu0 0.0
    %1396 = vmatpush.msra.mxu0 0.0
    %1397 = vmatpush.msra.mxu0 0.0
    %1398 = vmatpush.msra.mxu0 0.0
    %1399 = vmatpush.msra.mxu0 0.0
    %1400 = vmatpush.msra.mxu0 0.0
    %1401 = vmatpush.msra.mxu0 0.0
    %1402 = vmatpush.msra.mxu0 0.0
    %1403 = vmatpush.msra.mxu0 0.0
    %1404 = vmatpush.msra.mxu0 0.0
    %1405 = vmatpush.msra.mxu0 0.0
    %1406 = vmatpush.msra.mxu0 0.0
    %1407 = vmatpush.msra.mxu0 %v1387
    %1408 = vmatmul.f32.gmra.mxu0 %v1390
    %v1409 = vpop.f32.mrf.mxu0
    %v1410 = vadd.f32 0.0, %v1409
    %1411 = vdwg.mxu0
    %1412 = vrot.lane.b32.xlu0 %v1097, 112
    %v1413 = vpop.permute.xlu0 %1412
    %1414 = vrot.lane.b32.xlu0 %v1097, 80
    %v1415 = vpop.permute.xlu0 %1414
    %v1416 = vsel %vm177, %v1413, 0
    %v1418 = vsel %vm177, %v1415, 0
    %1420 = vmatpush.xpose.msra.mxu0 0.0
    %1421 = vmatpush.xpose.msra.mxu0 0.0
    %1422 = vmatpush.xpose.msra.mxu0 0.0
    %1423 = vmatpush.xpose.msra.mxu0 0.0
    %1424 = vmatpush.xpose.msra.mxu0 0.0
    %1425 = vmatpush.xpose.msra.mxu0 0.0
    %1426 = vmatpush.xpose.msra.mxu0 0.0
    %1427 = vmatpush.xpose.msra.mxu0 0.0
    %1428 = vmatpush.xpose.msra.mxu0 0.0
    %1429 = vmatpush.xpose.msra.mxu0 0.0
    %1430 = vmatpush.xpose.msra.mxu0 0.0
    %1431 = vmatpush.xpose.msra.mxu0 0.0
    %1432 = vmatpush.xpose.msra.mxu0 0.0
    %1433 = vmatpush.xpose.msra.mxu0 0.0
    %1434 = vmatpush.xpose.msra.mxu0 0.0
    %1435 = vmatpush.xpose.msra.mxu0 %v1418
    %1436 = vmatmul.f32.gmra.mxu0 %v1416
    %v1437 = vpop.f32.mrf.mxu0
    %v1438 = vadd.f32 %v170, %v1437
    %1439 = vdwg.mxu0
    %1440 = vrot.lane.b32.xlu0 %v1100, 112
    %v1441 = vpop.permute.xlu0 %1440
    %1442 = vrot.lane.b32.xlu0 %v1100, 80
    %v1443 = vpop.permute.xlu0 %1442
    %v1444 = vsel %vm177, %v1441, 0
    %v1446 = vsel %vm177, %v1443, 0
    %1448 = vmatpush.xpose.msra.mxu0 0.0
    %1449 = vmatpush.xpose.msra.mxu0 0.0
    %1450 = vmatpush.xpose.msra.mxu0 0.0
    %1451 = vmatpush.xpose.msra.mxu0 0.0
    %1452 = vmatpush.xpose.msra.mxu0 0.0
    %1453 = vmatpush.xpose.msra.mxu0 0.0
    %1454 = vmatpush.xpose.msra.mxu0 0.0
    %1455 = vmatpush.xpose.msra.mxu0 0.0
    %1456 = vmatpush.xpose.msra.mxu0 0.0
    %1457 = vmatpush.xpose.msra.mxu0 0.0
    %1458 = vmatpush.xpose.msra.mxu0 0.0
    %1459 = vmatpush.xpose.msra.mxu0 0.0
    %1460 = vmatpush.xpose.msra.mxu0 0.0
    %1461 = vmatpush.xpose.msra.mxu0 0.0
    %1462 = vmatpush.xpose.msra.mxu0 0.0
    %1463 = vmatpush.xpose.msra.mxu0 %v1446
    %1464 = vmatmul.f32.gmra.mxu0 %v1444
    %v1465 = vpop.f32.mrf.mxu0
    %v1466 = vadd.f32 %v171, %v1465
    %1467 = vdwg.mxu0
    %v1468 = vsel %vm177, %v1438, -inf
    %1469 = vmax.xlane.f32.xlu0 %v1468
    %v1470 = vpop.xlane.xlu0 %1469
    %v1471 = vsel %vm177, %v1466, -inf
    %1472 = vmax.xlane.f32.xlu0 %v1471
    %v1473 = vpop.xlane.xlu0 %1472
    %v1474 = vsub.f32 %v1438, %v1470
    %v1475 = vsub.f32 %v1466, %v1473
    %v1476 = vmul.f32 %v1474, 1.442695
    %v1477 = vpow.pop %v1476
    %v1478 = vmul.f32 %v1475, 1.442695
    %v1479 = vpow.pop %v1478
    %v1480 = vsel %vm177, %v1477, 0.0
    %1481 = vadd.xlane.f32.xlu0 %v1480
    %v1482 = vpop.xlane.xlu0 %1481
    %v1483 = vsel %vm177, %v1479, 0.0
    %1484 = vadd.xlane.f32.xlu0 %v1483
    %v1485 = vpop.xlane.xlu0 %1484
    %v1486 = vrcp.pop %v1482
    %v1487 = vmul.f32 %v1482, %v1486
    %v1488 = vsub.f32 1.0, %v1487
    %v1489 = vmul.f32 %v1486, %v1488
    %v1490 = vadd.f32 %v1486, %v1489
    %vm1491 = vweird.f32 %v1482
    %vm1492 = vweird.f32 %v1486
    %vm1493 = vmor %vm1491, %vm1492
    %v1494 = vsel %vm1493, %v1486, %v1490
    %v1495 = vand.u32 2147483647, %v1482
    %vm1496 = vcmp.eq.f32.partialorder %v1495, 8.507059e+37
    %v1497 = vand.u32 %v1482, 2147483648
    %v1498 = vor.u32 1.1754944e-38, %v1497
    %v1499 = vsel %vm1496, %v1498, %v1494
    %v1500 = vmul.f32 %v1477, %v1499
    %v1501 = vrcp.pop %v1485
    %v1502 = vmul.f32 %v1485, %v1501
    %v1503 = vsub.f32 1.0, %v1502
    %v1504 = vmul.f32 %v1501, %v1503
    %v1505 = vadd.f32 %v1501, %v1504
    %vm1506 = vweird.f32 %v1485
    %vm1507 = vweird.f32 %v1501
    %vm1508 = vmor %vm1506, %vm1507
    %v1509 = vsel %vm1508, %v1501, %v1505
    %v1510 = vand.u32 2147483647, %v1485
    %vm1511 = vcmp.eq.f32.partialorder %v1510, 8.507059e+37
    %v1512 = vand.u32 %v1485, 2147483648
    %v1513 = vor.u32 1.1754944e-38, %v1512
    %v1514 = vsel %vm1511, %v1513, %v1509
    %v1515 = vmul.f32 %v1479, %v1514
    %1516 = vrot.lane.b32.xlu0 %v1097, 48
    %v1517 = vpop.permute.xlu0 %1516
    %v1520 = vsel %vm177, %v1500, 0
    %1522 = vmatpush.msra.mxu0 0.0
    %1523 = vmatpush.msra.mxu0 0.0
    %1524 = vmatpush.msra.mxu0 0.0
    %1525 = vmatpush.msra.mxu0 0.0
    %1526 = vmatpush.msra.mxu0 0.0
    %1527 = vmatpush.msra.mxu0 0.0
    %1528 = vmatpush.msra.mxu0 0.0
    %1529 = vmatpush.msra.mxu0 0.0
    %1530 = vmatpush.msra.mxu0 0.0
    %1531 = vmatpush.msra.mxu0 0.0
    %1532 = vmatpush.msra.mxu0 0.0
    %1533 = vmatpush.msra.mxu0 0.0
    %1534 = vmatpush.msra.mxu0 0.0
    %1535 = vmatpush.msra.mxu0 0.0
    %1536 = vmatpush.msra.mxu0 0.0
    %1537 = vmatpush.msra.mxu0 %v1517
    %1538 = vmatmul.f32.gmra.mxu0 %v1520
    %v1539 = vpop.f32.mrf.mxu0
    %v1540 = vadd.f32 0.0, %v1539
    %1541 = vdwg.mxu0
    %1542 = vrot.lane.b32.xlu0 %v1100, 48
    %v1543 = vpop.permute.xlu0 %1542
    %v1546 = vsel %vm177, %v1515, 0
    %1548 = vmatpush.msra.mxu0 0.0
    %1549 = vmatpush.msra.mxu0 0.0
    %1550 = vmatpush.msra.mxu0 0.0
    %1551 = vmatpush.msra.mxu0 0.0
    %1552 = vmatpush.msra.mxu0 0.0
    %1553 = vmatpush.msra.mxu0 0.0
    %1554 = vmatpush.msra.mxu0 0.0
    %1555 = vmatpush.msra.mxu0 0.0
    %1556 = vmatpush.msra.mxu0 0.0
    %1557 = vmatpush.msra.mxu0 0.0
    %1558 = vmatpush.msra.mxu0 0.0
    %1559 = vmatpush.msra.mxu0 0.0
    %1560 = vmatpush.msra.mxu0 0.0
    %1561 = vmatpush.msra.mxu0 0.0
    %1562 = vmatpush.msra.mxu0 0.0
    %1563 = vmatpush.msra.mxu0 %v1543
    %1564 = vmatmul.f32.gmra.mxu0 %v1546
    %v1565 = vpop.f32.mrf.mxu0
    %v1566 = vadd.f32 0.0, %v1565
    %1567 = vdwg.mxu0
    %1568 = vrot.lane.b32.xlu0 %v1097, 104
    %v1569 = vpop.permute.xlu0 %1568
    %1570 = vrot.lane.b32.xlu0 %v1097, 72
    %v1571 = vpop.permute.xlu0 %1570
    %v1572 = vsel %vm177, %v1569, 0
    %v1574 = vsel %vm177, %v1571, 0
    %1576 = vmatpush.xpose.msra.mxu0 0.0
    %1577 = vmatpush.xpose.msra.mxu0 0.0
    %1578 = vmatpush.xpose.msra.mxu0 0.0
    %1579 = vmatpush.xpose.msra.mxu0 0.0
    %1580 = vmatpush.xpose.msra.mxu0 0.0
    %1581 = vmatpush.xpose.msra.mxu0 0.0
    %1582 = vmatpush.xpose.msra.mxu0 0.0
    %1583 = vmatpush.xpose.msra.mxu0 0.0
    %1584 = vmatpush.xpose.msra.mxu0 0.0
    %1585 = vmatpush.xpose.msra.mxu0 0.0
    %1586 = vmatpush.xpose.msra.mxu0 0.0
    %1587 = vmatpush.xpose.msra.mxu0 0.0
    %1588 = vmatpush.xpose.msra.mxu0 0.0
    %1589 = vmatpush.xpose.msra.mxu0 0.0
    %1590 = vmatpush.xpose.msra.mxu0 0.0
    %1591 = vmatpush.xpose.msra.mxu0 %v1574
    %1592 = vmatmul.f32.gmra.mxu0 %v1572
    %v1593 = vpop.f32.mrf.mxu0
    %v1594 = vadd.f32 %v170, %v1593
    %1595 = vdwg.mxu0
    %1596 = vrot.lane.b32.xlu0 %v1100, 104
    %v1597 = vpop.permute.xlu0 %1596
    %1598 = vrot.lane.b32.xlu0 %v1100, 72
    %v1599 = vpop.permute.xlu0 %1598
    %v1600 = vsel %vm177, %v1597, 0
    %v1602 = vsel %vm177, %v1599, 0
    %1604 = vmatpush.xpose.msra.mxu0 0.0
    %1605 = vmatpush.xpose.msra.mxu0 0.0
    %1606 = vmatpush.xpose.msra.mxu0 0.0
    %1607 = vmatpush.xpose.msra.mxu0 0.0
    %1608 = vmatpush.xpose.msra.mxu0 0.0
    %1609 = vmatpush.xpose.msra.mxu0 0.0
    %1610 = vmatpush.xpose.msra.mxu0 0.0
    %1611 = vmatpush.xpose.msra.mxu0 0.0
    %1612 = vmatpush.xpose.msra.mxu0 0.0
    %1613 = vmatpush.xpose.msra.mxu0 0.0
    %1614 = vmatpush.xpose.msra.mxu0 0.0
    %1615 = vmatpush.xpose.msra.mxu0 0.0
    %1616 = vmatpush.xpose.msra.mxu0 0.0
    %1617 = vmatpush.xpose.msra.mxu0 0.0
    %1618 = vmatpush.xpose.msra.mxu0 0.0
    %1619 = vmatpush.xpose.msra.mxu0 %v1602
    %1620 = vmatmul.f32.gmra.mxu0 %v1600
    %v1621 = vpop.f32.mrf.mxu0
    %v1622 = vadd.f32 %v171, %v1621
    %1623 = vdwg.mxu0
    %v1624 = vsel %vm177, %v1594, -inf
    %1625 = vmax.xlane.f32.xlu0 %v1624
    %v1626 = vpop.xlane.xlu0 %1625
    %v1627 = vsel %vm177, %v1622, -inf
    %1628 = vmax.xlane.f32.xlu0 %v1627
    %v1629 = vpop.xlane.xlu0 %1628
    %v1630 = vsub.f32 %v1594, %v1626
    %v1631 = vsub.f32 %v1622, %v1629
    %v1632 = vmul.f32 %v1630, 1.442695
    %v1633 = vpow.pop %v1632
    %v1634 = vmul.f32 %v1631, 1.442695
    %v1635 = vpow.pop %v1634
    %v1636 = vsel %vm177, %v1633, 0.0
    %1637 = vadd.xlane.f32.xlu0 %v1636
    %v1638 = vpop.xlane.xlu0 %1637
    %v1639 = vsel %vm177, %v1635, 0.0
    %1640 = vadd.xlane.f32.xlu0 %v1639
    %v1641 = vpop.xlane.xlu0 %1640
    %v1642 = vrcp.pop %v1638
    %v1643 = vmul.f32 %v1638, %v1642
    %v1644 = vsub.f32 1.0, %v1643
    %v1645 = vmul.f32 %v1642, %v1644
    %v1646 = vadd.f32 %v1642, %v1645
    %vm1647 = vweird.f32 %v1638
    %vm1648 = vweird.f32 %v1642
    %vm1649 = vmor %vm1647, %vm1648
    %v1650 = vsel %vm1649, %v1642, %v1646
    %v1651 = vand.u32 2147483647, %v1638
    %vm1652 = vcmp.eq.f32.partialorder %v1651, 8.507059e+37
    %v1653 = vand.u32 %v1638, 2147483648
    %v1654 = vor.u32 1.1754944e-38, %v1653
    %v1655 = vsel %vm1652, %v1654, %v1650
    %v1656 = vmul.f32 %v1633, %v1655
    %v1657 = vrcp.pop %v1641
    %v1658 = vmul.f32 %v1641, %v1657
    %v1659 = vsub.f32 1.0, %v1658
    %v1660 = vmul.f32 %v1657, %v1659
    %v1661 = vadd.f32 %v1657, %v1660
    %vm1662 = vweird.f32 %v1641
    %vm1663 = vweird.f32 %v1657
    %vm1664 = vmor %vm1662, %vm1663
    %v1665 = vsel %vm1664, %v1657, %v1661
    %v1666 = vand.u32 2147483647, %v1641
    %vm1667 = vcmp.eq.f32.partialorder %v1666, 8.507059e+37
    %v1668 = vand.u32 %v1641, 2147483648
    %v1669 = vor.u32 1.1754944e-38, %v1668
    %v1670 = vsel %vm1667, %v1669, %v1665
    %v1671 = vmul.f32 %v1635, %v1670
    %1672 = vrot.lane.b32.xlu0 %v1097, 40
    %v1673 = vpop.permute.xlu0 %1672
    %v1676 = vsel %vm177, %v1656, 0
    %1678 = vmatpush.msra.mxu0 0.0
    %1679 = vmatpush.msra.mxu0 0.0
    %1680 = vmatpush.msra.mxu0 0.0
    %1681 = vmatpush.msra.mxu0 0.0
    %1682 = vmatpush.msra.mxu0 0.0
    %1683 = vmatpush.msra.mxu0 0.0
    %1684 = vmatpush.msra.mxu0 0.0
    %1685 = vmatpush.msra.mxu0 0.0
    %1686 = vmatpush.msra.mxu0 0.0
    %1687 = vmatpush.msra.mxu0 0.0
    %1688 = vmatpush.msra.mxu0 0.0
    %1689 = vmatpush.msra.mxu0 0.0
    %1690 = vmatpush.msra.mxu0 0.0
    %1691 = vmatpush.msra.mxu0 0.0
    %1692 = vmatpush.msra.mxu0 0.0
    %1693 = vmatpush.msra.mxu0 %v1673
    %1694 = vmatmul.f32.gmra.mxu0 %v1676
    %v1695 = vpop.f32.mrf.mxu0
    %v1696 = vadd.f32 0.0, %v1695
    %1697 = vdwg.mxu0
    %1698 = vrot.lane.b32.xlu0 %v1100, 40
    %v1699 = vpop.permute.xlu0 %1698
    %v1702 = vsel %vm177, %v1671, 0
    %1704 = vmatpush.msra.mxu0 0.0
    %1705 = vmatpush.msra.mxu0 0.0
    %1706 = vmatpush.msra.mxu0 0.0
    %1707 = vmatpush.msra.mxu0 0.0
    %1708 = vmatpush.msra.mxu0 0.0
    %1709 = vmatpush.msra.mxu0 0.0
    %1710 = vmatpush.msra.mxu0 0.0
    %1711 = vmatpush.msra.mxu0 0.0
    %1712 = vmatpush.msra.mxu0 0.0
    %1713 = vmatpush.msra.mxu0 0.0
    %1714 = vmatpush.msra.mxu0 0.0
    %1715 = vmatpush.msra.mxu0 0.0
    %1716 = vmatpush.msra.mxu0 0.0
    %1717 = vmatpush.msra.mxu0 0.0
    %1718 = vmatpush.msra.mxu0 0.0
    %1719 = vmatpush.msra.mxu0 %v1699
    %1720 = vmatmul.f32.gmra.mxu0 %v1702
    %v1721 = vpop.f32.mrf.mxu0
    %v1722 = vadd.f32 0.0, %v1721
    %1723 = vdwg.mxu0
    %1726 = vrot.lane.b32.xlu0 %v1384, 8
    %v1727 = vpop.permute.xlu0 %1726
    %1728 = vrot.lane.b32.xlu0 %v1410, 8
    %v1729 = vpop.permute.xlu0 %1728
    %1734 = vrot.lane.b32.xlu0 %v1540, 16
    %v1735 = vpop.permute.xlu0 %1734
    %1736 = vrot.lane.b32.xlu0 %v1566, 16
    %v1737 = vpop.permute.xlu0 %1736
    %1742 = vrot.lane.b32.xlu0 %v1696, 24
    %v1743 = vpop.permute.xlu0 %1742
    %1744 = vrot.lane.b32.xlu0 %v1722, 24
    %v1745 = vpop.permute.xlu0 %1744
    %v1748 = vsel %vm177, %v1228, %v1727
    %v1749 = vsel %vm177, %v1254, %v1729
    %v1750 = vsel %vm823, %v1748, %v1735
    %v1751 = vsel %vm823, %v1749, %v1737
    %v1752 = vsel %vm826, %v1750, %v1743
    %v1753 = vsel %vm826, %v1751, %v1745
    %v1754 = vmul.f32 %v1752, %v835
    %v1755 = vmul.f32 %v1753, %v842
    %s1756 = scalar_lea.vmem [#allocation2], 448
    %v1757 = vld [vmem:[%s1756] sm:$0xff]
    %v1758 = vld [vmem:[%s1756 + $0x8] sm:$0xff]
    %v1759 = vld [vmem:[%s1756 + $0x10] sm:$0xff]
    %v1760 = vld [vmem:[%s1756 + $0x18] sm:$0xff]
    %v1761 = vperm.slane %v37, 1
    %v1763 = vsel %vm138, %v1754, 0
    %v1766 = vsel %vm138, %v1755, 0
    %1768 = vmatpush.msra.mxu0 0.0
    %1769 = vmatpush.msra.mxu0 0.0
    %1770 = vmatpush.msra.mxu0 0.0
    %1771 = vmatpush.msra.mxu0 0.0
    %1772 = vmatpush.msra.mxu0 0.0
    %1773 = vmatpush.msra.mxu0 0.0
    %1774 = vmatpush.msra.mxu0 0.0
    %1775 = vmatpush.msra.mxu0 0.0
    %1776 = vmatpush.msra.mxu0 0.0
    %1777 = vmatpush.msra.mxu0 0.0
    %1778 = vmatpush.msra.mxu0 0.0
    %1779 = vmatpush.msra.mxu0 0.0
    %1780 = vmatpush.msra.mxu0 %v1760
    %1781 = vmatpush.msra.mxu0 %v1759
    %1782 = vmatpush.msra.mxu0 %v1758
    %1783 = vmatpush.msra.mxu0 %v1757
    %1784 = vmatmul.f32.gmra.mxu0 %v1763
    %v1785 = vpop.f32.mrf.mxu0
    %v1786 = vadd.f32 %v1761, %v1785
    %1787 = vmatmul.f32.gmra.mxu0 %v1766
    %v1788 = vpop.f32.mrf.mxu0
    %v1789 = vadd.f32 %v1761, %v1788
    %1790 = vdwg.mxu0
    %v1791 = vadd.f32 %v1065, %v1786
    %v1792 = vadd.f32 %v1066, %v1789
    %v1793 = vsel %vm138, %v1791, 0.0
    %1794 = vadd.xlane.f32.xlu0 %v1793
    %v1795 = vpop.xlane.xlu0 %1794
    %v1796 = vsel %vm138, %v1792, 0.0
    %1797 = vadd.xlane.f32.xlu0 %v1796
    %v1798 = vpop.xlane.xlu0 %1797
    %v1799 = vmul.f32 %v1795, %v894
    %v1800 = vmul.f32 %v1798, %v894
    %v1801 = vsub.f32 %v1791, %v1799
    %v1802 = vsub.f32 %v1792, %v1800
    %v1803 = vmul.f32 %v1801, %v1801
    %v1804 = vmul.f32 %v1802, %v1802
    %v1805 = vsel %vm138, %v1803, 0.0
    %1806 = vadd.xlane.f32.xlu0 %v1805
    %v1807 = vpop.xlane.xlu0 %1806
    %v1808 = vsel %vm138, %v1804, 0.0
    %1809 = vadd.xlane.f32.xlu0 %v1808
    %v1810 = vpop.xlane.xlu0 %1809
    %v1811 = vmul.f32 %v1807, %v894
    %v1812 = vmul.f32 %v1810, %v894
    %v1813 = vadd.f32 %v1811, 1e-05
    %v1814 = vadd.f32 %v1812, 1e-05
    %v1815 = vrsqrt.pop %v1813
    %v1816 = vmul.f32 %v1815, %v1813
    %v1817 = vmul.f32 %v1816, %v1815
    %v1818 = vmul.f32 0.5, %v1817
    %v1819 = vsub.f32 1.5, %v1818
    %v1820 = vmul.f32 %v1815, %v1819
    %vm1821 = vweird.f32 %v1813
    %vm1822 = vweird.f32 %v1815
    %vm1823 = vmor %vm1821, %vm1822
    %v1824 = vsel %vm1823, %v1815, %v1820
    %v1825 = vrsqrt.pop %v1814
    %v1826 = vmul.f32 %v1825, %v1814
    %v1827 = vmul.f32 %v1826, %v1825
    %v1828 = vmul.f32 0.5, %v1827
    %v1829 = vsub.f32 1.5, %v1828
    %v1830 = vmul.f32 %v1825, %v1829
    %vm1831 = vweird.f32 %v1814
    %vm1832 = vweird.f32 %v1825
    %vm1833 = vmor %vm1831, %vm1832
    %v1834 = vsel %vm1833, %v1825, %v1830
    %v1835 = vmul.f32 %v1801, %v1824
    %v1836 = vmul.f32 %v1802, %v1834
    %v1837 = vperm.slane %v37, 2
    %v1838 = vmul.f32 %v1835, %v1837
    %v1839 = vmul.f32 %v1836, %v1837
    %v1840 = vperm.slane %v37, 3
    %v1841 = vadd.f32 %v1838, %v1840
    %v1842 = vadd.f32 %v1839, %v1840
    %s1843 = scalar_lea.vmem [#allocation2], 512
    %v1844 = vld [vmem:[%s1843] sm:$0xff]
    %v1845 = vld [vmem:[%s1843 + $0x8] sm:$0xff]
    %v1846 = vld [vmem:[%s1843 + $0x10] sm:$0xff]
    %v1847 = vld [vmem:[%s1843 + $0x18] sm:$0xff]
    %v1848 = vperm.slane %v37, 4
    %v1850 = vsel %vm138, %v1841, 0
    %v1853 = vsel %vm138, %v1842, 0
    %1855 = vmatpush.msra.mxu0 0.0
    %1856 = vmatpush.msra.mxu0 0.0
    %1857 = vmatpush.msra.mxu0 0.0
    %1858 = vmatpush.msra.mxu0 0.0
    %1859 = vmatpush.msra.mxu0 0.0
    %1860 = vmatpush.msra.mxu0 0.0
    %1861 = vmatpush.msra.mxu0 0.0
    %1862 = vmatpush.msra.mxu0 0.0
    %1863 = vmatpush.msra.mxu0 0.0
    %1864 = vmatpush.msra.mxu0 0.0
    %1865 = vmatpush.msra.mxu0 0.0
    %1866 = vmatpush.msra.mxu0 0.0
    %1867 = vmatpush.msra.mxu0 %v1847
    %1868 = vmatpush.msra.mxu0 %v1846
    %1869 = vmatpush.msra.mxu0 %v1845
    %1870 = vmatpush.msra.mxu0 %v1844
    %1871 = vmatmul.f32.gmra.mxu0 %v1850
    %v1872 = vpop.f32.mrf.mxu0
    %v1873 = vadd.f32 %v1848, %v1872
    %1874 = vmatmul.f32.gmra.mxu0 %v1853
    %v1875 = vpop.f32.mrf.mxu0
    %v1876 = vadd.f32 %v1848, %v1875
    %1877 = vdwg.mxu0
    %v1878 = vmax.f32 %v1873, 0.0
    %v1879 = vmax.f32 %v1876, 0.0
    %s1880 = scalar_lea.vmem [#allocation2], 576
    %v1881 = vld [vmem:[%s1880] sm:$0xff]
    %v1882 = vld [vmem:[%s1880 + $0x8] sm:$0xff]
    %v1883 = vld [vmem:[%s1880 + $0x10] sm:$0xff]
    %v1884 = vld [vmem:[%s1880 + $0x18] sm:$0xff]
    %v1885 = vld [vmem:[%s1880 + $0x20] sm:$0xff]
    %v1886 = vld [vmem:[%s1880 + $0x28] sm:$0xff]
    %v1887 = vld [vmem:[%s1880 + $0x30] sm:$0xff]
    %v1888 = vld [vmem:[%s1880 + $0x38] sm:$0xff]
    %v1889 = vperm.slane %v37, 5
    %v1891 = vsel %vm90, %v1878, 0
    %v1894 = vsel %vm90, %v1879, 0
    %1896 = vmatpush.msra.mxu0 0.0
    %1897 = vmatpush.msra.mxu0 0.0
    %1898 = vmatpush.msra.mxu0 0.0
    %1899 = vmatpush.msra.mxu0 0.0
    %1900 = vmatpush.msra.mxu0 0.0
    %1901 = vmatpush.msra.mxu0 0.0
    %1902 = vmatpush.msra.mxu0 0.0
    %1903 = vmatpush.msra.mxu0 0.0
    %1904 = vmatpush.msra.mxu0 %v1888
    %1905 = vmatpush.msra.mxu0 %v1887
    %1906 = vmatpush.msra.mxu0 %v1886
    %1907 = vmatpush.msra.mxu0 %v1885
    %1908 = vmatpush.msra.mxu0 %v1884
    %1909 = vmatpush.msra.mxu0 %v1883
    %1910 = vmatpush.msra.mxu0 %v1882
    %1911 = vmatpush.msra.mxu0 %v1881
    %1912 = vmatmul.f32.gmra.mxu0 %v1891
    %v1913 = vpop.f32.mrf.mxu0
    %v1914 = vadd.f32 %v1889, %v1913
    %1915 = vmatmul.f32.gmra.mxu0 %v1894
    %v1916 = vpop.f32.mrf.mxu0
    %v1917 = vadd.f32 %v1889, %v1916
    %1918 = vdwg.mxu0
    %v1919 = vadd.f32 %v1841, %v1914
    %v1920 = vadd.f32 %v1842, %v1917
    %v1921 = vsel %vm138, %v1919, 0.0
    %1922 = vadd.xlane.f32.xlu0 %v1921
    %v1923 = vpop.xlane.xlu0 %1922
    %v1924 = vsel %vm138, %v1920, 0.0
    %1925 = vadd.xlane.f32.xlu0 %v1924
    %v1926 = vpop.xlane.xlu0 %1925
    %v1927 = vmul.f32 %v1923, %v894
    %v1928 = vmul.f32 %v1926, %v894
    %v1929 = vsub.f32 %v1919, %v1927
    %v1930 = vsub.f32 %v1920, %v1928
    %v1931 = vmul.f32 %v1929, %v1929
    %v1932 = vmul.f32 %v1930, %v1930
    %v1933 = vsel %vm138, %v1931, 0.0
    %1934 = vadd.xlane.f32.xlu0 %v1933
    %v1935 = vpop.xlane.xlu0 %1934
    %v1936 = vsel %vm138, %v1932, 0.0
    %1937 = vadd.xlane.f32.xlu0 %v1936
    %v1938 = vpop.xlane.xlu0 %1937
    %v1939 = vmul.f32 %v1935, %v894
    %v1940 = vmul.f32 %v1938, %v894
    %v1941 = vadd.f32 %v1939, 1e-05
    %v1942 = vadd.f32 %v1940, 1e-05
    %v1943 = vrsqrt.pop %v1941
    %v1944 = vmul.f32 %v1943, %v1941
    %v1945 = vmul.f32 %v1944, %v1943
    %v1946 = vmul.f32 0.5, %v1945
    %v1947 = vsub.f32 1.5, %v1946
    %v1948 = vmul.f32 %v1943, %v1947
    %vm1949 = vweird.f32 %v1941
    %vm1950 = vweird.f32 %v1943
    %vm1951 = vmor %vm1949, %vm1950
    %v1952 = vsel %vm1951, %v1943, %v1948
    %v1953 = vrsqrt.pop %v1942
    %v1954 = vmul.f32 %v1953, %v1942
    %v1955 = vmul.f32 %v1954, %v1953
    %v1956 = vmul.f32 0.5, %v1955
    %v1957 = vsub.f32 1.5, %v1956
    %v1958 = vmul.f32 %v1953, %v1957
    %vm1959 = vweird.f32 %v1942
    %vm1960 = vweird.f32 %v1953
    %vm1961 = vmor %vm1959, %vm1960
    %v1962 = vsel %vm1961, %v1953, %v1958
    %v1963 = vmul.f32 %v1929, %v1952
    %v1964 = vmul.f32 %v1930, %v1962
    %v1965 = vperm.slane %v37, 6
    %v1966 = vmul.f32 %v1963, %v1965
    %v1967 = vmul.f32 %v1964, %v1965
    %v1968 = vperm.slane %v37, 7
    %v1969 = vadd.f32 %v1966, %v1968
    %v1970 = vadd.f32 %v1967, %v1968
    %s1971 = scalar_lea.vmem [#allocation2], 640
    %v1972 = vld [vmem:[%s1971] sm:$0xff]
    %v1973 = vld [vmem:[%s1971 + $0x8] sm:$0xff]
    %v1974 = vld [vmem:[%s1971 + $0x10] sm:$0xff]
    %v1975 = vld [vmem:[%s1971 + $0x18] sm:$0xff]
    %v1976 = vperm.slane %v38, 0
    %v1978 = vsel %vm138, %v127, 0
    %v1981 = vsel %vm138, %v130, 0
    %1983 = vmatpush.msra.mxu0 0.0
    %1984 = vmatpush.msra.mxu0 0.0
    %1985 = vmatpush.msra.mxu0 0.0
    %1986 = vmatpush.msra.mxu0 0.0
    %1987 = vmatpush.msra.mxu0 0.0
    %1988 = vmatpush.msra.mxu0 0.0
    %1989 = vmatpush.msra.mxu0 0.0
    %1990 = vmatpush.msra.mxu0 0.0
    %1991 = vmatpush.msra.mxu0 0.0
    %1992 = vmatpush.msra.mxu0 0.0
    %1993 = vmatpush.msra.mxu0 0.0
    %1994 = vmatpush.msra.mxu0 0.0
    %1995 = vmatpush.msra.mxu0 %v1975
    %1996 = vmatpush.msra.mxu0 %v1974
    %1997 = vmatpush.msra.mxu0 %v1973
    %1998 = vmatpush.msra.mxu0 %v1972
    %1999 = vmatmul.f32.gmra.mxu0 %v1978
    %v2000 = vpop.f32.mrf.mxu0
    %v2001 = vadd.f32 %v1976, %v2000
    %2002 = vmatmul.f32.gmra.mxu0 %v1981
    %v2003 = vpop.f32.mrf.mxu0
    %v2004 = vadd.f32 %v1976, %v2003
    %2005 = vdwg.mxu0
    %2006 = vst [vmem:[#allocation1] sm:$0xff] %v43
    %s2007 = scalar_lea.vmem [#allocation1], 2
    %v2008 = vld [vmem:[%s2007] ss:$9 sm:$0xff]
    %s2009 = scalar_lea.vmem [#allocation1], 3
    %v2010 = vld [vmem:[%s2009] ss:$9 sm:$0xff]
    %v2011 = vperm.slane %v2008, 0
    %v2012 = vperm.slane %v2010, 0
    %v2015 = vadd.f32 %v2011, %v49
    %v2016 = vadd.f32 %v2012, %v49
    %2018 = vrot.lane.b32.xlu0 %v2001, 96
    %v2019 = vpop.permute.xlu0 %2018
    %v2020 = vsel %vm177, %v2001, 0
    %v2022 = vsel %vm177, %v2019, 0
    %2024 = vmatpush.xpose.msra.mxu0 0.0
    %2025 = vmatpush.xpose.msra.mxu0 0.0
    %2026 = vmatpush.xpose.msra.mxu0 0.0
    %2027 = vmatpush.xpose.msra.mxu0 0.0
    %2028 = vmatpush.xpose.msra.mxu0 0.0
    %2029 = vmatpush.xpose.msra.mxu0 0.0
    %2030 = vmatpush.xpose.msra.mxu0 0.0
    %2031 = vmatpush.xpose.msra.mxu0 0.0
    %2032 = vmatpush.xpose.msra.mxu0 0.0
    %2033 = vmatpush.xpose.msra.mxu0 0.0
    %2034 = vmatpush.xpose.msra.mxu0 0.0
    %2035 = vmatpush.xpose.msra.mxu0 0.0
    %2036 = vmatpush.xpose.msra.mxu0 0.0
    %2037 = vmatpush.xpose.msra.mxu0 0.0
    %2038 = vmatpush.xpose.msra.mxu0 0.0
    %2039 = vmatpush.xpose.msra.mxu0 %v2022
    %2040 = vmatmul.f32.gmra.mxu0 %v2020
    %v2041 = vpop.f32.mrf.mxu0
    %v2042 = vadd.f32 %v2015, %v2041
    %2043 = vdwg.mxu0
    %2045 = vrot.lane.b32.xlu0 %v2004, 96
    %v2046 = vpop.permute.xlu0 %2045
    %v2047 = vsel %vm177, %v2004, 0
    %v2049 = vsel %vm177, %v2046, 0
    %2051 = vmatpush.xpose.msra.mxu0 0.0
    %2052 = vmatpush.xpose.msra.mxu0 0.0
    %2053 = vmatpush.xpose.msra.mxu0 0.0
    %2054 = vmatpush.xpose.msra.mxu0 0.0
    %2055 = vmatpush.xpose.msra.mxu0 0.0
    %2056 = vmatpush.xpose.msra.mxu0 0.0
    %2057 = vmatpush.xpose.msra.mxu0 0.0
    %2058 = vmatpush.xpose.msra.mxu0 0.0
    %2059 = vmatpush.xpose.msra.mxu0 0.0
    %2060 = vmatpush.xpose.msra.mxu0 0.0
    %2061 = vmatpush.xpose.msra.mxu0 0.0
    %2062 = vmatpush.xpose.msra.mxu0 0.0
    %2063 = vmatpush.xpose.msra.mxu0 0.0
    %2064 = vmatpush.xpose.msra.mxu0 0.0
    %2065 = vmatpush.xpose.msra.mxu0 0.0
    %2066 = vmatpush.xpose.msra.mxu0 %v2049
    %2067 = vmatmul.f32.gmra.mxu0 %v2047
    %v2068 = vpop.f32.mrf.mxu0
    %v2069 = vadd.f32 %v2016, %v2068
    %2070 = vdwg.mxu0
    %v2071 = vsel %vm177, %v2042, -inf
    %2072 = vmax.xlane.f32.xlu0 %v2071
    %v2073 = vpop.xlane.xlu0 %2072
    %v2074 = vsel %vm177, %v2069, -inf
    %2075 = vmax.xlane.f32.xlu0 %v2074
    %v2076 = vpop.xlane.xlu0 %2075
    %v2077 = vsub.f32 %v2042, %v2073
    %v2078 = vsub.f32 %v2069, %v2076
    %v2079 = vmul.f32 %v2077, 1.442695
    %v2080 = vpow.pop %v2079
    %v2081 = vmul.f32 %v2078, 1.442695
    %v2082 = vpow.pop %v2081
    %v2083 = vsel %vm177, %v2080, 0.0
    %2084 = vadd.xlane.f32.xlu0 %v2083
    %v2085 = vpop.xlane.xlu0 %2084
    %v2086 = vsel %vm177, %v2082, 0.0
    %2087 = vadd.xlane.f32.xlu0 %v2086
    %v2088 = vpop.xlane.xlu0 %2087
    %v2089 = vrcp.pop %v2085
    %v2090 = vmul.f32 %v2085, %v2089
    %v2091 = vsub.f32 1.0, %v2090
    %v2092 = vmul.f32 %v2089, %v2091
    %v2093 = vadd.f32 %v2089, %v2092
    %vm2094 = vweird.f32 %v2085
    %vm2095 = vweird.f32 %v2089
    %vm2096 = vmor %vm2094, %vm2095
    %v2097 = vsel %vm2096, %v2089, %v2093
    %v2098 = vand.u32 2147483647, %v2085
    %vm2099 = vcmp.eq.f32.partialorder %v2098, 8.507059e+37
    %v2100 = vand.u32 %v2085, 2147483648
    %v2101 = vor.u32 1.1754944e-38, %v2100
    %v2102 = vsel %vm2099, %v2101, %v2097
    %v2103 = vmul.f32 %v2080, %v2102
    %v2104 = vrcp.pop %v2088
    %v2105 = vmul.f32 %v2088, %v2104
    %v2106 = vsub.f32 1.0, %v2105
    %v2107 = vmul.f32 %v2104, %v2106
    %v2108 = vadd.f32 %v2104, %v2107
    %vm2109 = vweird.f32 %v2088
    %vm2110 = vweird.f32 %v2104
    %vm2111 = vmor %vm2109, %vm2110
    %v2112 = vsel %vm2111, %v2104, %v2108
    %v2113 = vand.u32 2147483647, %v2088
    %vm2114 = vcmp.eq.f32.partialorder %v2113, 8.507059e+37
    %v2115 = vand.u32 %v2088, 2147483648
    %v2116 = vor.u32 1.1754944e-38, %v2115
    %v2117 = vsel %vm2114, %v2116, %v2112
    %v2118 = vmul.f32 %v2082, %v2117
    %2119 = vrot.lane.b32.xlu0 %v2001, 64
    %v2120 = vpop.permute.xlu0 %2119
    %v2123 = vsel %vm177, %v2103, 0
    %2125 = vmatpush.msra.mxu0 0.0
    %2126 = vmatpush.msra.mxu0 0.0
    %2127 = vmatpush.msra.mxu0 0.0
    %2128 = vmatpush.msra.mxu0 0.0
    %2129 = vmatpush.msra.mxu0 0.0
    %2130 = vmatpush.msra.mxu0 0.0
    %2131 = vmatpush.msra.mxu0 0.0
    %2132 = vmatpush.msra.mxu0 0.0
    %2133 = vmatpush.msra.mxu0 0.0
    %2134 = vmatpush.msra.mxu0 0.0
    %2135 = vmatpush.msra.mxu0 0.0
    %2136 = vmatpush.msra.mxu0 0.0
    %2137 = vmatpush.msra.mxu0 0.0
    %2138 = vmatpush.msra.mxu0 0.0
    %2139 = vmatpush.msra.mxu0 0.0
    %2140 = vmatpush.msra.mxu0 %v2120
    %2141 = vmatmul.f32.gmra.mxu0 %v2123
    %v2142 = vpop.f32.mrf.mxu0
    %v2143 = vadd.f32 0.0, %v2142
    %2144 = vdwg.mxu0
    %2145 = vrot.lane.b32.xlu0 %v2004, 64
    %v2146 = vpop.permute.xlu0 %2145
    %v2149 = vsel %vm177, %v2118, 0
    %2151 = vmatpush.msra.mxu0 0.0
    %2152 = vmatpush.msra.mxu0 0.0
    %2153 = vmatpush.msra.mxu0 0.0
    %2154 = vmatpush.msra.mxu0 0.0
    %2155 = vmatpush.msra.mxu0 0.0
    %2156 = vmatpush.msra.mxu0 0.0
    %2157 = vmatpush.msra.mxu0 0.0
    %2158 = vmatpush.msra.mxu0 0.0
    %2159 = vmatpush.msra.mxu0 0.0
    %2160 = vmatpush.msra.mxu0 0.0
    %2161 = vmatpush.msra.mxu0 0.0
    %2162 = vmatpush.msra.mxu0 0.0
    %2163 = vmatpush.msra.mxu0 0.0
    %2164 = vmatpush.msra.mxu0 0.0
    %2165 = vmatpush.msra.mxu0 0.0
    %2166 = vmatpush.msra.mxu0 %v2146
    %2167 = vmatmul.f32.gmra.mxu0 %v2149
    %v2168 = vpop.f32.mrf.mxu0
    %v2169 = vadd.f32 0.0, %v2168
    %2170 = vdwg.mxu0
    %2171 = vrot.lane.b32.xlu0 %v2001, 120
    %v2172 = vpop.permute.xlu0 %2171
    %2173 = vrot.lane.b32.xlu0 %v2001, 88
    %v2174 = vpop.permute.xlu0 %2173
    %v2175 = vsel %vm177, %v2172, 0
    %v2177 = vsel %vm177, %v2174, 0
    %2179 = vmatpush.xpose.msra.mxu0 0.0
    %2180 = vmatpush.xpose.msra.mxu0 0.0
    %2181 = vmatpush.xpose.msra.mxu0 0.0
    %2182 = vmatpush.xpose.msra.mxu0 0.0
    %2183 = vmatpush.xpose.msra.mxu0 0.0
    %2184 = vmatpush.xpose.msra.mxu0 0.0
    %2185 = vmatpush.xpose.msra.mxu0 0.0
    %2186 = vmatpush.xpose.msra.mxu0 0.0
    %2187 = vmatpush.xpose.msra.mxu0 0.0
    %2188 = vmatpush.xpose.msra.mxu0 0.0
    %2189 = vmatpush.xpose.msra.mxu0 0.0
    %2190 = vmatpush.xpose.msra.mxu0 0.0
    %2191 = vmatpush.xpose.msra.mxu0 0.0
    %2192 = vmatpush.xpose.msra.mxu0 0.0
    %2193 = vmatpush.xpose.msra.mxu0 0.0
    %2194 = vmatpush.xpose.msra.mxu0 %v2177
    %2195 = vmatmul.f32.gmra.mxu0 %v2175
    %v2196 = vpop.f32.mrf.mxu0
    %v2197 = vadd.f32 %v2015, %v2196
    %2198 = vdwg.mxu0
    %2199 = vrot.lane.b32.xlu0 %v2004, 120
    %v2200 = vpop.permute.xlu0 %2199
    %2201 = vrot.lane.b32.xlu0 %v2004, 88
    %v2202 = vpop.permute.xlu0 %2201
    %v2203 = vsel %vm177, %v2200, 0
    %v2205 = vsel %vm177, %v2202, 0
    %2207 = vmatpush.xpose.msra.mxu0 0.0
    %2208 = vmatpush.xpose.msra.mxu0 0.0
    %2209 = vmatpush.xpose.msra.mxu0 0.0
    %2210 = vmatpush.xpose.msra.mxu0 0.0
    %2211 = vmatpush.xpose.msra.mxu0 0.0
    %2212 = vmatpush.xpose.msra.mxu0 0.0
    %2213 = vmatpush.xpose.msra.mxu0 0.0
    %2214 = vmatpush.xpose.msra.mxu0 0.0
    %2215 = vmatpush.xpose.msra.mxu0 0.0
    %2216 = vmatpush.xpose.msra.mxu0 0.0
    %2217 = vmatpush.xpose.msra.mxu0 0.0
    %2218 = vmatpush.xpose.msra.mxu0 0.0
    %2219 = vmatpush.xpose.msra.mxu0 0.0
    %2220 = vmatpush.xpose.msra.mxu0 0.0
    %2221 = vmatpush.xpose.msra.mxu0 0.0
    %2222 = vmatpush.xpose.msra.mxu0 %v2205
    %2223 = vmatmul.f32.gmra.mxu0 %v2203
    %v2224 = vpop.f32.mrf.mxu0
    %v2225 = vadd.f32 %v2016, %v2224
    %2226 = vdwg.mxu0
    %v2227 = vsel %vm177, %v2197, -inf
    %2228 = vmax.xlane.f32.xlu0 %v2227
    %v2229 = vpop.xlane.xlu0 %2228
    %v2230 = vsel %vm177, %v2225, -inf
    %2231 = vmax.xlane.f32.xlu0 %v2230
    %v2232 = vpop.xlane.xlu0 %2231
    %v2233 = vsub.f32 %v2197, %v2229
    %v2234 = vsub.f32 %v2225, %v2232
    %v2235 = vmul.f32 %v2233, 1.442695
    %v2236 = vpow.pop %v2235
    %v2237 = vmul.f32 %v2234, 1.442695
    %v2238 = vpow.pop %v2237
    %v2239 = vsel %vm177, %v2236, 0.0
    %2240 = vadd.xlane.f32.xlu0 %v2239
    %v2241 = vpop.xlane.xlu0 %2240
    %v2242 = vsel %vm177, %v2238, 0.0
    %2243 = vadd.xlane.f32.xlu0 %v2242
    %v2244 = vpop.xlane.xlu0 %2243
    %v2245 = vrcp.pop %v2241
    %v2246 = vmul.f32 %v2241, %v2245
    %v2247 = vsub.f32 1.0, %v2246
    %v2248 = vmul.f32 %v2245, %v2247
    %v2249 = vadd.f32 %v2245, %v2248
    %vm2250 = vweird.f32 %v2241
    %vm2251 = vweird.f32 %v2245
    %vm2252 = vmor %vm2250, %vm2251
    %v2253 = vsel %vm2252, %v2245, %v2249
    %v2254 = vand.u32 2147483647, %v2241
    %vm2255 = vcmp.eq.f32.partialorder %v2254, 8.507059e+37
    %v2256 = vand.u32 %v2241, 2147483648
    %v2257 = vor.u32 1.1754944e-38, %v2256
    %v2258 = vsel %vm2255, %v2257, %v2253
    %v2259 = vmul.f32 %v2236, %v2258
    %v2260 = vrcp.pop %v2244
    %v2261 = vmul.f32 %v2244, %v2260
    %v2262 = vsub.f32 1.0, %v2261
    %v2263 = vmul.f32 %v2260, %v2262
    %v2264 = vadd.f32 %v2260, %v2263
    %vm2265 = vweird.f32 %v2244
    %vm2266 = vweird.f32 %v2260
    %vm2267 = vmor %vm2265, %vm2266
    %v2268 = vsel %vm2267, %v2260, %v2264
    %v2269 = vand.u32 2147483647, %v2244
    %vm2270 = vcmp.eq.f32.partialorder %v2269, 8.507059e+37
    %v2271 = vand.u32 %v2244, 2147483648
    %v2272 = vor.u32 1.1754944e-38, %v2271
    %v2273 = vsel %vm2270, %v2272, %v2268
    %v2274 = vmul.f32 %v2238, %v2273
    %2275 = vrot.lane.b32.xlu0 %v2001, 56
    %v2276 = vpop.permute.xlu0 %2275
    %v2279 = vsel %vm177, %v2259, 0
    %2281 = vmatpush.msra.mxu0 0.0
    %2282 = vmatpush.msra.mxu0 0.0
    %2283 = vmatpush.msra.mxu0 0.0
    %2284 = vmatpush.msra.mxu0 0.0
    %2285 = vmatpush.msra.mxu0 0.0
    %2286 = vmatpush.msra.mxu0 0.0
    %2287 = vmatpush.msra.mxu0 0.0
    %2288 = vmatpush.msra.mxu0 0.0
    %2289 = vmatpush.msra.mxu0 0.0
    %2290 = vmatpush.msra.mxu0 0.0
    %2291 = vmatpush.msra.mxu0 0.0
    %2292 = vmatpush.msra.mxu0 0.0
    %2293 = vmatpush.msra.mxu0 0.0
    %2294 = vmatpush.msra.mxu0 0.0
    %2295 = vmatpush.msra.mxu0 0.0
    %2296 = vmatpush.msra.mxu0 %v2276
    %2297 = vmatmul.f32.gmra.mxu0 %v2279
    %v2298 = vpop.f32.mrf.mxu0
    %v2299 = vadd.f32 0.0, %v2298
    %2300 = vdwg.mxu0
    %2301 = vrot.lane.b32.xlu0 %v2004, 56
    %v2302 = vpop.permute.xlu0 %2301
    %v2305 = vsel %vm177, %v2274, 0
    %2307 = vmatpush.msra.mxu0 0.0
    %2308 = vmatpush.msra.mxu0 0.0
    %2309 = vmatpush.msra.mxu0 0.0
    %2310 = vmatpush.msra.mxu0 0.0
    %2311 = vmatpush.msra.mxu0 0.0
    %2312 = vmatpush.msra.mxu0 0.0
    %2313 = vmatpush.msra.mxu0 0.0
    %2314 = vmatpush.msra.mxu0 0.0
    %2315 = vmatpush.msra.mxu0 0.0
    %2316 = vmatpush.msra.mxu0 0.0
    %2317 = vmatpush.msra.mxu0 0.0
    %2318 = vmatpush.msra.mxu0 0.0
    %2319 = vmatpush.msra.mxu0 0.0
    %2320 = vmatpush.msra.mxu0 0.0
    %2321 = vmatpush.msra.mxu0 0.0
    %2322 = vmatpush.msra.mxu0 %v2302
    %2323 = vmatmul.f32.gmra.mxu0 %v2305
    %v2324 = vpop.f32.mrf.mxu0
    %v2325 = vadd.f32 0.0, %v2324
    %2326 = vdwg.mxu0
    %2327 = vrot.lane.b32.xlu0 %v2001, 112
    %v2328 = vpop.permute.xlu0 %2327
    %2329 = vrot.lane.b32.xlu0 %v2001, 80
    %v2330 = vpop.permute.xlu0 %2329
    %v2331 = vsel %vm177, %v2328, 0
    %v2333 = vsel %vm177, %v2330, 0
    %2335 = vmatpush.xpose.msra.mxu0 0.0
    %2336 = vmatpush.xpose.msra.mxu0 0.0
    %2337 = vmatpush.xpose.msra.mxu0 0.0
    %2338 = vmatpush.xpose.msra.mxu0 0.0
    %2339 = vmatpush.xpose.msra.mxu0 0.0
    %2340 = vmatpush.xpose.msra.mxu0 0.0
    %2341 = vmatpush.xpose.msra.mxu0 0.0
    %2342 = vmatpush.xpose.msra.mxu0 0.0
    %2343 = vmatpush.xpose.msra.mxu0 0.0
    %2344 = vmatpush.xpose.msra.mxu0 0.0
    %2345 = vmatpush.xpose.msra.mxu0 0.0
    %2346 = vmatpush.xpose.msra.mxu0 0.0
    %2347 = vmatpush.xpose.msra.mxu0 0.0
    %2348 = vmatpush.xpose.msra.mxu0 0.0
    %2349 = vmatpush.xpose.msra.mxu0 0.0
    %2350 = vmatpush.xpose.msra.mxu0 %v2333
    %2351 = vmatmul.f32.gmra.mxu0 %v2331
    %v2352 = vpop.f32.mrf.mxu0
    %v2353 = vadd.f32 %v2015, %v2352
    %2354 = vdwg.mxu0
    %2355 = vrot.lane.b32.xlu0 %v2004, 112
    %v2356 = vpop.permute.xlu0 %2355
    %2357 = vrot.lane.b32.xlu0 %v2004, 80
    %v2358 = vpop.permute.xlu0 %2357
    %v2359 = vsel %vm177, %v2356, 0
    %v2361 = vsel %vm177, %v2358, 0
    %2363 = vmatpush.xpose.msra.mxu0 0.0
    %2364 = vmatpush.xpose.msra.mxu0 0.0
    %2365 = vmatpush.xpose.msra.mxu0 0.0
    %2366 = vmatpush.xpose.msra.mxu0 0.0
    %2367 = vmatpush.xpose.msra.mxu0 0.0
    %2368 = vmatpush.xpose.msra.mxu0 0.0
    %2369 = vmatpush.xpose.msra.mxu0 0.0
    %2370 = vmatpush.xpose.msra.mxu0 0.0
    %2371 = vmatpush.xpose.msra.mxu0 0.0
    %2372 = vmatpush.xpose.msra.mxu0 0.0
    %2373 = vmatpush.xpose.msra.mxu0 0.0
    %2374 = vmatpush.xpose.msra.mxu0 0.0
    %2375 = vmatpush.xpose.msra.mxu0 0.0
    %2376 = vmatpush.xpose.msra.mxu0 0.0
    %2377 = vmatpush.xpose.msra.mxu0 0.0
    %2378 = vmatpush.xpose.msra.mxu0 %v2361
    %2379 = vmatmul.f32.gmra.mxu0 %v2359
    %v2380 = vpop.f32.mrf.mxu0
    %v2381 = vadd.f32 %v2016, %v2380
    %2382 = vdwg.mxu0
    %v2383 = vsel %vm177, %v2353, -inf
    %2384 = vmax.xlane.f32.xlu0 %v2383
    %v2385 = vpop.xlane.xlu0 %2384
    %v2386 = vsel %vm177, %v2381, -inf
    %2387 = vmax.xlane.f32.xlu0 %v2386
    %v2388 = vpop.xlane.xlu0 %2387
    %v2389 = vsub.f32 %v2353, %v2385
    %v2390 = vsub.f32 %v2381, %v2388
    %v2391 = vmul.f32 %v2389, 1.442695
    %v2392 = vpow.pop %v2391
    %v2393 = vmul.f32 %v2390, 1.442695
    %v2394 = vpow.pop %v2393
    %v2395 = vsel %vm177, %v2392, 0.0
    %2396 = vadd.xlane.f32.xlu0 %v2395
    %v2397 = vpop.xlane.xlu0 %2396
    %v2398 = vsel %vm177, %v2394, 0.0
    %2399 = vadd.xlane.f32.xlu0 %v2398
    %v2400 = vpop.xlane.xlu0 %2399
    %v2401 = vrcp.pop %v2397
    %v2402 = vmul.f32 %v2397, %v2401
    %v2403 = vsub.f32 1.0, %v2402
    %v2404 = vmul.f32 %v2401, %v2403
    %v2405 = vadd.f32 %v2401, %v2404
    %vm2406 = vweird.f32 %v2397
    %vm2407 = vweird.f32 %v2401
    %vm2408 = vmor %vm2406, %vm2407
    %v2409 = vsel %vm2408, %v2401, %v2405
    %v2410 = vand.u32 2147483647, %v2397
    %vm2411 = vcmp.eq.f32.partialorder %v2410, 8.507059e+37
    %v2412 = vand.u32 %v2397, 2147483648
    %v2413 = vor.u32 1.1754944e-38, %v2412
    %v2414 = vsel %vm2411, %v2413, %v2409
    %v2415 = vmul.f32 %v2392, %v2414
    %v2416 = vrcp.pop %v2400
    %v2417 = vmul.f32 %v2400, %v2416
    %v2418 = vsub.f32 1.0, %v2417
    %v2419 = vmul.f32 %v2416, %v2418
    %v2420 = vadd.f32 %v2416, %v2419
    %vm2421 = vweird.f32 %v2400
    %vm2422 = vweird.f32 %v2416
    %vm2423 = vmor %vm2421, %vm2422
    %v2424 = vsel %vm2423, %v2416, %v2420
    %v2425 = vand.u32 2147483647, %v2400
    %vm2426 = vcmp.eq.f32.partialorder %v2425, 8.507059e+37
    %v2427 = vand.u32 %v2400, 2147483648
    %v2428 = vor.u32 1.1754944e-38, %v2427
    %v2429 = vsel %vm2426, %v2428, %v2424
    %v2430 = vmul.f32 %v2394, %v2429
    %2431 = vrot.lane.b32.xlu0 %v2001, 48
    %v2432 = vpop.permute.xlu0 %2431
    %v2435 = vsel %vm177, %v2415, 0
    %2437 = vmatpush.msra.mxu0 0.0
    %2438 = vmatpush.msra.mxu0 0.0
    %2439 = vmatpush.msra.mxu0 0.0
    %2440 = vmatpush.msra.mxu0 0.0
    %2441 = vmatpush.msra.mxu0 0.0
    %2442 = vmatpush.msra.mxu0 0.0
    %2443 = vmatpush.msra.mxu0 0.0
    %2444 = vmatpush.msra.mxu0 0.0
    %2445 = vmatpush.msra.mxu0 0.0
    %2446 = vmatpush.msra.mxu0 0.0
    %2447 = vmatpush.msra.mxu0 0.0
    %2448 = vmatpush.msra.mxu0 0.0
    %2449 = vmatpush.msra.mxu0 0.0
    %2450 = vmatpush.msra.mxu0 0.0
    %2451 = vmatpush.msra.mxu0 0.0
    %2452 = vmatpush.msra.mxu0 %v2432
    %2453 = vmatmul.f32.gmra.mxu0 %v2435
    %v2454 = vpop.f32.mrf.mxu0
    %v2455 = vadd.f32 0.0, %v2454
    %2456 = vdwg.mxu0
    %2457 = vrot.lane.b32.xlu0 %v2004, 48
    %v2458 = vpop.permute.xlu0 %2457
    %v2461 = vsel %vm177, %v2430, 0
    %2463 = vmatpush.msra.mxu0 0.0
    %2464 = vmatpush.msra.mxu0 0.0
    %2465 = vmatpush.msra.mxu0 0.0
    %2466 = vmatpush.msra.mxu0 0.0
    %2467 = vmatpush.msra.mxu0 0.0
    %2468 = vmatpush.msra.mxu0 0.0
    %2469 = vmatpush.msra.mxu0 0.0
    %2470 = vmatpush.msra.mxu0 0.0
    %2471 = vmatpush.msra.mxu0 0.0
    %2472 = vmatpush.msra.mxu0 0.0
    %2473 = vmatpush.msra.mxu0 0.0
    %2474 = vmatpush.msra.mxu0 0.0
    %2475 = vmatpush.msra.mxu0 0.0
    %2476 = vmatpush.msra.mxu0 0.0
    %2477 = vmatpush.msra.mxu0 0.0
    %2478 = vmatpush.msra.mxu0 %v2458
    %2479 = vmatmul.f32.gmra.mxu0 %v2461
    %v2480 = vpop.f32.mrf.mxu0
    %v2481 = vadd.f32 0.0, %v2480
    %2482 = vdwg.mxu0
    %2483 = vrot.lane.b32.xlu0 %v2001, 104
    %v2484 = vpop.permute.xlu0 %2483
    %2485 = vrot.lane.b32.xlu0 %v2001, 72
    %v2486 = vpop.permute.xlu0 %2485
    %v2487 = vsel %vm177, %v2484, 0
    %v2489 = vsel %vm177, %v2486, 0
    %2491 = vmatpush.xpose.msra.mxu0 0.0
    %2492 = vmatpush.xpose.msra.mxu0 0.0
    %2493 = vmatpush.xpose.msra.mxu0 0.0
    %2494 = vmatpush.xpose.msra.mxu0 0.0
    %2495 = vmatpush.xpose.msra.mxu0 0.0
    %2496 = vmatpush.xpose.msra.mxu0 0.0
    %2497 = vmatpush.xpose.msra.mxu0 0.0
    %2498 = vmatpush.xpose.msra.mxu0 0.0
    %2499 = vmatpush.xpose.msra.mxu0 0.0
    %2500 = vmatpush.xpose.msra.mxu0 0.0
    %2501 = vmatpush.xpose.msra.mxu0 0.0
    %2502 = vmatpush.xpose.msra.mxu0 0.0
    %2503 = vmatpush.xpose.msra.mxu0 0.0
    %2504 = vmatpush.xpose.msra.mxu0 0.0
    %2505 = vmatpush.xpose.msra.mxu0 0.0
    %2506 = vmatpush.xpose.msra.mxu0 %v2489
    %2507 = vmatmul.f32.gmra.mxu0 %v2487
    %v2508 = vpop.f32.mrf.mxu0
    %v2509 = vadd.f32 %v2015, %v2508
    %2510 = vdwg.mxu0
    %2511 = vrot.lane.b32.xlu0 %v2004, 104
    %v2512 = vpop.permute.xlu0 %2511
    %2513 = vrot.lane.b32.xlu0 %v2004, 72
    %v2514 = vpop.permute.xlu0 %2513
    %v2515 = vsel %vm177, %v2512, 0
    %v2517 = vsel %vm177, %v2514, 0
    %2519 = vmatpush.xpose.msra.mxu0 0.0
    %2520 = vmatpush.xpose.msra.mxu0 0.0
    %2521 = vmatpush.xpose.msra.mxu0 0.0
    %2522 = vmatpush.xpose.msra.mxu0 0.0
    %2523 = vmatpush.xpose.msra.mxu0 0.0
    %2524 = vmatpush.xpose.msra.mxu0 0.0
    %2525 = vmatpush.xpose.msra.mxu0 0.0
    %2526 = vmatpush.xpose.msra.mxu0 0.0
    %2527 = vmatpush.xpose.msra.mxu0 0.0
    %2528 = vmatpush.xpose.msra.mxu0 0.0
    %2529 = vmatpush.xpose.msra.mxu0 0.0
    %2530 = vmatpush.xpose.msra.mxu0 0.0
    %2531 = vmatpush.xpose.msra.mxu0 0.0
    %2532 = vmatpush.xpose.msra.mxu0 0.0
    %2533 = vmatpush.xpose.msra.mxu0 0.0
    %2534 = vmatpush.xpose.msra.mxu0 %v2517
    %2535 = vmatmul.f32.gmra.mxu0 %v2515
    %v2536 = vpop.f32.mrf.mxu0
    %v2537 = vadd.f32 %v2016, %v2536
    %2538 = vdwg.mxu0
    %v2539 = vsel %vm177, %v2509, -inf
    %2540 = vmax.xlane.f32.xlu0 %v2539
    %v2541 = vpop.xlane.xlu0 %2540
    %v2542 = vsel %vm177, %v2537, -inf
    %2543 = vmax.xlane.f32.xlu0 %v2542
    %v2544 = vpop.xlane.xlu0 %2543
    %v2545 = vsub.f32 %v2509, %v2541
    %v2546 = vsub.f32 %v2537, %v2544
    %v2547 = vmul.f32 %v2545, 1.442695
    %v2548 = vpow.pop %v2547
    %v2549 = vmul.f32 %v2546, 1.442695
    %v2550 = vpow.pop %v2549
    %v2551 = vsel %vm177, %v2548, 0.0
    %2552 = vadd.xlane.f32.xlu0 %v2551
    %v2553 = vpop.xlane.xlu0 %2552
    %v2554 = vsel %vm177, %v2550, 0.0
    %2555 = vadd.xlane.f32.xlu0 %v2554
    %v2556 = vpop.xlane.xlu0 %2555
    %v2557 = vrcp.pop %v2553
    %v2558 = vmul.f32 %v2553, %v2557
    %v2559 = vsub.f32 1.0, %v2558
    %v2560 = vmul.f32 %v2557, %v2559
    %v2561 = vadd.f32 %v2557, %v2560
    %vm2562 = vweird.f32 %v2553
    %vm2563 = vweird.f32 %v2557
    %vm2564 = vmor %vm2562, %vm2563
    %v2565 = vsel %vm2564, %v2557, %v2561
    %v2566 = vand.u32 2147483647, %v2553
    %vm2567 = vcmp.eq.f32.partialorder %v2566, 8.507059e+37
    %v2568 = vand.u32 %v2553, 2147483648
    %v2569 = vor.u32 1.1754944e-38, %v2568
    %v2570 = vsel %vm2567, %v2569, %v2565
    %v2571 = vmul.f32 %v2548, %v2570
    %v2572 = vrcp.pop %v2556
    %v2573 = vmul.f32 %v2556, %v2572
    %v2574 = vsub.f32 1.0, %v2573
    %v2575 = vmul.f32 %v2572, %v2574
    %v2576 = vadd.f32 %v2572, %v2575
    %vm2577 = vweird.f32 %v2556
    %vm2578 = vweird.f32 %v2572
    %vm2579 = vmor %vm2577, %vm2578
    %v2580 = vsel %vm2579, %v2572, %v2576
    %v2581 = vand.u32 2147483647, %v2556
    %vm2582 = vcmp.eq.f32.partialorder %v2581, 8.507059e+37
    %v2583 = vand.u32 %v2556, 2147483648
    %v2584 = vor.u32 1.1754944e-38, %v2583
    %v2585 = vsel %vm2582, %v2584, %v2580
    %v2586 = vmul.f32 %v2550, %v2585
    %2587 = vrot.lane.b32.xlu0 %v2001, 40
    %v2588 = vpop.permute.xlu0 %2587
    %v2591 = vsel %vm177, %v2571, 0
    %2593 = vmatpush.msra.mxu0 0.0
    %2594 = vmatpush.msra.mxu0 0.0
    %2595 = vmatpush.msra.mxu0 0.0
    %2596 = vmatpush.msra.mxu0 0.0
    %2597 = vmatpush.msra.mxu0 0.0
    %2598 = vmatpush.msra.mxu0 0.0
    %2599 = vmatpush.msra.mxu0 0.0
    %2600 = vmatpush.msra.mxu0 0.0
    %2601 = vmatpush.msra.mxu0 0.0
    %2602 = vmatpush.msra.mxu0 0.0
    %2603 = vmatpush.msra.mxu0 0.0
    %2604 = vmatpush.msra.mxu0 0.0
    %2605 = vmatpush.msra.mxu0 0.0
    %2606 = vmatpush.msra.mxu0 0.0
    %2607 = vmatpush.msra.mxu0 0.0
    %2608 = vmatpush.msra.mxu0 %v2588
    %2609 = vmatmul.f32.gmra.mxu0 %v2591
    %v2610 = vpop.f32.mrf.mxu0
    %v2611 = vadd.f32 0.0, %v2610
    %2612 = vdwg.mxu0
    %2613 = vrot.lane.b32.xlu0 %v2004, 40
    %v2614 = vpop.permute.xlu0 %2613
    %v2617 = vsel %vm177, %v2586, 0
    %2619 = vmatpush.msra.mxu0 0.0
    %2620 = vmatpush.msra.mxu0 0.0
    %2621 = vmatpush.msra.mxu0 0.0
    %2622 = vmatpush.msra.mxu0 0.0
    %2623 = vmatpush.msra.mxu0 0.0
    %2624 = vmatpush.msra.mxu0 0.0
    %2625 = vmatpush.msra.mxu0 0.0
    %2626 = vmatpush.msra.mxu0 0.0
    %2627 = vmatpush.msra.mxu0 0.0
    %2628 = vmatpush.msra.mxu0 0.0
    %2629 = vmatpush.msra.mxu0 0.0
    %2630 = vmatpush.msra.mxu0 0.0
    %2631 = vmatpush.msra.mxu0 0.0
    %2632 = vmatpush.msra.mxu0 0.0
    %2633 = vmatpush.msra.mxu0 0.0
    %2634 = vmatpush.msra.mxu0 %v2614
    %2635 = vmatmul.f32.gmra.mxu0 %v2617
    %v2636 = vpop.f32.mrf.mxu0
    %v2637 = vadd.f32 0.0, %v2636
    %2638 = vdwg.mxu0
    %2641 = vrot.lane.b32.xlu0 %v2299, 8
    %v2642 = vpop.permute.xlu0 %2641
    %2643 = vrot.lane.b32.xlu0 %v2325, 8
    %v2644 = vpop.permute.xlu0 %2643
    %2649 = vrot.lane.b32.xlu0 %v2455, 16
    %v2650 = vpop.permute.xlu0 %2649
    %2651 = vrot.lane.b32.xlu0 %v2481, 16
    %v2652 = vpop.permute.xlu0 %2651
    %2657 = vrot.lane.b32.xlu0 %v2611, 24
    %v2658 = vpop.permute.xlu0 %2657
    %2659 = vrot.lane.b32.xlu0 %v2637, 24
    %v2660 = vpop.permute.xlu0 %2659
    %v2663 = vsel %vm177, %v2143, %v2642
    %v2664 = vsel %vm177, %v2169, %v2644
    %v2665 = vsel %vm823, %v2663, %v2650
    %v2666 = vsel %vm823, %v2664, %v2652
    %v2667 = vsel %vm826, %v2665, %v2658
    %v2668 = vsel %vm826, %v2666, %v2660
    %v2669 = vperm.slane %v41, 2
    %v2670 = vlaneseq
    %v2671 = vshrl.u32 %v2670, 7
    %2673 = vset.pattern.permute.xlu0 %v2671
    %2674 = vperm.xlu0 %2673, %v2669
    %v2675 = vpop.permute.xlu0 %2674
    %v2676 = vperm.slane %v41, 3
    %v2677 = vlaneseq
    %v2678 = vshrl.u32 %v2677, 7
    %2680 = vset.pattern.permute.xlu0 %v2678
    %2681 = vperm.xlu0 %2680, %v2676
    %v2682 = vpop.permute.xlu0 %2681
    %v2683 = vmul.f32 %v2667, %v2675
    %v2684 = vmul.f32 %v2668, %v2682
    %s2685 = scalar_lea.vmem [#allocation2], 704
    %v2686 = vld [vmem:[%s2685] sm:$0xff]
    %v2687 = vld [vmem:[%s2685 + $0x8] sm:$0xff]
    %v2688 = vld [vmem:[%s2685 + $0x10] sm:$0xff]
    %v2689 = vld [vmem:[%s2685 + $0x18] sm:$0xff]
    %v2690 = vperm.slane %v38, 1
    %v2692 = vsel %vm138, %v2683, 0
    %v2695 = vsel %vm138, %v2684, 0
    %2697 = vmatpush.msra.mxu0 0.0
    %2698 = vmatpush.msra.mxu0 0.0
    %2699 = vmatpush.msra.mxu0 0.0
    %2700 = vmatpush.msra.mxu0 0.0
    %2701 = vmatpush.msra.mxu0 0.0
    %2702 = vmatpush.msra.mxu0 0.0
    %2703 = vmatpush.msra.mxu0 0.0
    %2704 = vmatpush.msra.mxu0 0.0
    %2705 = vmatpush.msra.mxu0 0.0
    %2706 = vmatpush.msra.mxu0 0.0
    %2707 = vmatpush.msra.mxu0 0.0
    %2708 = vmatpush.msra.mxu0 0.0
    %2709 = vmatpush.msra.mxu0 %v2689
    %2710 = vmatpush.msra.mxu0 %v2688
    %2711 = vmatpush.msra.mxu0 %v2687
    %2712 = vmatpush.msra.mxu0 %v2686
    %2713 = vmatmul.f32.gmra.mxu0 %v2692
    %v2714 = vpop.f32.mrf.mxu0
    %v2715 = vadd.f32 %v2690, %v2714
    %2716 = vmatmul.f32.gmra.mxu0 %v2695
    %v2717 = vpop.f32.mrf.mxu0
    %v2718 = vadd.f32 %v2690, %v2717
    %2719 = vdwg.mxu0
    %v2720 = vadd.f32 %v127, %v2715
    %v2721 = vadd.f32 %v130, %v2718
    %v2722 = vsel %vm138, %v2720, 0.0
    %2723 = vadd.xlane.f32.xlu0 %v2722
    %v2724 = vpop.xlane.xlu0 %2723
    %v2725 = vsel %vm138, %v2721, 0.0
    %2726 = vadd.xlane.f32.xlu0 %v2725
    %v2727 = vpop.xlane.xlu0 %2726
    %v2728 = vmul.f32 %v2724, %v894
    %v2729 = vmul.f32 %v2727, %v894
    %v2730 = vsub.f32 %v2720, %v2728
    %v2731 = vsub.f32 %v2721, %v2729
    %v2732 = vmul.f32 %v2730, %v2730
    %v2733 = vmul.f32 %v2731, %v2731
    %v2734 = vsel %vm138, %v2732, 0.0
    %2735 = vadd.xlane.f32.xlu0 %v2734
    %v2736 = vpop.xlane.xlu0 %2735
    %v2737 = vsel %vm138, %v2733, 0.0
    %2738 = vadd.xlane.f32.xlu0 %v2737
    %v2739 = vpop.xlane.xlu0 %2738
    %v2740 = vmul.f32 %v2736, %v894
    %v2741 = vmul.f32 %v2739, %v894
    %v2742 = vadd.f32 %v2740, 1e-05
    %v2743 = vadd.f32 %v2741, 1e-05
    %v2744 = vrsqrt.pop %v2742
    %v2745 = vmul.f32 %v2744, %v2742
    %v2746 = vmul.f32 %v2745, %v2744
    %v2747 = vmul.f32 0.5, %v2746
    %v2748 = vsub.f32 1.5, %v2747
    %v2749 = vmul.f32 %v2744, %v2748
    %vm2750 = vweird.f32 %v2742
    %vm2751 = vweird.f32 %v2744
    %vm2752 = vmor %vm2750, %vm2751
    %v2753 = vsel %vm2752, %v2744, %v2749
    %v2754 = vrsqrt.pop %v2743
    %v2755 = vmul.f32 %v2754, %v2743
    %v2756 = vmul.f32 %v2755, %v2754
    %v2757 = vmul.f32 0.5, %v2756
    %v2758 = vsub.f32 1.5, %v2757
    %v2759 = vmul.f32 %v2754, %v2758
    %vm2760 = vweird.f32 %v2743
    %vm2761 = vweird.f32 %v2754
    %vm2762 = vmor %vm2760, %vm2761
    %v2763 = vsel %vm2762, %v2754, %v2759
    %v2764 = vmul.f32 %v2730, %v2753
    %v2765 = vmul.f32 %v2731, %v2763
    %v2766 = vperm.slane %v38, 2
    %v2767 = vmul.f32 %v2764, %v2766
    %v2768 = vmul.f32 %v2765, %v2766
    %v2769 = vperm.slane %v38, 3
    %v2770 = vadd.f32 %v2767, %v2769
    %v2771 = vadd.f32 %v2768, %v2769
    %s2772 = scalar_lea.vmem [#allocation2], 768
    %v2773 = vld [vmem:[%s2772] sm:$0xff]
    %v2774 = vld [vmem:[%s2772 + $0x8] sm:$0xff]
    %v2775 = vld [vmem:[%s2772 + $0x10] sm:$0xff]
    %v2776 = vld [vmem:[%s2772 + $0x18] sm:$0xff]
    %v2777 = vperm.slane %v38, 4
    %v2779 = vsel %vm138, %v2770, 0
    %v2782 = vsel %vm138, %v2771, 0
    %2784 = vmatpush.msra.mxu0 0.0
    %2785 = vmatpush.msra.mxu0 0.0
    %2786 = vmatpush.msra.mxu0 0.0
    %2787 = vmatpush.msra.mxu0 0.0
    %2788 = vmatpush.msra.mxu0 0.0
    %2789 = vmatpush.msra.mxu0 0.0
    %2790 = vmatpush.msra.mxu0 0.0
    %2791 = vmatpush.msra.mxu0 0.0
    %2792 = vmatpush.msra.mxu0 0.0
    %2793 = vmatpush.msra.mxu0 0.0
    %2794 = vmatpush.msra.mxu0 0.0
    %2795 = vmatpush.msra.mxu0 0.0
    %2796 = vmatpush.msra.mxu0 %v2776
    %2797 = vmatpush.msra.mxu0 %v2775
    %2798 = vmatpush.msra.mxu0 %v2774
    %2799 = vmatpush.msra.mxu0 %v2773
    %2800 = vmatmul.f32.gmra.mxu0 %v2779
    %v2801 = vpop.f32.mrf.mxu0
    %v2802 = vadd.f32 %v2777, %v2801
    %2803 = vmatmul.f32.gmra.mxu0 %v2782
    %v2804 = vpop.f32.mrf.mxu0
    %v2805 = vadd.f32 %v2777, %v2804
    %2806 = vdwg.mxu0
    %2811 = vrot.lane.b32.xlu0 %v2773, 96
    %v2812 = vpop.permute.xlu0 %2811
    %2813 = vrot.lane.b32.xlu0 %v2774, 96
    %v2814 = vpop.permute.xlu0 %2813
    %2815 = vrot.lane.b32.xlu0 %v2775, 96
    %v2816 = vpop.permute.xlu0 %2815
    %2817 = vrot.lane.b32.xlu0 %v2776, 96
    %v2818 = vpop.permute.xlu0 %2817
    %2824 = vrot.lane.b32.xlu0 %v2777, 96
    %v2825 = vpop.permute.xlu0 %2824
    %v2828 = vsel %vm138, %v1969, 0
    %v2831 = vsel %vm138, %v1970, 0
    %2833 = vmatpush.msra.mxu0 0.0
    %2834 = vmatpush.msra.mxu0 0.0
    %2835 = vmatpush.msra.mxu0 0.0
    %2836 = vmatpush.msra.mxu0 0.0
    %2837 = vmatpush.msra.mxu0 0.0
    %2838 = vmatpush.msra.mxu0 0.0
    %2839 = vmatpush.msra.mxu0 0.0
    %2840 = vmatpush.msra.mxu0 0.0
    %2841 = vmatpush.msra.mxu0 0.0
    %2842 = vmatpush.msra.mxu0 0.0
    %2843 = vmatpush.msra.mxu0 0.0
    %2844 = vmatpush.msra.mxu0 0.0
    %2845 = vmatpush.msra.mxu0 %v2818
    %2846 = vmatpush.msra.mxu0 %v2816
    %2847 = vmatpush.msra.mxu0 %v2814
    %2848 = vmatpush.msra.mxu0 %v2812
    %2849 = vmatmul.f32.gmra.mxu0 %v2828
    %v2850 = vpop.f32.mrf.mxu0
    %v2851 = vadd.f32 %v2825, %v2850
    %2852 = vmatmul.f32.gmra.mxu0 %v2831
    %v2853 = vpop.f32.mrf.mxu0
    %v2854 = vadd.f32 %v2825, %v2853
    %2855 = vdwg.mxu0
    %v2857 = vsel %vm177, %v2802, 0
    %v2860 = vsel %vm177, %v2851, 0
    %2862 = vmatpush.xpose.msra.mxu0 0.0
    %2863 = vmatpush.xpose.msra.mxu0 0.0
    %2864 = vmatpush.xpose.msra.mxu0 0.0
    %2865 = vmatpush.xpose.msra.mxu0 0.0
    %2866 = vmatpush.xpose.msra.mxu0 0.0
    %2867 = vmatpush.xpose.msra.mxu0 0.0
    %2868 = vmatpush.xpose.msra.mxu0 0.0
    %2869 = vmatpush.xpose.msra.mxu0 0.0
    %2870 = vmatpush.xpose.msra.mxu0 0.0
    %2871 = vmatpush.xpose.msra.mxu0 0.0
    %2872 = vmatpush.xpose.msra.mxu0 0.0
    %2873 = vmatpush.xpose.msra.mxu0 0.0
    %2874 = vmatpush.xpose.msra.mxu0 0.0
    %2875 = vmatpush.xpose.msra.mxu0 0.0
    %2876 = vmatpush.xpose.msra.mxu0 0.0
    %2877 = vmatpush.xpose.msra.mxu0 %v2860
    %2878 = vmatmul.f32.gmra.mxu0 %v2857
    %v2879 = vpop.f32.mrf.mxu0
    %v2880 = vadd.f32 %v170, %v2879
    %2881 = vdwg.mxu0
    %v2883 = vsel %vm177, %v2805, 0
    %v2886 = vsel %vm177, %v2854, 0
    %2888 = vmatpush.xpose.msra.mxu0 0.0
    %2889 = vmatpush.xpose.msra.mxu0 0.0
    %2890 = vmatpush.xpose.msra.mxu0 0.0
    %2891 = vmatpush.xpose.msra.mxu0 0.0
    %2892 = vmatpush.xpose.msra.mxu0 0.0
    %2893 = vmatpush.xpose.msra.mxu0 0.0
    %2894 = vmatpush.xpose.msra.mxu0 0.0
    %2895 = vmatpush.xpose.msra.mxu0 0.0
    %2896 = vmatpush.xpose.msra.mxu0 0.0
    %2897 = vmatpush.xpose.msra.mxu0 0.0
    %2898 = vmatpush.xpose.msra.mxu0 0.0
    %2899 = vmatpush.xpose.msra.mxu0 0.0
    %2900 = vmatpush.xpose.msra.mxu0 0.0
    %2901 = vmatpush.xpose.msra.mxu0 0.0
    %2902 = vmatpush.xpose.msra.mxu0 0.0
    %2903 = vmatpush.xpose.msra.mxu0 %v2886
    %2904 = vmatmul.f32.gmra.mxu0 %v2883
    %v2905 = vpop.f32.mrf.mxu0
    %v2906 = vadd.f32 %v171, %v2905
    %2907 = vdwg.mxu0
    %v2908 = vsel %vm177, %v2880, -inf
    %2909 = vmax.xlane.f32.xlu0 %v2908
    %v2910 = vpop.xlane.xlu0 %2909
    %v2911 = vsel %vm177, %v2906, -inf
    %2912 = vmax.xlane.f32.xlu0 %v2911
    %v2913 = vpop.xlane.xlu0 %2912
    %v2914 = vsub.f32 %v2880, %v2910
    %v2915 = vsub.f32 %v2906, %v2913
    %v2916 = vmul.f32 %v2914, 1.442695
    %v2917 = vpow.pop %v2916
    %v2918 = vmul.f32 %v2915, 1.442695
    %v2919 = vpow.pop %v2918
    %v2920 = vsel %vm177, %v2917, 0.0
    %2921 = vadd.xlane.f32.xlu0 %v2920
    %v2922 = vpop.xlane.xlu0 %2921
    %v2923 = vsel %vm177, %v2919, 0.0
    %2924 = vadd.xlane.f32.xlu0 %v2923
    %v2925 = vpop.xlane.xlu0 %2924
    %v2926 = vrcp.pop %v2922
    %v2927 = vmul.f32 %v2922, %v2926
    %v2928 = vsub.f32 1.0, %v2927
    %v2929 = vmul.f32 %v2926, %v2928
    %v2930 = vadd.f32 %v2926, %v2929
    %vm2931 = vweird.f32 %v2922
    %vm2932 = vweird.f32 %v2926
    %vm2933 = vmor %vm2931, %vm2932
    %v2934 = vsel %vm2933, %v2926, %v2930
    %v2935 = vand.u32 2147483647, %v2922
    %vm2936 = vcmp.eq.f32.partialorder %v2935, 8.507059e+37
    %v2937 = vand.u32 %v2922, 2147483648
    %v2938 = vor.u32 1.1754944e-38, %v2937
    %v2939 = vsel %vm2936, %v2938, %v2934
    %v2940 = vmul.f32 %v2917, %v2939
    %v2941 = vrcp.pop %v2925
    %v2942 = vmul.f32 %v2925, %v2941
    %v2943 = vsub.f32 1.0, %v2942
    %v2944 = vmul.f32 %v2941, %v2943
    %v2945 = vadd.f32 %v2941, %v2944
    %vm2946 = vweird.f32 %v2925
    %vm2947 = vweird.f32 %v2941
    %vm2948 = vmor %vm2946, %vm2947
    %v2949 = vsel %vm2948, %v2941, %v2945
    %v2950 = vand.u32 2147483647, %v2925
    %vm2951 = vcmp.eq.f32.partialorder %v2950, 8.507059e+37
    %v2952 = vand.u32 %v2925, 2147483648
    %v2953 = vor.u32 1.1754944e-38, %v2952
    %v2954 = vsel %vm2951, %v2953, %v2949
    %v2955 = vmul.f32 %v2919, %v2954
    %2956 = vrot.lane.b32.xlu0 %v2851, 96
    %v2957 = vpop.permute.xlu0 %2956
    %v2960 = vsel %vm177, %v2940, 0
    %2962 = vmatpush.msra.mxu0 0.0
    %2963 = vmatpush.msra.mxu0 0.0
    %2964 = vmatpush.msra.mxu0 0.0
    %2965 = vmatpush.msra.mxu0 0.0
    %2966 = vmatpush.msra.mxu0 0.0
    %2967 = vmatpush.msra.mxu0 0.0
    %2968 = vmatpush.msra.mxu0 0.0
    %2969 = vmatpush.msra.mxu0 0.0
    %2970 = vmatpush.msra.mxu0 0.0
    %2971 = vmatpush.msra.mxu0 0.0
    %2972 = vmatpush.msra.mxu0 0.0
    %2973 = vmatpush.msra.mxu0 0.0
    %2974 = vmatpush.msra.mxu0 0.0
    %2975 = vmatpush.msra.mxu0 0.0
    %2976 = vmatpush.msra.mxu0 0.0
    %2977 = vmatpush.msra.mxu0 %v2957
    %2978 = vmatmul.f32.gmra.mxu0 %v2960
    %v2979 = vpop.f32.mrf.mxu0
    %v2980 = vadd.f32 0.0, %v2979
    %2981 = vdwg.mxu0
    %2982 = vrot.lane.b32.xlu0 %v2854, 96
    %v2983 = vpop.permute.xlu0 %2982
    %v2986 = vsel %vm177, %v2955, 0
    %2988 = vmatpush.msra.mxu0 0.0
    %2989 = vmatpush.msra.mxu0 0.0
    %2990 = vmatpush.msra.mxu0 0.0
    %2991 = vmatpush.msra.mxu0 0.0
    %2992 = vmatpush.msra.mxu0 0.0
    %2993 = vmatpush.msra.mxu0 0.0
    %2994 = vmatpush.msra.mxu0 0.0
    %2995 = vmatpush.msra.mxu0 0.0
    %2996 = vmatpush.msra.mxu0 0.0
    %2997 = vmatpush.msra.mxu0 0.0
    %2998 = vmatpush.msra.mxu0 0.0
    %2999 = vmatpush.msra.mxu0 0.0
    %3000 = vmatpush.msra.mxu0 0.0
    %3001 = vmatpush.msra.mxu0 0.0
    %3002 = vmatpush.msra.mxu0 0.0
    %3003 = vmatpush.msra.mxu0 %v2983
    %3004 = vmatmul.f32.gmra.mxu0 %v2986
    %v3005 = vpop.f32.mrf.mxu0
    %v3006 = vadd.f32 0.0, %v3005
    %3007 = vdwg.mxu0
    %3008 = vrot.lane.b32.xlu0 %v2802, 120
    %v3009 = vpop.permute.xlu0 %3008
    %3010 = vrot.lane.b32.xlu0 %v2851, 120
    %v3011 = vpop.permute.xlu0 %3010
    %v3012 = vsel %vm177, %v3009, 0
    %v3014 = vsel %vm177, %v3011, 0
    %3016 = vmatpush.xpose.msra.mxu0 0.0
    %3017 = vmatpush.xpose.msra.mxu0 0.0
    %3018 = vmatpush.xpose.msra.mxu0 0.0
    %3019 = vmatpush.xpose.msra.mxu0 0.0
    %3020 = vmatpush.xpose.msra.mxu0 0.0
    %3021 = vmatpush.xpose.msra.mxu0 0.0
    %3022 = vmatpush.xpose.msra.mxu0 0.0
    %3023 = vmatpush.xpose.msra.mxu0 0.0
    %3024 = vmatpush.xpose.msra.mxu0 0.0
    %3025 = vmatpush.xpose.msra.mxu0 0.0
    %3026 = vmatpush.xpose.msra.mxu0 0.0
    %3027 = vmatpush.xpose.msra.mxu0 0.0
    %3028 = vmatpush.xpose.msra.mxu0 0.0
    %3029 = vmatpush.xpose.msra.mxu0 0.0
    %3030 = vmatpush.xpose.msra.mxu0 0.0
    %3031 = vmatpush.xpose.msra.mxu0 %v3014
    %3032 = vmatmul.f32.gmra.mxu0 %v3012
    %v3033 = vpop.f32.mrf.mxu0
    %v3034 = vadd.f32 %v170, %v3033
    %3035 = vdwg.mxu0
    %3036 = vrot.lane.b32.xlu0 %v2805, 120
    %v3037 = vpop.permute.xlu0 %3036
    %3038 = vrot.lane.b32.xlu0 %v2854, 120
    %v3039 = vpop.permute.xlu0 %3038
    %v3040 = vsel %vm177, %v3037, 0
    %v3042 = vsel %vm177, %v3039, 0
    %3044 = vmatpush.xpose.msra.mxu0 0.0
    %3045 = vmatpush.xpose.msra.mxu0 0.0
    %3046 = vmatpush.xpose.msra.mxu0 0.0
    %3047 = vmatpush.xpose.msra.mxu0 0.0
    %3048 = vmatpush.xpose.msra.mxu0 0.0
    %3049 = vmatpush.xpose.msra.mxu0 0.0
    %3050 = vmatpush.xpose.msra.mxu0 0.0
    %3051 = vmatpush.xpose.msra.mxu0 0.0
    %3052 = vmatpush.xpose.msra.mxu0 0.0
    %3053 = vmatpush.xpose.msra.mxu0 0.0
    %3054 = vmatpush.xpose.msra.mxu0 0.0
    %3055 = vmatpush.xpose.msra.mxu0 0.0
    %3056 = vmatpush.xpose.msra.mxu0 0.0
    %3057 = vmatpush.xpose.msra.mxu0 0.0
    %3058 = vmatpush.xpose.msra.mxu0 0.0
    %3059 = vmatpush.xpose.msra.mxu0 %v3042
    %3060 = vmatmul.f32.gmra.mxu0 %v3040
    %v3061 = vpop.f32.mrf.mxu0
    %v3062 = vadd.f32 %v171, %v3061
    %3063 = vdwg.mxu0
    %v3064 = vsel %vm177, %v3034, -inf
    %3065 = vmax.xlane.f32.xlu0 %v3064
    %v3066 = vpop.xlane.xlu0 %3065
    %v3067 = vsel %vm177, %v3062, -inf
    %3068 = vmax.xlane.f32.xlu0 %v3067
    %v3069 = vpop.xlane.xlu0 %3068
    %v3070 = vsub.f32 %v3034, %v3066
    %v3071 = vsub.f32 %v3062, %v3069
    %v3072 = vmul.f32 %v3070, 1.442695
    %v3073 = vpow.pop %v3072
    %v3074 = vmul.f32 %v3071, 1.442695
    %v3075 = vpow.pop %v3074
    %v3076 = vsel %vm177, %v3073, 0.0
    %3077 = vadd.xlane.f32.xlu0 %v3076
    %v3078 = vpop.xlane.xlu0 %3077
    %v3079 = vsel %vm177, %v3075, 0.0
    %3080 = vadd.xlane.f32.xlu0 %v3079
    %v3081 = vpop.xlane.xlu0 %3080
    %v3082 = vrcp.pop %v3078
    %v3083 = vmul.f32 %v3078, %v3082
    %v3084 = vsub.f32 1.0, %v3083
    %v3085 = vmul.f32 %v3082, %v3084
    %v3086 = vadd.f32 %v3082, %v3085
    %vm3087 = vweird.f32 %v3078
    %vm3088 = vweird.f32 %v3082
    %vm3089 = vmor %vm3087, %vm3088
    %v3090 = vsel %vm3089, %v3082, %v3086
    %v3091 = vand.u32 2147483647, %v3078
    %vm3092 = vcmp.eq.f32.partialorder %v3091, 8.507059e+37
    %v3093 = vand.u32 %v3078, 2147483648
    %v3094 = vor.u32 1.1754944e-38, %v3093
    %v3095 = vsel %vm3092, %v3094, %v3090
    %v3096 = vmul.f32 %v3073, %v3095
    %v3097 = vrcp.pop %v3081
    %v3098 = vmul.f32 %v3081, %v3097
    %v3099 = vsub.f32 1.0, %v3098
    %v3100 = vmul.f32 %v3097, %v3099
    %v3101 = vadd.f32 %v3097, %v3100
    %vm3102 = vweird.f32 %v3081
    %vm3103 = vweird.f32 %v3097
    %vm3104 = vmor %vm3102, %vm3103
    %v3105 = vsel %vm3104, %v3097, %v3101
    %v3106 = vand.u32 2147483647, %v3081
    %vm3107 = vcmp.eq.f32.partialorder %v3106, 8.507059e+37
    %v3108 = vand.u32 %v3081, 2147483648
    %v3109 = vor.u32 1.1754944e-38, %v3108
    %v3110 = vsel %vm3107, %v3109, %v3105
    %v3111 = vmul.f32 %v3075, %v3110
    %3112 = vrot.lane.b32.xlu0 %v2851, 88
    %v3113 = vpop.permute.xlu0 %3112
    %v3116 = vsel %vm177, %v3096, 0
    %3118 = vmatpush.msra.mxu0 0.0
    %3119 = vmatpush.msra.mxu0 0.0
    %3120 = vmatpush.msra.mxu0 0.0
    %3121 = vmatpush.msra.mxu0 0.0
    %3122 = vmatpush.msra.mxu0 0.0
    %3123 = vmatpush.msra.mxu0 0.0
    %3124 = vmatpush.msra.mxu0 0.0
    %3125 = vmatpush.msra.mxu0 0.0
    %3126 = vmatpush.msra.mxu0 0.0
    %3127 = vmatpush.msra.mxu0 0.0
    %3128 = vmatpush.msra.mxu0 0.0
    %3129 = vmatpush.msra.mxu0 0.0
    %3130 = vmatpush.msra.mxu0 0.0
    %3131 = vmatpush.msra.mxu0 0.0
    %3132 = vmatpush.msra.mxu0 0.0
    %3133 = vmatpush.msra.mxu0 %v3113
    %3134 = vmatmul.f32.gmra.mxu0 %v3116
    %v3135 = vpop.f32.mrf.mxu0
    %v3136 = vadd.f32 0.0, %v3135
    %3137 = vdwg.mxu0
    %3138 = vrot.lane.b32.xlu0 %v2854, 88
    %v3139 = vpop.permute.xlu0 %3138
    %v3142 = vsel %vm177, %v3111, 0
    %3144 = vmatpush.msra.mxu0 0.0
    %3145 = vmatpush.msra.mxu0 0.0
    %3146 = vmatpush.msra.mxu0 0.0
    %3147 = vmatpush.msra.mxu0 0.0
    %3148 = vmatpush.msra.mxu0 0.0
    %3149 = vmatpush.msra.mxu0 0.0
    %3150 = vmatpush.msra.mxu0 0.0
    %3151 = vmatpush.msra.mxu0 0.0
    %3152 = vmatpush.msra.mxu0 0.0
    %3153 = vmatpush.msra.mxu0 0.0
    %3154 = vmatpush.msra.mxu0 0.0
    %3155 = vmatpush.msra.mxu0 0.0
    %3156 = vmatpush.msra.mxu0 0.0
    %3157 = vmatpush.msra.mxu0 0.0
    %3158 = vmatpush.msra.mxu0 0.0
    %3159 = vmatpush.msra.mxu0 %v3139
    %3160 = vmatmul.f32.gmra.mxu0 %v3142
    %v3161 = vpop.f32.mrf.mxu0
    %v3162 = vadd.f32 0.0, %v3161
    %3163 = vdwg.mxu0
    %3164 = vrot.lane.b32.xlu0 %v2802, 112
    %v3165 = vpop.permute.xlu0 %3164
    %3166 = vrot.lane.b32.xlu0 %v2851, 112
    %v3167 = vpop.permute.xlu0 %3166
    %v3168 = vsel %vm177, %v3165, 0
    %v3170 = vsel %vm177, %v3167, 0
    %3172 = vmatpush.xpose.msra.mxu0 0.0
    %3173 = vmatpush.xpose.msra.mxu0 0.0
    %3174 = vmatpush.xpose.msra.mxu0 0.0
    %3175 = vmatpush.xpose.msra.mxu0 0.0
    %3176 = vmatpush.xpose.msra.mxu0 0.0
    %3177 = vmatpush.xpose.msra.mxu0 0.0
    %3178 = vmatpush.xpose.msra.mxu0 0.0
    %3179 = vmatpush.xpose.msra.mxu0 0.0
    %3180 = vmatpush.xpose.msra.mxu0 0.0
    %3181 = vmatpush.xpose.msra.mxu0 0.0
    %3182 = vmatpush.xpose.msra.mxu0 0.0
    %3183 = vmatpush.xpose.msra.mxu0 0.0
    %3184 = vmatpush.xpose.msra.mxu0 0.0
    %3185 = vmatpush.xpose.msra.mxu0 0.0
    %3186 = vmatpush.xpose.msra.mxu0 0.0
    %3187 = vmatpush.xpose.msra.mxu0 %v3170
    %3188 = vmatmul.f32.gmra.mxu0 %v3168
    %v3189 = vpop.f32.mrf.mxu0
    %v3190 = vadd.f32 %v170, %v3189
    %3191 = vdwg.mxu0
    %3192 = vrot.lane.b32.xlu0 %v2805, 112
    %v3193 = vpop.permute.xlu0 %3192
    %3194 = vrot.lane.b32.xlu0 %v2854, 112
    %v3195 = vpop.permute.xlu0 %3194
    %v3196 = vsel %vm177, %v3193, 0
    %v3198 = vsel %vm177, %v3195, 0
    %3200 = vmatpush.xpose.msra.mxu0 0.0
    %3201 = vmatpush.xpose.msra.mxu0 0.0
    %3202 = vmatpush.xpose.msra.mxu0 0.0
    %3203 = vmatpush.xpose.msra.mxu0 0.0
    %3204 = vmatpush.xpose.msra.mxu0 0.0
    %3205 = vmatpush.xpose.msra.mxu0 0.0
    %3206 = vmatpush.xpose.msra.mxu0 0.0
    %3207 = vmatpush.xpose.msra.mxu0 0.0
    %3208 = vmatpush.xpose.msra.mxu0 0.0
    %3209 = vmatpush.xpose.msra.mxu0 0.0
    %3210 = vmatpush.xpose.msra.mxu0 0.0
    %3211 = vmatpush.xpose.msra.mxu0 0.0
    %3212 = vmatpush.xpose.msra.mxu0 0.0
    %3213 = vmatpush.xpose.msra.mxu0 0.0
    %3214 = vmatpush.xpose.msra.mxu0 0.0
    %3215 = vmatpush.xpose.msra.mxu0 %v3198
    %3216 = vmatmul.f32.gmra.mxu0 %v3196
    %v3217 = vpop.f32.mrf.mxu0
    %v3218 = vadd.f32 %v171, %v3217
    %3219 = vdwg.mxu0
    %v3220 = vsel %vm177, %v3190, -inf
    %3221 = vmax.xlane.f32.xlu0 %v3220
    %v3222 = vpop.xlane.xlu0 %3221
    %v3223 = vsel %vm177, %v3218, -inf
    %3224 = vmax.xlane.f32.xlu0 %v3223
    %v3225 = vpop.xlane.xlu0 %3224
    %v3226 = vsub.f32 %v3190, %v3222
    %v3227 = vsub.f32 %v3218, %v3225
    %v3228 = vmul.f32 %v3226, 1.442695
    %v3229 = vpow.pop %v3228
    %v3230 = vmul.f32 %v3227, 1.442695
    %v3231 = vpow.pop %v3230
    %v3232 = vsel %vm177, %v3229, 0.0
    %3233 = vadd.xlane.f32.xlu0 %v3232
    %v3234 = vpop.xlane.xlu0 %3233
    %v3235 = vsel %vm177, %v3231, 0.0
    %3236 = vadd.xlane.f32.xlu0 %v3235
    %v3237 = vpop.xlane.xlu0 %3236
    %v3238 = vrcp.pop %v3234
    %v3239 = vmul.f32 %v3234, %v3238
    %v3240 = vsub.f32 1.0, %v3239
    %v3241 = vmul.f32 %v3238, %v3240
    %v3242 = vadd.f32 %v3238, %v3241
    %vm3243 = vweird.f32 %v3234
    %vm3244 = vweird.f32 %v3238
    %vm3245 = vmor %vm3243, %vm3244
    %v3246 = vsel %vm3245, %v3238, %v3242
    %v3247 = vand.u32 2147483647, %v3234
    %vm3248 = vcmp.eq.f32.partialorder %v3247, 8.507059e+37
    %v3249 = vand.u32 %v3234, 2147483648
    %v3250 = vor.u32 1.1754944e-38, %v3249
    %v3251 = vsel %vm3248, %v3250, %v3246
    %v3252 = vmul.f32 %v3229, %v3251
    %v3253 = vrcp.pop %v3237
    %v3254 = vmul.f32 %v3237, %v3253
    %v3255 = vsub.f32 1.0, %v3254
    %v3256 = vmul.f32 %v3253, %v3255
    %v3257 = vadd.f32 %v3253, %v3256
    %vm3258 = vweird.f32 %v3237
    %vm3259 = vweird.f32 %v3253
    %vm3260 = vmor %vm3258, %vm3259
    %v3261 = vsel %vm3260, %v3253, %v3257
    %v3262 = vand.u32 2147483647, %v3237
    %vm3263 = vcmp.eq.f32.partialorder %v3262, 8.507059e+37
    %v3264 = vand.u32 %v3237, 2147483648
    %v3265 = vor.u32 1.1754944e-38, %v3264
    %v3266 = vsel %vm3263, %v3265, %v3261
    %v3267 = vmul.f32 %v3231, %v3266
    %3268 = vrot.lane.b32.xlu0 %v2851, 80
    %v3269 = vpop.permute.xlu0 %3268
    %v3272 = vsel %vm177, %v3252, 0
    %3274 = vmatpush.msra.mxu0 0.0
    %3275 = vmatpush.msra.mxu0 0.0
    %3276 = vmatpush.msra.mxu0 0.0
    %3277 = vmatpush.msra.mxu0 0.0
    %3278 = vmatpush.msra.mxu0 0.0
    %3279 = vmatpush.msra.mxu0 0.0
    %3280 = vmatpush.msra.mxu0 0.0
    %3281 = vmatpush.msra.mxu0 0.0
    %3282 = vmatpush.msra.mxu0 0.0
    %3283 = vmatpush.msra.mxu0 0.0
    %3284 = vmatpush.msra.mxu0 0.0
    %3285 = vmatpush.msra.mxu0 0.0
    %3286 = vmatpush.msra.mxu0 0.0
    %3287 = vmatpush.msra.mxu0 0.0
    %3288 = vmatpush.msra.mxu0 0.0
    %3289 = vmatpush.msra.mxu0 %v3269
    %3290 = vmatmul.f32.gmra.mxu0 %v3272
    %v3291 = vpop.f32.mrf.mxu0
    %v3292 = vadd.f32 0.0, %v3291
    %3293 = vdwg.mxu0
    %3294 = vrot.lane.b32.xlu0 %v2854, 80
    %v3295 = vpop.permute.xlu0 %3294
    %v3298 = vsel %vm177, %v3267, 0
    %3300 = vmatpush.msra.mxu0 0.0
    %3301 = vmatpush.msra.mxu0 0.0
    %3302 = vmatpush.msra.mxu0 0.0
    %3303 = vmatpush.msra.mxu0 0.0
    %3304 = vmatpush.msra.mxu0 0.0
    %3305 = vmatpush.msra.mxu0 0.0
    %3306 = vmatpush.msra.mxu0 0.0
    %3307 = vmatpush.msra.mxu0 0.0
    %3308 = vmatpush.msra.mxu0 0.0
    %3309 = vmatpush.msra.mxu0 0.0
    %3310 = vmatpush.msra.mxu0 0.0
    %3311 = vmatpush.msra.mxu0 0.0
    %3312 = vmatpush.msra.mxu0 0.0
    %3313 = vmatpush.msra.mxu0 0.0
    %3314 = vmatpush.msra.mxu0 0.0
    %3315 = vmatpush.msra.mxu0 %v3295
    %3316 = vmatmul.f32.gmra.mxu0 %v3298
    %v3317 = vpop.f32.mrf.mxu0
    %v3318 = vadd.f32 0.0, %v3317
    %3319 = vdwg.mxu0
    %3320 = vrot.lane.b32.xlu0 %v2802, 104
    %v3321 = vpop.permute.xlu0 %3320
    %3322 = vrot.lane.b32.xlu0 %v2851, 104
    %v3323 = vpop.permute.xlu0 %3322
    %v3324 = vsel %vm177, %v3321, 0
    %v3326 = vsel %vm177, %v3323, 0
    %3328 = vmatpush.xpose.msra.mxu0 0.0
    %3329 = vmatpush.xpose.msra.mxu0 0.0
    %3330 = vmatpush.xpose.msra.mxu0 0.0
    %3331 = vmatpush.xpose.msra.mxu0 0.0
    %3332 = vmatpush.xpose.msra.mxu0 0.0
    %3333 = vmatpush.xpose.msra.mxu0 0.0
    %3334 = vmatpush.xpose.msra.mxu0 0.0
    %3335 = vmatpush.xpose.msra.mxu0 0.0
    %3336 = vmatpush.xpose.msra.mxu0 0.0
    %3337 = vmatpush.xpose.msra.mxu0 0.0
    %3338 = vmatpush.xpose.msra.mxu0 0.0
    %3339 = vmatpush.xpose.msra.mxu0 0.0
    %3340 = vmatpush.xpose.msra.mxu0 0.0
    %3341 = vmatpush.xpose.msra.mxu0 0.0
    %3342 = vmatpush.xpose.msra.mxu0 0.0
    %3343 = vmatpush.xpose.msra.mxu0 %v3326
    %3344 = vmatmul.f32.gmra.mxu0 %v3324
    %v3345 = vpop.f32.mrf.mxu0
    %v3346 = vadd.f32 %v170, %v3345
    %3347 = vdwg.mxu0
    %3348 = vrot.lane.b32.xlu0 %v2805, 104
    %v3349 = vpop.permute.xlu0 %3348
    %3350 = vrot.lane.b32.xlu0 %v2854, 104
    %v3351 = vpop.permute.xlu0 %3350
    %v3352 = vsel %vm177, %v3349, 0
    %v3354 = vsel %vm177, %v3351, 0
    %3356 = vmatpush.xpose.msra.mxu0 0.0
    %3357 = vmatpush.xpose.msra.mxu0 0.0
    %3358 = vmatpush.xpose.msra.mxu0 0.0
    %3359 = vmatpush.xpose.msra.mxu0 0.0
    %3360 = vmatpush.xpose.msra.mxu0 0.0
    %3361 = vmatpush.xpose.msra.mxu0 0.0
    %3362 = vmatpush.xpose.msra.mxu0 0.0
    %3363 = vmatpush.xpose.msra.mxu0 0.0
    %3364 = vmatpush.xpose.msra.mxu0 0.0
    %3365 = vmatpush.xpose.msra.mxu0 0.0
    %3366 = vmatpush.xpose.msra.mxu0 0.0
    %3367 = vmatpush.xpose.msra.mxu0 0.0
    %3368 = vmatpush.xpose.msra.mxu0 0.0
    %3369 = vmatpush.xpose.msra.mxu0 0.0
    %3370 = vmatpush.xpose.msra.mxu0 0.0
    %3371 = vmatpush.xpose.msra.mxu0 %v3354
    %3372 = vmatmul.f32.gmra.mxu0 %v3352
    %v3373 = vpop.f32.mrf.mxu0
    %v3374 = vadd.f32 %v171, %v3373
    %3375 = vdwg.mxu0
    %v3376 = vsel %vm177, %v3346, -inf
    %3377 = vmax.xlane.f32.xlu0 %v3376
    %v3378 = vpop.xlane.xlu0 %3377
    %v3379 = vsel %vm177, %v3374, -inf
    %3380 = vmax.xlane.f32.xlu0 %v3379
    %v3381 = vpop.xlane.xlu0 %3380
    %v3382 = vsub.f32 %v3346, %v3378
    %v3383 = vsub.f32 %v3374, %v3381
    %v3384 = vmul.f32 %v3382, 1.442695
    %v3385 = vpow.pop %v3384
    %v3386 = vmul.f32 %v3383, 1.442695
    %v3387 = vpow.pop %v3386
    %v3388 = vsel %vm177, %v3385, 0.0
    %3389 = vadd.xlane.f32.xlu0 %v3388
    %v3390 = vpop.xlane.xlu0 %3389
    %v3391 = vsel %vm177, %v3387, 0.0
    %3392 = vadd.xlane.f32.xlu0 %v3391
    %v3393 = vpop.xlane.xlu0 %3392
    %v3394 = vrcp.pop %v3390
    %v3395 = vmul.f32 %v3390, %v3394
    %v3396 = vsub.f32 1.0, %v3395
    %v3397 = vmul.f32 %v3394, %v3396
    %v3398 = vadd.f32 %v3394, %v3397
    %vm3399 = vweird.f32 %v3390
    %vm3400 = vweird.f32 %v3394
    %vm3401 = vmor %vm3399, %vm3400
    %v3402 = vsel %vm3401, %v3394, %v3398
    %v3403 = vand.u32 2147483647, %v3390
    %vm3404 = vcmp.eq.f32.partialorder %v3403, 8.507059e+37
    %v3405 = vand.u32 %v3390, 2147483648
    %v3406 = vor.u32 1.1754944e-38, %v3405
    %v3407 = vsel %vm3404, %v3406, %v3402
    %v3408 = vmul.f32 %v3385, %v3407
    %v3409 = vrcp.pop %v3393
    %v3410 = vmul.f32 %v3393, %v3409
    %v3411 = vsub.f32 1.0, %v3410
    %v3412 = vmul.f32 %v3409, %v3411
    %v3413 = vadd.f32 %v3409, %v3412
    %vm3414 = vweird.f32 %v3393
    %vm3415 = vweird.f32 %v3409
    %vm3416 = vmor %vm3414, %vm3415
    %v3417 = vsel %vm3416, %v3409, %v3413
    %v3418 = vand.u32 2147483647, %v3393
    %vm3419 = vcmp.eq.f32.partialorder %v3418, 8.507059e+37
    %v3420 = vand.u32 %v3393, 2147483648
    %v3421 = vor.u32 1.1754944e-38, %v3420
    %v3422 = vsel %vm3419, %v3421, %v3417
    %v3423 = vmul.f32 %v3387, %v3422
    %3424 = vrot.lane.b32.xlu0 %v2851, 72
    %v3425 = vpop.permute.xlu0 %3424
    %v3428 = vsel %vm177, %v3408, 0
    %3430 = vmatpush.msra.mxu0 0.0
    %3431 = vmatpush.msra.mxu0 0.0
    %3432 = vmatpush.msra.mxu0 0.0
    %3433 = vmatpush.msra.mxu0 0.0
    %3434 = vmatpush.msra.mxu0 0.0
    %3435 = vmatpush.msra.mxu0 0.0
    %3436 = vmatpush.msra.mxu0 0.0
    %3437 = vmatpush.msra.mxu0 0.0
    %3438 = vmatpush.msra.mxu0 0.0
    %3439 = vmatpush.msra.mxu0 0.0
    %3440 = vmatpush.msra.mxu0 0.0
    %3441 = vmatpush.msra.mxu0 0.0
    %3442 = vmatpush.msra.mxu0 0.0
    %3443 = vmatpush.msra.mxu0 0.0
    %3444 = vmatpush.msra.mxu0 0.0
    %3445 = vmatpush.msra.mxu0 %v3425
    %3446 = vmatmul.f32.gmra.mxu0 %v3428
    %v3447 = vpop.f32.mrf.mxu0
    %v3448 = vadd.f32 0.0, %v3447
    %3449 = vdwg.mxu0
    %3450 = vrot.lane.b32.xlu0 %v2854, 72
    %v3451 = vpop.permute.xlu0 %3450
    %v3454 = vsel %vm177, %v3423, 0
    %3456 = vmatpush.msra.mxu0 0.0
    %3457 = vmatpush.msra.mxu0 0.0
    %3458 = vmatpush.msra.mxu0 0.0
    %3459 = vmatpush.msra.mxu0 0.0
    %3460 = vmatpush.msra.mxu0 0.0
    %3461 = vmatpush.msra.mxu0 0.0
    %3462 = vmatpush.msra.mxu0 0.0
    %3463 = vmatpush.msra.mxu0 0.0
    %3464 = vmatpush.msra.mxu0 0.0
    %3465 = vmatpush.msra.mxu0 0.0
    %3466 = vmatpush.msra.mxu0 0.0
    %3467 = vmatpush.msra.mxu0 0.0
    %3468 = vmatpush.msra.mxu0 0.0
    %3469 = vmatpush.msra.mxu0 0.0
    %3470 = vmatpush.msra.mxu0 0.0
    %3471 = vmatpush.msra.mxu0 %v3451
    %3472 = vmatmul.f32.gmra.mxu0 %v3454
    %v3473 = vpop.f32.mrf.mxu0
    %v3474 = vadd.f32 0.0, %v3473
    %3475 = vdwg.mxu0
    %3478 = vrot.lane.b32.xlu0 %v3136, 8
    %v3479 = vpop.permute.xlu0 %3478
    %3480 = vrot.lane.b32.xlu0 %v3162, 8
    %v3481 = vpop.permute.xlu0 %3480
    %3486 = vrot.lane.b32.xlu0 %v3292, 16
    %v3487 = vpop.permute.xlu0 %3486
    %3488 = vrot.lane.b32.xlu0 %v3318, 16
    %v3489 = vpop.permute.xlu0 %3488
    %3494 = vrot.lane.b32.xlu0 %v3448, 24
    %v3495 = vpop.permute.xlu0 %3494
    %3496 = vrot.lane.b32.xlu0 %v3474, 24
    %v3497 = vpop.permute.xlu0 %3496
    %v3500 = vsel %vm177, %v2980, %v3479
    %v3501 = vsel %vm177, %v3006, %v3481
    %v3502 = vsel %vm823, %v3500, %v3487
    %v3503 = vsel %vm823, %v3501, %v3489
    %v3504 = vsel %vm826, %v3502, %v3495
    %v3505 = vsel %vm826, %v3503, %v3497
    %v3506 = vmul.f32 %v3504, %v2675
    %v3507 = vmul.f32 %v3505, %v2682
    %s3508 = scalar_lea.vmem [#allocation2], 832
    %v3509 = vld [vmem:[%s3508] sm:$0xff]
    %v3510 = vld [vmem:[%s3508 + $0x8] sm:$0xff]
    %v3511 = vld [vmem:[%s3508 + $0x10] sm:$0xff]
    %v3512 = vld [vmem:[%s3508 + $0x18] sm:$0xff]
    %v3513 = vperm.slane %v38, 5
    %v3515 = vsel %vm138, %v3506, 0
    %v3518 = vsel %vm138, %v3507, 0
    %3520 = vmatpush.msra.mxu0 0.0
    %3521 = vmatpush.msra.mxu0 0.0
    %3522 = vmatpush.msra.mxu0 0.0
    %3523 = vmatpush.msra.mxu0 0.0
    %3524 = vmatpush.msra.mxu0 0.0
    %3525 = vmatpush.msra.mxu0 0.0
    %3526 = vmatpush.msra.mxu0 0.0
    %3527 = vmatpush.msra.mxu0 0.0
    %3528 = vmatpush.msra.mxu0 0.0
    %3529 = vmatpush.msra.mxu0 0.0
    %3530 = vmatpush.msra.mxu0 0.0
    %3531 = vmatpush.msra.mxu0 0.0
    %3532 = vmatpush.msra.mxu0 %v3512
    %3533 = vmatpush.msra.mxu0 %v3511
    %3534 = vmatpush.msra.mxu0 %v3510
    %3535 = vmatpush.msra.mxu0 %v3509
    %3536 = vmatmul.f32.gmra.mxu0 %v3515
    %v3537 = vpop.f32.mrf.mxu0
    %v3538 = vadd.f32 %v3513, %v3537
    %3539 = vmatmul.f32.gmra.mxu0 %v3518
    %v3540 = vpop.f32.mrf.mxu0
    %v3541 = vadd.f32 %v3513, %v3540
    %3542 = vdwg.mxu0
    %v3543 = vadd.f32 %v2770, %v3538
    %v3544 = vadd.f32 %v2771, %v3541
    %v3545 = vsel %vm138, %v3543, 0.0
    %3546 = vadd.xlane.f32.xlu0 %v3545
    %v3547 = vpop.xlane.xlu0 %3546
    %v3548 = vsel %vm138, %v3544, 0.0
    %3549 = vadd.xlane.f32.xlu0 %v3548
    %v3550 = vpop.xlane.xlu0 %3549
    %v3551 = vmul.f32 %v3547, %v894
    %v3552 = vmul.f32 %v3550, %v894
    %v3553 = vsub.f32 %v3543, %v3551
    %v3554 = vsub.f32 %v3544, %v3552
    %v3555 = vmul.f32 %v3553, %v3553
    %v3556 = vmul.f32 %v3554, %v3554
    %v3557 = vsel %vm138, %v3555, 0.0
    %3558 = vadd.xlane.f32.xlu0 %v3557
    %v3559 = vpop.xlane.xlu0 %3558
    %v3560 = vsel %vm138, %v3556, 0.0
    %3561 = vadd.xlane.f32.xlu0 %v3560
    %v3562 = vpop.xlane.xlu0 %3561
    %v3563 = vmul.f32 %v3559, %v894
    %v3564 = vmul.f32 %v3562, %v894
    %v3565 = vadd.f32 %v3563, 1e-05
    %v3566 = vadd.f32 %v3564, 1e-05
    %v3567 = vrsqrt.pop %v3565
    %v3568 = vmul.f32 %v3567, %v3565
    %v3569 = vmul.f32 %v3568, %v3567
    %v3570 = vmul.f32 0.5, %v3569
    %v3571 = vsub.f32 1.5, %v3570
    %v3572 = vmul.f32 %v3567, %v3571
    %vm3573 = vweird.f32 %v3565
    %vm3574 = vweird.f32 %v3567
    %vm3575 = vmor %vm3573, %vm3574
    %v3576 = vsel %vm3575, %v3567, %v3572
    %v3577 = vrsqrt.pop %v3566
    %v3578 = vmul.f32 %v3577, %v3566
    %v3579 = vmul.f32 %v3578, %v3577
    %v3580 = vmul.f32 0.5, %v3579
    %v3581 = vsub.f32 1.5, %v3580
    %v3582 = vmul.f32 %v3577, %v3581
    %vm3583 = vweird.f32 %v3566
    %vm3584 = vweird.f32 %v3577
    %vm3585 = vmor %vm3583, %vm3584
    %v3586 = vsel %vm3585, %v3577, %v3582
    %v3587 = vmul.f32 %v3553, %v3576
    %v3588 = vmul.f32 %v3554, %v3586
    %v3589 = vperm.slane %v38, 6
    %v3590 = vmul.f32 %v3587, %v3589
    %v3591 = vmul.f32 %v3588, %v3589
    %v3592 = vperm.slane %v38, 7
    %v3593 = vadd.f32 %v3590, %v3592
    %v3594 = vadd.f32 %v3591, %v3592
    %s3595 = scalar_lea.vmem [#allocation2], 896
    %v3596 = vld [vmem:[%s3595] sm:$0xff]
    %v3597 = vld [vmem:[%s3595 + $0x8] sm:$0xff]
    %v3598 = vld [vmem:[%s3595 + $0x10] sm:$0xff]
    %v3599 = vld [vmem:[%s3595 + $0x18] sm:$0xff]
    %v3600 = vperm.slane %v39, 0
    %v3602 = vsel %vm138, %v3593, 0
    %v3605 = vsel %vm138, %v3594, 0
    %3607 = vmatpush.msra.mxu0 0.0
    %3608 = vmatpush.msra.mxu0 0.0
    %3609 = vmatpush.msra.mxu0 0.0
    %3610 = vmatpush.msra.mxu0 0.0
    %3611 = vmatpush.msra.mxu0 0.0
    %3612 = vmatpush.msra.mxu0 0.0
    %3613 = vmatpush.msra.mxu0 0.0
    %3614 = vmatpush.msra.mxu0 0.0
    %3615 = vmatpush.msra.mxu0 0.0
    %3616 = vmatpush.msra.mxu0 0.0
    %3617 = vmatpush.msra.mxu0 0.0
    %3618 = vmatpush.msra.mxu0 0.0
    %3619 = vmatpush.msra.mxu0 %v3599
    %3620 = vmatpush.msra.mxu0 %v3598
    %3621 = vmatpush.msra.mxu0 %v3597
    %3622 = vmatpush.msra.mxu0 %v3596
    %3623 = vmatmul.f32.gmra.mxu0 %v3602
    %v3624 = vpop.f32.mrf.mxu0
    %v3625 = vadd.f32 %v3600, %v3624
    %3626 = vmatmul.f32.gmra.mxu0 %v3605
    %v3627 = vpop.f32.mrf.mxu0
    %v3628 = vadd.f32 %v3600, %v3627
    %3629 = vdwg.mxu0
    %v3630 = vmax.f32 %v3625, 0.0
    %v3631 = vmax.f32 %v3628, 0.0
    %s3632 = scalar_lea.vmem [#allocation2], 960
    %v3633 = vld [vmem:[%s3632] sm:$0xff]
    %v3634 = vld [vmem:[%s3632 + $0x8] sm:$0xff]
    %v3635 = vld [vmem:[%s3632 + $0x10] sm:$0xff]
    %v3636 = vld [vmem:[%s3632 + $0x18] sm:$0xff]
    %v3637 = vld [vmem:[%s3632 + $0x20] sm:$0xff]
    %v3638 = vld [vmem:[%s3632 + $0x28] sm:$0xff]
    %v3639 = vld [vmem:[%s3632 + $0x30] sm:$0xff]
    %v3640 = vld [vmem:[%s3632 + $0x38] sm:$0xff]
    %v3641 = vperm.slane %v39, 1
    %v3643 = vsel %vm90, %v3630, 0
    %v3646 = vsel %vm90, %v3631, 0
    %3648 = vmatpush.msra.mxu0 0.0
    %3649 = vmatpush.msra.mxu0 0.0
    %3650 = vmatpush.msra.mxu0 0.0
    %3651 = vmatpush.msra.mxu0 0.0
    %3652 = vmatpush.msra.mxu0 0.0
    %3653 = vmatpush.msra.mxu0 0.0
    %3654 = vmatpush.msra.mxu0 0.0
    %3655 = vmatpush.msra.mxu0 0.0
    %3656 = vmatpush.msra.mxu0 %v3640
    %3657 = vmatpush.msra.mxu0 %v3639
    %3658 = vmatpush.msra.mxu0 %v3638
    %3659 = vmatpush.msra.mxu0 %v3637
    %3660 = vmatpush.msra.mxu0 %v3636
    %3661 = vmatpush.msra.mxu0 %v3635
    %3662 = vmatpush.msra.mxu0 %v3634
    %3663 = vmatpush.msra.mxu0 %v3633
    %3664 = vmatmul.f32.gmra.mxu0 %v3643
    %v3665 = vpop.f32.mrf.mxu0
    %v3666 = vadd.f32 %v3641, %v3665
    %3667 = vmatmul.f32.gmra.mxu0 %v3646
    %v3668 = vpop.f32.mrf.mxu0
    %v3669 = vadd.f32 %v3641, %v3668
    %3670 = vdwg.mxu0
    %v3671 = vadd.f32 %v3593, %v3666
    %v3672 = vadd.f32 %v3594, %v3669
    %v3673 = vsel %vm138, %v3671, 0.0
    %3674 = vadd.xlane.f32.xlu0 %v3673
    %v3675 = vpop.xlane.xlu0 %3674
    %v3676 = vsel %vm138, %v3672, 0.0
    %3677 = vadd.xlane.f32.xlu0 %v3676
    %v3678 = vpop.xlane.xlu0 %3677
    %v3679 = vmul.f32 %v3675, %v894
    %v3680 = vmul.f32 %v3678, %v894
    %v3681 = vsub.f32 %v3671, %v3679
    %v3682 = vsub.f32 %v3672, %v3680
    %v3683 = vmul.f32 %v3681, %v3681
    %v3684 = vmul.f32 %v3682, %v3682
    %v3685 = vsel %vm138, %v3683, 0.0
    %3686 = vadd.xlane.f32.xlu0 %v3685
    %v3687 = vpop.xlane.xlu0 %3686
    %v3688 = vsel %vm138, %v3684, 0.0
    %3689 = vadd.xlane.f32.xlu0 %v3688
    %v3690 = vpop.xlane.xlu0 %3689
    %v3691 = vmul.f32 %v3687, %v894
    %v3692 = vmul.f32 %v3690, %v894
    %v3693 = vadd.f32 %v3691, 1e-05
    %v3694 = vadd.f32 %v3692, 1e-05
    %v3695 = vrsqrt.pop %v3693
    %v3696 = vmul.f32 %v3695, %v3693
    %v3697 = vmul.f32 %v3696, %v3695
    %v3698 = vmul.f32 0.5, %v3697
    %v3699 = vsub.f32 1.5, %v3698
    %v3700 = vmul.f32 %v3695, %v3699
    %vm3701 = vweird.f32 %v3693
    %vm3702 = vweird.f32 %v3695
    %vm3703 = vmor %vm3701, %vm3702
    %v3704 = vsel %vm3703, %v3695, %v3700
    %v3705 = vrsqrt.pop %v3694
    %v3706 = vmul.f32 %v3705, %v3694
    %v3707 = vmul.f32 %v3706, %v3705
    %v3708 = vmul.f32 0.5, %v3707
    %v3709 = vsub.f32 1.5, %v3708
    %v3710 = vmul.f32 %v3705, %v3709
    %vm3711 = vweird.f32 %v3694
    %vm3712 = vweird.f32 %v3705
    %vm3713 = vmor %vm3711, %vm3712
    %v3714 = vsel %vm3713, %v3705, %v3710
    %v3715 = vmul.f32 %v3681, %v3704
    %v3716 = vmul.f32 %v3682, %v3714
    %v3717 = vperm.slane %v39, 2
    %v3718 = vmul.f32 %v3715, %v3717
    %v3719 = vmul.f32 %v3716, %v3717
    %v3720 = vperm.slane %v39, 3
    %v3721 = vadd.f32 %v3718, %v3720
    %v3722 = vadd.f32 %v3719, %v3720
    %s3723 = scalar_lea.vmem [#allocation2], 1024
    %v3724 = vld [vmem:[%s3723] sm:$0xff]
    %v3725 = vld [vmem:[%s3723 + $0x8] sm:$0xff]
    %v3726 = vld [vmem:[%s3723 + $0x10] sm:$0xff]
    %v3727 = vld [vmem:[%s3723 + $0x18] sm:$0xff]
    %v3728 = vperm.slane %v39, 4
    %v3730 = vsel %vm138, %v3721, 0
    %v3733 = vsel %vm138, %v3722, 0
    %3735 = vmatpush.msra.mxu0 0.0
    %3736 = vmatpush.msra.mxu0 0.0
    %3737 = vmatpush.msra.mxu0 0.0
    %3738 = vmatpush.msra.mxu0 0.0
    %3739 = vmatpush.msra.mxu0 0.0
    %3740 = vmatpush.msra.mxu0 0.0
    %3741 = vmatpush.msra.mxu0 0.0
    %3742 = vmatpush.msra.mxu0 0.0
    %3743 = vmatpush.msra.mxu0 0.0
    %3744 = vmatpush.msra.mxu0 0.0
    %3745 = vmatpush.msra.mxu0 0.0
    %3746 = vmatpush.msra.mxu0 0.0
    %3747 = vmatpush.msra.mxu0 %v3727
    %3748 = vmatpush.msra.mxu0 %v3726
    %3749 = vmatpush.msra.mxu0 %v3725
    %3750 = vmatpush.msra.mxu0 %v3724
    %3751 = vmatmul.f32.gmra.mxu0 %v3730
    %v3752 = vpop.f32.mrf.mxu0
    %v3753 = vadd.f32 %v3728, %v3752
    %3754 = vmatmul.f32.gmra.mxu0 %v3733
    %v3755 = vpop.f32.mrf.mxu0
    %v3756 = vadd.f32 %v3728, %v3755
    %3757 = vdwg.mxu0
    %3759 = vrot.lane.b32.xlu0 %v3753, 96
    %v3760 = vpop.permute.xlu0 %3759
    %v3761 = vsel %vm177, %v3753, 0
    %v3763 = vsel %vm177, %v3760, 0
    %3765 = vmatpush.xpose.msra.mxu0 0.0
    %3766 = vmatpush.xpose.msra.mxu0 0.0
    %3767 = vmatpush.xpose.msra.mxu0 0.0
    %3768 = vmatpush.xpose.msra.mxu0 0.0
    %3769 = vmatpush.xpose.msra.mxu0 0.0
    %3770 = vmatpush.xpose.msra.mxu0 0.0
    %3771 = vmatpush.xpose.msra.mxu0 0.0
    %3772 = vmatpush.xpose.msra.mxu0 0.0
    %3773 = vmatpush.xpose.msra.mxu0 0.0
    %3774 = vmatpush.xpose.msra.mxu0 0.0
    %3775 = vmatpush.xpose.msra.mxu0 0.0
    %3776 = vmatpush.xpose.msra.mxu0 0.0
    %3777 = vmatpush.xpose.msra.mxu0 0.0
    %3778 = vmatpush.xpose.msra.mxu0 0.0
    %3779 = vmatpush.xpose.msra.mxu0 0.0
    %3780 = vmatpush.xpose.msra.mxu0 %v3763
    %3781 = vmatmul.f32.gmra.mxu0 %v3761
    %v3782 = vpop.f32.mrf.mxu0
    %v3783 = vadd.f32 %v2015, %v3782
    %3784 = vdwg.mxu0
    %3786 = vrot.lane.b32.xlu0 %v3756, 96
    %v3787 = vpop.permute.xlu0 %3786
    %v3788 = vsel %vm177, %v3756, 0
    %v3790 = vsel %vm177, %v3787, 0
    %3792 = vmatpush.xpose.msra.mxu0 0.0
    %3793 = vmatpush.xpose.msra.mxu0 0.0
    %3794 = vmatpush.xpose.msra.mxu0 0.0
    %3795 = vmatpush.xpose.msra.mxu0 0.0
    %3796 = vmatpush.xpose.msra.mxu0 0.0
    %3797 = vmatpush.xpose.msra.mxu0 0.0
    %3798 = vmatpush.xpose.msra.mxu0 0.0
    %3799 = vmatpush.xpose.msra.mxu0 0.0
    %3800 = vmatpush.xpose.msra.mxu0 0.0
    %3801 = vmatpush.xpose.msra.mxu0 0.0
    %3802 = vmatpush.xpose.msra.mxu0 0.0
    %3803 = vmatpush.xpose.msra.mxu0 0.0
    %3804 = vmatpush.xpose.msra.mxu0 0.0
    %3805 = vmatpush.xpose.msra.mxu0 0.0
    %3806 = vmatpush.xpose.msra.mxu0 0.0
    %3807 = vmatpush.xpose.msra.mxu0 %v3790
    %3808 = vmatmul.f32.gmra.mxu0 %v3788
    %v3809 = vpop.f32.mrf.mxu0
    %v3810 = vadd.f32 %v2016, %v3809
    %3811 = vdwg.mxu0
    %v3812 = vsel %vm177, %v3783, -inf
    %3813 = vmax.xlane.f32.xlu0 %v3812
    %v3814 = vpop.xlane.xlu0 %3813
    %v3815 = vsel %vm177, %v3810, -inf
    %3816 = vmax.xlane.f32.xlu0 %v3815
    %v3817 = vpop.xlane.xlu0 %3816
    %v3818 = vsub.f32 %v3783, %v3814
    %v3819 = vsub.f32 %v3810, %v3817
    %v3820 = vmul.f32 %v3818, 1.442695
    %v3821 = vpow.pop %v3820
    %v3822 = vmul.f32 %v3819, 1.442695
    %v3823 = vpow.pop %v3822
    %v3824 = vsel %vm177, %v3821, 0.0
    %3825 = vadd.xlane.f32.xlu0 %v3824
    %v3826 = vpop.xlane.xlu0 %3825
    %v3827 = vsel %vm177, %v3823, 0.0
    %3828 = vadd.xlane.f32.xlu0 %v3827
    %v3829 = vpop.xlane.xlu0 %3828
    %v3830 = vrcp.pop %v3826
    %v3831 = vmul.f32 %v3826, %v3830
    %v3832 = vsub.f32 1.0, %v3831
    %v3833 = vmul.f32 %v3830, %v3832
    %v3834 = vadd.f32 %v3830, %v3833
    %vm3835 = vweird.f32 %v3826
    %vm3836 = vweird.f32 %v3830
    %vm3837 = vmor %vm3835, %vm3836
    %v3838 = vsel %vm3837, %v3830, %v3834
    %v3839 = vand.u32 2147483647, %v3826
    %vm3840 = vcmp.eq.f32.partialorder %v3839, 8.507059e+37
    %v3841 = vand.u32 %v3826, 2147483648
    %v3842 = vor.u32 1.1754944e-38, %v3841
    %v3843 = vsel %vm3840, %v3842, %v3838
    %v3844 = vmul.f32 %v3821, %v3843
    %v3845 = vrcp.pop %v3829
    %v3846 = vmul.f32 %v3829, %v3845
    %v3847 = vsub.f32 1.0, %v3846
    %v3848 = vmul.f32 %v3845, %v3847
    %v3849 = vadd.f32 %v3845, %v3848
    %vm3850 = vweird.f32 %v3829
    %vm3851 = vweird.f32 %v3845
    %vm3852 = vmor %vm3850, %vm3851
    %v3853 = vsel %vm3852, %v3845, %v3849
    %v3854 = vand.u32 2147483647, %v3829
    %vm3855 = vcmp.eq.f32.partialorder %v3854, 8.507059e+37
    %v3856 = vand.u32 %v3829, 2147483648
    %v3857 = vor.u32 1.1754944e-38, %v3856
    %v3858 = vsel %vm3855, %v3857, %v3853
    %v3859 = vmul.f32 %v3823, %v3858
    %3860 = vrot.lane.b32.xlu0 %v3753, 64
    %v3861 = vpop.permute.xlu0 %3860
    %v3864 = vsel %vm177, %v3844, 0
    %3866 = vmatpush.msra.mxu0 0.0
    %3867 = vmatpush.msra.mxu0 0.0
    %3868 = vmatpush.msra.mxu0 0.0
    %3869 = vmatpush.msra.mxu0 0.0
    %3870 = vmatpush.msra.mxu0 0.0
    %3871 = vmatpush.msra.mxu0 0.0
    %3872 = vmatpush.msra.mxu0 0.0
    %3873 = vmatpush.msra.mxu0 0.0
    %3874 = vmatpush.msra.mxu0 0.0
    %3875 = vmatpush.msra.mxu0 0.0
    %3876 = vmatpush.msra.mxu0 0.0
    %3877 = vmatpush.msra.mxu0 0.0
    %3878 = vmatpush.msra.mxu0 0.0
    %3879 = vmatpush.msra.mxu0 0.0
    %3880 = vmatpush.msra.mxu0 0.0
    %3881 = vmatpush.msra.mxu0 %v3861
    %3882 = vmatmul.f32.gmra.mxu0 %v3864
    %v3883 = vpop.f32.mrf.mxu0
    %v3884 = vadd.f32 0.0, %v3883
    %3885 = vdwg.mxu0
    %3886 = vrot.lane.b32.xlu0 %v3756, 64
    %v3887 = vpop.permute.xlu0 %3886
    %v3890 = vsel %vm177, %v3859, 0
    %3892 = vmatpush.msra.mxu0 0.0
    %3893 = vmatpush.msra.mxu0 0.0
    %3894 = vmatpush.msra.mxu0 0.0
    %3895 = vmatpush.msra.mxu0 0.0
    %3896 = vmatpush.msra.mxu0 0.0
    %3897 = vmatpush.msra.mxu0 0.0
    %3898 = vmatpush.msra.mxu0 0.0
    %3899 = vmatpush.msra.mxu0 0.0
    %3900 = vmatpush.msra.mxu0 0.0
    %3901 = vmatpush.msra.mxu0 0.0
    %3902 = vmatpush.msra.mxu0 0.0
    %3903 = vmatpush.msra.mxu0 0.0
    %3904 = vmatpush.msra.mxu0 0.0
    %3905 = vmatpush.msra.mxu0 0.0
    %3906 = vmatpush.msra.mxu0 0.0
    %3907 = vmatpush.msra.mxu0 %v3887
    %3908 = vmatmul.f32.gmra.mxu0 %v3890
    %v3909 = vpop.f32.mrf.mxu0
    %v3910 = vadd.f32 0.0, %v3909
    %3911 = vdwg.mxu0
    %3912 = vrot.lane.b32.xlu0 %v3753, 120
    %v3913 = vpop.permute.xlu0 %3912
    %3914 = vrot.lane.b32.xlu0 %v3753, 88
    %v3915 = vpop.permute.xlu0 %3914
    %v3916 = vsel %vm177, %v3913, 0
    %v3918 = vsel %vm177, %v3915, 0
    %3920 = vmatpush.xpose.msra.mxu0 0.0
    %3921 = vmatpush.xpose.msra.mxu0 0.0
    %3922 = vmatpush.xpose.msra.mxu0 0.0
    %3923 = vmatpush.xpose.msra.mxu0 0.0
    %3924 = vmatpush.xpose.msra.mxu0 0.0
    %3925 = vmatpush.xpose.msra.mxu0 0.0
    %3926 = vmatpush.xpose.msra.mxu0 0.0
    %3927 = vmatpush.xpose.msra.mxu0 0.0
    %3928 = vmatpush.xpose.msra.mxu0 0.0
    %3929 = vmatpush.xpose.msra.mxu0 0.0
    %3930 = vmatpush.xpose.msra.mxu0 0.0
    %3931 = vmatpush.xpose.msra.mxu0 0.0
    %3932 = vmatpush.xpose.msra.mxu0 0.0
    %3933 = vmatpush.xpose.msra.mxu0 0.0
    %3934 = vmatpush.xpose.msra.mxu0 0.0
    %3935 = vmatpush.xpose.msra.mxu0 %v3918
    %3936 = vmatmul.f32.gmra.mxu0 %v3916
    %v3937 = vpop.f32.mrf.mxu0
    %v3938 = vadd.f32 %v2015, %v3937
    %3939 = vdwg.mxu0
    %3940 = vrot.lane.b32.xlu0 %v3756, 120
    %v3941 = vpop.permute.xlu0 %3940
    %3942 = vrot.lane.b32.xlu0 %v3756, 88
    %v3943 = vpop.permute.xlu0 %3942
    %v3944 = vsel %vm177, %v3941, 0
    %v3946 = vsel %vm177, %v3943, 0
    %3948 = vmatpush.xpose.msra.mxu0 0.0
    %3949 = vmatpush.xpose.msra.mxu0 0.0
    %3950 = vmatpush.xpose.msra.mxu0 0.0
    %3951 = vmatpush.xpose.msra.mxu0 0.0
    %3952 = vmatpush.xpose.msra.mxu0 0.0
    %3953 = vmatpush.xpose.msra.mxu0 0.0
    %3954 = vmatpush.xpose.msra.mxu0 0.0
    %3955 = vmatpush.xpose.msra.mxu0 0.0
    %3956 = vmatpush.xpose.msra.mxu0 0.0
    %3957 = vmatpush.xpose.msra.mxu0 0.0
    %3958 = vmatpush.xpose.msra.mxu0 0.0
    %3959 = vmatpush.xpose.msra.mxu0 0.0
    %3960 = vmatpush.xpose.msra.mxu0 0.0
    %3961 = vmatpush.xpose.msra.mxu0 0.0
    %3962 = vmatpush.xpose.msra.mxu0 0.0
    %3963 = vmatpush.xpose.msra.mxu0 %v3946
    %3964 = vmatmul.f32.gmra.mxu0 %v3944
    %v3965 = vpop.f32.mrf.mxu0
    %v3966 = vadd.f32 %v2016, %v3965
    %3967 = vdwg.mxu0
    %v3968 = vsel %vm177, %v3938, -inf
    %3969 = vmax.xlane.f32.xlu0 %v3968
    %v3970 = vpop.xlane.xlu0 %3969
    %v3971 = vsel %vm177, %v3966, -inf
    %3972 = vmax.xlane.f32.xlu0 %v3971
    %v3973 = vpop.xlane.xlu0 %3972
    %v3974 = vsub.f32 %v3938, %v3970
    %v3975 = vsub.f32 %v3966, %v3973
    %v3976 = vmul.f32 %v3974, 1.442695
    %v3977 = vpow.pop %v3976
    %v3978 = vmul.f32 %v3975, 1.442695
    %v3979 = vpow.pop %v3978
    %v3980 = vsel %vm177, %v3977, 0.0
    %3981 = vadd.xlane.f32.xlu0 %v3980
    %v3982 = vpop.xlane.xlu0 %3981
    %v3983 = vsel %vm177, %v3979, 0.0
    %3984 = vadd.xlane.f32.xlu0 %v3983
    %v3985 = vpop.xlane.xlu0 %3984
    %v3986 = vrcp.pop %v3982
    %v3987 = vmul.f32 %v3982, %v3986
    %v3988 = vsub.f32 1.0, %v3987
    %v3989 = vmul.f32 %v3986, %v3988
    %v3990 = vadd.f32 %v3986, %v3989
    %vm3991 = vweird.f32 %v3982
    %vm3992 = vweird.f32 %v3986
    %vm3993 = vmor %vm3991, %vm3992
    %v3994 = vsel %vm3993, %v3986, %v3990
    %v3995 = vand.u32 2147483647, %v3982
    %vm3996 = vcmp.eq.f32.partialorder %v3995, 8.507059e+37
    %v3997 = vand.u32 %v3982, 2147483648
    %v3998 = vor.u32 1.1754944e-38, %v3997
    %v3999 = vsel %vm3996, %v3998, %v3994
    %v4000 = vmul.f32 %v3977, %v3999
    %v4001 = vrcp.pop %v3985
    %v4002 = vmul.f32 %v3985, %v4001
    %v4003 = vsub.f32 1.0, %v4002
    %v4004 = vmul.f32 %v4001, %v4003
    %v4005 = vadd.f32 %v4001, %v4004
    %vm4006 = vweird.f32 %v3985
    %vm4007 = vweird.f32 %v4001
    %vm4008 = vmor %vm4006, %vm4007
    %v4009 = vsel %vm4008, %v4001, %v4005
    %v4010 = vand.u32 2147483647, %v3985
    %vm4011 = vcmp.eq.f32.partialorder %v4010, 8.507059e+37
    %v4012 = vand.u32 %v3985, 2147483648
    %v4013 = vor.u32 1.1754944e-38, %v4012
    %v4014 = vsel %vm4011, %v4013, %v4009
    %v4015 = vmul.f32 %v3979, %v4014
    %4016 = vrot.lane.b32.xlu0 %v3753, 56
    %v4017 = vpop.permute.xlu0 %4016
    %v4020 = vsel %vm177, %v4000, 0
    %4022 = vmatpush.msra.mxu0 0.0
    %4023 = vmatpush.msra.mxu0 0.0
    %4024 = vmatpush.msra.mxu0 0.0
    %4025 = vmatpush.msra.mxu0 0.0
    %4026 = vmatpush.msra.mxu0 0.0
    %4027 = vmatpush.msra.mxu0 0.0
    %4028 = vmatpush.msra.mxu0 0.0
    %4029 = vmatpush.msra.mxu0 0.0
    %4030 = vmatpush.msra.mxu0 0.0
    %4031 = vmatpush.msra.mxu0 0.0
    %4032 = vmatpush.msra.mxu0 0.0
    %4033 = vmatpush.msra.mxu0 0.0
    %4034 = vmatpush.msra.mxu0 0.0
    %4035 = vmatpush.msra.mxu0 0.0
    %4036 = vmatpush.msra.mxu0 0.0
    %4037 = vmatpush.msra.mxu0 %v4017
    %4038 = vmatmul.f32.gmra.mxu0 %v4020
    %v4039 = vpop.f32.mrf.mxu0
    %v4040 = vadd.f32 0.0, %v4039
    %4041 = vdwg.mxu0
    %4042 = vrot.lane.b32.xlu0 %v3756, 56
    %v4043 = vpop.permute.xlu0 %4042
    %v4046 = vsel %vm177, %v4015, 0
    %4048 = vmatpush.msra.mxu0 0.0
    %4049 = vmatpush.msra.mxu0 0.0
    %4050 = vmatpush.msra.mxu0 0.0
    %4051 = vmatpush.msra.mxu0 0.0
    %4052 = vmatpush.msra.mxu0 0.0
    %4053 = vmatpush.msra.mxu0 0.0
    %4054 = vmatpush.msra.mxu0 0.0
    %4055 = vmatpush.msra.mxu0 0.0
    %4056 = vmatpush.msra.mxu0 0.0
    %4057 = vmatpush.msra.mxu0 0.0
    %4058 = vmatpush.msra.mxu0 0.0
    %4059 = vmatpush.msra.mxu0 0.0
    %4060 = vmatpush.msra.mxu0 0.0
    %4061 = vmatpush.msra.mxu0 0.0
    %4062 = vmatpush.msra.mxu0 0.0
    %4063 = vmatpush.msra.mxu0 %v4043
    %4064 = vmatmul.f32.gmra.mxu0 %v4046
    %v4065 = vpop.f32.mrf.mxu0
    %v4066 = vadd.f32 0.0, %v4065
    %4067 = vdwg.mxu0
    %4068 = vrot.lane.b32.xlu0 %v3753, 112
    %v4069 = vpop.permute.xlu0 %4068
    %4070 = vrot.lane.b32.xlu0 %v3753, 80
    %v4071 = vpop.permute.xlu0 %4070
    %v4072 = vsel %vm177, %v4069, 0
    %v4074 = vsel %vm177, %v4071, 0
    %4076 = vmatpush.xpose.msra.mxu0 0.0
    %4077 = vmatpush.xpose.msra.mxu0 0.0
    %4078 = vmatpush.xpose.msra.mxu0 0.0
    %4079 = vmatpush.xpose.msra.mxu0 0.0
    %4080 = vmatpush.xpose.msra.mxu0 0.0
    %4081 = vmatpush.xpose.msra.mxu0 0.0
    %4082 = vmatpush.xpose.msra.mxu0 0.0
    %4083 = vmatpush.xpose.msra.mxu0 0.0
    %4084 = vmatpush.xpose.msra.mxu0 0.0
    %4085 = vmatpush.xpose.msra.mxu0 0.0
    %4086 = vmatpush.xpose.msra.mxu0 0.0
    %4087 = vmatpush.xpose.msra.mxu0 0.0
    %4088 = vmatpush.xpose.msra.mxu0 0.0
    %4089 = vmatpush.xpose.msra.mxu0 0.0
    %4090 = vmatpush.xpose.msra.mxu0 0.0
    %4091 = vmatpush.xpose.msra.mxu0 %v4074
    %4092 = vmatmul.f32.gmra.mxu0 %v4072
    %v4093 = vpop.f32.mrf.mxu0
    %v4094 = vadd.f32 %v2015, %v4093
    %4095 = vdwg.mxu0
    %4096 = vrot.lane.b32.xlu0 %v3756, 112
    %v4097 = vpop.permute.xlu0 %4096
    %4098 = vrot.lane.b32.xlu0 %v3756, 80
    %v4099 = vpop.permute.xlu0 %4098
    %v4100 = vsel %vm177, %v4097, 0
    %v4102 = vsel %vm177, %v4099, 0
    %4104 = vmatpush.xpose.msra.mxu0 0.0
    %4105 = vmatpush.xpose.msra.mxu0 0.0
    %4106 = vmatpush.xpose.msra.mxu0 0.0
    %4107 = vmatpush.xpose.msra.mxu0 0.0
    %4108 = vmatpush.xpose.msra.mxu0 0.0
    %4109 = vmatpush.xpose.msra.mxu0 0.0
    %4110 = vmatpush.xpose.msra.mxu0 0.0
    %4111 = vmatpush.xpose.msra.mxu0 0.0
    %4112 = vmatpush.xpose.msra.mxu0 0.0
    %4113 = vmatpush.xpose.msra.mxu0 0.0
    %4114 = vmatpush.xpose.msra.mxu0 0.0
    %4115 = vmatpush.xpose.msra.mxu0 0.0
    %4116 = vmatpush.xpose.msra.mxu0 0.0
    %4117 = vmatpush.xpose.msra.mxu0 0.0
    %4118 = vmatpush.xpose.msra.mxu0 0.0
    %4119 = vmatpush.xpose.msra.mxu0 %v4102
    %4120 = vmatmul.f32.gmra.mxu0 %v4100
    %v4121 = vpop.f32.mrf.mxu0
    %v4122 = vadd.f32 %v2016, %v4121
    %4123 = vdwg.mxu0
    %v4124 = vsel %vm177, %v4094, -inf
    %4125 = vmax.xlane.f32.xlu0 %v4124
    %v4126 = vpop.xlane.xlu0 %4125
    %v4127 = vsel %vm177, %v4122, -inf
    %4128 = vmax.xlane.f32.xlu0 %v4127
    %v4129 = vpop.xlane.xlu0 %4128
    %v4130 = vsub.f32 %v4094, %v4126
    %v4131 = vsub.f32 %v4122, %v4129
    %v4132 = vmul.f32 %v4130, 1.442695
    %v4133 = vpow.pop %v4132
    %v4134 = vmul.f32 %v4131, 1.442695
    %v4135 = vpow.pop %v4134
    %v4136 = vsel %vm177, %v4133, 0.0
    %4137 = vadd.xlane.f32.xlu0 %v4136
    %v4138 = vpop.xlane.xlu0 %4137
    %v4139 = vsel %vm177, %v4135, 0.0
    %4140 = vadd.xlane.f32.xlu0 %v4139
    %v4141 = vpop.xlane.xlu0 %4140
    %v4142 = vrcp.pop %v4138
    %v4143 = vmul.f32 %v4138, %v4142
    %v4144 = vsub.f32 1.0, %v4143
    %v4145 = vmul.f32 %v4142, %v4144
    %v4146 = vadd.f32 %v4142, %v4145
    %vm4147 = vweird.f32 %v4138
    %vm4148 = vweird.f32 %v4142
    %vm4149 = vmor %vm4147, %vm4148
    %v4150 = vsel %vm4149, %v4142, %v4146
    %v4151 = vand.u32 2147483647, %v4138
    %vm4152 = vcmp.eq.f32.partialorder %v4151, 8.507059e+37
    %v4153 = vand.u32 %v4138, 2147483648
    %v4154 = vor.u32 1.1754944e-38, %v4153
    %v4155 = vsel %vm4152, %v4154, %v4150
    %v4156 = vmul.f32 %v4133, %v4155
    %v4157 = vrcp.pop %v4141
    %v4158 = vmul.f32 %v4141, %v4157
    %v4159 = vsub.f32 1.0, %v4158
    %v4160 = vmul.f32 %v4157, %v4159
    %v4161 = vadd.f32 %v4157, %v4160
    %vm4162 = vweird.f32 %v4141
    %vm4163 = vweird.f32 %v4157
    %vm4164 = vmor %vm4162, %vm4163
    %v4165 = vsel %vm4164, %v4157, %v4161
    %v4166 = vand.u32 2147483647, %v4141
    %vm4167 = vcmp.eq.f32.partialorder %v4166, 8.507059e+37
    %v4168 = vand.u32 %v4141, 2147483648
    %v4169 = vor.u32 1.1754944e-38, %v4168
    %v4170 = vsel %vm4167, %v4169, %v4165
    %v4171 = vmul.f32 %v4135, %v4170
    %4172 = vrot.lane.b32.xlu0 %v3753, 48
    %v4173 = vpop.permute.xlu0 %4172
    %v4176 = vsel %vm177, %v4156, 0
    %4178 = vmatpush.msra.mxu0 0.0
    %4179 = vmatpush.msra.mxu0 0.0
    %4180 = vmatpush.msra.mxu0 0.0
    %4181 = vmatpush.msra.mxu0 0.0
    %4182 = vmatpush.msra.mxu0 0.0
    %4183 = vmatpush.msra.mxu0 0.0
    %4184 = vmatpush.msra.mxu0 0.0
    %4185 = vmatpush.msra.mxu0 0.0
    %4186 = vmatpush.msra.mxu0 0.0
    %4187 = vmatpush.msra.mxu0 0.0
    %4188 = vmatpush.msra.mxu0 0.0
    %4189 = vmatpush.msra.mxu0 0.0
    %4190 = vmatpush.msra.mxu0 0.0
    %4191 = vmatpush.msra.mxu0 0.0
    %4192 = vmatpush.msra.mxu0 0.0
    %4193 = vmatpush.msra.mxu0 %v4173
    %4194 = vmatmul.f32.gmra.mxu0 %v4176
    %v4195 = vpop.f32.mrf.mxu0
    %v4196 = vadd.f32 0.0, %v4195
    %4197 = vdwg.mxu0
    %4198 = vrot.lane.b32.xlu0 %v3756, 48
    %v4199 = vpop.permute.xlu0 %4198
    %v4202 = vsel %vm177, %v4171, 0
    %4204 = vmatpush.msra.mxu0 0.0
    %4205 = vmatpush.msra.mxu0 0.0
    %4206 = vmatpush.msra.mxu0 0.0
    %4207 = vmatpush.msra.mxu0 0.0
    %4208 = vmatpush.msra.mxu0 0.0
    %4209 = vmatpush.msra.mxu0 0.0
    %4210 = vmatpush.msra.mxu0 0.0
    %4211 = vmatpush.msra.mxu0 0.0
    %4212 = vmatpush.msra.mxu0 0.0
    %4213 = vmatpush.msra.mxu0 0.0
    %4214 = vmatpush.msra.mxu0 0.0
    %4215 = vmatpush.msra.mxu0 0.0
    %4216 = vmatpush.msra.mxu0 0.0
    %4217 = vmatpush.msra.mxu0 0.0
    %4218 = vmatpush.msra.mxu0 0.0
    %4219 = vmatpush.msra.mxu0 %v4199
    %4220 = vmatmul.f32.gmra.mxu0 %v4202
    %v4221 = vpop.f32.mrf.mxu0
    %v4222 = vadd.f32 0.0, %v4221
    %4223 = vdwg.mxu0
    %4224 = vrot.lane.b32.xlu0 %v3753, 104
    %v4225 = vpop.permute.xlu0 %4224
    %4226 = vrot.lane.b32.xlu0 %v3753, 72
    %v4227 = vpop.permute.xlu0 %4226
    %v4228 = vsel %vm177, %v4225, 0
    %v4230 = vsel %vm177, %v4227, 0
    %4232 = vmatpush.xpose.msra.mxu0 0.0
    %4233 = vmatpush.xpose.msra.mxu0 0.0
    %4234 = vmatpush.xpose.msra.mxu0 0.0
    %4235 = vmatpush.xpose.msra.mxu0 0.0
    %4236 = vmatpush.xpose.msra.mxu0 0.0
    %4237 = vmatpush.xpose.msra.mxu0 0.0
    %4238 = vmatpush.xpose.msra.mxu0 0.0
    %4239 = vmatpush.xpose.msra.mxu0 0.0
    %4240 = vmatpush.xpose.msra.mxu0 0.0
    %4241 = vmatpush.xpose.msra.mxu0 0.0
    %4242 = vmatpush.xpose.msra.mxu0 0.0
    %4243 = vmatpush.xpose.msra.mxu0 0.0
    %4244 = vmatpush.xpose.msra.mxu0 0.0
    %4245 = vmatpush.xpose.msra.mxu0 0.0
    %4246 = vmatpush.xpose.msra.mxu0 0.0
    %4247 = vmatpush.xpose.msra.mxu0 %v4230
    %4248 = vmatmul.f32.gmra.mxu0 %v4228
    %v4249 = vpop.f32.mrf.mxu0
    %v4250 = vadd.f32 %v2015, %v4249
    %4251 = vdwg.mxu0
    %4252 = vrot.lane.b32.xlu0 %v3756, 104
    %v4253 = vpop.permute.xlu0 %4252
    %4254 = vrot.lane.b32.xlu0 %v3756, 72
    %v4255 = vpop.permute.xlu0 %4254
    %v4256 = vsel %vm177, %v4253, 0
    %v4258 = vsel %vm177, %v4255, 0
    %4260 = vmatpush.xpose.msra.mxu0 0.0
    %4261 = vmatpush.xpose.msra.mxu0 0.0
    %4262 = vmatpush.xpose.msra.mxu0 0.0
    %4263 = vmatpush.xpose.msra.mxu0 0.0
    %4264 = vmatpush.xpose.msra.mxu0 0.0
    %4265 = vmatpush.xpose.msra.mxu0 0.0
    %4266 = vmatpush.xpose.msra.mxu0 0.0
    %4267 = vmatpush.xpose.msra.mxu0 0.0
    %4268 = vmatpush.xpose.msra.mxu0 0.0
    %4269 = vmatpush.xpose.msra.mxu0 0.0
    %4270 = vmatpush.xpose.msra.mxu0 0.0
    %4271 = vmatpush.xpose.msra.mxu0 0.0
    %4272 = vmatpush.xpose.msra.mxu0 0.0
    %4273 = vmatpush.xpose.msra.mxu0 0.0
    %4274 = vmatpush.xpose.msra.mxu0 0.0
    %4275 = vmatpush.xpose.msra.mxu0 %v4258
    %4276 = vmatmul.f32.gmra.mxu0 %v4256
    %v4277 = vpop.f32.mrf.mxu0
    %v4278 = vadd.f32 %v2016, %v4277
    %4279 = vdwg.mxu0
    %v4280 = vsel %vm177, %v4250, -inf
    %4281 = vmax.xlane.f32.xlu0 %v4280
    %v4282 = vpop.xlane.xlu0 %4281
    %v4283 = vsel %vm177, %v4278, -inf
    %4284 = vmax.xlane.f32.xlu0 %v4283
    %v4285 = vpop.xlane.xlu0 %4284
    %v4286 = vsub.f32 %v4250, %v4282
    %v4287 = vsub.f32 %v4278, %v4285
    %v4288 = vmul.f32 %v4286, 1.442695
    %v4289 = vpow.pop %v4288
    %v4290 = vmul.f32 %v4287, 1.442695
    %v4291 = vpow.pop %v4290
    %v4292 = vsel %vm177, %v4289, 0.0
    %4293 = vadd.xlane.f32.xlu0 %v4292
    %v4294 = vpop.xlane.xlu0 %4293
    %v4295 = vsel %vm177, %v4291, 0.0
    %4296 = vadd.xlane.f32.xlu0 %v4295
    %v4297 = vpop.xlane.xlu0 %4296
    %v4298 = vrcp.pop %v4294
    %v4299 = vmul.f32 %v4294, %v4298
    %v4300 = vsub.f32 1.0, %v4299
    %v4301 = vmul.f32 %v4298, %v4300
    %v4302 = vadd.f32 %v4298, %v4301
    %vm4303 = vweird.f32 %v4294
    %vm4304 = vweird.f32 %v4298
    %vm4305 = vmor %vm4303, %vm4304
    %v4306 = vsel %vm4305, %v4298, %v4302
    %v4307 = vand.u32 2147483647, %v4294
    %vm4308 = vcmp.eq.f32.partialorder %v4307, 8.507059e+37
    %v4309 = vand.u32 %v4294, 2147483648
    %v4310 = vor.u32 1.1754944e-38, %v4309
    %v4311 = vsel %vm4308, %v4310, %v4306
    %v4312 = vmul.f32 %v4289, %v4311
    %v4313 = vrcp.pop %v4297
    %v4314 = vmul.f32 %v4297, %v4313
    %v4315 = vsub.f32 1.0, %v4314
    %v4316 = vmul.f32 %v4313, %v4315
    %v4317 = vadd.f32 %v4313, %v4316
    %vm4318 = vweird.f32 %v4297
    %vm4319 = vweird.f32 %v4313
    %vm4320 = vmor %vm4318, %vm4319
    %v4321 = vsel %vm4320, %v4313, %v4317
    %v4322 = vand.u32 2147483647, %v4297
    %vm4323 = vcmp.eq.f32.partialorder %v4322, 8.507059e+37
    %v4324 = vand.u32 %v4297, 2147483648
    %v4325 = vor.u32 1.1754944e-38, %v4324
    %v4326 = vsel %vm4323, %v4325, %v4321
    %v4327 = vmul.f32 %v4291, %v4326
    %4328 = vrot.lane.b32.xlu0 %v3753, 40
    %v4329 = vpop.permute.xlu0 %4328
    %v4332 = vsel %vm177, %v4312, 0
    %4334 = vmatpush.msra.mxu0 0.0
    %4335 = vmatpush.msra.mxu0 0.0
    %4336 = vmatpush.msra.mxu0 0.0
    %4337 = vmatpush.msra.mxu0 0.0
    %4338 = vmatpush.msra.mxu0 0.0
    %4339 = vmatpush.msra.mxu0 0.0
    %4340 = vmatpush.msra.mxu0 0.0
    %4341 = vmatpush.msra.mxu0 0.0
    %4342 = vmatpush.msra.mxu0 0.0
    %4343 = vmatpush.msra.mxu0 0.0
    %4344 = vmatpush.msra.mxu0 0.0
    %4345 = vmatpush.msra.mxu0 0.0
    %4346 = vmatpush.msra.mxu0 0.0
    %4347 = vmatpush.msra.mxu0 0.0
    %4348 = vmatpush.msra.mxu0 0.0
    %4349 = vmatpush.msra.mxu0 %v4329
    %4350 = vmatmul.f32.gmra.mxu0 %v4332
    %v4351 = vpop.f32.mrf.mxu0
    %v4352 = vadd.f32 0.0, %v4351
    %4353 = vdwg.mxu0
    %4354 = vrot.lane.b32.xlu0 %v3756, 40
    %v4355 = vpop.permute.xlu0 %4354
    %v4358 = vsel %vm177, %v4327, 0
    %4360 = vmatpush.msra.mxu0 0.0
    %4361 = vmatpush.msra.mxu0 0.0
    %4362 = vmatpush.msra.mxu0 0.0
    %4363 = vmatpush.msra.mxu0 0.0
    %4364 = vmatpush.msra.mxu0 0.0
    %4365 = vmatpush.msra.mxu0 0.0
    %4366 = vmatpush.msra.mxu0 0.0
    %4367 = vmatpush.msra.mxu0 0.0
    %4368 = vmatpush.msra.mxu0 0.0
    %4369 = vmatpush.msra.mxu0 0.0
    %4370 = vmatpush.msra.mxu0 0.0
    %4371 = vmatpush.msra.mxu0 0.0
    %4372 = vmatpush.msra.mxu0 0.0
    %4373 = vmatpush.msra.mxu0 0.0
    %4374 = vmatpush.msra.mxu0 0.0
    %4375 = vmatpush.msra.mxu0 %v4355
    %4376 = vmatmul.f32.gmra.mxu0 %v4358
    %v4377 = vpop.f32.mrf.mxu0
    %v4378 = vadd.f32 0.0, %v4377
    %4379 = vdwg.mxu0
    %4382 = vrot.lane.b32.xlu0 %v4040, 8
    %v4383 = vpop.permute.xlu0 %4382
    %4384 = vrot.lane.b32.xlu0 %v4066, 8
    %v4385 = vpop.permute.xlu0 %4384
    %4390 = vrot.lane.b32.xlu0 %v4196, 16
    %v4391 = vpop.permute.xlu0 %4390
    %4392 = vrot.lane.b32.xlu0 %v4222, 16
    %v4393 = vpop.permute.xlu0 %4392
    %4398 = vrot.lane.b32.xlu0 %v4352, 24
    %v4399 = vpop.permute.xlu0 %4398
    %4400 = vrot.lane.b32.xlu0 %v4378, 24
    %v4401 = vpop.permute.xlu0 %4400
    %v4404 = vsel %vm177, %v3884, %v4383
    %v4405 = vsel %vm177, %v3910, %v4385
    %v4406 = vsel %vm823, %v4404, %v4391
    %v4407 = vsel %vm823, %v4405, %v4393
    %v4408 = vsel %vm826, %v4406, %v4399
    %v4409 = vsel %vm826, %v4407, %v4401
    %v4410 = vmul.f32 %v4408, %v2675
    %v4411 = vmul.f32 %v4409, %v2682
    %s4412 = scalar_lea.vmem [#allocation2], 1088
    %v4413 = vld [vmem:[%s4412] sm:$0xff]
    %v4414 = vld [vmem:[%s4412 + $0x8] sm:$0xff]
    %v4415 = vld [vmem:[%s4412 + $0x10] sm:$0xff]
    %v4416 = vld [vmem:[%s4412 + $0x18] sm:$0xff]
    %v4417 = vperm.slane %v39, 5
    %v4419 = vsel %vm138, %v4410, 0
    %v4422 = vsel %vm138, %v4411, 0
    %4424 = vmatpush.msra.mxu0 0.0
    %4425 = vmatpush.msra.mxu0 0.0
    %4426 = vmatpush.msra.mxu0 0.0
    %4427 = vmatpush.msra.mxu0 0.0
    %4428 = vmatpush.msra.mxu0 0.0
    %4429 = vmatpush.msra.mxu0 0.0
    %4430 = vmatpush.msra.mxu0 0.0
    %4431 = vmatpush.msra.mxu0 0.0
    %4432 = vmatpush.msra.mxu0 0.0
    %4433 = vmatpush.msra.mxu0 0.0
    %4434 = vmatpush.msra.mxu0 0.0
    %4435 = vmatpush.msra.mxu0 0.0
    %4436 = vmatpush.msra.mxu0 %v4416
    %4437 = vmatpush.msra.mxu0 %v4415
    %4438 = vmatpush.msra.mxu0 %v4414
    %4439 = vmatpush.msra.mxu0 %v4413
    %4440 = vmatmul.f32.gmra.mxu0 %v4419
    %v4441 = vpop.f32.mrf.mxu0
    %v4442 = vadd.f32 %v4417, %v4441
    %4443 = vmatmul.f32.gmra.mxu0 %v4422
    %v4444 = vpop.f32.mrf.mxu0
    %v4445 = vadd.f32 %v4417, %v4444
    %4446 = vdwg.mxu0
    %v4447 = vadd.f32 %v3721, %v4442
    %v4448 = vadd.f32 %v3722, %v4445
    %v4449 = vsel %vm138, %v4447, 0.0
    %4450 = vadd.xlane.f32.xlu0 %v4449
    %v4451 = vpop.xlane.xlu0 %4450
    %v4452 = vsel %vm138, %v4448, 0.0
    %4453 = vadd.xlane.f32.xlu0 %v4452
    %v4454 = vpop.xlane.xlu0 %4453
    %v4455 = vmul.f32 %v4451, %v894
    %v4456 = vmul.f32 %v4454, %v894
    %v4457 = vsub.f32 %v4447, %v4455
    %v4458 = vsub.f32 %v4448, %v4456
    %v4459 = vmul.f32 %v4457, %v4457
    %v4460 = vmul.f32 %v4458, %v4458
    %v4461 = vsel %vm138, %v4459, 0.0
    %4462 = vadd.xlane.f32.xlu0 %v4461
    %v4463 = vpop.xlane.xlu0 %4462
    %v4464 = vsel %vm138, %v4460, 0.0
    %4465 = vadd.xlane.f32.xlu0 %v4464
    %v4466 = vpop.xlane.xlu0 %4465
    %v4467 = vmul.f32 %v4463, %v894
    %v4468 = vmul.f32 %v4466, %v894
    %v4469 = vadd.f32 %v4467, 1e-05
    %v4470 = vadd.f32 %v4468, 1e-05
    %v4471 = vrsqrt.pop %v4469
    %v4472 = vmul.f32 %v4471, %v4469
    %v4473 = vmul.f32 %v4472, %v4471
    %v4474 = vmul.f32 0.5, %v4473
    %v4475 = vsub.f32 1.5, %v4474
    %v4476 = vmul.f32 %v4471, %v4475
    %vm4477 = vweird.f32 %v4469
    %vm4478 = vweird.f32 %v4471
    %vm4479 = vmor %vm4477, %vm4478
    %v4480 = vsel %vm4479, %v4471, %v4476
    %v4481 = vrsqrt.pop %v4470
    %v4482 = vmul.f32 %v4481, %v4470
    %v4483 = vmul.f32 %v4482, %v4481
    %v4484 = vmul.f32 0.5, %v4483
    %v4485 = vsub.f32 1.5, %v4484
    %v4486 = vmul.f32 %v4481, %v4485
    %vm4487 = vweird.f32 %v4470
    %vm4488 = vweird.f32 %v4481
    %vm4489 = vmor %vm4487, %vm4488
    %v4490 = vsel %vm4489, %v4481, %v4486
    %v4491 = vmul.f32 %v4457, %v4480
    %v4492 = vmul.f32 %v4458, %v4490
    %v4493 = vperm.slane %v39, 6
    %v4494 = vmul.f32 %v4491, %v4493
    %v4495 = vmul.f32 %v4492, %v4493
    %v4496 = vperm.slane %v39, 7
    %v4497 = vadd.f32 %v4494, %v4496
    %v4498 = vadd.f32 %v4495, %v4496
    %s4499 = scalar_lea.vmem [#allocation2], 1152
    %v4500 = vld [vmem:[%s4499] sm:$0xff]
    %v4501 = vld [vmem:[%s4499 + $0x8] sm:$0xff]
    %v4502 = vld [vmem:[%s4499 + $0x10] sm:$0xff]
    %v4503 = vld [vmem:[%s4499 + $0x18] sm:$0xff]
    %v4504 = vperm.slane %v40, 0
    %v4506 = vsel %vm138, %v4497, 0
    %v4509 = vsel %vm138, %v4498, 0
    %4511 = vmatpush.msra.mxu0 0.0
    %4512 = vmatpush.msra.mxu0 0.0
    %4513 = vmatpush.msra.mxu0 0.0
    %4514 = vmatpush.msra.mxu0 0.0
    %4515 = vmatpush.msra.mxu0 0.0
    %4516 = vmatpush.msra.mxu0 0.0
    %4517 = vmatpush.msra.mxu0 0.0
    %4518 = vmatpush.msra.mxu0 0.0
    %4519 = vmatpush.msra.mxu0 0.0
    %4520 = vmatpush.msra.mxu0 0.0
    %4521 = vmatpush.msra.mxu0 0.0
    %4522 = vmatpush.msra.mxu0 0.0
    %4523 = vmatpush.msra.mxu0 %v4503
    %4524 = vmatpush.msra.mxu0 %v4502
    %4525 = vmatpush.msra.mxu0 %v4501
    %4526 = vmatpush.msra.mxu0 %v4500
    %4527 = vmatmul.f32.gmra.mxu0 %v4506
    %v4528 = vpop.f32.mrf.mxu0
    %v4529 = vadd.f32 %v4504, %v4528
    %4530 = vmatmul.f32.gmra.mxu0 %v4509
    %v4531 = vpop.f32.mrf.mxu0
    %v4532 = vadd.f32 %v4504, %v4531
    %4533 = vdwg.mxu0
    %4538 = vrot.lane.b32.xlu0 %v4500, 96
    %v4539 = vpop.permute.xlu0 %4538
    %4540 = vrot.lane.b32.xlu0 %v4501, 96
    %v4541 = vpop.permute.xlu0 %4540
    %4542 = vrot.lane.b32.xlu0 %v4502, 96
    %v4543 = vpop.permute.xlu0 %4542
    %4544 = vrot.lane.b32.xlu0 %v4503, 96
    %v4545 = vpop.permute.xlu0 %4544
    %4551 = vrot.lane.b32.xlu0 %v4504, 96
    %v4552 = vpop.permute.xlu0 %4551
    %4554 = vmatpush.msra.mxu0 0.0
    %4555 = vmatpush.msra.mxu0 0.0
    %4556 = vmatpush.msra.mxu0 0.0
    %4557 = vmatpush.msra.mxu0 0.0
    %4558 = vmatpush.msra.mxu0 0.0
    %4559 = vmatpush.msra.mxu0 0.0
    %4560 = vmatpush.msra.mxu0 0.0
    %4561 = vmatpush.msra.mxu0 0.0
    %4562 = vmatpush.msra.mxu0 0.0
    %4563 = vmatpush.msra.mxu0 0.0
    %4564 = vmatpush.msra.mxu0 0.0
    %4565 = vmatpush.msra.mxu0 0.0
    %4566 = vmatpush.msra.mxu0 %v4545
    %4567 = vmatpush.msra.mxu0 %v4543
    %4568 = vmatpush.msra.mxu0 %v4541
    %4569 = vmatpush.msra.mxu0 %v4539
    %4570 = vmatmul.f32.gmra.mxu0 %v2828
    %v4571 = vpop.f32.mrf.mxu0
    %v4572 = vadd.f32 %v4552, %v4571
    %4573 = vmatmul.f32.gmra.mxu0 %v2831
    %v4574 = vpop.f32.mrf.mxu0
    %v4575 = vadd.f32 %v4552, %v4574
    %4576 = vdwg.mxu0
    %v4578 = vsel %vm177, %v4529, 0
    %v4581 = vsel %vm177, %v4572, 0
    %4583 = vmatpush.xpose.msra.mxu0 0.0
    %4584 = vmatpush.xpose.msra.mxu0 0.0
    %4585 = vmatpush.xpose.msra.mxu0 0.0
    %4586 = vmatpush.xpose.msra.mxu0 0.0
    %4587 = vmatpush.xpose.msra.mxu0 0.0
    %4588 = vmatpush.xpose.msra.mxu0 0.0
    %4589 = vmatpush.xpose.msra.mxu0 0.0
    %4590 = vmatpush.xpose.msra.mxu0 0.0
    %4591 = vmatpush.xpose.msra.mxu0 0.0
    %4592 = vmatpush.xpose.msra.mxu0 0.0
    %4593 = vmatpush.xpose.msra.mxu0 0.0
    %4594 = vmatpush.xpose.msra.mxu0 0.0
    %4595 = vmatpush.xpose.msra.mxu0 0.0
    %4596 = vmatpush.xpose.msra.mxu0 0.0
    %4597 = vmatpush.xpose.msra.mxu0 0.0
    %4598 = vmatpush.xpose.msra.mxu0 %v4581
    %4599 = vmatmul.f32.gmra.mxu0 %v4578
    %v4600 = vpop.f32.mrf.mxu0
    %v4601 = vadd.f32 %v170, %v4600
    %4602 = vdwg.mxu0
    %v4604 = vsel %vm177, %v4532, 0
    %v4607 = vsel %vm177, %v4575, 0
    %4609 = vmatpush.xpose.msra.mxu0 0.0
    %4610 = vmatpush.xpose.msra.mxu0 0.0
    %4611 = vmatpush.xpose.msra.mxu0 0.0
    %4612 = vmatpush.xpose.msra.mxu0 0.0
    %4613 = vmatpush.xpose.msra.mxu0 0.0
    %4614 = vmatpush.xpose.msra.mxu0 0.0
    %4615 = vmatpush.xpose.msra.mxu0 0.0
    %4616 = vmatpush.xpose.msra.mxu0 0.0
    %4617 = vmatpush.xpose.msra.mxu0 0.0
    %4618 = vmatpush.xpose.msra.mxu0 0.0
    %4619 = vmatpush.xpose.msra.mxu0 0.0
    %4620 = vmatpush.xpose.msra.mxu0 0.0
    %4621 = vmatpush.xpose.msra.mxu0 0.0
    %4622 = vmatpush.xpose.msra.mxu0 0.0
    %4623 = vmatpush.xpose.msra.mxu0 0.0
    %4624 = vmatpush.xpose.msra.mxu0 %v4607
    %4625 = vmatmul.f32.gmra.mxu0 %v4604
    %v4626 = vpop.f32.mrf.mxu0
    %v4627 = vadd.f32 %v171, %v4626
    %4628 = vdwg.mxu0
    %v4629 = vsel %vm177, %v4601, -inf
    %4630 = vmax.xlane.f32.xlu0 %v4629
    %v4631 = vpop.xlane.xlu0 %4630
    %v4632 = vsel %vm177, %v4627, -inf
    %4633 = vmax.xlane.f32.xlu0 %v4632
    %v4634 = vpop.xlane.xlu0 %4633
    %v4635 = vsub.f32 %v4601, %v4631
    %v4636 = vsub.f32 %v4627, %v4634
    %v4637 = vmul.f32 %v4635, 1.442695
    %v4638 = vpow.pop %v4637
    %v4639 = vmul.f32 %v4636, 1.442695
    %v4640 = vpow.pop %v4639
    %v4641 = vsel %vm177, %v4638, 0.0
    %4642 = vadd.xlane.f32.xlu0 %v4641
    %v4643 = vpop.xlane.xlu0 %4642
    %v4644 = vsel %vm177, %v4640, 0.0
    %4645 = vadd.xlane.f32.xlu0 %v4644
    %v4646 = vpop.xlane.xlu0 %4645
    %v4647 = vrcp.pop %v4643
    %v4648 = vmul.f32 %v4643, %v4647
    %v4649 = vsub.f32 1.0, %v4648
    %v4650 = vmul.f32 %v4647, %v4649
    %v4651 = vadd.f32 %v4647, %v4650
    %vm4652 = vweird.f32 %v4643
    %vm4653 = vweird.f32 %v4647
    %vm4654 = vmor %vm4652, %vm4653
    %v4655 = vsel %vm4654, %v4647, %v4651
    %v4656 = vand.u32 2147483647, %v4643
    %vm4657 = vcmp.eq.f32.partialorder %v4656, 8.507059e+37
    %v4658 = vand.u32 %v4643, 2147483648
    %v4659 = vor.u32 1.1754944e-38, %v4658
    %v4660 = vsel %vm4657, %v4659, %v4655
    %v4661 = vmul.f32 %v4638, %v4660
    %v4662 = vrcp.pop %v4646
    %v4663 = vmul.f32 %v4646, %v4662
    %v4664 = vsub.f32 1.0, %v4663
    %v4665 = vmul.f32 %v4662, %v4664
    %v4666 = vadd.f32 %v4662, %v4665
    %vm4667 = vweird.f32 %v4646
    %vm4668 = vweird.f32 %v4662
    %vm4669 = vmor %vm4667, %vm4668
    %v4670 = vsel %vm4669, %v4662, %v4666
    %v4671 = vand.u32 2147483647, %v4646
    %vm4672 = vcmp.eq.f32.partialorder %v4671, 8.507059e+37
    %v4673 = vand.u32 %v4646, 2147483648
    %v4674 = vor.u32 1.1754944e-38, %v4673
    %v4675 = vsel %vm4672, %v4674, %v4670
    %v4676 = vmul.f32 %v4640, %v4675
    %4677 = vrot.lane.b32.xlu0 %v4572, 96
    %v4678 = vpop.permute.xlu0 %4677
    %v4681 = vsel %vm177, %v4661, 0
    %4683 = vmatpush.msra.mxu0 0.0
    %4684 = vmatpush.msra.mxu0 0.0
    %4685 = vmatpush.msra.mxu0 0.0
    %4686 = vmatpush.msra.mxu0 0.0
    %4687 = vmatpush.msra.mxu0 0.0
    %4688 = vmatpush.msra.mxu0 0.0
    %4689 = vmatpush.msra.mxu0 0.0
    %4690 = vmatpush.msra.mxu0 0.0
    %4691 = vmatpush.msra.mxu0 0.0
    %4692 = vmatpush.msra.mxu0 0.0
    %4693 = vmatpush.msra.mxu0 0.0
    %4694 = vmatpush.msra.mxu0 0.0
    %4695 = vmatpush.msra.mxu0 0.0
    %4696 = vmatpush.msra.mxu0 0.0
    %4697 = vmatpush.msra.mxu0 0.0
    %4698 = vmatpush.msra.mxu0 %v4678
    %4699 = vmatmul.f32.gmra.mxu0 %v4681
    %v4700 = vpop.f32.mrf.mxu0
    %v4701 = vadd.f32 0.0, %v4700
    %4702 = vdwg.mxu0
    %4703 = vrot.lane.b32.xlu0 %v4575, 96
    %v4704 = vpop.permute.xlu0 %4703
    %v4707 = vsel %vm177, %v4676, 0
    %4709 = vmatpush.msra.mxu0 0.0
    %4710 = vmatpush.msra.mxu0 0.0
    %4711 = vmatpush.msra.mxu0 0.0
    %4712 = vmatpush.msra.mxu0 0.0
    %4713 = vmatpush.msra.mxu0 0.0
    %4714 = vmatpush.msra.mxu0 0.0
    %4715 = vmatpush.msra.mxu0 0.0
    %4716 = vmatpush.msra.mxu0 0.0
    %4717 = vmatpush.msra.mxu0 0.0
    %4718 = vmatpush.msra.mxu0 0.0
    %4719 = vmatpush.msra.mxu0 0.0
    %4720 = vmatpush.msra.mxu0 0.0
    %4721 = vmatpush.msra.mxu0 0.0
    %4722 = vmatpush.msra.mxu0 0.0
    %4723 = vmatpush.msra.mxu0 0.0
    %4724 = vmatpush.msra.mxu0 %v4704
    %4725 = vmatmul.f32.gmra.mxu0 %v4707
    %v4726 = vpop.f32.mrf.mxu0
    %v4727 = vadd.f32 0.0, %v4726
    %4728 = vdwg.mxu0
    %4729 = vrot.lane.b32.xlu0 %v4529, 120
    %v4730 = vpop.permute.xlu0 %4729
    %4731 = vrot.lane.b32.xlu0 %v4572, 120
    %v4732 = vpop.permute.xlu0 %4731
    %v4733 = vsel %vm177, %v4730, 0
    %v4735 = vsel %vm177, %v4732, 0
    %4737 = vmatpush.xpose.msra.mxu0 0.0
    %4738 = vmatpush.xpose.msra.mxu0 0.0
    %4739 = vmatpush.xpose.msra.mxu0 0.0
    %4740 = vmatpush.xpose.msra.mxu0 0.0
    %4741 = vmatpush.xpose.msra.mxu0 0.0
    %4742 = vmatpush.xpose.msra.mxu0 0.0
    %4743 = vmatpush.xpose.msra.mxu0 0.0
    %4744 = vmatpush.xpose.msra.mxu0 0.0
    %4745 = vmatpush.xpose.msra.mxu0 0.0
    %4746 = vmatpush.xpose.msra.mxu0 0.0
    %4747 = vmatpush.xpose.msra.mxu0 0.0
    %4748 = vmatpush.xpose.msra.mxu0 0.0
    %4749 = vmatpush.xpose.msra.mxu0 0.0
    %4750 = vmatpush.xpose.msra.mxu0 0.0
    %4751 = vmatpush.xpose.msra.mxu0 0.0
    %4752 = vmatpush.xpose.msra.mxu0 %v4735
    %4753 = vmatmul.f32.gmra.mxu0 %v4733
    %v4754 = vpop.f32.mrf.mxu0
    %v4755 = vadd.f32 %v170, %v4754
    %4756 = vdwg.mxu0
    %4757 = vrot.lane.b32.xlu0 %v4532, 120
    %v4758 = vpop.permute.xlu0 %4757
    %4759 = vrot.lane.b32.xlu0 %v4575, 120
    %v4760 = vpop.permute.xlu0 %4759
    %v4761 = vsel %vm177, %v4758, 0
    %v4763 = vsel %vm177, %v4760, 0
    %4765 = vmatpush.xpose.msra.mxu0 0.0
    %4766 = vmatpush.xpose.msra.mxu0 0.0
    %4767 = vmatpush.xpose.msra.mxu0 0.0
    %4768 = vmatpush.xpose.msra.mxu0 0.0
    %4769 = vmatpush.xpose.msra.mxu0 0.0
    %4770 = vmatpush.xpose.msra.mxu0 0.0
    %4771 = vmatpush.xpose.msra.mxu0 0.0
    %4772 = vmatpush.xpose.msra.mxu0 0.0
    %4773 = vmatpush.xpose.msra.mxu0 0.0
    %4774 = vmatpush.xpose.msra.mxu0 0.0
    %4775 = vmatpush.xpose.msra.mxu0 0.0
    %4776 = vmatpush.xpose.msra.mxu0 0.0
    %4777 = vmatpush.xpose.msra.mxu0 0.0
    %4778 = vmatpush.xpose.msra.mxu0 0.0
    %4779 = vmatpush.xpose.msra.mxu0 0.0
    %4780 = vmatpush.xpose.msra.mxu0 %v4763
    %4781 = vmatmul.f32.gmra.mxu0 %v4761
    %v4782 = vpop.f32.mrf.mxu0
    %v4783 = vadd.f32 %v171, %v4782
    %4784 = vdwg.mxu0
    %v4785 = vsel %vm177, %v4755, -inf
    %4786 = vmax.xlane.f32.xlu0 %v4785
    %v4787 = vpop.xlane.xlu0 %4786
    %v4788 = vsel %vm177, %v4783, -inf
    %4789 = vmax.xlane.f32.xlu0 %v4788
    %v4790 = vpop.xlane.xlu0 %4789
    %v4791 = vsub.f32 %v4755, %v4787
    %v4792 = vsub.f32 %v4783, %v4790
    %v4793 = vmul.f32 %v4791, 1.442695
    %v4794 = vpow.pop %v4793
    %v4795 = vmul.f32 %v4792, 1.442695
    %v4796 = vpow.pop %v4795
    %v4797 = vsel %vm177, %v4794, 0.0
    %4798 = vadd.xlane.f32.xlu0 %v4797
    %v4799 = vpop.xlane.xlu0 %4798
    %v4800 = vsel %vm177, %v4796, 0.0
    %4801 = vadd.xlane.f32.xlu0 %v4800
    %v4802 = vpop.xlane.xlu0 %4801
    %v4803 = vrcp.pop %v4799
    %v4804 = vmul.f32 %v4799, %v4803
    %v4805 = vsub.f32 1.0, %v4804
    %v4806 = vmul.f32 %v4803, %v4805
    %v4807 = vadd.f32 %v4803, %v4806
    %vm4808 = vweird.f32 %v4799
    %vm4809 = vweird.f32 %v4803
    %vm4810 = vmor %vm4808, %vm4809
    %v4811 = vsel %vm4810, %v4803, %v4807
    %v4812 = vand.u32 2147483647, %v4799
    %vm4813 = vcmp.eq.f32.partialorder %v4812, 8.507059e+37
    %v4814 = vand.u32 %v4799, 2147483648
    %v4815 = vor.u32 1.1754944e-38, %v4814
    %v4816 = vsel %vm4813, %v4815, %v4811
    %v4817 = vmul.f32 %v4794, %v4816
    %v4818 = vrcp.pop %v4802
    %v4819 = vmul.f32 %v4802, %v4818
    %v4820 = vsub.f32 1.0, %v4819
    %v4821 = vmul.f32 %v4818, %v4820
    %v4822 = vadd.f32 %v4818, %v4821
    %vm4823 = vweird.f32 %v4802
    %vm4824 = vweird.f32 %v4818
    %vm4825 = vmor %vm4823, %vm4824
    %v4826 = vsel %vm4825, %v4818, %v4822
    %v4827 = vand.u32 2147483647, %v4802
    %vm4828 = vcmp.eq.f32.partialorder %v4827, 8.507059e+37
    %v4829 = vand.u32 %v4802, 2147483648
    %v4830 = vor.u32 1.1754944e-38, %v4829
    %v4831 = vsel %vm4828, %v4830, %v4826
    %v4832 = vmul.f32 %v4796, %v4831
    %4833 = vrot.lane.b32.xlu0 %v4572, 88
    %v4834 = vpop.permute.xlu0 %4833
    %v4837 = vsel %vm177, %v4817, 0
    %4839 = vmatpush.msra.mxu0 0.0
    %4840 = vmatpush.msra.mxu0 0.0
    %4841 = vmatpush.msra.mxu0 0.0
    %4842 = vmatpush.msra.mxu0 0.0
    %4843 = vmatpush.msra.mxu0 0.0
    %4844 = vmatpush.msra.mxu0 0.0
    %4845 = vmatpush.msra.mxu0 0.0
    %4846 = vmatpush.msra.mxu0 0.0
    %4847 = vmatpush.msra.mxu0 0.0
    %4848 = vmatpush.msra.mxu0 0.0
    %4849 = vmatpush.msra.mxu0 0.0
    %4850 = vmatpush.msra.mxu0 0.0
    %4851 = vmatpush.msra.mxu0 0.0
    %4852 = vmatpush.msra.mxu0 0.0
    %4853 = vmatpush.msra.mxu0 0.0
    %4854 = vmatpush.msra.mxu0 %v4834
    %4855 = vmatmul.f32.gmra.mxu0 %v4837
    %v4856 = vpop.f32.mrf.mxu0
    %v4857 = vadd.f32 0.0, %v4856
    %4858 = vdwg.mxu0
    %4859 = vrot.lane.b32.xlu0 %v4575, 88
    %v4860 = vpop.permute.xlu0 %4859
    %v4863 = vsel %vm177, %v4832, 0
    %4865 = vmatpush.msra.mxu0 0.0
    %4866 = vmatpush.msra.mxu0 0.0
    %4867 = vmatpush.msra.mxu0 0.0
    %4868 = vmatpush.msra.mxu0 0.0
    %4869 = vmatpush.msra.mxu0 0.0
    %4870 = vmatpush.msra.mxu0 0.0
    %4871 = vmatpush.msra.mxu0 0.0
    %4872 = vmatpush.msra.mxu0 0.0
    %4873 = vmatpush.msra.mxu0 0.0
    %4874 = vmatpush.msra.mxu0 0.0
    %4875 = vmatpush.msra.mxu0 0.0
    %4876 = vmatpush.msra.mxu0 0.0
    %4877 = vmatpush.msra.mxu0 0.0
    %4878 = vmatpush.msra.mxu0 0.0
    %4879 = vmatpush.msra.mxu0 0.0
    %4880 = vmatpush.msra.mxu0 %v4860
    %4881 = vmatmul.f32.gmra.mxu0 %v4863
    %v4882 = vpop.f32.mrf.mxu0
    %v4883 = vadd.f32 0.0, %v4882
    %4884 = vdwg.mxu0
    %4885 = vrot.lane.b32.xlu0 %v4529, 112
    %v4886 = vpop.permute.xlu0 %4885
    %4887 = vrot.lane.b32.xlu0 %v4572, 112
    %v4888 = vpop.permute.xlu0 %4887
    %v4889 = vsel %vm177, %v4886, 0
    %v4891 = vsel %vm177, %v4888, 0
    %4893 = vmatpush.xpose.msra.mxu0 0.0
    %4894 = vmatpush.xpose.msra.mxu0 0.0
    %4895 = vmatpush.xpose.msra.mxu0 0.0
    %4896 = vmatpush.xpose.msra.mxu0 0.0
    %4897 = vmatpush.xpose.msra.mxu0 0.0
    %4898 = vmatpush.xpose.msra.mxu0 0.0
    %4899 = vmatpush.xpose.msra.mxu0 0.0
    %4900 = vmatpush.xpose.msra.mxu0 0.0
    %4901 = vmatpush.xpose.msra.mxu0 0.0
    %4902 = vmatpush.xpose.msra.mxu0 0.0
    %4903 = vmatpush.xpose.msra.mxu0 0.0
    %4904 = vmatpush.xpose.msra.mxu0 0.0
    %4905 = vmatpush.xpose.msra.mxu0 0.0
    %4906 = vmatpush.xpose.msra.mxu0 0.0
    %4907 = vmatpush.xpose.msra.mxu0 0.0
    %4908 = vmatpush.xpose.msra.mxu0 %v4891
    %4909 = vmatmul.f32.gmra.mxu0 %v4889
    %v4910 = vpop.f32.mrf.mxu0
    %v4911 = vadd.f32 %v170, %v4910
    %4912 = vdwg.mxu0
    %4913 = vrot.lane.b32.xlu0 %v4532, 112
    %v4914 = vpop.permute.xlu0 %4913
    %4915 = vrot.lane.b32.xlu0 %v4575, 112
    %v4916 = vpop.permute.xlu0 %4915
    %v4917 = vsel %vm177, %v4914, 0
    %v4919 = vsel %vm177, %v4916, 0
    %4921 = vmatpush.xpose.msra.mxu0 0.0
    %4922 = vmatpush.xpose.msra.mxu0 0.0
    %4923 = vmatpush.xpose.msra.mxu0 0.0
    %4924 = vmatpush.xpose.msra.mxu0 0.0
    %4925 = vmatpush.xpose.msra.mxu0 0.0
    %4926 = vmatpush.xpose.msra.mxu0 0.0
    %4927 = vmatpush.xpose.msra.mxu0 0.0
    %4928 = vmatpush.xpose.msra.mxu0 0.0
    %4929 = vmatpush.xpose.msra.mxu0 0.0
    %4930 = vmatpush.xpose.msra.mxu0 0.0
    %4931 = vmatpush.xpose.msra.mxu0 0.0
    %4932 = vmatpush.xpose.msra.mxu0 0.0
    %4933 = vmatpush.xpose.msra.mxu0 0.0
    %4934 = vmatpush.xpose.msra.mxu0 0.0
    %4935 = vmatpush.xpose.msra.mxu0 0.0
    %4936 = vmatpush.xpose.msra.mxu0 %v4919
    %4937 = vmatmul.f32.gmra.mxu0 %v4917
    %v4938 = vpop.f32.mrf.mxu0
    %v4939 = vadd.f32 %v171, %v4938
    %4940 = vdwg.mxu0
    %v4941 = vsel %vm177, %v4911, -inf
    %4942 = vmax.xlane.f32.xlu0 %v4941
    %v4943 = vpop.xlane.xlu0 %4942
    %v4944 = vsel %vm177, %v4939, -inf
    %4945 = vmax.xlane.f32.xlu0 %v4944
    %v4946 = vpop.xlane.xlu0 %4945
    %v4947 = vsub.f32 %v4911, %v4943
    %v4948 = vsub.f32 %v4939, %v4946
    %v4949 = vmul.f32 %v4947, 1.442695
    %v4950 = vpow.pop %v4949
    %v4951 = vmul.f32 %v4948, 1.442695
    %v4952 = vpow.pop %v4951
    %v4953 = vsel %vm177, %v4950, 0.0
    %4954 = vadd.xlane.f32.xlu0 %v4953
    %v4955 = vpop.xlane.xlu0 %4954
    %v4956 = vsel %vm177, %v4952, 0.0
    %4957 = vadd.xlane.f32.xlu0 %v4956
    %v4958 = vpop.xlane.xlu0 %4957
    %v4959 = vrcp.pop %v4955
    %v4960 = vmul.f32 %v4955, %v4959
    %v4961 = vsub.f32 1.0, %v4960
    %v4962 = vmul.f32 %v4959, %v4961
    %v4963 = vadd.f32 %v4959, %v4962
    %vm4964 = vweird.f32 %v4955
    %vm4965 = vweird.f32 %v4959
    %vm4966 = vmor %vm4964, %vm4965
    %v4967 = vsel %vm4966, %v4959, %v4963
    %v4968 = vand.u32 2147483647, %v4955
    %vm4969 = vcmp.eq.f32.partialorder %v4968, 8.507059e+37
    %v4970 = vand.u32 %v4955, 2147483648
    %v4971 = vor.u32 1.1754944e-38, %v4970
    %v4972 = vsel %vm4969, %v4971, %v4967
    %v4973 = vmul.f32 %v4950, %v4972
    %v4974 = vrcp.pop %v4958
    %v4975 = vmul.f32 %v4958, %v4974
    %v4976 = vsub.f32 1.0, %v4975
    %v4977 = vmul.f32 %v4974, %v4976
    %v4978 = vadd.f32 %v4974, %v4977
    %vm4979 = vweird.f32 %v4958
    %vm4980 = vweird.f32 %v4974
    %vm4981 = vmor %vm4979, %vm4980
    %v4982 = vsel %vm4981, %v4974, %v4978
    %v4983 = vand.u32 2147483647, %v4958
    %vm4984 = vcmp.eq.f32.partialorder %v4983, 8.507059e+37
    %v4985 = vand.u32 %v4958, 2147483648
    %v4986 = vor.u32 1.1754944e-38, %v4985
    %v4987 = vsel %vm4984, %v4986, %v4982
    %v4988 = vmul.f32 %v4952, %v4987
    %4989 = vrot.lane.b32.xlu0 %v4572, 80
    %v4990 = vpop.permute.xlu0 %4989
    %v4993 = vsel %vm177, %v4973, 0
    %4995 = vmatpush.msra.mxu0 0.0
    %4996 = vmatpush.msra.mxu0 0.0
    %4997 = vmatpush.msra.mxu0 0.0
    %4998 = vmatpush.msra.mxu0 0.0
    %4999 = vmatpush.msra.mxu0 0.0
    %5000 = vmatpush.msra.mxu0 0.0
    %5001 = vmatpush.msra.mxu0 0.0
    %5002 = vmatpush.msra.mxu0 0.0
    %5003 = vmatpush.msra.mxu0 0.0
    %5004 = vmatpush.msra.mxu0 0.0
    %5005 = vmatpush.msra.mxu0 0.0
    %5006 = vmatpush.msra.mxu0 0.0
    %5007 = vmatpush.msra.mxu0 0.0
    %5008 = vmatpush.msra.mxu0 0.0
    %5009 = vmatpush.msra.mxu0 0.0
    %5010 = vmatpush.msra.mxu0 %v4990
    %5011 = vmatmul.f32.gmra.mxu0 %v4993
    %v5012 = vpop.f32.mrf.mxu0
    %v5013 = vadd.f32 0.0, %v5012
    %5014 = vdwg.mxu0
    %5015 = vrot.lane.b32.xlu0 %v4575, 80
    %v5016 = vpop.permute.xlu0 %5015
    %v5019 = vsel %vm177, %v4988, 0
    %5021 = vmatpush.msra.mxu0 0.0
    %5022 = vmatpush.msra.mxu0 0.0
    %5023 = vmatpush.msra.mxu0 0.0
    %5024 = vmatpush.msra.mxu0 0.0
    %5025 = vmatpush.msra.mxu0 0.0
    %5026 = vmatpush.msra.mxu0 0.0
    %5027 = vmatpush.msra.mxu0 0.0
    %5028 = vmatpush.msra.mxu0 0.0
    %5029 = vmatpush.msra.mxu0 0.0
    %5030 = vmatpush.msra.mxu0 0.0
    %5031 = vmatpush.msra.mxu0 0.0
    %5032 = vmatpush.msra.mxu0 0.0
    %5033 = vmatpush.msra.mxu0 0.0
    %5034 = vmatpush.msra.mxu0 0.0
    %5035 = vmatpush.msra.mxu0 0.0
    %5036 = vmatpush.msra.mxu0 %v5016
    %5037 = vmatmul.f32.gmra.mxu0 %v5019
    %v5038 = vpop.f32.mrf.mxu0
    %v5039 = vadd.f32 0.0, %v5038
    %5040 = vdwg.mxu0
    %5041 = vrot.lane.b32.xlu0 %v4529, 104
    %v5042 = vpop.permute.xlu0 %5041
    %5043 = vrot.lane.b32.xlu0 %v4572, 104
    %v5044 = vpop.permute.xlu0 %5043
    %v5045 = vsel %vm177, %v5042, 0
    %v5047 = vsel %vm177, %v5044, 0
    %5049 = vmatpush.xpose.msra.mxu0 0.0
    %5050 = vmatpush.xpose.msra.mxu0 0.0
    %5051 = vmatpush.xpose.msra.mxu0 0.0
    %5052 = vmatpush.xpose.msra.mxu0 0.0
    %5053 = vmatpush.xpose.msra.mxu0 0.0
    %5054 = vmatpush.xpose.msra.mxu0 0.0
    %5055 = vmatpush.xpose.msra.mxu0 0.0
    %5056 = vmatpush.xpose.msra.mxu0 0.0
    %5057 = vmatpush.xpose.msra.mxu0 0.0
    %5058 = vmatpush.xpose.msra.mxu0 0.0
    %5059 = vmatpush.xpose.msra.mxu0 0.0
    %5060 = vmatpush.xpose.msra.mxu0 0.0
    %5061 = vmatpush.xpose.msra.mxu0 0.0
    %5062 = vmatpush.xpose.msra.mxu0 0.0
    %5063 = vmatpush.xpose.msra.mxu0 0.0
    %5064 = vmatpush.xpose.msra.mxu0 %v5047
    %5065 = vmatmul.f32.gmra.mxu0 %v5045
    %v5066 = vpop.f32.mrf.mxu0
    %v5067 = vadd.f32 %v170, %v5066
    %5068 = vdwg.mxu0
    %5069 = vrot.lane.b32.xlu0 %v4532, 104
    %v5070 = vpop.permute.xlu0 %5069
    %5071 = vrot.lane.b32.xlu0 %v4575, 104
    %v5072 = vpop.permute.xlu0 %5071
    %v5073 = vsel %vm177, %v5070, 0
    %v5075 = vsel %vm177, %v5072, 0
    %5077 = vmatpush.xpose.msra.mxu0 0.0
    %5078 = vmatpush.xpose.msra.mxu0 0.0
    %5079 = vmatpush.xpose.msra.mxu0 0.0
    %5080 = vmatpush.xpose.msra.mxu0 0.0
    %5081 = vmatpush.xpose.msra.mxu0 0.0
    %5082 = vmatpush.xpose.msra.mxu0 0.0
    %5083 = vmatpush.xpose.msra.mxu0 0.0
    %5084 = vmatpush.xpose.msra.mxu0 0.0
    %5085 = vmatpush.xpose.msra.mxu0 0.0
    %5086 = vmatpush.xpose.msra.mxu0 0.0
    %5087 = vmatpush.xpose.msra.mxu0 0.0
    %5088 = vmatpush.xpose.msra.mxu0 0.0
    %5089 = vmatpush.xpose.msra.mxu0 0.0
    %5090 = vmatpush.xpose.msra.mxu0 0.0
    %5091 = vmatpush.xpose.msra.mxu0 0.0
    %5092 = vmatpush.xpose.msra.mxu0 %v5075
    %5093 = vmatmul.f32.gmra.mxu0 %v5073
    %v5094 = vpop.f32.mrf.mxu0
    %v5095 = vadd.f32 %v171, %v5094
    %5096 = vdwg.mxu0
    %v5097 = vsel %vm177, %v5067, -inf
    %5098 = vmax.xlane.f32.xlu0 %v5097
    %v5099 = vpop.xlane.xlu0 %5098
    %v5100 = vsel %vm177, %v5095, -inf
    %5101 = vmax.xlane.f32.xlu0 %v5100
    %v5102 = vpop.xlane.xlu0 %5101
    %v5103 = vsub.f32 %v5067, %v5099
    %v5104 = vsub.f32 %v5095, %v5102
    %v5105 = vmul.f32 %v5103, 1.442695
    %v5106 = vpow.pop %v5105
    %v5107 = vmul.f32 %v5104, 1.442695
    %v5108 = vpow.pop %v5107
    %v5109 = vsel %vm177, %v5106, 0.0
    %5110 = vadd.xlane.f32.xlu0 %v5109
    %v5111 = vpop.xlane.xlu0 %5110
    %v5112 = vsel %vm177, %v5108, 0.0
    %5113 = vadd.xlane.f32.xlu0 %v5112
    %v5114 = vpop.xlane.xlu0 %5113
    %v5115 = vrcp.pop %v5111
    %v5116 = vmul.f32 %v5111, %v5115
    %v5117 = vsub.f32 1.0, %v5116
    %v5118 = vmul.f32 %v5115, %v5117
    %v5119 = vadd.f32 %v5115, %v5118
    %vm5120 = vweird.f32 %v5111
    %vm5121 = vweird.f32 %v5115
    %vm5122 = vmor %vm5120, %vm5121
    %v5123 = vsel %vm5122, %v5115, %v5119
    %v5124 = vand.u32 2147483647, %v5111
    %vm5125 = vcmp.eq.f32.partialorder %v5124, 8.507059e+37
    %v5126 = vand.u32 %v5111, 2147483648
    %v5127 = vor.u32 1.1754944e-38, %v5126
    %v5128 = vsel %vm5125, %v5127, %v5123
    %v5129 = vmul.f32 %v5106, %v5128
    %v5130 = vrcp.pop %v5114
    %v5131 = vmul.f32 %v5114, %v5130
    %v5132 = vsub.f32 1.0, %v5131
    %v5133 = vmul.f32 %v5130, %v5132
    %v5134 = vadd.f32 %v5130, %v5133
    %vm5135 = vweird.f32 %v5114
    %vm5136 = vweird.f32 %v5130
    %vm5137 = vmor %vm5135, %vm5136
    %v5138 = vsel %vm5137, %v5130, %v5134
    %v5139 = vand.u32 2147483647, %v5114
    %vm5140 = vcmp.eq.f32.partialorder %v5139, 8.507059e+37
    %v5141 = vand.u32 %v5114, 2147483648
    %v5142 = vor.u32 1.1754944e-38, %v5141
    %v5143 = vsel %vm5140, %v5142, %v5138
    %v5144 = vmul.f32 %v5108, %v5143
    %5145 = vrot.lane.b32.xlu0 %v4572, 72
    %v5146 = vpop.permute.xlu0 %5145
    %v5149 = vsel %vm177, %v5129, 0
    %5151 = vmatpush.msra.mxu0 0.0
    %5152 = vmatpush.msra.mxu0 0.0
    %5153 = vmatpush.msra.mxu0 0.0
    %5154 = vmatpush.msra.mxu0 0.0
    %5155 = vmatpush.msra.mxu0 0.0
    %5156 = vmatpush.msra.mxu0 0.0
    %5157 = vmatpush.msra.mxu0 0.0
    %5158 = vmatpush.msra.mxu0 0.0
    %5159 = vmatpush.msra.mxu0 0.0
    %5160 = vmatpush.msra.mxu0 0.0
    %5161 = vmatpush.msra.mxu0 0.0
    %5162 = vmatpush.msra.mxu0 0.0
    %5163 = vmatpush.msra.mxu0 0.0
    %5164 = vmatpush.msra.mxu0 0.0
    %5165 = vmatpush.msra.mxu0 0.0
    %5166 = vmatpush.msra.mxu0 %v5146
    %5167 = vmatmul.f32.gmra.mxu0 %v5149
    %v5168 = vpop.f32.mrf.mxu0
    %v5169 = vadd.f32 0.0, %v5168
    %5170 = vdwg.mxu0
    %5171 = vrot.lane.b32.xlu0 %v4575, 72
    %v5172 = vpop.permute.xlu0 %5171
    %v5175 = vsel %vm177, %v5144, 0
    %5177 = vmatpush.msra.mxu0 0.0
    %5178 = vmatpush.msra.mxu0 0.0
    %5179 = vmatpush.msra.mxu0 0.0
    %5180 = vmatpush.msra.mxu0 0.0
    %5181 = vmatpush.msra.mxu0 0.0
    %5182 = vmatpush.msra.mxu0 0.0
    %5183 = vmatpush.msra.mxu0 0.0
    %5184 = vmatpush.msra.mxu0 0.0
    %5185 = vmatpush.msra.mxu0 0.0
    %5186 = vmatpush.msra.mxu0 0.0
    %5187 = vmatpush.msra.mxu0 0.0
    %5188 = vmatpush.msra.mxu0 0.0
    %5189 = vmatpush.msra.mxu0 0.0
    %5190 = vmatpush.msra.mxu0 0.0
    %5191 = vmatpush.msra.mxu0 0.0
    %5192 = vmatpush.msra.mxu0 %v5172
    %5193 = vmatmul.f32.gmra.mxu0 %v5175
    %v5194 = vpop.f32.mrf.mxu0
    %v5195 = vadd.f32 0.0, %v5194
    %5196 = vdwg.mxu0
    %5199 = vrot.lane.b32.xlu0 %v4857, 8
    %v5200 = vpop.permute.xlu0 %5199
    %5201 = vrot.lane.b32.xlu0 %v4883, 8
    %v5202 = vpop.permute.xlu0 %5201
    %5207 = vrot.lane.b32.xlu0 %v5013, 16
    %v5208 = vpop.permute.xlu0 %5207
    %5209 = vrot.lane.b32.xlu0 %v5039, 16
    %v5210 = vpop.permute.xlu0 %5209
    %5215 = vrot.lane.b32.xlu0 %v5169, 24
    %v5216 = vpop.permute.xlu0 %5215
    %5217 = vrot.lane.b32.xlu0 %v5195, 24
    %v5218 = vpop.permute.xlu0 %5217
    %v5221 = vsel %vm177, %v4701, %v5200
    %v5222 = vsel %vm177, %v4727, %v5202
    %v5223 = vsel %vm823, %v5221, %v5208
    %v5224 = vsel %vm823, %v5222, %v5210
    %v5225 = vsel %vm826, %v5223, %v5216
    %v5226 = vsel %vm826, %v5224, %v5218
    %v5227 = vmul.f32 %v5225, %v2675
    %v5228 = vmul.f32 %v5226, %v2682
    %s5229 = scalar_lea.vmem [#allocation2], 1216
    %v5230 = vld [vmem:[%s5229] sm:$0xff]
    %v5231 = vld [vmem:[%s5229 + $0x8] sm:$0xff]
    %v5232 = vld [vmem:[%s5229 + $0x10] sm:$0xff]
    %v5233 = vld [vmem:[%s5229 + $0x18] sm:$0xff]
    %v5234 = vperm.slane %v40, 1
    %v5236 = vsel %vm138, %v5227, 0
    %v5239 = vsel %vm138, %v5228, 0
    %5241 = vmatpush.msra.mxu0 0.0
    %5242 = vmatpush.msra.mxu0 0.0
    %5243 = vmatpush.msra.mxu0 0.0
    %5244 = vmatpush.msra.mxu0 0.0
    %5245 = vmatpush.msra.mxu0 0.0
    %5246 = vmatpush.msra.mxu0 0.0
    %5247 = vmatpush.msra.mxu0 0.0
    %5248 = vmatpush.msra.mxu0 0.0
    %5249 = vmatpush.msra.mxu0 0.0
    %5250 = vmatpush.msra.mxu0 0.0
    %5251 = vmatpush.msra.mxu0 0.0
    %5252 = vmatpush.msra.mxu0 0.0
    %5253 = vmatpush.msra.mxu0 %v5233
    %5254 = vmatpush.msra.mxu0 %v5232
    %5255 = vmatpush.msra.mxu0 %v5231
    %5256 = vmatpush.msra.mxu0 %v5230
    %5257 = vmatmul.f32.gmra.mxu0 %v5236
    %v5258 = vpop.f32.mrf.mxu0
    %v5259 = vadd.f32 %v5234, %v5258
    %5260 = vmatmul.f32.gmra.mxu0 %v5239
    %v5261 = vpop.f32.mrf.mxu0
    %v5262 = vadd.f32 %v5234, %v5261
    %5263 = vdwg.mxu0
    %v5264 = vadd.f32 %v4497, %v5259
    %v5265 = vadd.f32 %v4498, %v5262
    %v5266 = vsel %vm138, %v5264, 0.0
    %5267 = vadd.xlane.f32.xlu0 %v5266
    %v5268 = vpop.xlane.xlu0 %5267
    %v5269 = vsel %vm138, %v5265, 0.0
    %5270 = vadd.xlane.f32.xlu0 %v5269
    %v5271 = vpop.xlane.xlu0 %5270
    %v5272 = vmul.f32 %v5268, %v894
    %v5273 = vmul.f32 %v5271, %v894
    %v5274 = vsub.f32 %v5264, %v5272
    %v5275 = vsub.f32 %v5265, %v5273
    %v5276 = vmul.f32 %v5274, %v5274
    %v5277 = vmul.f32 %v5275, %v5275
    %v5278 = vsel %vm138, %v5276, 0.0
    %5279 = vadd.xlane.f32.xlu0 %v5278
    %v5280 = vpop.xlane.xlu0 %5279
    %v5281 = vsel %vm138, %v5277, 0.0
    %5282 = vadd.xlane.f32.xlu0 %v5281
    %v5283 = vpop.xlane.xlu0 %5282
    %v5284 = vmul.f32 %v5280, %v894
    %v5285 = vmul.f32 %v5283, %v894
    %v5286 = vadd.f32 %v5284, 1e-05
    %v5287 = vadd.f32 %v5285, 1e-05
    %v5288 = vrsqrt.pop %v5286
    %v5289 = vmul.f32 %v5288, %v5286
    %v5290 = vmul.f32 %v5289, %v5288
    %v5291 = vmul.f32 0.5, %v5290
    %v5292 = vsub.f32 1.5, %v5291
    %v5293 = vmul.f32 %v5288, %v5292
    %vm5294 = vweird.f32 %v5286
    %vm5295 = vweird.f32 %v5288
    %vm5296 = vmor %vm5294, %vm5295
    %v5297 = vsel %vm5296, %v5288, %v5293
    %v5298 = vrsqrt.pop %v5287
    %v5299 = vmul.f32 %v5298, %v5287
    %v5300 = vmul.f32 %v5299, %v5298
    %v5301 = vmul.f32 0.5, %v5300
    %v5302 = vsub.f32 1.5, %v5301
    %v5303 = vmul.f32 %v5298, %v5302
    %vm5304 = vweird.f32 %v5287
    %vm5305 = vweird.f32 %v5298
    %vm5306 = vmor %vm5304, %vm5305
    %v5307 = vsel %vm5306, %v5298, %v5303
    %v5308 = vmul.f32 %v5274, %v5297
    %v5309 = vmul.f32 %v5275, %v5307
    %v5310 = vperm.slane %v40, 2
    %v5311 = vmul.f32 %v5308, %v5310
    %v5312 = vmul.f32 %v5309, %v5310
    %v5313 = vperm.slane %v40, 3
    %v5314 = vadd.f32 %v5311, %v5313
    %v5315 = vadd.f32 %v5312, %v5313
    %s5316 = scalar_lea.vmem [#allocation2], 1280
    %v5317 = vld [vmem:[%s5316] sm:$0xff]
    %v5318 = vld [vmem:[%s5316 + $0x8] sm:$0xff]
    %v5319 = vld [vmem:[%s5316 + $0x10] sm:$0xff]
    %v5320 = vld [vmem:[%s5316 + $0x18] sm:$0xff]
    %v5321 = vperm.slane %v40, 4
    %v5323 = vsel %vm138, %v5314, 0
    %v5326 = vsel %vm138, %v5315, 0
    %5328 = vmatpush.msra.mxu0 0.0
    %5329 = vmatpush.msra.mxu0 0.0
    %5330 = vmatpush.msra.mxu0 0.0
    %5331 = vmatpush.msra.mxu0 0.0
    %5332 = vmatpush.msra.mxu0 0.0
    %5333 = vmatpush.msra.mxu0 0.0
    %5334 = vmatpush.msra.mxu0 0.0
    %5335 = vmatpush.msra.mxu0 0.0
    %5336 = vmatpush.msra.mxu0 0.0
    %5337 = vmatpush.msra.mxu0 0.0
    %5338 = vmatpush.msra.mxu0 0.0
    %5339 = vmatpush.msra.mxu0 0.0
    %5340 = vmatpush.msra.mxu0 %v5320
    %5341 = vmatpush.msra.mxu0 %v5319
    %5342 = vmatpush.msra.mxu0 %v5318
    %5343 = vmatpush.msra.mxu0 %v5317
    %5344 = vmatmul.f32.gmra.mxu0 %v5323
    %v5345 = vpop.f32.mrf.mxu0
    %v5346 = vadd.f32 %v5321, %v5345
    %5347 = vmatmul.f32.gmra.mxu0 %v5326
    %v5348 = vpop.f32.mrf.mxu0
    %v5349 = vadd.f32 %v5321, %v5348
    %5350 = vdwg.mxu0
    %v5351 = vmax.f32 %v5346, 0.0
    %v5352 = vmax.f32 %v5349, 0.0
    %s5353 = scalar_lea.vmem [#allocation2], 1344
    %v5354 = vld [vmem:[%s5353] sm:$0xff]
    %v5355 = vld [vmem:[%s5353 + $0x8] sm:$0xff]
    %v5356 = vld [vmem:[%s5353 + $0x10] sm:$0xff]
    %v5357 = vld [vmem:[%s5353 + $0x18] sm:$0xff]
    %v5358 = vld [vmem:[%s5353 + $0x20] sm:$0xff]
    %v5359 = vld [vmem:[%s5353 + $0x28] sm:$0xff]
    %v5360 = vld [vmem:[%s5353 + $0x30] sm:$0xff]
    %v5361 = vld [vmem:[%s5353 + $0x38] sm:$0xff]
    %v5362 = vperm.slane %v40, 5
    %v5364 = vsel %vm90, %v5351, 0
    %v5367 = vsel %vm90, %v5352, 0
    %5369 = vmatpush.msra.mxu0 0.0
    %5370 = vmatpush.msra.mxu0 0.0
    %5371 = vmatpush.msra.mxu0 0.0
    %5372 = vmatpush.msra.mxu0 0.0
    %5373 = vmatpush.msra.mxu0 0.0
    %5374 = vmatpush.msra.mxu0 0.0
    %5375 = vmatpush.msra.mxu0 0.0
    %5376 = vmatpush.msra.mxu0 0.0
    %5377 = vmatpush.msra.mxu0 %v5361
    %5378 = vmatpush.msra.mxu0 %v5360
    %5379 = vmatpush.msra.mxu0 %v5359
    %5380 = vmatpush.msra.mxu0 %v5358
    %5381 = vmatpush.msra.mxu0 %v5357
    %5382 = vmatpush.msra.mxu0 %v5356
    %5383 = vmatpush.msra.mxu0 %v5355
    %5384 = vmatpush.msra.mxu0 %v5354
    %5385 = vmatmul.f32.gmra.mxu0 %v5364
    %v5386 = vpop.f32.mrf.mxu0
    %v5387 = vadd.f32 %v5362, %v5386
    %5388 = vmatmul.f32.gmra.mxu0 %v5367
    %v5389 = vpop.f32.mrf.mxu0
    %v5390 = vadd.f32 %v5362, %v5389
    %5391 = vdwg.mxu0
    %v5392 = vadd.f32 %v5314, %v5387
    %v5393 = vadd.f32 %v5315, %v5390
    %v5394 = vsel %vm138, %v5392, 0.0
    %5395 = vadd.xlane.f32.xlu0 %v5394
    %v5396 = vpop.xlane.xlu0 %5395
    %v5397 = vsel %vm138, %v5393, 0.0
    %5398 = vadd.xlane.f32.xlu0 %v5397
    %v5399 = vpop.xlane.xlu0 %5398
    %v5400 = vmul.f32 %v5396, %v894
    %v5401 = vmul.f32 %v5399, %v894
    %v5402 = vsub.f32 %v5392, %v5400
    %v5403 = vsub.f32 %v5393, %v5401
    %v5404 = vmul.f32 %v5402, %v5402
    %v5405 = vmul.f32 %v5403, %v5403
    %v5406 = vsel %vm138, %v5404, 0.0
    %5407 = vadd.xlane.f32.xlu0 %v5406
    %v5408 = vpop.xlane.xlu0 %5407
    %v5409 = vsel %vm138, %v5405, 0.0
    %5410 = vadd.xlane.f32.xlu0 %v5409
    %v5411 = vpop.xlane.xlu0 %5410
    %v5412 = vmul.f32 %v5408, %v894
    %v5413 = vmul.f32 %v5411, %v894
    %v5414 = vadd.f32 %v5412, 1e-05
    %v5415 = vadd.f32 %v5413, 1e-05
    %v5416 = vrsqrt.pop %v5414
    %v5417 = vmul.f32 %v5416, %v5414
    %v5418 = vmul.f32 %v5417, %v5416
    %v5419 = vmul.f32 0.5, %v5418
    %v5420 = vsub.f32 1.5, %v5419
    %v5421 = vmul.f32 %v5416, %v5420
    %vm5422 = vweird.f32 %v5414
    %vm5423 = vweird.f32 %v5416
    %vm5424 = vmor %vm5422, %vm5423
    %v5425 = vsel %vm5424, %v5416, %v5421
    %v5426 = vrsqrt.pop %v5415
    %v5427 = vmul.f32 %v5426, %v5415
    %v5428 = vmul.f32 %v5427, %v5426
    %v5429 = vmul.f32 0.5, %v5428
    %v5430 = vsub.f32 1.5, %v5429
    %v5431 = vmul.f32 %v5426, %v5430
    %vm5432 = vweird.f32 %v5415
    %vm5433 = vweird.f32 %v5426
    %vm5434 = vmor %vm5432, %vm5433
    %v5435 = vsel %vm5434, %v5426, %v5431
    %v5436 = vmul.f32 %v5402, %v5425
    %v5437 = vmul.f32 %v5403, %v5435
    %v5438 = vperm.slane %v40, 6
    %v5439 = vmul.f32 %v5436, %v5438
    %v5440 = vmul.f32 %v5437, %v5438
    %v5441 = vperm.slane %v40, 7
    %v5442 = vadd.f32 %v5439, %v5441
    %v5443 = vadd.f32 %v5440, %v5441
    %s5444 = scalar_lea.vmem [#allocation2], 64
    %v5445 = vld [vmem:[%s5444] sm:$0xff]
    %v5446 = vld [vmem:[%s5444 + $0x8] sm:$0xff]
    %v5447 = vld [vmem:[%s5444 + $0x10] sm:$0xff]
    %v5448 = vld [vmem:[%s5444 + $0x18] sm:$0xff]
    %v5450 = vsel %vm138, %v5442, 0
    %v5453 = vsel %vm138, %v5443, 0
    %5455 = vmatpush.msra.mxu0 0.0
    %5456 = vmatpush.msra.mxu0 0.0
    %5457 = vmatpush.msra.mxu0 0.0
    %5458 = vmatpush.msra.mxu0 0.0
    %5459 = vmatpush.msra.mxu0 0.0
    %5460 = vmatpush.msra.mxu0 0.0
    %5461 = vmatpush.msra.mxu0 0.0
    %5462 = vmatpush.msra.mxu0 0.0
    %5463 = vmatpush.msra.mxu0 0.0
    %5464 = vmatpush.msra.mxu0 0.0
    %5465 = vmatpush.msra.mxu0 0.0
    %5466 = vmatpush.msra.mxu0 0.0
    %5467 = vmatpush.msra.mxu0 %v5448
    %5468 = vmatpush.msra.mxu0 %v5447
    %5469 = vmatpush.msra.mxu0 %v5446
    %5470 = vmatpush.msra.mxu0 %v5445
    %5471 = vmatmul.f32.gmra.mxu0 %v5450
    %v5472 = vpop.f32.mrf.mxu0
    %v5473 = vadd.f32 0.0, %v5472
    %5474 = vmatmul.f32.gmra.mxu0 %v5453
    %v5475 = vpop.f32.mrf.mxu0
    %v5476 = vadd.f32 0.0, %v5475
    %5477 = vdwg.mxu0
    %5478 = vst [vmem:[%s5] sm:$0xff] %v5473
    %5479 = vst [vmem:[%s5 + $0x8] sm:$0xff] %v5476
    // Predicated region
    $region26: #{transformer_forward.1} parent=1 // pred_check
      _
    $region27: #{transformer_forward.1} parent=1 // pred_check_branch
      %5481 = sbr.rel (0) target = $region29
    $region28: #{transformer_forward.1} parent=1 // pred_region
      _
    $region29: #{transformer_forward.1} parent=1 // pred_fallthru
      _
    // Predicated region
    $region30: #{transformer_forward.1} parent=1 // pred_check
      _
    $region31: #{transformer_forward.1} parent=1 // pred_check_branch
      %5483 = sbr.rel (0) target = $region33
    $region32: #{transformer_forward.1} parent=1 // pred_region
      _
    $region33: #{transformer_forward.1} parent=1 // pred_fallthru
      _
    %5484 = vsyncpa [#allocation3], 1

</llo_original>
